<compile_context>
chip_gen: v7x
topology: tpu7x:2x2x1
jax: 0.10.0
libtpu: 0.0.40
codegen_flags: <defaults>
</compile_context>

<pallas_src>
import functools

import numpy as np
import jax
import jax.numpy as jnp
from jax.experimental import pallas as pl
from jax.experimental.pallas import tpu as pltpu


_VMEM_LIMIT = 32 * 1024 * 1024  # explicit, plenty of headroom on v5e/v6e/v7x


# ----------------------------------------------------------------------------
# Pallas kernels: fused matmul(+matmul) + folded-BN shift + SiLU
# ----------------------------------------------------------------------------
def _mm_silu_kernel(a_ref, w_ref, shift_ref, o_ref):
    y = jnp.dot(a_ref[...], w_ref[...], preferred_element_type=jnp.float32)
    y = y + shift_ref[...]
    o_ref[...] = y * jax.nn.sigmoid(y)          # SiLU in f32


def _mm2_silu_kernel(a1_ref, a2_ref, w1_ref, w2_ref, shift_ref, o_ref):
    # split-K: concat([A1, A2]) @ [[W1],[W2]]  ==  A1@W1 + A2@W2
    y = jnp.dot(a1_ref[...], w1_ref[...], preferred_element_type=jnp.float32)
    y = y + jnp.dot(a2_ref[...], w2_ref[...], preferred_element_type=jnp.float32)
    y = y + shift_ref[...]
    o_ref[...] = y * jax.nn.sigmoid(y)


def _pad_rows(A, Mp):
    return A if A.shape[0] == Mp else jnp.pad(A, ((0, Mp - A.shape[0]), (0, 0)))


def matmul_silu(A, W, shift):
    """SiLU((M,K) @ (K,N) + shift). Single grid-less pallas_call."""
    M = A.shape[0]
    N = W.shape[1]
    Mp = max(8, ((M + 7) // 8) * 8)             # only the M=4 (2x2) calls pad
    out = pl.pallas_call(
        _mm_silu_kernel,
        out_shape=jax.ShapeDtypeStruct((Mp, N), jnp.float32),
        compiler_params=pltpu.CompilerParams(vmem_limit_bytes=_VMEM_LIMIT),
    )(_pad_rows(A, Mp).astype(jnp.bfloat16), W,
      shift.reshape(1, N).astype(jnp.float32))
    return out if Mp == M else out[:M]


def matmul2_silu(A1, A2, W1, W2, shift):
    """SiLU(A1@W1 + A2@W2 + shift) — the concat([A1,A2],K) matmul, fused."""
    M = A1.shape[0]
    N = W1.shape[1]
    Mp = max(8, ((M + 7) // 8) * 8)
    out = pl.pallas_call(
        _mm2_silu_kernel,
        out_shape=jax.ShapeDtypeStruct((Mp, N), jnp.float32),
        compiler_params=pltpu.CompilerParams(vmem_limit_bytes=_VMEM_LIMIT),
    )(_pad_rows(A1, Mp).astype(jnp.bfloat16),
      _pad_rows(A2, Mp).astype(jnp.bfloat16),
      W1, W2, shift.reshape(1, N).astype(jnp.float32))
    return out if Mp == M else out[:M]


# Pure-JAX references of the exact same math (bf16 in, f32 accumulate).
def matmul_silu_ref(A, W, shift):
    y = jnp.dot(A.astype(jnp.bfloat16), W,
                preferred_element_type=jnp.float32) + shift.reshape(1, -1)
    return y * jax.nn.sigmoid(y)


def matmul2_silu_ref(A1, A2, W1, W2, shift):
    y = (jnp.dot(A1.astype(jnp.bfloat16), W1, preferred_element_type=jnp.float32)
         + jnp.dot(A2.astype(jnp.bfloat16), W2, preferred_element_type=jnp.float32)
         + shift.reshape(1, -1))
    return y * jax.nn.sigmoid(y)


# ----------------------------------------------------------------------------
# Parameter construction (Conv2d + eval-mode BatchNorm2d folded, SiLU)
# ----------------------------------------------------------------------------
def _init_conv_w(key, k, c1, c2):
    return jax.random.normal(key, (k, k, c1, c2), jnp.float32) / np.sqrt(k * k * c1)


def _bn_params(key, c2):
    kg, kb = jax.random.split(key)
    gamma = 1.0 + 0.1 * jax.random.normal(kg, (c2,), jnp.float32)
    beta = 0.1 * jax.random.normal(kb, (c2,), jnp.float32)
    mean = jnp.zeros((c2,), jnp.float32)
    var = jnp.ones((c2,), jnp.float32)
    eps = 1e-3
    scale = gamma / jnp.sqrt(var + eps)
    shift = beta - mean * scale
    return scale, shift


def _conv_w_shift(key, k, c1, c2):
    """Folded weight (k*k*c1, c2) in (di,dj,ci) row order, and BN shift (c2,)."""
    kw, kbn = jax.random.split(key)
    w = _init_conv_w(kw, k, c1, c2)
    scale, shift = _bn_params(kbn, c2)
    w = (w * scale).reshape(k * k * c1, c2)      # fold BN scale into W
    return w, shift


def make_conv(key, c1, c2, k=1, s=1):
    """Conv2d(c1,c2,k,s,pad=k//2,bias=False) + BatchNorm2d(eval) + SiLU."""
    w, shift = _conv_w_shift(key, k, c1, c2)
    return dict(w=w.astype(jnp.bfloat16), shift=shift, k=k, s=s)


def make_c3(key, c1a, c1b, c2):
    """CSP3Conv(c1a+c1b, c2, n=1, shortcut=False); the block input arrives as
    two tensors (xa, xb) whose channel-concat is the torch input."""
    c_ = c2 // 2                 # expansion e = 0.5
    cp = max(c_, 128)            # lane-padded bottleneck width (c_=64 -> 128)
    c1 = c1a + c1b
    keys = jax.random.split(key, 5)

    # C3 cv1 & cv2 (both 1x1, c1 -> c_): fused along N, split along K.
    w_cv1, sh_cv1 = _conv_w_shift(keys[0], 1, c1, c_)
    w_cv2, sh_cv2 = _conv_w_shift(keys[1], 1, c1, c_)
    w12 = jnp.concatenate([w_cv1, w_cv2], axis=1)             # (c1, 2c_)
    sh12 = jnp.concatenate([sh_cv1, sh_cv2], axis=0)          # (2c_,)
    w12_a, w12_b = w12[:c1a], w12[c1a:]

    # Bottleneck cv1: 1x1 (c_ -> c_), output zero-padded to cp lanes.
    w_b1, sh_b1 = _conv_w_shift(keys[3], 1, c_, c_)
    w_b1 = jnp.pad(w_b1, ((0, 0), (0, cp - c_)))              # (c_, cp)
    sh_b1 = jnp.pad(sh_b1, (0, cp - c_))                      # SiLU(0)=0 on pad

    # Bottleneck cv2: 3x3 (c_ -> c_), in/out zero-padded to cp.
    w_b2, sh_b2 = _conv_w_shift(keys[4], 3, c_, c_)           # (9*c_, c_)
    w_b2 = w_b2.reshape(9, c_, c_)
    w_b2 = jnp.pad(w_b2, ((0, 0), (0, cp - c_), (0, cp - c_))).reshape(9 * cp, cp)
    sh_b2 = jnp.pad(sh_b2, (0, cp - c_))

    # cv3: 1x1 (2c_ -> c2); split along K into the y1 block (padded to cp rows,
    # zero rows absorb the bottleneck's zero-padded channels) and the y2 block.
    w_cv3, sh_cv3 = _conv_w_shift(keys[2], 1, 2 * c_, c2)
    w3_a = jnp.pad(w_cv3[:c_], ((0, cp - c_), (0, 0)))        # (cp, c2)
    w3_b = w_cv3[c_:]                                         # (c_, c2)

    bf = lambda w: w.astype(jnp.bfloat16)
    return dict(
        c_=c_, cp=cp,
        w12_a=bf(w12_a), w12_b=bf(w12_b), sh12=sh12,
        w_b1=bf(w_b1), sh_b1=sh_b1,
        w_b2=bf(w_b2), sh_b2=sh_b2,
        w3_a=bf(w3_a), w3_b=bf(w3_b), sh_cv3=sh_cv3,
    )


# ----------------------------------------------------------------------------
# Forward building blocks (glue is plain JAX fused under jit; matmuls = Pallas)
# ----------------------------------------------------------------------------
def _im2col(x, k, s):
    """x: (B,H,W,C) NHWC -> (B*Ho*Wo, k*k*C) in (di,dj,c) order; pad = k//2."""
    B, H, W, C = x.shape
    pad = k // 2
    xp = jnp.pad(x, ((0, 0), (pad, pad), (pad, pad), (0, 0)))
    Ho = (H + 2 * pad - k) // s + 1
    Wo = (W + 2 * pad - k) // s + 1
    cols = [xp[:, di:di + s * Ho:s, dj:dj + s * Wo:s, :]
            for di in range(k) for dj in range(k)]
    A = jnp.concatenate(cols, axis=-1)
    return A.reshape(B * Ho * Wo, k * k * C), (B, Ho, Wo)


def conv_fwd(p, x, mm):
    B, H, W, C = x.shape
    k, s = p["k"], p["s"]
    if k == 1 and s == 1:
        A, (Bo, Ho, Wo) = x.reshape(B * H * W, C), (B, H, W)
    else:
        A, (Bo, Ho, Wo) = _im2col(x, k, s)
    y = mm(A, p["w"], p["shift"])
    return y.reshape(Bo, Ho, Wo, -1)


def c3_fwd(p, xa, xb, mm, mm2):
    """C3 block whose torch input is cat([xa, xb], channel)."""
    B, H, W, _ = xa.shape
    M = B * H * W
    a1 = xa.reshape(M, -1)
    a2 = xb.reshape(M, -1)
    c_, cp = p["c_"], p["cp"]

    # fused cv1 | cv2 (1x1) over the virtual concat input
    y12 = mm2(a1, a2, p["w12_a"], p["w12_b"], p["sh12"])       # (M, 2c_)
    y1 = y12[:, :c_]
    y2 = y12[:, c_:]

    # bottleneck (n=1, shortcut=False): 1x1 then 3x3, lane-padded to cp
    h = mm(y1, p["w_b1"], p["sh_b1"])                          # (M, cp)
    h = h.reshape(B, H, W, cp)
    A3, _ = _im2col(h, 3, 1)                                   # (M, 9*cp)
    y1f = mm(A3, p["w_b2"], p["sh_b2"])                        # (M, cp)

    # cv3 over cat([y1f, y2]) as a split-K dual matmul
    out = mm2(y1f, y2, p["w3_a"], p["w3_b"], p["sh_cv3"])      # (M, c2)
    return out.reshape(B, H, W, -1)


def upsample2x(x):  # nearest-neighbor, NHWC
    return jnp.repeat(jnp.repeat(x, 2, axis=1), 2, axis=2)


# ----------------------------------------------------------------------------
# YoloV5Neck
# ----------------------------------------------------------------------------
def make_neck_params(key):
    ks = jax.random.split(key, 8)
    return dict(
        c1_0=make_conv(ks[0], 512, 256, 1, 1),
        c1_1=make_c3(ks[1], 256, 256, 256),    # input = cat([x3_up, x2])
        c2_0=make_conv(ks[2], 256, 128, 1, 1),
        c2_1=make_c3(ks[3], 128, 128, 128),    # input = cat([x2_up, x1])
        c3_0=make_conv(ks[4], 128, 128, 3, 2),
        c3_1=make_c3(ks[5], 128, 128, 256),    # input = cat([x1_down, x2])
        c4_0=make_conv(ks[6], 256, 256, 3, 2),
        c4_1=make_c3(ks[7], 256, 256, 512),    # input = cat([x2_down, x3])
        # up_3 of the PyTorch module is unused in forward(); omitted.
    )


def neck_fwd(params, x1, x2, x3, mm=matmul_silu, mm2=matmul2_silu):
    to_nhwc = lambda t: jnp.transpose(t, (0, 2, 3, 1))
    to_nchw = lambda t: jnp.transpose(t, (0, 3, 1, 2))
    x1, x2, x3 = to_nhwc(x1), to_nhwc(x2), to_nhwc(x3)

    x3 = conv_fwd(params["c1_0"], x3, mm)                 # (B,2,2,256)
    x3_up = upsample2x(x3)                                # (B,4,4,256)
    x2 = c3_fwd(params["c1_1"], x3_up, x2, mm, mm2)       # (B,4,4,256)
    x2 = conv_fwd(params["c2_0"], x2, mm)                 # (B,4,4,128)
    x2_up = upsample2x(x2)                                # (B,8,8,128)
    x1 = c3_fwd(params["c2_1"], x2_up, x1, mm, mm2)       # (B,8,8,128)
    x1_down = conv_fwd(params["c3_0"], x1, mm)            # (B,4,4,128)
    x2 = c3_fwd(params["c3_1"], x1_down, x2, mm, mm2)     # (B,4,4,256)
    x2_down = conv_fwd(params["c4_0"], x2, mm)            # (B,2,2,256)
    x3 = c3_fwd(params["c4_1"], x2_down, x3, mm, mm2)     # (B,2,2,512)
    return to_nchw(x1), to_nchw(x2), to_nchw(x3)


# ----------------------------------------------------------------------------
if __name__ == "__main__":
    key = jax.random.PRNGKey(0)
    kp, k1, k2, k3 = jax.random.split(key, 4)
    params = make_neck_params(kp)

    # NCHW inputs; channel counts fixed by the module, small spatial dims.
    x1 = jax.random.normal(k1, (1, 128, 8, 8), jnp.float32)
    x2 = jax.random.normal(k2, (1, 256, 4, 4), jnp.float32)
    x3 = jax.random.normal(k3, (1, 512, 2, 2), jnp.float32)

    # One jitted program for the whole neck (Pallas path) + a jitted reference.
    fwd_pallas = jax.jit(functools.partial(
        neck_fwd, params, mm=matmul_silu, mm2=matmul2_silu))
    fwd_ref = jax.jit(functools.partial(
        neck_fwd, params, mm=matmul_silu_ref, mm2=matmul2_silu_ref))

    o1, o2, o3 = fwd_pallas(x1, x2, x3)
    jax.block_until_ready((o1, o2, o3))

    # sanity: Pallas path matches a pure-JAX reference of the same math
    r1, r2, r3 = fwd_ref(x1, x2, x3)
    jax.block_until_ready((r1, r2, r3))
    np.testing.assert_allclose(np.asarray(o1), np.asarray(r1), rtol=2e-3, atol=2e-3)
    np.testing.assert_allclose(np.asarray(o2), np.asarray(r2), rtol=2e-3, atol=2e-3)
    np.testing.assert_allclose(np.asarray(o3), np.asarray(r3), rtol=2e-3, atol=2e-3)

    assert o1.shape == (1, 128, 8, 8)
    assert o2.shape == (1, 256, 4, 4)
    assert o3.shape == (1, 512, 2, 2)

    print("KERNEL_OK")
</pallas_src>

<mosaic_0001>
module attributes {stable_mosaic.version = 11 : i64} {
  func.func @_mm_silu_kernel(%arg0: memref<8x512xbf16, #tpu.memory_space<vmem>>, %arg1: memref<512x256xbf16, #tpu.memory_space<vmem>>, %arg2: memref<1x256xf32, #tpu.memory_space<vmem>>, %arg3: memref<8x256xf32, #tpu.memory_space<vmem>>) attributes {dimension_semantics = [], scalar_prefetch = 0 : i64, scratch_operands = 0 : i64, tpu.core_type = #tpu.core_type<tc>} {
    %c0 = arith.constant 0 : index
    %c0_0 = arith.constant 0 : index
    %0 = vector.load %arg0[%c0, %c0_0] : memref<8x512xbf16, #tpu.memory_space<vmem>>, vector<8x512xbf16>
    %c0_1 = arith.constant 0 : index
    %c0_2 = arith.constant 0 : index
    %1 = vector.load %arg1[%c0_1, %c0_2] : memref<512x256xbf16, #tpu.memory_space<vmem>>, vector<512x256xbf16>
    %cst = arith.constant dense<0.000000e+00> : vector<8x256xf32>
    %2 = tpu.matmul %0, %1, %cst {dimension_numbers = #tpu.dot_dimension_numbers<[1], [0], [0], [1], [0, 0, 1, 1], [], []>} : vector<8x512xbf16>, vector<512x256xbf16>, vector<8x256xf32> -> vector<8x256xf32>
    %c0_3 = arith.constant 0 : index
    %c0_4 = arith.constant 0 : index
    %3 = vector.load %arg2[%c0_3, %c0_4] : memref<1x256xf32, #tpu.memory_space<vmem>>, vector<1x256xf32>
    %4 = vector.broadcast %3 : vector<1x256xf32> to vector<8x256xf32>
    %5 = arith.addf %2, %4 : vector<8x256xf32>
    %6 = arith.negf %5 : vector<8x256xf32>
    %7 = math.exp %6 : vector<8x256xf32>
    %cst_5 = arith.constant 1.000000e+00 : f32
    %8 = vector.broadcast %cst_5 : f32 to vector<8x256xf32>
    %9 = arith.addf %8, %7 : vector<8x256xf32>
    %10 = arith.divf %8, %9 : vector<8x256xf32>
    %11 = arith.mulf %5, %10 : vector<8x256xf32>
    %c0_6 = arith.constant 0 : index
    %c0_7 = arith.constant 0 : index
    %12 = vector.load %arg3[%c0_6, %c0_7] : memref<8x256xf32, #tpu.memory_space<vmem>>, vector<8x256xf32>
    tpu.vector_store %arg3[%c0_6, %c0_7], %11 {strides = array<i32>} : memref<8x256xf32, #tpu.memory_space<vmem>>, vector<8x256xf32>,
    return
  }
}

module attributes {stable_mosaic.version = 11 : i64} {
  func.func @_mm_silu_kernel(%arg0: memref<16x128xbf16, #tpu.memory_space<vmem>>, %arg1: memref<128x128xbf16, #tpu.memory_space<vmem>>, %arg2: memref<1x128xf32, #tpu.memory_space<vmem>>, %arg3: memref<16x128xf32, #tpu.memory_space<vmem>>) attributes {dimension_semantics = [], scalar_prefetch = 0 : i64, scratch_operands = 0 : i64, tpu.core_type = #tpu.core_type<tc>} {
    %c0 = arith.constant 0 : index
    %c0_0 = arith.constant 0 : index
    %0 = vector.load %arg0[%c0, %c0_0] : memref<16x128xbf16, #tpu.memory_space<vmem>>, vector<16x128xbf16>
    %c0_1 = arith.constant 0 : index
    %c0_2 = arith.constant 0 : index
    %1 = vector.load %arg1[%c0_1, %c0_2] : memref<128x128xbf16, #tpu.memory_space<vmem>>, vector<128x128xbf16>
    %cst = arith.constant dense<0.000000e+00> : vector<16x128xf32>
    %2 = tpu.matmul %0, %1, %cst {dimension_numbers = #tpu.dot_dimension_numbers<[1], [0], [0], [1], [0, 0, 1, 1], [], []>} : vector<16x128xbf16>, vector<128x128xbf16>, vector<16x128xf32> -> vector<16x128xf32>
    %c0_3 = arith.constant 0 : index
    %c0_4 = arith.constant 0 : index
    %3 = vector.load %arg2[%c0_3, %c0_4] : memref<1x128xf32, #tpu.memory_space<vmem>>, vector<1x128xf32>
    %4 = vector.broadcast %3 : vector<1x128xf32> to vector<16x128xf32>
    %5 = arith.addf %2, %4 : vector<16x128xf32>
    %6 = arith.negf %5 : vector<16x128xf32>
    %7 = math.exp %6 : vector<16x128xf32>
    %cst_5 = arith.constant 1.000000e+00 : f32
    %8 = vector.broadcast %cst_5 : f32 to vector<16x128xf32>
    %9 = arith.addf %8, %7 : vector<16x128xf32>
    %10 = arith.divf %8, %9 : vector<16x128xf32>
    %11 = arith.mulf %5, %10 : vector<16x128xf32>
    %c0_6 = arith.constant 0 : index
    %c0_7 = arith.constant 0 : index
    %12 = vector.load %arg3[%c0_6, %c0_7] : memref<16x128xf32, #tpu.memory_space<vmem>>, vector<16x128xf32>
    tpu.vector_store %arg3[%c0_6, %c0_7], %11 {strides = array<i32>} : memref<16x128xf32, #tpu.memory_space<vmem>>, vector<16x128xf32>,
    return
  }
}

module attributes {stable_mosaic.version = 11 : i64} {
  func.func @_mm2_silu_kernel(%arg0: memref<16x256xbf16, #tpu.memory_space<vmem>>, %arg1: memref<16x256xbf16, #tpu.memory_space<vmem>>, %arg2: memref<256x256xbf16, #tpu.memory_space<vmem>>, %arg3: memref<256x256xbf16, #tpu.memory_space<vmem>>, %arg4: memref<1x256xf32, #tpu.memory_space<vmem>>, %arg5: memref<16x256xf32, #tpu.memory_space<vmem>>) attributes {dimension_semantics = [], scalar_prefetch = 0 : i64, scratch_operands = 0 : i64, tpu.core_type = #tpu.core_type<tc>} {
    %c0 = arith.constant 0 : index
    %c0_0 = arith.constant 0 : index
    %0 = vector.load %arg0[%c0, %c0_0] : memref<16x256xbf16, #tpu.memory_space<vmem>>, vector<16x256xbf16>
    %c0_1 = arith.constant 0 : index
    %c0_2 = arith.constant 0 : index
    %1 = vector.load %arg2[%c0_1, %c0_2] : memref<256x256xbf16, #tpu.memory_space<vmem>>, vector<256x256xbf16>
    %cst = arith.constant dense<0.000000e+00> : vector<16x256xf32>
    %2 = tpu.matmul %0, %1, %cst {dimension_numbers = #tpu.dot_dimension_numbers<[1], [0], [0], [1], [0, 0, 1, 1], [], []>} : vector<16x256xbf16>, vector<256x256xbf16>, vector<16x256xf32> -> vector<16x256xf32>
    %c0_3 = arith.constant 0 : index
    %c0_4 = arith.constant 0 : index
    %3 = vector.load %arg1[%c0_3, %c0_4] : memref<16x256xbf16, #tpu.memory_space<vmem>>, vector<16x256xbf16>
    %c0_5 = arith.constant 0 : index
    %c0_6 = arith.constant 0 : index
    %4 = vector.load %arg3[%c0_5, %c0_6] : memref<256x256xbf16, #tpu.memory_space<vmem>>, vector<256x256xbf16>
    %cst_7 = arith.constant dense<0.000000e+00> : vector<16x256xf32>
    %5 = tpu.matmul %3, %4, %cst_7 {dimension_numbers = #tpu.dot_dimension_numbers<[1], [0], [0], [1], [0, 0, 1, 1], [], []>} : vector<16x256xbf16>, vector<256x256xbf16>, vector<16x256xf32> -> vector<16x256xf32>
    %6 = arith.addf %2, %5 : vector<16x256xf32>
    %c0_8 = arith.constant 0 : index
    %c0_9 = arith.constant 0 : index
    %7 = vector.load %arg4[%c0_8, %c0_9] : memref<1x256xf32, #tpu.memory_space<vmem>>, vector<1x256xf32>
    %8 = vector.broadcast %7 : vector<1x256xf32> to vector<16x256xf32>
    %9 = arith.addf %6, %8 : vector<16x256xf32>
    %10 = arith.negf %9 : vector<16x256xf32>
    %11 = math.exp %10 : vector<16x256xf32>
    %cst_10 = arith.constant 1.000000e+00 : f32
    %12 = vector.broadcast %cst_10 : f32 to vector<16x256xf32>
    %13 = arith.addf %12, %11 : vector<16x256xf32>
    %14 = arith.divf %12, %13 : vector<16x256xf32>
    %15 = arith.mulf %9, %14 : vector<16x256xf32>
    %c0_11 = arith.constant 0 : index
    %c0_12 = arith.constant 0 : index
    %16 = vector.load %arg5[%c0_11, %c0_12] : memref<16x256xf32, #tpu.memory_space<vmem>>, vector<16x256xf32>
    tpu.vector_store %arg5[%c0_11, %c0_12], %15 {strides = array<i32>} : memref<16x256xf32, #tpu.memory_space<vmem>>, vector<16x256xf32>,
    return
  }
}

module attributes {stable_mosaic.version = 11 : i64} {
  func.func @_mm_silu_kernel(%arg0: memref<16x1152xbf16, #tpu.memory_space<vmem>>, %arg1: memref<1152x128xbf16, #tpu.memory_space<vmem>>, %arg2: memref<1x128xf32, #tpu.memory_space<vmem>>, %arg3: memref<16x128xf32, #tpu.memory_space<vmem>>) attributes {dimension_semantics = [], scalar_prefetch = 0 : i64, scratch_operands = 0 : i64, tpu.core_type = #tpu.core_type<tc>} {
    %c0 = arith.constant 0 : index
    %c0_0 = arith.constant 0 : index
    %0 = vector.load %arg0[%c0, %c0_0] : memref<16x1152xbf16, #tpu.memory_space<vmem>>, vector<16x1152xbf16>
    %c0_1 = arith.constant 0 : index
    %c0_2 = arith.constant 0 : index
    %1 = vector.load %arg1[%c0_1, %c0_2] : memref<1152x128xbf16, #tpu.memory_space<vmem>>, vector<1152x128xbf16>
    %cst = arith.constant dense<0.000000e+00> : vector<16x128xf32>
    %2 = tpu.matmul %0, %1, %cst {dimension_numbers = #tpu.dot_dimension_numbers<[1], [0], [0], [1], [0, 0, 1, 1], [], []>} : vector<16x1152xbf16>, vector<1152x128xbf16>, vector<16x128xf32> -> vector<16x128xf32>
    %c0_3 = arith.constant 0 : index
    %c0_4 = arith.constant 0 : index
    %3 = vector.load %arg2[%c0_3, %c0_4] : memref<1x128xf32, #tpu.memory_space<vmem>>, vector<1x128xf32>
    %4 = vector.broadcast %3 : vector<1x128xf32> to vector<16x128xf32>
    %5 = arith.addf %2, %4 : vector<16x128xf32>
    %6 = arith.negf %5 : vector<16x128xf32>
    %7 = math.exp %6 : vector<16x128xf32>
    %cst_5 = arith.constant 1.000000e+00 : f32
    %8 = vector.broadcast %cst_5 : f32 to vector<16x128xf32>
    %9 = arith.addf %8, %7 : vector<16x128xf32>
    %10 = arith.divf %8, %9 : vector<16x128xf32>
    %11 = arith.mulf %5, %10 : vector<16x128xf32>
    %c0_6 = arith.constant 0 : index
    %c0_7 = arith.constant 0 : index
    %12 = vector.load %arg3[%c0_6, %c0_7] : memref<16x128xf32, #tpu.memory_space<vmem>>, vector<16x128xf32>
    tpu.vector_store %arg3[%c0_6, %c0_7], %11 {strides = array<i32>} : memref<16x128xf32, #tpu.memory_space<vmem>>, vector<16x128xf32>,
    return
  }
}

module attributes {stable_mosaic.version = 11 : i64} {
  func.func @_mm_silu_kernel(%arg0: memref<16x256xbf16, #tpu.memory_space<vmem>>, %arg1: memref<256x128xbf16, #tpu.memory_space<vmem>>, %arg2: memref<1x128xf32, #tpu.memory_space<vmem>>, %arg3: memref<16x128xf32, #tpu.memory_space<vmem>>) attributes {dimension_semantics = [], scalar_prefetch = 0 : i64, scratch_operands = 0 : i64, tpu.core_type = #tpu.core_type<tc>} {
    %c0 = arith.constant 0 : index
    %c0_0 = arith.constant 0 : index
    %0 = vector.load %arg0[%c0, %c0_0] : memref<16x256xbf16, #tpu.memory_space<vmem>>, vector<16x256xbf16>
    %c0_1 = arith.constant 0 : index
    %c0_2 = arith.constant 0 : index
    %1 = vector.load %arg1[%c0_1, %c0_2] : memref<256x128xbf16, #tpu.memory_space<vmem>>, vector<256x128xbf16>
    %cst = arith.constant dense<0.000000e+00> : vector<16x128xf32>
    %2 = tpu.matmul %0, %1, %cst {dimension_numbers = #tpu.dot_dimension_numbers<[1], [0], [0], [1], [0, 0, 1, 1], [], []>} : vector<16x256xbf16>, vector<256x128xbf16>, vector<16x128xf32> -> vector<16x128xf32>
    %c0_3 = arith.constant 0 : index
    %c0_4 = arith.constant 0 : index
    %3 = vector.load %arg2[%c0_3, %c0_4] : memref<1x128xf32, #tpu.memory_space<vmem>>, vector<1x128xf32>
    %4 = vector.broadcast %3 : vector<1x128xf32> to vector<16x128xf32>
    %5 = arith.addf %2, %4 : vector<16x128xf32>
    %6 = arith.negf %5 : vector<16x128xf32>
    %7 = math.exp %6 : vector<16x128xf32>
    %cst_5 = arith.constant 1.000000e+00 : f32
    %8 = vector.broadcast %cst_5 : f32 to vector<16x128xf32>
    %9 = arith.addf %8, %7 : vector<16x128xf32>
    %10 = arith.divf %8, %9 : vector<16x128xf32>
    %11 = arith.mulf %5, %10 : vector<16x128xf32>
    %c0_6 = arith.constant 0 : index
    %c0_7 = arith.constant 0 : index
    %12 = vector.load %arg3[%c0_6, %c0_7] : memref<16x128xf32, #tpu.memory_space<vmem>>, vector<16x128xf32>
    tpu.vector_store %arg3[%c0_6, %c0_7], %11 {strides = array<i32>} : memref<16x128xf32, #tpu.memory_space<vmem>>, vector<16x128xf32>,
    return
  }
}

module attributes {stable_mosaic.version = 11 : i64} {
  func.func @_mm2_silu_kernel(%arg0: memref<16x128xbf16, #tpu.memory_space<vmem>>, %arg1: memref<16x128xbf16, #tpu.memory_space<vmem>>, %arg2: memref<128x256xbf16, #tpu.memory_space<vmem>>, %arg3: memref<128x256xbf16, #tpu.memory_space<vmem>>, %arg4: memref<1x256xf32, #tpu.memory_space<vmem>>, %arg5: memref<16x256xf32, #tpu.memory_space<vmem>>) attributes {dimension_semantics = [], scalar_prefetch = 0 : i64, scratch_operands = 0 : i64, tpu.core_type = #tpu.core_type<tc>} {
    %c0 = arith.constant 0 : index
    %c0_0 = arith.constant 0 : index
    %0 = vector.load %arg0[%c0, %c0_0] : memref<16x128xbf16, #tpu.memory_space<vmem>>, vector<16x128xbf16>
    %c0_1 = arith.constant 0 : index
    %c0_2 = arith.constant 0 : index
    %1 = vector.load %arg2[%c0_1, %c0_2] : memref<128x256xbf16, #tpu.memory_space<vmem>>, vector<128x256xbf16>
    %cst = arith.constant dense<0.000000e+00> : vector<16x256xf32>
    %2 = tpu.matmul %0, %1, %cst {dimension_numbers = #tpu.dot_dimension_numbers<[1], [0], [0], [1], [0, 0, 1, 1], [], []>} : vector<16x128xbf16>, vector<128x256xbf16>, vector<16x256xf32> -> vector<16x256xf32>
    %c0_3 = arith.constant 0 : index
    %c0_4 = arith.constant 0 : index
    %3 = vector.load %arg1[%c0_3, %c0_4] : memref<16x128xbf16, #tpu.memory_space<vmem>>, vector<16x128xbf16>
    %c0_5 = arith.constant 0 : index
    %c0_6 = arith.constant 0 : index
    %4 = vector.load %arg3[%c0_5, %c0_6] : memref<128x256xbf16, #tpu.memory_space<vmem>>, vector<128x256xbf16>
    %cst_7 = arith.constant dense<0.000000e+00> : vector<16x256xf32>
    %5 = tpu.matmul %3, %4, %cst_7 {dimension_numbers = #tpu.dot_dimension_numbers<[1], [0], [0], [1], [0, 0, 1, 1], [], []>} : vector<16x128xbf16>, vector<128x256xbf16>, vector<16x256xf32> -> vector<16x256xf32>
    %6 = arith.addf %2, %5 : vector<16x256xf32>
    %c0_8 = arith.constant 0 : index
    %c0_9 = arith.constant 0 : index
    %7 = vector.load %arg4[%c0_8, %c0_9] : memref<1x256xf32, #tpu.memory_space<vmem>>, vector<1x256xf32>
    %8 = vector.broadcast %7 : vector<1x256xf32> to vector<16x256xf32>
    %9 = arith.addf %6, %8 : vector<16x256xf32>
    %10 = arith.negf %9 : vector<16x256xf32>
    %11 = math.exp %10 : vector<16x256xf32>
    %cst_10 = arith.constant 1.000000e+00 : f32
    %12 = vector.broadcast %cst_10 : f32 to vector<16x256xf32>
    %13 = arith.addf %12, %11 : vector<16x256xf32>
    %14 = arith.divf %12, %13 : vector<16x256xf32>
    %15 = arith.mulf %9, %14 : vector<16x256xf32>
    %c0_11 = arith.constant 0 : index
    %c0_12 = arith.constant 0 : index
    %16 = vector.load %arg5[%c0_11, %c0_12] : memref<16x256xf32, #tpu.memory_space<vmem>>, vector<16x256xf32>
    tpu.vector_store %arg5[%c0_11, %c0_12], %15 {strides = array<i32>} : memref<16x256xf32, #tpu.memory_space<vmem>>, vector<16x256xf32>,
    return
  }
}

module attributes {stable_mosaic.version = 11 : i64} {
  func.func @_mm2_silu_kernel(%arg0: memref<64x128xbf16, #tpu.memory_space<vmem>>, %arg1: memref<64x128xbf16, #tpu.memory_space<vmem>>, %arg2: memref<128x128xbf16, #tpu.memory_space<vmem>>, %arg3: memref<128x128xbf16, #tpu.memory_space<vmem>>, %arg4: memref<1x128xf32, #tpu.memory_space<vmem>>, %arg5: memref<64x128xf32, #tpu.memory_space<vmem>>) attributes {dimension_semantics = [], scalar_prefetch = 0 : i64, scratch_operands = 0 : i64, tpu.core_type = #tpu.core_type<tc>} {
    %c0 = arith.constant 0 : index
    %c0_0 = arith.constant 0 : index
    %0 = vector.load %arg0[%c0, %c0_0] : memref<64x128xbf16, #tpu.memory_space<vmem>>, vector<64x128xbf16>
    %c0_1 = arith.constant 0 : index
    %c0_2 = arith.constant 0 : index
    %1 = vector.load %arg2[%c0_1, %c0_2] : memref<128x128xbf16, #tpu.memory_space<vmem>>, vector<128x128xbf16>
    %cst = arith.constant dense<0.000000e+00> : vector<64x128xf32>
    %2 = tpu.matmul %0, %1, %cst {dimension_numbers = #tpu.dot_dimension_numbers<[1], [0], [0], [1], [0, 0, 1, 1], [], []>} : vector<64x128xbf16>, vector<128x128xbf16>, vector<64x128xf32> -> vector<64x128xf32>
    %c0_3 = arith.constant 0 : index
    %c0_4 = arith.constant 0 : index
    %3 = vector.load %arg1[%c0_3, %c0_4] : memref<64x128xbf16, #tpu.memory_space<vmem>>, vector<64x128xbf16>
    %c0_5 = arith.constant 0 : index
    %c0_6 = arith.constant 0 : index
    %4 = vector.load %arg3[%c0_5, %c0_6] : memref<128x128xbf16, #tpu.memory_space<vmem>>, vector<128x128xbf16>
    %cst_7 = arith.constant dense<0.000000e+00> : vector<64x128xf32>
    %5 = tpu.matmul %3, %4, %cst_7 {dimension_numbers = #tpu.dot_dimension_numbers<[1], [0], [0], [1], [0, 0, 1, 1], [], []>} : vector<64x128xbf16>, vector<128x128xbf16>, vector<64x128xf32> -> vector<64x128xf32>
    %6 = arith.addf %2, %5 : vector<64x128xf32>
    %c0_8 = arith.constant 0 : index
    %c0_9 = arith.constant 0 : index
    %7 = vector.load %arg4[%c0_8, %c0_9] : memref<1x128xf32, #tpu.memory_space<vmem>>, vector<1x128xf32>
    %8 = vector.broadcast %7 : vector<1x128xf32> to vector<64x128xf32>
    %9 = arith.addf %6, %8 : vector<64x128xf32>
    %10 = arith.negf %9 : vector<64x128xf32>
    %11 = math.exp %10 : vector<64x128xf32>
    %cst_10 = arith.constant 1.000000e+00 : f32
    %12 = vector.broadcast %cst_10 : f32 to vector<64x128xf32>
    %13 = arith.addf %12, %11 : vector<64x128xf32>
    %14 = arith.divf %12, %13 : vector<64x128xf32>
    %15 = arith.mulf %9, %14 : vector<64x128xf32>
    %c0_11 = arith.constant 0 : index
    %c0_12 = arith.constant 0 : index
    %16 = vector.load %arg5[%c0_11, %c0_12] : memref<64x128xf32, #tpu.memory_space<vmem>>, vector<64x128xf32>
    tpu.vector_store %arg5[%c0_11, %c0_12], %15 {strides = array<i32>} : memref<64x128xf32, #tpu.memory_space<vmem>>, vector<64x128xf32>,
    return
  }
}

module attributes {stable_mosaic.version = 11 : i64} {
  func.func @_mm_silu_kernel(%arg0: memref<64x64xbf16, #tpu.memory_space<vmem>>, %arg1: memref<64x128xbf16, #tpu.memory_space<vmem>>, %arg2: memref<1x128xf32, #tpu.memory_space<vmem>>, %arg3: memref<64x128xf32, #tpu.memory_space<vmem>>) attributes {dimension_semantics = [], scalar_prefetch = 0 : i64, scratch_operands = 0 : i64, tpu.core_type = #tpu.core_type<tc>} {
    %c0 = arith.constant 0 : index
    %c0_0 = arith.constant 0 : index
    %0 = vector.load %arg0[%c0, %c0_0] : memref<64x64xbf16, #tpu.memory_space<vmem>>, vector<64x64xbf16>
    %c0_1 = arith.constant 0 : index
    %c0_2 = arith.constant 0 : index
    %1 = vector.load %arg1[%c0_1, %c0_2] : memref<64x128xbf16, #tpu.memory_space<vmem>>, vector<64x128xbf16>
    %cst = arith.constant dense<0.000000e+00> : vector<64x128xf32>
    %2 = tpu.matmul %0, %1, %cst {dimension_numbers = #tpu.dot_dimension_numbers<[1], [0], [0], [1], [0, 0, 1, 1], [], []>} : vector<64x64xbf16>, vector<64x128xbf16>, vector<64x128xf32> -> vector<64x128xf32>
    %c0_3 = arith.constant 0 : index
    %c0_4 = arith.constant 0 : index
    %3 = vector.load %arg2[%c0_3, %c0_4] : memref<1x128xf32, #tpu.memory_space<vmem>>, vector<1x128xf32>
    %4 = vector.broadcast %3 : vector<1x128xf32> to vector<64x128xf32>
    %5 = arith.addf %2, %4 : vector<64x128xf32>
    %6 = arith.negf %5 : vector<64x128xf32>
    %7 = math.exp %6 : vector<64x128xf32>
    %cst_5 = arith.constant 1.000000e+00 : f32
    %8 = vector.broadcast %cst_5 : f32 to vector<64x128xf32>
    %9 = arith.addf %8, %7 : vector<64x128xf32>
    %10 = arith.divf %8, %9 : vector<64x128xf32>
    %11 = arith.mulf %5, %10 : vector<64x128xf32>
    %c0_6 = arith.constant 0 : index
    %c0_7 = arith.constant 0 : index
    %12 = vector.load %arg3[%c0_6, %c0_7] : memref<64x128xf32, #tpu.memory_space<vmem>>, vector<64x128xf32>
    tpu.vector_store %arg3[%c0_6, %c0_7], %11 {strides = array<i32>} : memref<64x128xf32, #tpu.memory_space<vmem>>, vector<64x128xf32>,
    return
  }
}

module attributes {stable_mosaic.version = 11 : i64} {
  func.func @_mm_silu_kernel(%arg0: memref<64x1152xbf16, #tpu.memory_space<vmem>>, %arg1: memref<1152x128xbf16, #tpu.memory_space<vmem>>, %arg2: memref<1x128xf32, #tpu.memory_space<vmem>>, %arg3: memref<64x128xf32, #tpu.memory_space<vmem>>) attributes {dimension_semantics = [], scalar_prefetch = 0 : i64, scratch_operands = 0 : i64, tpu.core_type = #tpu.core_type<tc>} {
    %c0 = arith.constant 0 : index
    %c0_0 = arith.constant 0 : index
    %0 = vector.load %arg0[%c0, %c0_0] : memref<64x1152xbf16, #tpu.memory_space<vmem>>, vector<64x1152xbf16>
    %c0_1 = arith.constant 0 : index
    %c0_2 = arith.constant 0 : index
    %1 = vector.load %arg1[%c0_1, %c0_2] : memref<1152x128xbf16, #tpu.memory_space<vmem>>, vector<1152x128xbf16>
    %cst = arith.constant dense<0.000000e+00> : vector<64x128xf32>
    %2 = tpu.matmul %0, %1, %cst {dimension_numbers = #tpu.dot_dimension_numbers<[1], [0], [0], [1], [0, 0, 1, 1], [], []>} : vector<64x1152xbf16>, vector<1152x128xbf16>, vector<64x128xf32> -> vector<64x128xf32>
    %c0_3 = arith.constant 0 : index
    %c0_4 = arith.constant 0 : index
    %3 = vector.load %arg2[%c0_3, %c0_4] : memref<1x128xf32, #tpu.memory_space<vmem>>, vector<1x128xf32>
    %4 = vector.broadcast %3 : vector<1x128xf32> to vector<64x128xf32>
    %5 = arith.addf %2, %4 : vector<64x128xf32>
    %6 = arith.negf %5 : vector<64x128xf32>
    %7 = math.exp %6 : vector<64x128xf32>
    %cst_5 = arith.constant 1.000000e+00 : f32
    %8 = vector.broadcast %cst_5 : f32 to vector<64x128xf32>
    %9 = arith.addf %8, %7 : vector<64x128xf32>
    %10 = arith.divf %8, %9 : vector<64x128xf32>
    %11 = arith.mulf %5, %10 : vector<64x128xf32>
    %c0_6 = arith.constant 0 : index
    %c0_7 = arith.constant 0 : index
    %12 = vector.load %arg3[%c0_6, %c0_7] : memref<64x128xf32, #tpu.memory_space<vmem>>, vector<64x128xf32>
    tpu.vector_store %arg3[%c0_6, %c0_7], %11 {strides = array<i32>} : memref<64x128xf32, #tpu.memory_space<vmem>>, vector<64x128xf32>,
    return
  }
}

module attributes {stable_mosaic.version = 11 : i64} {
  func.func @_mm2_silu_kernel(%arg0: memref<64x128xbf16, #tpu.memory_space<vmem>>, %arg1: memref<64x64xbf16, #tpu.memory_space<vmem>>, %arg2: memref<128x128xbf16, #tpu.memory_space<vmem>>, %arg3: memref<64x128xbf16, #tpu.memory_space<vmem>>, %arg4: memref<1x128xf32, #tpu.memory_space<vmem>>, %arg5: memref<64x128xf32, #tpu.memory_space<vmem>>) attributes {dimension_semantics = [], scalar_prefetch = 0 : i64, scratch_operands = 0 : i64, tpu.core_type = #tpu.core_type<tc>} {
    %c0 = arith.constant 0 : index
    %c0_0 = arith.constant 0 : index
    %0 = vector.load %arg0[%c0, %c0_0] : memref<64x128xbf16, #tpu.memory_space<vmem>>, vector<64x128xbf16>
    %c0_1 = arith.constant 0 : index
    %c0_2 = arith.constant 0 : index
    %1 = vector.load %arg2[%c0_1, %c0_2] : memref<128x128xbf16, #tpu.memory_space<vmem>>, vector<128x128xbf16>
    %cst = arith.constant dense<0.000000e+00> : vector<64x128xf32>
    %2 = tpu.matmul %0, %1, %cst {dimension_numbers = #tpu.dot_dimension_numbers<[1], [0], [0], [1], [0, 0, 1, 1], [], []>} : vector<64x128xbf16>, vector<128x128xbf16>, vector<64x128xf32> -> vector<64x128xf32>
    %c0_3 = arith.constant 0 : index
    %c0_4 = arith.constant 0 : index
    %3 = vector.load %arg1[%c0_3, %c0_4] : memref<64x64xbf16, #tpu.memory_space<vmem>>, vector<64x64xbf16>
    %c0_5 = arith.constant 0 : index
    %c0_6 = arith.constant 0 : index
    %4 = vector.load %arg3[%c0_5, %c0_6] : memref<64x128xbf16, #tpu.memory_space<vmem>>, vector<64x128xbf16>
    %cst_7 = arith.constant dense<0.000000e+00> : vector<64x128xf32>
    %5 = tpu.matmul %3, %4, %cst_7 {dimension_numbers = #tpu.dot_dimension_numbers<[1], [0], [0], [1], [0, 0, 1, 1], [], []>} : vector<64x64xbf16>, vector<64x128xbf16>, vector<64x128xf32> -> vector<64x128xf32>
    %6 = arith.addf %2, %5 : vector<64x128xf32>
    %c0_8 = arith.constant 0 : index
    %c0_9 = arith.constant 0 : index
    %7 = vector.load %arg4[%c0_8, %c0_9] : memref<1x128xf32, #tpu.memory_space<vmem>>, vector<1x128xf32>
    %8 = vector.broadcast %7 : vector<1x128xf32> to vector<64x128xf32>
    %9 = arith.addf %6, %8 : vector<64x128xf32>
    %10 = arith.negf %9 : vector<64x128xf32>
    %11 = math.exp %10 : vector<64x128xf32>
    %cst_10 = arith.constant 1.000000e+00 : f32
    %12 = vector.broadcast %cst_10 : f32 to vector<64x128xf32>
    %13 = arith.addf %12, %11 : vector<64x128xf32>
    %14 = arith.divf %12, %13 : vector<64x128xf32>
    %15 = arith.mulf %9, %14 : vector<64x128xf32>
    %c0_11 = arith.constant 0 : index
    %c0_12 = arith.constant 0 : index
    %16 = vector.load %arg5[%c0_11, %c0_12] : memref<64x128xf32, #tpu.memory_space<vmem>>, vector<64x128xf32>
    tpu.vector_store %arg5[%c0_11, %c0_12], %15 {strides = array<i32>} : memref<64x128xf32, #tpu.memory_space<vmem>>, vector<64x128xf32>,
    return
  }
}

module attributes {stable_mosaic.version = 11 : i64} {
  func.func @_mm2_silu_kernel(%arg0: memref<8x256xbf16, #tpu.memory_space<vmem>>, %arg1: memref<8x256xbf16, #tpu.memory_space<vmem>>, %arg2: memref<256x512xbf16, #tpu.memory_space<vmem>>, %arg3: memref<256x512xbf16, #tpu.memory_space<vmem>>, %arg4: memref<1x512xf32, #tpu.memory_space<vmem>>, %arg5: memref<8x512xf32, #tpu.memory_space<vmem>>) attributes {dimension_semantics = [], scalar_prefetch = 0 : i64, scratch_operands = 0 : i64, tpu.core_type = #tpu.core_type<tc>} {
    %c0 = arith.constant 0 : index
    %c0_0 = arith.constant 0 : index
    %0 = vector.load %arg0[%c0, %c0_0] : memref<8x256xbf16, #tpu.memory_space<vmem>>, vector<8x256xbf16>
    %c0_1 = arith.constant 0 : index
    %c0_2 = arith.constant 0 : index
    %1 = vector.load %arg2[%c0_1, %c0_2] : memref<256x512xbf16, #tpu.memory_space<vmem>>, vector<256x512xbf16>
    %cst = arith.constant dense<0.000000e+00> : vector<8x512xf32>
    %2 = tpu.matmul %0, %1, %cst {dimension_numbers = #tpu.dot_dimension_numbers<[1], [0], [0], [1], [0, 0, 1, 1], [], []>} : vector<8x256xbf16>, vector<256x512xbf16>, vector<8x512xf32> -> vector<8x512xf32>
    %c0_3 = arith.constant 0 : index
    %c0_4 = arith.constant 0 : index
    %3 = vector.load %arg1[%c0_3, %c0_4] : memref<8x256xbf16, #tpu.memory_space<vmem>>, vector<8x256xbf16>
    %c0_5 = arith.constant 0 : index
    %c0_6 = arith.constant 0 : index
    %4 = vector.load %arg3[%c0_5, %c0_6] : memref<256x512xbf16, #tpu.memory_space<vmem>>, vector<256x512xbf16>
    %cst_7 = arith.constant dense<0.000000e+00> : vector<8x512xf32>
    %5 = tpu.matmul %3, %4, %cst_7 {dimension_numbers = #tpu.dot_dimension_numbers<[1], [0], [0], [1], [0, 0, 1, 1], [], []>} : vector<8x256xbf16>, vector<256x512xbf16>, vector<8x512xf32> -> vector<8x512xf32>
    %6 = arith.addf %2, %5 : vector<8x512xf32>
    %c0_8 = arith.constant 0 : index
    %c0_9 = arith.constant 0 : index
    %7 = vector.load %arg4[%c0_8, %c0_9] : memref<1x512xf32, #tpu.memory_space<vmem>>, vector<1x512xf32>
    %8 = vector.broadcast %7 : vector<1x512xf32> to vector<8x512xf32>
    %9 = arith.addf %6, %8 : vector<8x512xf32>
    %10 = arith.negf %9 : vector<8x512xf32>
    %11 = math.exp %10 : vector<8x512xf32>
    %cst_10 = arith.constant 1.000000e+00 : f32
    %12 = vector.broadcast %cst_10 : f32 to vector<8x512xf32>
    %13 = arith.addf %12, %11 : vector<8x512xf32>
    %14 = arith.divf %12, %13 : vector<8x512xf32>
    %15 = arith.mulf %9, %14 : vector<8x512xf32>
    %c0_11 = arith.constant 0 : index
    %c0_12 = arith.constant 0 : index
    %16 = vector.load %arg5[%c0_11, %c0_12] : memref<8x512xf32, #tpu.memory_space<vmem>>, vector<8x512xf32>
    tpu.vector_store %arg5[%c0_11, %c0_12], %15 {strides = array<i32>} : memref<8x512xf32, #tpu.memory_space<vmem>>, vector<8x512xf32>,
    return
  }
}

module attributes {stable_mosaic.version = 11 : i64} {
  func.func @_mm_silu_kernel(%arg0: memref<8x2304xbf16, #tpu.memory_space<vmem>>, %arg1: memref<2304x256xbf16, #tpu.memory_space<vmem>>, %arg2: memref<1x256xf32, #tpu.memory_space<vmem>>, %arg3: memref<8x256xf32, #tpu.memory_space<vmem>>) attributes {dimension_semantics = [], scalar_prefetch = 0 : i64, scratch_operands = 0 : i64, tpu.core_type = #tpu.core_type<tc>} {
    %c0 = arith.constant 0 : index
    %c0_0 = arith.constant 0 : index
    %0 = vector.load %arg0[%c0, %c0_0] : memref<8x2304xbf16, #tpu.memory_space<vmem>>, vector<8x2304xbf16>
    %c0_1 = arith.constant 0 : index
    %c0_2 = arith.constant 0 : index
    %1 = vector.load %arg1[%c0_1, %c0_2] : memref<2304x256xbf16, #tpu.memory_space<vmem>>, vector<2304x256xbf16>
    %cst = arith.constant dense<0.000000e+00> : vector<8x256xf32>
    %2 = tpu.matmul %0, %1, %cst {dimension_numbers = #tpu.dot_dimension_numbers<[1], [0], [0], [1], [0, 0, 1, 1], [], []>} : vector<8x2304xbf16>, vector<2304x256xbf16>, vector<8x256xf32> -> vector<8x256xf32>
    %c0_3 = arith.constant 0 : index
    %c0_4 = arith.constant 0 : index
    %3 = vector.load %arg2[%c0_3, %c0_4] : memref<1x256xf32, #tpu.memory_space<vmem>>, vector<1x256xf32>
    %4 = vector.broadcast %3 : vector<1x256xf32> to vector<8x256xf32>
    %5 = arith.addf %2, %4 : vector<8x256xf32>
    %6 = arith.negf %5 : vector<8x256xf32>
    %7 = math.exp %6 : vector<8x256xf32>
    %cst_5 = arith.constant 1.000000e+00 : f32
    %8 = vector.broadcast %cst_5 : f32 to vector<8x256xf32>
    %9 = arith.addf %8, %7 : vector<8x256xf32>
    %10 = arith.divf %8, %9 : vector<8x256xf32>
    %11 = arith.mulf %5, %10 : vector<8x256xf32>
    %c0_6 = arith.constant 0 : index
    %c0_7 = arith.constant 0 : index
    %12 = vector.load %arg3[%c0_6, %c0_7] : memref<8x256xf32, #tpu.memory_space<vmem>>, vector<8x256xf32>
    tpu.vector_store %arg3[%c0_6, %c0_7], %11 {strides = array<i32>} : memref<8x256xf32, #tpu.memory_space<vmem>>, vector<8x256xf32>,
    return
  }
}

module attributes {stable_mosaic.version = 11 : i64} {
  func.func @_mm_silu_kernel(%arg0: memref<8x256xbf16, #tpu.memory_space<vmem>>, %arg1: memref<256x256xbf16, #tpu.memory_space<vmem>>, %arg2: memref<1x256xf32, #tpu.memory_space<vmem>>, %arg3: memref<8x256xf32, #tpu.memory_space<vmem>>) attributes {dimension_semantics = [], scalar_prefetch = 0 : i64, scratch_operands = 0 : i64, tpu.core_type = #tpu.core_type<tc>} {
    %c0 = arith.constant 0 : index
    %c0_0 = arith.constant 0 : index
    %0 = vector.load %arg0[%c0, %c0_0] : memref<8x256xbf16, #tpu.memory_space<vmem>>, vector<8x256xbf16>
    %c0_1 = arith.constant 0 : index
    %c0_2 = arith.constant 0 : index
    %1 = vector.load %arg1[%c0_1, %c0_2] : memref<256x256xbf16, #tpu.memory_space<vmem>>, vector<256x256xbf16>
    %cst = arith.constant dense<0.000000e+00> : vector<8x256xf32>
    %2 = tpu.matmul %0, %1, %cst {dimension_numbers = #tpu.dot_dimension_numbers<[1], [0], [0], [1], [0, 0, 1, 1], [], []>} : vector<8x256xbf16>, vector<256x256xbf16>, vector<8x256xf32> -> vector<8x256xf32>
    %c0_3 = arith.constant 0 : index
    %c0_4 = arith.constant 0 : index
    %3 = vector.load %arg2[%c0_3, %c0_4] : memref<1x256xf32, #tpu.memory_space<vmem>>, vector<1x256xf32>
    %4 = vector.broadcast %3 : vector<1x256xf32> to vector<8x256xf32>
    %5 = arith.addf %2, %4 : vector<8x256xf32>
    %6 = arith.negf %5 : vector<8x256xf32>
    %7 = math.exp %6 : vector<8x256xf32>
    %cst_5 = arith.constant 1.000000e+00 : f32
    %8 = vector.broadcast %cst_5 : f32 to vector<8x256xf32>
    %9 = arith.addf %8, %7 : vector<8x256xf32>
    %10 = arith.divf %8, %9 : vector<8x256xf32>
    %11 = arith.mulf %5, %10 : vector<8x256xf32>
    %c0_6 = arith.constant 0 : index
    %c0_7 = arith.constant 0 : index
    %12 = vector.load %arg3[%c0_6, %c0_7] : memref<8x256xf32, #tpu.memory_space<vmem>>, vector<8x256xf32>
    tpu.vector_store %arg3[%c0_6, %c0_7], %11 {strides = array<i32>} : memref<8x256xf32, #tpu.memory_space<vmem>>, vector<8x256xf32>,
    return
  }
}

</mosaic_0001>

<llo_original>
// kernel: neck_fwd.22
$region0: #{neck_fwd.22}
  #allocation0 [shape = 'u32[]', space=smem, size = 0x4, offset = 0x4, fixed_abs, tag = 'smem constant byte address 0x4 - core index']
  #allocation1 [shape = 'u32[144,128]{1,0:T(1,128)}', space=vmem, size = 0x12000, scoped, tag = 'internal scratch']
  %s0 = inlined_call_operand.vmem [shape: bf16[16,128], index: 0, kind: input, shape index: {}]
  %s1 = inlined_call_operand.vmem [shape: bf16[128,128], index: 1, kind: input, shape index: {}]
  %s2 = inlined_call_operand.vmem [shape: f32[1,128], index: 2, kind: input, shape index: {}]
  %s3 = inlined_call_operand.vmem [shape: f32[16,128], index: 3, kind: output, shape index: {}]
  %s4 = sld [smem:[#allocation0]]
  $region22: #{neck_fwd.22} parent=0
    _
  %s6 = ssub.s32 1, %s4
  %s7 = scalar_select 0, %s6, %s4
  // Predicated region
  $region2: #{neck_fwd.22} parent=0 // pred_check
    _
  $region3: #{neck_fwd.22} parent=0 // pred_check_branch
    %9 = sbr.rel (0) target = $region5
  $region4: #{neck_fwd.22} parent=0 // pred_region
    _
  $region5: #{neck_fwd.22} parent=0 // pred_fallthru
    _
  // Predicated region
  $region6: #{neck_fwd.22} parent=0 // pred_check
    _
  $region7: #{neck_fwd.22} parent=0 // pred_check_branch
    %11 = sbr.rel (0) target = $region9
  $region8: #{neck_fwd.22} parent=0 // pred_region
    _
  $region9: #{neck_fwd.22} parent=0 // pred_fallthru
    _
  // Predicated region
  $region10: #{neck_fwd.22} parent=0 // pred_check
    _
  $region11: #{neck_fwd.22} parent=0 // pred_check_branch
    %13 = sbr.rel (0) target = $region13
  $region12: #{neck_fwd.22} parent=0 // pred_region
    _
  $region13: #{neck_fwd.22} parent=0 // pred_fallthru
    _
  %v15 = vld [vmem:[%s0] sm:$0xf]
  %v16 = vld [vmem:[%s0 + $0x4] sm:$0xf]
  %v17 = vld [vmem:[%s1] sm:$0xf]
  %v18 = vld [vmem:[%s1 + $0x4] sm:$0xf]
  %v19 = vld [vmem:[%s1 + $0x8] sm:$0xf]
  %v20 = vld [vmem:[%s1 + $0xc] sm:$0xf]
  %v21 = vld [vmem:[%s1 + $0x10] sm:$0xf]
  %v22 = vld [vmem:[%s1 + $0x14] sm:$0xf]
  %v23 = vld [vmem:[%s1 + $0x18] sm:$0xf]
  %v24 = vld [vmem:[%s1 + $0x1c] sm:$0xf]
  %v25 = vld [vmem:[%s1 + $0x20] sm:$0xf]
  %v26 = vld [vmem:[%s1 + $0x24] sm:$0xf]
  %v27 = vld [vmem:[%s1 + $0x28] sm:$0xf]
  %v28 = vld [vmem:[%s1 + $0x2c] sm:$0xf]
  %v29 = vld [vmem:[%s1 + $0x30] sm:$0xf]
  %v30 = vld [vmem:[%s1 + $0x34] sm:$0xf]
  %v31 = vld [vmem:[%s1 + $0x38] sm:$0xf]
  %v32 = vld [vmem:[%s1 + $0x3c] sm:$0xf]
  %v33 = vld [vmem:[%s2] sm:$0x1]
  %v35 = vlaneseq
  %v36 = vshrl.u32 %v35, 7
  %v37 = vsub.s32 0, %v36
  %v38 = vrot.slane %v33, %v37
  %v42 = vunpack.c.l.b16 %v15
  %v43 = vunpack.c.l.b16 %v16
  %v44 = vpack.c.b16 %v43, %v42
  %v62 = vunpack.c.l.b16 %v17
  %v63 = vunpack.c.l.b16 %v18
  %v64 = vunpack.c.l.b16 %v19
  %v65 = vunpack.c.l.b16 %v20
  %v66 = vunpack.c.l.b16 %v21
  %v67 = vunpack.c.l.b16 %v22
  %v68 = vunpack.c.l.b16 %v23
  %v69 = vunpack.c.l.b16 %v24
  %v70 = vunpack.c.l.b16 %v25
  %v71 = vunpack.c.l.b16 %v26
  %v72 = vunpack.c.l.b16 %v27
  %v73 = vunpack.c.l.b16 %v28
  %v74 = vunpack.c.l.b16 %v29
  %v75 = vunpack.c.l.b16 %v30
  %v76 = vunpack.c.l.b16 %v31
  %v77 = vunpack.c.l.b16 %v32
  %v78 = vpack.c.b16 %v63, %v62
  %v79 = vpack.c.b16 %v65, %v64
  %v80 = vpack.c.b16 %v67, %v66
  %v81 = vpack.c.b16 %v69, %v68
  %v82 = vpack.c.b16 %v71, %v70
  %v83 = vpack.c.b16 %v73, %v72
  %v84 = vpack.c.b16 %v75, %v74
  %v85 = vpack.c.b16 %v77, %v76
  %94 = vmatprep.subr.bf16.mxu0 0
  %95 = vmatpush1.bf16.msra.mxu0 %v78
  %96 = vmatprep.subr.bf16.mxu0 0
  %97 = vmatpush1.bf16.msra.mxu0 %v79
  %98 = vmatprep.subr.bf16.mxu0 0
  %99 = vmatpush1.bf16.msra.mxu0 %v80
  %100 = vmatprep.subr.bf16.mxu0 0
  %101 = vmatpush1.bf16.msra.mxu0 %v81
  %102 = vmatprep.subr.bf16.mxu0 0
  %103 = vmatpush1.bf16.msra.mxu0 %v82
  %104 = vmatprep.subr.bf16.mxu0 0
  %105 = vmatpush1.bf16.msra.mxu0 %v83
  %106 = vmatprep.subr.bf16.mxu0 0
  %107 = vmatpush1.bf16.msra.mxu0 %v84
  %108 = vmatprep.subr.bf16.mxu0 0
  %109 = vmatpush1.bf16.msra.mxu0 %v85
  %110 = vmatprep.subr.bf16.mxu0 0
  %111 = vmatpush1.bf16.msra.mxu0 0
  %112 = vmatprep.subr.bf16.mxu0 0
  %113 = vmatpush1.bf16.msra.mxu0 0
  %114 = vmatprep.subr.bf16.mxu0 0
  %115 = vmatpush1.bf16.msra.mxu0 0
  %116 = vmatprep.subr.bf16.mxu0 0
  %117 = vmatpush1.bf16.msra.mxu0 0
  %118 = vmatprep.subr.bf16.mxu0 0
  %119 = vmatpush1.bf16.msra.mxu0 0
  %120 = vmatprep.subr.bf16.mxu0 0
  %121 = vmatpush1.bf16.msra.mxu0 0
  %122 = vmatprep.subr.bf16.mxu0 0
  %123 = vmatpush1.bf16.msra.mxu0 0
  %124 = vmatprep.subr.bf16.mxu0 0
  %125 = vmatpush1.bf16.msra.mxu0 0
  %126 = vmatprep.mubr.bf16.mxu0 0
  %127 = vmatmul.mubr.bf16.gmra.mrb[0].mxu0 %v44
  %v128 = vpop.f32.mrb[0].mxu0
  %v129 = vadd.f32 %v38, %v128
  %v130 = vpop.f32.mrb[0].mxu0
  %v131 = vpop.f32.mrb[0].mxu0
  %v132 = vadd.f32 %v38, %v131
  %v133 = vpop.f32.mrb[0].mxu0
  %134 = vdwg.mxu0
  %v135 = vxor.u32 %v129, 2147483648
  %v136 = vxor.u32 %v132, 2147483648
  %v137 = vmul.f32 %v135, 1.442695
  %v138 = vpow.pop %v137
  %v139 = vmul.f32 %v136, 1.442695
  %v140 = vpow.pop %v139
  %v141 = vadd.f32 %v138, 1.0
  %v142 = vadd.f32 %v140, 1.0
  %v143 = vrcp.pop %v141
  %v144 = vmul.f32 1.0, %v143
  %v145 = vrcp.pop %v142
  %v146 = vmul.f32 1.0, %v145
  %v147 = vmul.f32 %v129, %v144
  %v148 = vmul.f32 %v132, %v146
  %149 = vst [vmem:[%s3] sm:$0xff] %v147
  %150 = vst [vmem:[%s3 + $0x8] sm:$0xff] %v148
  // Predicated region
  $region14: #{neck_fwd.22} parent=0 // pred_check
    _
  $region15: #{neck_fwd.22} parent=0 // pred_check_branch
    %152 = sbr.rel (0) target = $region17
  $region16: #{neck_fwd.22} parent=0 // pred_region
    _
  $region17: #{neck_fwd.22} parent=0 // pred_fallthru
    _
  // Predicated region
  $region18: #{neck_fwd.22} parent=0 // pred_check
    _
  $region19: #{neck_fwd.22} parent=0 // pred_check_branch
    %154 = sbr.rel (0) target = $region21
  $region20: #{neck_fwd.22} parent=0 // pred_region
    _
  $region21: #{neck_fwd.22} parent=0 // pred_fallthru
    _

// kernel: neck_fwd.20
$region0: #{neck_fwd.20}
  #allocation0 [shape = 'u32[]', space=smem, size = 0x4, offset = 0x4, fixed_abs, tag = 'smem constant byte address 0x4 - core index']
  #allocation1 [shape = 'u32[144,128]{1,0:T(1,128)}', space=vmem, size = 0x12000, scoped, tag = 'internal scratch']
  %s0 = inlined_call_operand.vmem [shape: bf16[8,512], index: 0, kind: input, shape index: {}]
  %s1 = inlined_call_operand.vmem [shape: bf16[512,256], index: 1, kind: input, shape index: {}]
  %s2 = inlined_call_operand.hbm [shape: f32[1,256], index: 2, kind: input, shape index: {}]
  %s3 = inlined_call_operand.vmem [shape: f32[8,256], index: 3, kind: output, shape index: {}]
  %s4 = sld [smem:[#allocation0]]
  $region26: #{neck_fwd.20} parent=0
    _
  %s6 = ssub.s32 1, %s4
  %s7 = scalar_select 0, %s6, %s4
  $region1: #{neck_fwd.20} parent=0
    #allocation2 [shape = 'u8[1024]{0}', space=vmem, size = 0x400, scoped, tag = 'input window, operand 2, single buffered']
    #allocation3 [shape = 's32[1]{0}', space=sflag, size = 0x4, scoped, tag = 'scoped memory for neck_fwd.20']
    %8 = vsyncpa [#allocation3], 0
    // Predicated region
    $region2: #{neck_fwd.20} parent=1 // pred_check
      _
    $region3: #{neck_fwd.20} parent=1 // pred_check_branch
      %10 = sbr.rel (0) target = $region5
    $region4: #{neck_fwd.20} parent=1 // pred_region
      _
    $region5: #{neck_fwd.20} parent=1 // pred_fallthru
      _
    // Predicated region
    $region6: #{neck_fwd.20} parent=1 // pred_check
      _
    $region7: #{neck_fwd.20} parent=1 // pred_check_branch
      %12 = sbr.rel (0) target = $region9
    $region8: #{neck_fwd.20} parent=1 // pred_region
      _
    $region9: #{neck_fwd.20} parent=1 // pred_fallthru
      _
    // Predicated region
    $region10: #{neck_fwd.20} parent=1 // pred_check
      _
    $region11: #{neck_fwd.20} parent=1 // pred_check_branch
      %14 = sbr.rel (0) target = $region13
    $region12: #{neck_fwd.20} parent=1 // pred_region
      %s16 = ssub.s32 32, 32
      %17 = vsyncadd [#allocation3], %s16
      %s19 = sshll.u32 [#allocation2], 4
      %s20 = int_to_ptr.vmem [resolvable:$true] %s19
      %22 = dma.hbm_to_vmem [thread:$0]  %s2, 32, %s20, [#allocation3]
    $region13: #{neck_fwd.20} parent=1 // pred_fallthru
      _
    // Predicated region
    $region14: #{neck_fwd.20} parent=1 // pred_check
      _
    $region15: #{neck_fwd.20} parent=1 // pred_check_branch
      %24 = sbr.rel (0) target = $region17
    $region16: #{neck_fwd.20} parent=1 // pred_region
      %25 = dma.done [#allocation3], 32
    $region17: #{neck_fwd.20} parent=1 // pred_fallthru
      _
    %v26 = vld [vmem:[%s0] sm:$0xff]
    %v27 = vld [vmem:[%s0 + $0x8] sm:$0xff]
    %v28 = vld [vmem:[%s1] sm:$0xff]
    %v29 = vld [vmem:[%s1 + $0x8] sm:$0xff]
    %v30 = vld [vmem:[%s1 + $0x10] sm:$0xff]
    %v31 = vld [vmem:[%s1 + $0x18] sm:$0xff]
    %v32 = vld [vmem:[%s1 + $0x20] sm:$0xff]
    %v33 = vld [vmem:[%s1 + $0x28] sm:$0xff]
    %v34 = vld [vmem:[%s1 + $0x30] sm:$0xff]
    %v35 = vld [vmem:[%s1 + $0x38] sm:$0xff]
    %v36 = vld [vmem:[%s1 + $0x40] sm:$0xff]
    %v37 = vld [vmem:[%s1 + $0x48] sm:$0xff]
    %v38 = vld [vmem:[%s1 + $0x50] sm:$0xff]
    %v39 = vld [vmem:[%s1 + $0x58] sm:$0xff]
    %v40 = vld [vmem:[%s1 + $0x60] sm:$0xff]
    %v41 = vld [vmem:[%s1 + $0x68] sm:$0xff]
    %v42 = vld [vmem:[%s1 + $0x70] sm:$0xff]
    %v43 = vld [vmem:[%s1 + $0x78] sm:$0xff]
    %v44 = vld [vmem:[%s1 + $0x80] sm:$0xff]
    %v45 = vld [vmem:[%s1 + $0x88] sm:$0xff]
    %v46 = vld [vmem:[%s1 + $0x90] sm:$0xff]
    %v47 = vld [vmem:[%s1 + $0x98] sm:$0xff]
    %v48 = vld [vmem:[%s1 + $0xa0] sm:$0xff]
    %v49 = vld [vmem:[%s1 + $0xa8] sm:$0xff]
    %v50 = vld [vmem:[%s1 + $0xb0] sm:$0xff]
    %v51 = vld [vmem:[%s1 + $0xb8] sm:$0xff]
    %v52 = vld [vmem:[%s1 + $0xc0] sm:$0xff]
    %v53 = vld [vmem:[%s1 + $0xc8] sm:$0xff]
    %v54 = vld [vmem:[%s1 + $0xd0] sm:$0xff]
    %v55 = vld [vmem:[%s1 + $0xd8] sm:$0xff]
    %v56 = vld [vmem:[%s1 + $0xe0] sm:$0xff]
    %v57 = vld [vmem:[%s1 + $0xe8] sm:$0xff]
    %v58 = vld [vmem:[%s1 + $0xf0] sm:$0xff]
    %v59 = vld [vmem:[%s1 + $0xf8] sm:$0xff]
    %v60 = vld [vmem:[%s1 + $0x100] sm:$0xff]
    %v61 = vld [vmem:[%s1 + $0x108] sm:$0xff]
    %v62 = vld [vmem:[%s1 + $0x110] sm:$0xff]
    %v63 = vld [vmem:[%s1 + $0x118] sm:$0xff]
    %v64 = vld [vmem:[%s1 + $0x120] sm:$0xff]
    %v65 = vld [vmem:[%s1 + $0x128] sm:$0xff]
    %v66 = vld [vmem:[%s1 + $0x130] sm:$0xff]
    %v67 = vld [vmem:[%s1 + $0x138] sm:$0xff]
    %v68 = vld [vmem:[%s1 + $0x140] sm:$0xff]
    %v69 = vld [vmem:[%s1 + $0x148] sm:$0xff]
    %v70 = vld [vmem:[%s1 + $0x150] sm:$0xff]
    %v71 = vld [vmem:[%s1 + $0x158] sm:$0xff]
    %v72 = vld [vmem:[%s1 + $0x160] sm:$0xff]
    %v73 = vld [vmem:[%s1 + $0x168] sm:$0xff]
    %v74 = vld [vmem:[%s1 + $0x170] sm:$0xff]
    %v75 = vld [vmem:[%s1 + $0x178] sm:$0xff]
    %v76 = vld [vmem:[%s1 + $0x180] sm:$0xff]
    %v77 = vld [vmem:[%s1 + $0x188] sm:$0xff]
    %v78 = vld [vmem:[%s1 + $0x190] sm:$0xff]
    %v79 = vld [vmem:[%s1 + $0x198] sm:$0xff]
    %v80 = vld [vmem:[%s1 + $0x1a0] sm:$0xff]
    %v81 = vld [vmem:[%s1 + $0x1a8] sm:$0xff]
    %v82 = vld [vmem:[%s1 + $0x1b0] sm:$0xff]
    %v83 = vld [vmem:[%s1 + $0x1b8] sm:$0xff]
    %v84 = vld [vmem:[%s1 + $0x1c0] sm:$0xff]
    %v85 = vld [vmem:[%s1 + $0x1c8] sm:$0xff]
    %v86 = vld [vmem:[%s1 + $0x1d0] sm:$0xff]
    %v87 = vld [vmem:[%s1 + $0x1d8] sm:$0xff]
    %v88 = vld [vmem:[%s1 + $0x1e0] sm:$0xff]
    %v89 = vld [vmem:[%s1 + $0x1e8] sm:$0xff]
    %v90 = vld [vmem:[%s1 + $0x1f0] sm:$0xff]
    %v91 = vld [vmem:[%s1 + $0x1f8] sm:$0xff]
    %v92 = vld [vmem:[#allocation2] sm:$0x3]
    %v94 = vlaneseq
    %v95 = vshrl.u32 %v94, 7
    %v96 = vsub.s32 0, %v95
    %v97 = vrot.slane %v92, %v96
    %v98 = vlaneseq
    %v99 = vshrl.u32 %v98, 7
    %v100 = vsub.s32 1, %v99
    %v101 = vrot.slane %v92, %v100
    %v106 = vunpack.c.l.b16 %v26
    %v107 = vunpack.c.h.b16 %v26
    %v108 = vunpack.c.l.b16 %v27
    %v109 = vunpack.c.h.b16 %v27
    %v110 = vpack.c.b16 %v106, %v106
    %v111 = vpack.c.b16 %v107, %v107
    %v112 = vpack.c.b16 %v108, %v108
    %v113 = vpack.c.b16 %v109, %v109
    %v182 = vunpack.c.l.b16 %v28
    %v183 = vunpack.c.h.b16 %v28
    %v184 = vunpack.c.l.b16 %v29
    %v185 = vunpack.c.h.b16 %v29
    %v186 = vunpack.c.l.b16 %v30
    %v187 = vunpack.c.h.b16 %v30
    %v188 = vunpack.c.l.b16 %v31
    %v189 = vunpack.c.h.b16 %v31
    %v190 = vunpack.c.l.b16 %v32
    %v191 = vunpack.c.h.b16 %v32
    %v192 = vunpack.c.l.b16 %v33
    %v193 = vunpack.c.h.b16 %v33
    %v194 = vunpack.c.l.b16 %v34
    %v195 = vunpack.c.h.b16 %v34
    %v196 = vunpack.c.l.b16 %v35
    %v197 = vunpack.c.h.b16 %v35
    %v198 = vunpack.c.l.b16 %v36
    %v199 = vunpack.c.h.b16 %v36
    %v200 = vunpack.c.l.b16 %v37
    %v201 = vunpack.c.h.b16 %v37
    %v202 = vunpack.c.l.b16 %v38
    %v203 = vunpack.c.h.b16 %v38
    %v204 = vunpack.c.l.b16 %v39
    %v205 = vunpack.c.h.b16 %v39
    %v206 = vunpack.c.l.b16 %v40
    %v207 = vunpack.c.h.b16 %v40
    %v208 = vunpack.c.l.b16 %v41
    %v209 = vunpack.c.h.b16 %v41
    %v210 = vunpack.c.l.b16 %v42
    %v211 = vunpack.c.h.b16 %v42
    %v212 = vunpack.c.l.b16 %v43
    %v213 = vunpack.c.h.b16 %v43
    %v214 = vunpack.c.l.b16 %v44
    %v215 = vunpack.c.h.b16 %v44
    %v216 = vunpack.c.l.b16 %v45
    %v217 = vunpack.c.h.b16 %v45
    %v218 = vunpack.c.l.b16 %v46
    %v219 = vunpack.c.h.b16 %v46
    %v220 = vunpack.c.l.b16 %v47
    %v221 = vunpack.c.h.b16 %v47
    %v222 = vunpack.c.l.b16 %v48
    %v223 = vunpack.c.h.b16 %v48
    %v224 = vunpack.c.l.b16 %v49
    %v225 = vunpack.c.h.b16 %v49
    %v226 = vunpack.c.l.b16 %v50
    %v227 = vunpack.c.h.b16 %v50
    %v228 = vunpack.c.l.b16 %v51
    %v229 = vunpack.c.h.b16 %v51
    %v230 = vunpack.c.l.b16 %v52
    %v231 = vunpack.c.h.b16 %v52
    %v232 = vunpack.c.l.b16 %v53
    %v233 = vunpack.c.h.b16 %v53
    %v234 = vunpack.c.l.b16 %v54
    %v235 = vunpack.c.h.b16 %v54
    %v236 = vunpack.c.l.b16 %v55
    %v237 = vunpack.c.h.b16 %v55
    %v238 = vunpack.c.l.b16 %v56
    %v239 = vunpack.c.h.b16 %v56
    %v240 = vunpack.c.l.b16 %v57
    %v241 = vunpack.c.h.b16 %v57
    %v242 = vunpack.c.l.b16 %v58
    %v243 = vunpack.c.h.b16 %v58
    %v244 = vunpack.c.l.b16 %v59
    %v245 = vunpack.c.h.b16 %v59
    %v246 = vunpack.c.l.b16 %v60
    %v247 = vunpack.c.h.b16 %v60
    %v248 = vunpack.c.l.b16 %v61
    %v249 = vunpack.c.h.b16 %v61
    %v250 = vunpack.c.l.b16 %v62
    %v251 = vunpack.c.h.b16 %v62
    %v252 = vunpack.c.l.b16 %v63
    %v253 = vunpack.c.h.b16 %v63
    %v254 = vunpack.c.l.b16 %v64
    %v255 = vunpack.c.h.b16 %v64
    %v256 = vunpack.c.l.b16 %v65
    %v257 = vunpack.c.h.b16 %v65
    %v258 = vunpack.c.l.b16 %v66
    %v259 = vunpack.c.h.b16 %v66
    %v260 = vunpack.c.l.b16 %v67
    %v261 = vunpack.c.h.b16 %v67
    %v262 = vunpack.c.l.b16 %v68
    %v263 = vunpack.c.h.b16 %v68
    %v264 = vunpack.c.l.b16 %v69
    %v265 = vunpack.c.h.b16 %v69
    %v266 = vunpack.c.l.b16 %v70
    %v267 = vunpack.c.h.b16 %v70
    %v268 = vunpack.c.l.b16 %v71
    %v269 = vunpack.c.h.b16 %v71
    %v270 = vunpack.c.l.b16 %v72
    %v271 = vunpack.c.h.b16 %v72
    %v272 = vunpack.c.l.b16 %v73
    %v273 = vunpack.c.h.b16 %v73
    %v274 = vunpack.c.l.b16 %v74
    %v275 = vunpack.c.h.b16 %v74
    %v276 = vunpack.c.l.b16 %v75
    %v277 = vunpack.c.h.b16 %v75
    %v278 = vunpack.c.l.b16 %v76
    %v279 = vunpack.c.h.b16 %v76
    %v280 = vunpack.c.l.b16 %v77
    %v281 = vunpack.c.h.b16 %v77
    %v282 = vunpack.c.l.b16 %v78
    %v283 = vunpack.c.h.b16 %v78
    %v284 = vunpack.c.l.b16 %v79
    %v285 = vunpack.c.h.b16 %v79
    %v286 = vunpack.c.l.b16 %v80
    %v287 = vunpack.c.h.b16 %v80
    %v288 = vunpack.c.l.b16 %v81
    %v289 = vunpack.c.h.b16 %v81
    %v290 = vunpack.c.l.b16 %v82
    %v291 = vunpack.c.h.b16 %v82
    %v292 = vunpack.c.l.b16 %v83
    %v293 = vunpack.c.h.b16 %v83
    %v294 = vunpack.c.l.b16 %v84
    %v295 = vunpack.c.h.b16 %v84
    %v296 = vunpack.c.l.b16 %v85
    %v297 = vunpack.c.h.b16 %v85
    %v298 = vunpack.c.l.b16 %v86
    %v299 = vunpack.c.h.b16 %v86
    %v300 = vunpack.c.l.b16 %v87
    %v301 = vunpack.c.h.b16 %v87
    %v302 = vunpack.c.l.b16 %v88
    %v303 = vunpack.c.h.b16 %v88
    %v304 = vunpack.c.l.b16 %v89
    %v305 = vunpack.c.h.b16 %v89
    %v306 = vunpack.c.l.b16 %v90
    %v307 = vunpack.c.h.b16 %v90
    %v308 = vunpack.c.l.b16 %v91
    %v309 = vunpack.c.h.b16 %v91
    %v310 = vpack.c.b16 %v184, %v182
    %v311 = vpack.c.b16 %v185, %v183
    %v312 = vpack.c.b16 %v188, %v186
    %v313 = vpack.c.b16 %v189, %v187
    %v314 = vpack.c.b16 %v192, %v190
    %v315 = vpack.c.b16 %v193, %v191
    %v316 = vpack.c.b16 %v196, %v194
    %v317 = vpack.c.b16 %v197, %v195
    %v318 = vpack.c.b16 %v200, %v198
    %v319 = vpack.c.b16 %v201, %v199
    %v320 = vpack.c.b16 %v204, %v202
    %v321 = vpack.c.b16 %v205, %v203
    %v322 = vpack.c.b16 %v208, %v206
    %v323 = vpack.c.b16 %v209, %v207
    %v324 = vpack.c.b16 %v212, %v210
    %v325 = vpack.c.b16 %v213, %v211
    %v326 = vpack.c.b16 %v216, %v214
    %v327 = vpack.c.b16 %v217, %v215
    %v328 = vpack.c.b16 %v220, %v218
    %v329 = vpack.c.b16 %v221, %v219
    %v330 = vpack.c.b16 %v224, %v222
    %v331 = vpack.c.b16 %v225, %v223
    %v332 = vpack.c.b16 %v228, %v226
    %v333 = vpack.c.b16 %v229, %v227
    %v334 = vpack.c.b16 %v232, %v230
    %v335 = vpack.c.b16 %v233, %v231
    %v336 = vpack.c.b16 %v236, %v234
    %v337 = vpack.c.b16 %v237, %v235
    %v338 = vpack.c.b16 %v240, %v238
    %v339 = vpack.c.b16 %v241, %v239
    %v340 = vpack.c.b16 %v244, %v242
    %v341 = vpack.c.b16 %v245, %v243
    %v342 = vpack.c.b16 %v248, %v246
    %v343 = vpack.c.b16 %v249, %v247
    %v344 = vpack.c.b16 %v252, %v250
    %v345 = vpack.c.b16 %v253, %v251
    %v346 = vpack.c.b16 %v256, %v254
    %v347 = vpack.c.b16 %v257, %v255
    %v348 = vpack.c.b16 %v260, %v258
    %v349 = vpack.c.b16 %v261, %v259
    %v350 = vpack.c.b16 %v264, %v262
    %v351 = vpack.c.b16 %v265, %v263
    %v352 = vpack.c.b16 %v268, %v266
    %v353 = vpack.c.b16 %v269, %v267
    %v354 = vpack.c.b16 %v272, %v270
    %v355 = vpack.c.b16 %v273, %v271
    %v356 = vpack.c.b16 %v276, %v274
    %v357 = vpack.c.b16 %v277, %v275
    %v358 = vpack.c.b16 %v280, %v278
    %v359 = vpack.c.b16 %v281, %v279
    %v360 = vpack.c.b16 %v284, %v282
    %v361 = vpack.c.b16 %v285, %v283
    %v362 = vpack.c.b16 %v288, %v286
    %v363 = vpack.c.b16 %v289, %v287
    %v364 = vpack.c.b16 %v292, %v290
    %v365 = vpack.c.b16 %v293, %v291
    %v366 = vpack.c.b16 %v296, %v294
    %v367 = vpack.c.b16 %v297, %v295
    %v368 = vpack.c.b16 %v300, %v298
    %v369 = vpack.c.b16 %v301, %v299
    %v370 = vpack.c.b16 %v304, %v302
    %v371 = vpack.c.b16 %v305, %v303
    %v372 = vpack.c.b16 %v308, %v306
    %v373 = vpack.c.b16 %v309, %v307
    %438 = vmatprep.subr.bf16.mxu0 %v311
    %439 = vmatpush1.bf16.msra.mxu0 %v310
    %440 = vmatprep.subr.bf16.mxu0 %v313
    %441 = vmatpush1.bf16.msra.mxu0 %v312
    %442 = vmatprep.subr.bf16.mxu0 %v315
    %443 = vmatpush1.bf16.msra.mxu0 %v314
    %444 = vmatprep.subr.bf16.mxu0 %v317
    %445 = vmatpush1.bf16.msra.mxu0 %v316
    %446 = vmatprep.subr.bf16.mxu0 %v319
    %447 = vmatpush1.bf16.msra.mxu0 %v318
    %448 = vmatprep.subr.bf16.mxu0 %v321
    %449 = vmatpush1.bf16.msra.mxu0 %v320
    %450 = vmatprep.subr.bf16.mxu0 %v323
    %451 = vmatpush1.bf16.msra.mxu0 %v322
    %452 = vmatprep.subr.bf16.mxu0 %v325
    %453 = vmatpush1.bf16.msra.mxu0 %v324
    %454 = vmatprep.subr.bf16.mxu0 %v327
    %455 = vmatpush1.bf16.msra.mxu0 %v326
    %456 = vmatprep.subr.bf16.mxu0 %v329
    %457 = vmatpush1.bf16.msra.mxu0 %v328
    %458 = vmatprep.subr.bf16.mxu0 %v331
    %459 = vmatpush1.bf16.msra.mxu0 %v330
    %460 = vmatprep.subr.bf16.mxu0 %v333
    %461 = vmatpush1.bf16.msra.mxu0 %v332
    %462 = vmatprep.subr.bf16.mxu0 %v335
    %463 = vmatpush1.bf16.msra.mxu0 %v334
    %464 = vmatprep.subr.bf16.mxu0 %v337
    %465 = vmatpush1.bf16.msra.mxu0 %v336
    %466 = vmatprep.subr.bf16.mxu0 %v339
    %467 = vmatpush1.bf16.msra.mxu0 %v338
    %468 = vmatprep.subr.bf16.mxu0 %v341
    %469 = vmatpush1.bf16.msra.mxu0 %v340
    %470 = vmatprep.mubr.bf16.mxu0 %v111
    %471 = vmatmul.mubr.bf16.gmra.mrb[0].mxu0 %v110
    %v472 = vpop.f32.mrb[0].mxu0
    %v473 = vadd.f32 %v97, %v472
    %v474 = vpop.f32.mrb[0].mxu0
    %v475 = vadd.f32 %v101, %v474
    %v476 = vpop.f32.mrb[0].mxu0
    %v477 = vpop.f32.mrb[0].mxu0
    %478 = vdwg.mxu0
    %479 = vmatprep.subr.bf16.mxu0 %v343
    %480 = vmatpush1.bf16.msra.mxu0 %v342
    %481 = vmatprep.subr.bf16.mxu0 %v345
    %482 = vmatpush1.bf16.msra.mxu0 %v344
    %483 = vmatprep.subr.bf16.mxu0 %v347
    %484 = vmatpush1.bf16.msra.mxu0 %v346
    %485 = vmatprep.subr.bf16.mxu0 %v349
    %486 = vmatpush1.bf16.msra.mxu0 %v348
    %487 = vmatprep.subr.bf16.mxu0 %v351
    %488 = vmatpush1.bf16.msra.mxu0 %v350
    %489 = vmatprep.subr.bf16.mxu0 %v353
    %490 = vmatpush1.bf16.msra.mxu0 %v352
    %491 = vmatprep.subr.bf16.mxu0 %v355
    %492 = vmatpush1.bf16.msra.mxu0 %v354
    %493 = vmatprep.subr.bf16.mxu0 %v357
    %494 = vmatpush1.bf16.msra.mxu0 %v356
    %495 = vmatprep.subr.bf16.mxu0 %v359
    %496 = vmatpush1.bf16.msra.mxu0 %v358
    %497 = vmatprep.subr.bf16.mxu0 %v361
    %498 = vmatpush1.bf16.msra.mxu0 %v360
    %499 = vmatprep.subr.bf16.mxu0 %v363
    %500 = vmatpush1.bf16.msra.mxu0 %v362
    %501 = vmatprep.subr.bf16.mxu0 %v365
    %502 = vmatpush1.bf16.msra.mxu0 %v364
    %503 = vmatprep.subr.bf16.mxu0 %v367
    %504 = vmatpush1.bf16.msra.mxu0 %v366
    %505 = vmatprep.subr.bf16.mxu0 %v369
    %506 = vmatpush1.bf16.msra.mxu0 %v368
    %507 = vmatprep.subr.bf16.mxu0 %v371
    %508 = vmatpush1.bf16.msra.mxu0 %v370
    %509 = vmatprep.subr.bf16.mxu0 %v373
    %510 = vmatpush1.bf16.msra.mxu0 %v372
    %511 = vmatprep.mubr.bf16.mxu0 %v113
    %512 = vmatmul.mubr.bf16.gmra.mrb[0].mxu0 %v112
    %v513 = vpop.f32.mrb[0].mxu0
    %v514 = vadd.f32 %v473, %v513
    %v515 = vpop.f32.mrb[0].mxu0
    %v516 = vadd.f32 %v475, %v515
    %v517 = vpop.f32.mrb[0].mxu0
    %v518 = vpop.f32.mrb[0].mxu0
    %519 = vdwg.mxu0
    %v520 = vxor.u32 %v514, 2147483648
    %v521 = vxor.u32 %v516, 2147483648
    %v522 = vmul.f32 %v520, 1.442695
    %v523 = vpow.pop %v522
    %v524 = vmul.f32 %v521, 1.442695
    %v525 = vpow.pop %v524
    %v526 = vadd.f32 %v523, 1.0
    %v527 = vadd.f32 %v525, 1.0
    %v528 = vrcp.pop %v526
    %v529 = vmul.f32 1.0, %v528
    %v530 = vrcp.pop %v527
    %v531 = vmul.f32 1.0, %v530
    %v532 = vmul.f32 %v514, %v529
    %v533 = vmul.f32 %v516, %v531
    %534 = vst [vmem:[%s3] sm:$0xff] %v532
    %535 = vst [vmem:[%s3 + $0x8] sm:$0xff] %v533
    // Predicated region
    $region18: #{neck_fwd.20} parent=1 // pred_check
      _
    $region19: #{neck_fwd.20} parent=1 // pred_check_branch
      %537 = sbr.rel (0) target = $region21
    $region20: #{neck_fwd.20} parent=1 // pred_region
      _
    $region21: #{neck_fwd.20} parent=1 // pred_fallthru
      _
    // Predicated region
    $region22: #{neck_fwd.20} parent=1 // pred_check
      _
    $region23: #{neck_fwd.20} parent=1 // pred_check_branch
      %539 = sbr.rel (0) target = $region25
    $region24: #{neck_fwd.20} parent=1 // pred_region
      _
    $region25: #{neck_fwd.20} parent=1 // pred_fallthru
      _
    %540 = vsyncpa [#allocation3], 1

// kernel: neck_fwd.21
$region0: #{neck_fwd.21}
  #allocation0 [shape = 'u32[]', space=smem, size = 0x4, offset = 0x4, fixed_abs, tag = 'smem constant byte address 0x4 - core index']
  #allocation1 [shape = 'u32[144,128]{1,0:T(1,128)}', space=vmem, size = 0x12000, scoped, tag = 'internal scratch']
  %s0 = inlined_call_operand.vmem [shape: bf16[16,256], index: 0, kind: input, shape index: {}]
  %s1 = inlined_call_operand.vmem [shape: bf16[16,256], index: 1, kind: input, shape index: {}]
  %s2 = inlined_call_operand.vmem [shape: bf16[256,256], index: 2, kind: input, shape index: {}]
  %s3 = inlined_call_operand.vmem [shape: bf16[256,256], index: 3, kind: input, shape index: {}]
  %s4 = inlined_call_operand.vmem [shape: f32[1,256], index: 4, kind: input, shape index: {}]
  %s5 = inlined_call_operand.vmem [shape: f32[16,256], index: 5, kind: output, shape index: {}]
  %s6 = sld [smem:[#allocation0]]
  $region30: #{neck_fwd.21} parent=0
    _
  %s8 = ssub.s32 1, %s6
  %s9 = scalar_select 0, %s8, %s6
  // Predicated region
  $region2: #{neck_fwd.21} parent=0 // pred_check
    _
  $region3: #{neck_fwd.21} parent=0 // pred_check_branch
    %11 = sbr.rel (0) target = $region5
  $region4: #{neck_fwd.21} parent=0 // pred_region
    _
  $region5: #{neck_fwd.21} parent=0 // pred_fallthru
    _
  // Predicated region
  $region6: #{neck_fwd.21} parent=0 // pred_check
    _
  $region7: #{neck_fwd.21} parent=0 // pred_check_branch
    %13 = sbr.rel (0) target = $region9
  $region8: #{neck_fwd.21} parent=0 // pred_region
    _
  $region9: #{neck_fwd.21} parent=0 // pred_fallthru
    _
  // Predicated region
  $region10: #{neck_fwd.21} parent=0 // pred_check
    _
  $region11: #{neck_fwd.21} parent=0 // pred_check_branch
    %15 = sbr.rel (0) target = $region13
  $region12: #{neck_fwd.21} parent=0 // pred_region
    _
  $region13: #{neck_fwd.21} parent=0 // pred_fallthru
    _
  // Predicated region
  $region14: #{neck_fwd.21} parent=0 // pred_check
    _
  $region15: #{neck_fwd.21} parent=0 // pred_check_branch
    %17 = sbr.rel (0) target = $region17
  $region16: #{neck_fwd.21} parent=0 // pred_region
    _
  $region17: #{neck_fwd.21} parent=0 // pred_fallthru
    _
  // Predicated region
  $region18: #{neck_fwd.21} parent=0 // pred_check
    _
  $region19: #{neck_fwd.21} parent=0 // pred_check_branch
    %19 = sbr.rel (0) target = $region21
  $region20: #{neck_fwd.21} parent=0 // pred_region
    _
  $region21: #{neck_fwd.21} parent=0 // pred_fallthru
    _
  %v20 = vld [vmem:[%s0] sm:$0xff]
  %v21 = vld [vmem:[%s0 + $0x8] sm:$0xff]
  %v22 = vld [vmem:[%s2] sm:$0xff]
  %v23 = vld [vmem:[%s2 + $0x8] sm:$0xff]
  %v24 = vld [vmem:[%s2 + $0x10] sm:$0xff]
  %v25 = vld [vmem:[%s2 + $0x18] sm:$0xff]
  %v26 = vld [vmem:[%s2 + $0x20] sm:$0xff]
  %v27 = vld [vmem:[%s2 + $0x28] sm:$0xff]
  %v28 = vld [vmem:[%s2 + $0x30] sm:$0xff]
  %v29 = vld [vmem:[%s2 + $0x38] sm:$0xff]
  %v30 = vld [vmem:[%s2 + $0x40] sm:$0xff]
  %v31 = vld [vmem:[%s2 + $0x48] sm:$0xff]
  %v32 = vld [vmem:[%s2 + $0x50] sm:$0xff]
  %v33 = vld [vmem:[%s2 + $0x58] sm:$0xff]
  %v34 = vld [vmem:[%s2 + $0x60] sm:$0xff]
  %v35 = vld [vmem:[%s2 + $0x68] sm:$0xff]
  %v36 = vld [vmem:[%s2 + $0x70] sm:$0xff]
  %v37 = vld [vmem:[%s2 + $0x78] sm:$0xff]
  %v38 = vld [vmem:[%s2 + $0x80] sm:$0xff]
  %v39 = vld [vmem:[%s2 + $0x88] sm:$0xff]
  %v40 = vld [vmem:[%s2 + $0x90] sm:$0xff]
  %v41 = vld [vmem:[%s2 + $0x98] sm:$0xff]
  %v42 = vld [vmem:[%s2 + $0xa0] sm:$0xff]
  %v43 = vld [vmem:[%s2 + $0xa8] sm:$0xff]
  %v44 = vld [vmem:[%s2 + $0xb0] sm:$0xff]
  %v45 = vld [vmem:[%s2 + $0xb8] sm:$0xff]
  %v46 = vld [vmem:[%s2 + $0xc0] sm:$0xff]
  %v47 = vld [vmem:[%s2 + $0xc8] sm:$0xff]
  %v48 = vld [vmem:[%s2 + $0xd0] sm:$0xff]
  %v49 = vld [vmem:[%s2 + $0xd8] sm:$0xff]
  %v50 = vld [vmem:[%s2 + $0xe0] sm:$0xff]
  %v51 = vld [vmem:[%s2 + $0xe8] sm:$0xff]
  %v52 = vld [vmem:[%s2 + $0xf0] sm:$0xff]
  %v53 = vld [vmem:[%s2 + $0xf8] sm:$0xff]
  %v54 = vld [vmem:[%s1] sm:$0xff]
  %v55 = vld [vmem:[%s1 + $0x8] sm:$0xff]
  %v56 = vld [vmem:[%s3] sm:$0xff]
  %v57 = vld [vmem:[%s3 + $0x8] sm:$0xff]
  %v58 = vld [vmem:[%s3 + $0x10] sm:$0xff]
  %v59 = vld [vmem:[%s3 + $0x18] sm:$0xff]
  %v60 = vld [vmem:[%s3 + $0x20] sm:$0xff]
  %v61 = vld [vmem:[%s3 + $0x28] sm:$0xff]
  %v62 = vld [vmem:[%s3 + $0x30] sm:$0xff]
  %v63 = vld [vmem:[%s3 + $0x38] sm:$0xff]
  %v64 = vld [vmem:[%s3 + $0x40] sm:$0xff]
  %v65 = vld [vmem:[%s3 + $0x48] sm:$0xff]
  %v66 = vld [vmem:[%s3 + $0x50] sm:$0xff]
  %v67 = vld [vmem:[%s3 + $0x58] sm:$0xff]
  %v68 = vld [vmem:[%s3 + $0x60] sm:$0xff]
  %v69 = vld [vmem:[%s3 + $0x68] sm:$0xff]
  %v70 = vld [vmem:[%s3 + $0x70] sm:$0xff]
  %v71 = vld [vmem:[%s3 + $0x78] sm:$0xff]
  %v72 = vld [vmem:[%s3 + $0x80] sm:$0xff]
  %v73 = vld [vmem:[%s3 + $0x88] sm:$0xff]
  %v74 = vld [vmem:[%s3 + $0x90] sm:$0xff]
  %v75 = vld [vmem:[%s3 + $0x98] sm:$0xff]
  %v76 = vld [vmem:[%s3 + $0xa0] sm:$0xff]
  %v77 = vld [vmem:[%s3 + $0xa8] sm:$0xff]
  %v78 = vld [vmem:[%s3 + $0xb0] sm:$0xff]
  %v79 = vld [vmem:[%s3 + $0xb8] sm:$0xff]
  %v80 = vld [vmem:[%s3 + $0xc0] sm:$0xff]
  %v81 = vld [vmem:[%s3 + $0xc8] sm:$0xff]
  %v82 = vld [vmem:[%s3 + $0xd0] sm:$0xff]
  %v83 = vld [vmem:[%s3 + $0xd8] sm:$0xff]
  %v84 = vld [vmem:[%s3 + $0xe0] sm:$0xff]
  %v85 = vld [vmem:[%s3 + $0xe8] sm:$0xff]
  %v86 = vld [vmem:[%s3 + $0xf0] sm:$0xff]
  %v87 = vld [vmem:[%s3 + $0xf8] sm:$0xff]
  %v90 = vunpack.c.l.b16 %v54
  %v91 = vunpack.c.h.b16 %v54
  %v92 = vunpack.c.l.b16 %v55
  %v93 = vunpack.c.h.b16 %v55
  %v94 = vpack.c.b16 %v92, %v90
  %v95 = vpack.c.b16 %v93, %v91
  %v130 = vunpack.c.l.b16 %v56
  %v131 = vunpack.c.h.b16 %v56
  %v132 = vunpack.c.l.b16 %v57
  %v133 = vunpack.c.h.b16 %v57
  %v134 = vunpack.c.l.b16 %v58
  %v135 = vunpack.c.h.b16 %v58
  %v136 = vunpack.c.l.b16 %v59
  %v137 = vunpack.c.h.b16 %v59
  %v138 = vunpack.c.l.b16 %v60
  %v139 = vunpack.c.h.b16 %v60
  %v140 = vunpack.c.l.b16 %v61
  %v141 = vunpack.c.h.b16 %v61
  %v142 = vunpack.c.l.b16 %v62
  %v143 = vunpack.c.h.b16 %v62
  %v144 = vunpack.c.l.b16 %v63
  %v145 = vunpack.c.h.b16 %v63
  %v146 = vunpack.c.l.b16 %v64
  %v147 = vunpack.c.h.b16 %v64
  %v148 = vunpack.c.l.b16 %v65
  %v149 = vunpack.c.h.b16 %v65
  %v150 = vunpack.c.l.b16 %v66
  %v151 = vunpack.c.h.b16 %v66
  %v152 = vunpack.c.l.b16 %v67
  %v153 = vunpack.c.h.b16 %v67
  %v154 = vunpack.c.l.b16 %v68
  %v155 = vunpack.c.h.b16 %v68
  %v156 = vunpack.c.l.b16 %v69
  %v157 = vunpack.c.h.b16 %v69
  %v158 = vunpack.c.l.b16 %v70
  %v159 = vunpack.c.h.b16 %v70
  %v160 = vunpack.c.l.b16 %v71
  %v161 = vunpack.c.h.b16 %v71
  %v162 = vunpack.c.l.b16 %v72
  %v163 = vunpack.c.h.b16 %v72
  %v164 = vunpack.c.l.b16 %v73
  %v165 = vunpack.c.h.b16 %v73
  %v166 = vunpack.c.l.b16 %v74
  %v167 = vunpack.c.h.b16 %v74
  %v168 = vunpack.c.l.b16 %v75
  %v169 = vunpack.c.h.b16 %v75
  %v170 = vunpack.c.l.b16 %v76
  %v171 = vunpack.c.h.b16 %v76
  %v172 = vunpack.c.l.b16 %v77
  %v173 = vunpack.c.h.b16 %v77
  %v174 = vunpack.c.l.b16 %v78
  %v175 = vunpack.c.h.b16 %v78
  %v176 = vunpack.c.l.b16 %v79
  %v177 = vunpack.c.h.b16 %v79
  %v178 = vunpack.c.l.b16 %v80
  %v179 = vunpack.c.h.b16 %v80
  %v180 = vunpack.c.l.b16 %v81
  %v181 = vunpack.c.h.b16 %v81
  %v182 = vunpack.c.l.b16 %v82
  %v183 = vunpack.c.h.b16 %v82
  %v184 = vunpack.c.l.b16 %v83
  %v185 = vunpack.c.h.b16 %v83
  %v186 = vunpack.c.l.b16 %v84
  %v187 = vunpack.c.h.b16 %v84
  %v188 = vunpack.c.l.b16 %v85
  %v189 = vunpack.c.h.b16 %v85
  %v190 = vunpack.c.l.b16 %v86
  %v191 = vunpack.c.h.b16 %v86
  %v192 = vunpack.c.l.b16 %v87
  %v193 = vunpack.c.h.b16 %v87
  %v194 = vpack.c.b16 %v132, %v130
  %v195 = vpack.c.b16 %v133, %v131
  %v196 = vpack.c.b16 %v136, %v134
  %v197 = vpack.c.b16 %v137, %v135
  %v198 = vpack.c.b16 %v140, %v138
  %v199 = vpack.c.b16 %v141, %v139
  %v200 = vpack.c.b16 %v144, %v142
  %v201 = vpack.c.b16 %v145, %v143
  %v202 = vpack.c.b16 %v148, %v146
  %v203 = vpack.c.b16 %v149, %v147
  %v204 = vpack.c.b16 %v152, %v150
  %v205 = vpack.c.b16 %v153, %v151
  %v206 = vpack.c.b16 %v156, %v154
  %v207 = vpack.c.b16 %v157, %v155
  %v208 = vpack.c.b16 %v160, %v158
  %v209 = vpack.c.b16 %v161, %v159
  %v210 = vpack.c.b16 %v164, %v162
  %v211 = vpack.c.b16 %v165, %v163
  %v212 = vpack.c.b16 %v168, %v166
  %v213 = vpack.c.b16 %v169, %v167
  %v214 = vpack.c.b16 %v172, %v170
  %v215 = vpack.c.b16 %v173, %v171
  %v216 = vpack.c.b16 %v176, %v174
  %v217 = vpack.c.b16 %v177, %v175
  %v218 = vpack.c.b16 %v180, %v178
  %v219 = vpack.c.b16 %v181, %v179
  %v220 = vpack.c.b16 %v184, %v182
  %v221 = vpack.c.b16 %v185, %v183
  %v222 = vpack.c.b16 %v188, %v186
  %v223 = vpack.c.b16 %v189, %v187
  %v224 = vpack.c.b16 %v192, %v190
  %v225 = vpack.c.b16 %v193, %v191
  %258 = vmatprep.subr.bf16.mxu0 %v195
  %259 = vmatpush1.bf16.msra.mxu0 %v194
  %260 = vmatprep.subr.bf16.mxu0 %v197
  %261 = vmatpush1.bf16.msra.mxu0 %v196
  %262 = vmatprep.subr.bf16.mxu0 %v199
  %263 = vmatpush1.bf16.msra.mxu0 %v198
  %264 = vmatprep.subr.bf16.mxu0 %v201
  %265 = vmatpush1.bf16.msra.mxu0 %v200
  %266 = vmatprep.subr.bf16.mxu0 %v203
  %267 = vmatpush1.bf16.msra.mxu0 %v202
  %268 = vmatprep.subr.bf16.mxu0 %v205
  %269 = vmatpush1.bf16.msra.mxu0 %v204
  %270 = vmatprep.subr.bf16.mxu0 %v207
  %271 = vmatpush1.bf16.msra.mxu0 %v206
  %272 = vmatprep.subr.bf16.mxu0 %v209
  %273 = vmatpush1.bf16.msra.mxu0 %v208
  %274 = vmatprep.subr.bf16.mxu0 %v211
  %275 = vmatpush1.bf16.msra.mxu0 %v210
  %276 = vmatprep.subr.bf16.mxu0 %v213
  %277 = vmatpush1.bf16.msra.mxu0 %v212
  %278 = vmatprep.subr.bf16.mxu0 %v215
  %279 = vmatpush1.bf16.msra.mxu0 %v214
  %280 = vmatprep.subr.bf16.mxu0 %v217
  %281 = vmatpush1.bf16.msra.mxu0 %v216
  %282 = vmatprep.subr.bf16.mxu0 %v219
  %283 = vmatpush1.bf16.msra.mxu0 %v218
  %284 = vmatprep.subr.bf16.mxu0 %v221
  %285 = vmatpush1.bf16.msra.mxu0 %v220
  %286 = vmatprep.subr.bf16.mxu0 %v223
  %287 = vmatpush1.bf16.msra.mxu0 %v222
  %288 = vmatprep.subr.bf16.mxu0 %v225
  %289 = vmatpush1.bf16.msra.mxu0 %v224
  %290 = vmatprep.mubr.bf16.mxu0 %v95
  %291 = vmatmul.mubr.bf16.gmra.mrb[0].mxu0 %v94
  %v292 = vpop.f32.mrb[0].mxu0
  %v293 = vadd.f32 0.0, %v292
  %v294 = vpop.f32.mrb[0].mxu0
  %v295 = vadd.f32 0.0, %v294
  %v296 = vpop.f32.mrb[0].mxu0
  %v297 = vadd.f32 0.0, %v296
  %v298 = vpop.f32.mrb[0].mxu0
  %v299 = vadd.f32 0.0, %v298
  %300 = vdwg.mxu0
  %v303 = vunpack.c.l.b16 %v20
  %v304 = vunpack.c.h.b16 %v20
  %v305 = vunpack.c.l.b16 %v21
  %v306 = vunpack.c.h.b16 %v21
  %v307 = vpack.c.b16 %v305, %v303
  %v308 = vpack.c.b16 %v306, %v304
  %v343 = vunpack.c.l.b16 %v22
  %v344 = vunpack.c.h.b16 %v22
  %v345 = vunpack.c.l.b16 %v23
  %v346 = vunpack.c.h.b16 %v23
  %v347 = vunpack.c.l.b16 %v24
  %v348 = vunpack.c.h.b16 %v24
  %v349 = vunpack.c.l.b16 %v25
  %v350 = vunpack.c.h.b16 %v25
  %v351 = vunpack.c.l.b16 %v26
  %v352 = vunpack.c.h.b16 %v26
  %v353 = vunpack.c.l.b16 %v27
  %v354 = vunpack.c.h.b16 %v27
  %v355 = vunpack.c.l.b16 %v28
  %v356 = vunpack.c.h.b16 %v28
  %v357 = vunpack.c.l.b16 %v29
  %v358 = vunpack.c.h.b16 %v29
  %v359 = vunpack.c.l.b16 %v30
  %v360 = vunpack.c.h.b16 %v30
  %v361 = vunpack.c.l.b16 %v31
  %v362 = vunpack.c.h.b16 %v31
  %v363 = vunpack.c.l.b16 %v32
  %v364 = vunpack.c.h.b16 %v32
  %v365 = vunpack.c.l.b16 %v33
  %v366 = vunpack.c.h.b16 %v33
  %v367 = vunpack.c.l.b16 %v34
  %v368 = vunpack.c.h.b16 %v34
  %v369 = vunpack.c.l.b16 %v35
  %v370 = vunpack.c.h.b16 %v35
  %v371 = vunpack.c.l.b16 %v36
  %v372 = vunpack.c.h.b16 %v36
  %v373 = vunpack.c.l.b16 %v37
  %v374 = vunpack.c.h.b16 %v37
  %v375 = vunpack.c.l.b16 %v38
  %v376 = vunpack.c.h.b16 %v38
  %v377 = vunpack.c.l.b16 %v39
  %v378 = vunpack.c.h.b16 %v39
  %v379 = vunpack.c.l.b16 %v40
  %v380 = vunpack.c.h.b16 %v40
  %v381 = vunpack.c.l.b16 %v41
  %v382 = vunpack.c.h.b16 %v41
  %v383 = vunpack.c.l.b16 %v42
  %v384 = vunpack.c.h.b16 %v42
  %v385 = vunpack.c.l.b16 %v43
  %v386 = vunpack.c.h.b16 %v43
  %v387 = vunpack.c.l.b16 %v44
  %v388 = vunpack.c.h.b16 %v44
  %v389 = vunpack.c.l.b16 %v45
  %v390 = vunpack.c.h.b16 %v45
  %v391 = vunpack.c.l.b16 %v46
  %v392 = vunpack.c.h.b16 %v46
  %v393 = vunpack.c.l.b16 %v47
  %v394 = vunpack.c.h.b16 %v47
  %v395 = vunpack.c.l.b16 %v48
  %v396 = vunpack.c.h.b16 %v48
  %v397 = vunpack.c.l.b16 %v49
  %v398 = vunpack.c.h.b16 %v49
  %v399 = vunpack.c.l.b16 %v50
  %v400 = vunpack.c.h.b16 %v50
  %v401 = vunpack.c.l.b16 %v51
  %v402 = vunpack.c.h.b16 %v51
  %v403 = vunpack.c.l.b16 %v52
  %v404 = vunpack.c.h.b16 %v52
  %v405 = vunpack.c.l.b16 %v53
  %v406 = vunpack.c.h.b16 %v53
  %v407 = vpack.c.b16 %v345, %v343
  %v408 = vpack.c.b16 %v346, %v344
  %v409 = vpack.c.b16 %v349, %v347
  %v410 = vpack.c.b16 %v350, %v348
  %v411 = vpack.c.b16 %v353, %v351
  %v412 = vpack.c.b16 %v354, %v352
  %v413 = vpack.c.b16 %v357, %v355
  %v414 = vpack.c.b16 %v358, %v356
  %v415 = vpack.c.b16 %v361, %v359
  %v416 = vpack.c.b16 %v362, %v360
  %v417 = vpack.c.b16 %v365, %v363
  %v418 = vpack.c.b16 %v366, %v364
  %v419 = vpack.c.b16 %v369, %v367
  %v420 = vpack.c.b16 %v370, %v368
  %v421 = vpack.c.b16 %v373, %v371
  %v422 = vpack.c.b16 %v374, %v372
  %v423 = vpack.c.b16 %v377, %v375
  %v424 = vpack.c.b16 %v378, %v376
  %v425 = vpack.c.b16 %v381, %v379
  %v426 = vpack.c.b16 %v382, %v380
  %v427 = vpack.c.b16 %v385, %v383
  %v428 = vpack.c.b16 %v386, %v384
  %v429 = vpack.c.b16 %v389, %v387
  %v430 = vpack.c.b16 %v390, %v388
  %v431 = vpack.c.b16 %v393, %v391
  %v432 = vpack.c.b16 %v394, %v392
  %v433 = vpack.c.b16 %v397, %v395
  %v434 = vpack.c.b16 %v398, %v396
  %v435 = vpack.c.b16 %v401, %v399
  %v436 = vpack.c.b16 %v402, %v400
  %v437 = vpack.c.b16 %v405, %v403
  %v438 = vpack.c.b16 %v406, %v404
  %471 = vmatprep.subr.bf16.mxu0 %v408
  %472 = vmatpush1.bf16.msra.mxu0 %v407
  %473 = vmatprep.subr.bf16.mxu0 %v410
  %474 = vmatpush1.bf16.msra.mxu0 %v409
  %475 = vmatprep.subr.bf16.mxu0 %v412
  %476 = vmatpush1.bf16.msra.mxu0 %v411
  %477 = vmatprep.subr.bf16.mxu0 %v414
  %478 = vmatpush1.bf16.msra.mxu0 %v413
  %479 = vmatprep.subr.bf16.mxu0 %v416
  %480 = vmatpush1.bf16.msra.mxu0 %v415
  %481 = vmatprep.subr.bf16.mxu0 %v418
  %482 = vmatpush1.bf16.msra.mxu0 %v417
  %483 = vmatprep.subr.bf16.mxu0 %v420
  %484 = vmatpush1.bf16.msra.mxu0 %v419
  %485 = vmatprep.subr.bf16.mxu0 %v422
  %486 = vmatpush1.bf16.msra.mxu0 %v421
  %487 = vmatprep.subr.bf16.mxu0 %v424
  %488 = vmatpush1.bf16.msra.mxu0 %v423
  %489 = vmatprep.subr.bf16.mxu0 %v426
  %490 = vmatpush1.bf16.msra.mxu0 %v425
  %491 = vmatprep.subr.bf16.mxu0 %v428
  %492 = vmatpush1.bf16.msra.mxu0 %v427
  %493 = vmatprep.subr.bf16.mxu0 %v430
  %494 = vmatpush1.bf16.msra.mxu0 %v429
  %495 = vmatprep.subr.bf16.mxu0 %v432
  %496 = vmatpush1.bf16.msra.mxu0 %v431
  %497 = vmatprep.subr.bf16.mxu0 %v434
  %498 = vmatpush1.bf16.msra.mxu0 %v433
  %499 = vmatprep.subr.bf16.mxu0 %v436
  %500 = vmatpush1.bf16.msra.mxu0 %v435
  %501 = vmatprep.subr.bf16.mxu0 %v438
  %502 = vmatpush1.bf16.msra.mxu0 %v437
  %503 = vmatprep.mubr.bf16.mxu0 %v308
  %504 = vmatmul.mubr.bf16.gmra.mrb[0].mxu0 %v307
  %v505 = vpop.f32.mrb[0].mxu0
  %v506 = vadd.f32 %v293, %v505
  %v507 = vpop.f32.mrb[0].mxu0
  %v508 = vadd.f32 %v295, %v507
  %v509 = vpop.f32.mrb[0].mxu0
  %v510 = vadd.f32 %v297, %v509
  %v511 = vpop.f32.mrb[0].mxu0
  %v512 = vadd.f32 %v299, %v511
  %513 = vdwg.mxu0
  %v514 = vld [vmem:[%s4] sm:$0x3]
  %v516 = vlaneseq
  %v517 = vshrl.u32 %v516, 7
  %v518 = vsub.s32 0, %v517
  %v519 = vrot.slane %v514, %v518
  %v520 = vlaneseq
  %v521 = vshrl.u32 %v520, 7
  %v522 = vsub.s32 1, %v521
  %v523 = vrot.slane %v514, %v522
  %v526 = vadd.f32 %v506, %v519
  %v527 = vadd.f32 %v508, %v523
  %v528 = vadd.f32 %v510, %v519
  %v529 = vadd.f32 %v512, %v523
  %v530 = vxor.u32 %v526, 2147483648
  %v531 = vxor.u32 %v527, 2147483648
  %v532 = vxor.u32 %v528, 2147483648
  %v533 = vxor.u32 %v529, 2147483648
  %v534 = vmul.f32 %v530, 1.442695
  %v535 = vpow.pop %v534
  %v536 = vmul.f32 %v531, 1.442695
  %v537 = vpow.pop %v536
  %v538 = vmul.f32 %v532, 1.442695
  %v539 = vpow.pop %v538
  %v540 = vmul.f32 %v533, 1.442695
  %v541 = vpow.pop %v540
  %v542 = vadd.f32 %v535, 1.0
  %v543 = vadd.f32 %v537, 1.0
  %v544 = vadd.f32 %v539, 1.0
  %v545 = vadd.f32 %v541, 1.0
  %v546 = vrcp.pop %v542
  %v547 = vmul.f32 1.0, %v546
  %v548 = vrcp.pop %v543
  %v549 = vmul.f32 1.0, %v548
  %v550 = vrcp.pop %v544
  %v551 = vmul.f32 1.0, %v550
  %v552 = vrcp.pop %v545
  %v553 = vmul.f32 1.0, %v552
  %v554 = vmul.f32 %v526, %v547
  %v555 = vmul.f32 %v527, %v549
  %v556 = vmul.f32 %v528, %v551
  %v557 = vmul.f32 %v529, %v553
  %558 = vst [vmem:[%s5] sm:$0xff] %v554
  %559 = vst [vmem:[%s5 + $0x8] sm:$0xff] %v555
  %560 = vst [vmem:[%s5 + $0x10] sm:$0xff] %v556
  %561 = vst [vmem:[%s5 + $0x18] sm:$0xff] %v557
  // Predicated region
  $region22: #{neck_fwd.21} parent=0 // pred_check
    _
  $region23: #{neck_fwd.21} parent=0 // pred_check_branch
    %563 = sbr.rel (0) target = $region25
  $region24: #{neck_fwd.21} parent=0 // pred_region
    _
  $region25: #{neck_fwd.21} parent=0 // pred_fallthru
    _
  // Predicated region
  $region26: #{neck_fwd.21} parent=0 // pred_check
    _
  $region27: #{neck_fwd.21} parent=0 // pred_check_branch
    %565 = sbr.rel (0) target = $region29
  $region28: #{neck_fwd.21} parent=0 // pred_region
    _
  $region29: #{neck_fwd.21} parent=0 // pred_fallthru
    _

// kernel: neck_fwd.23
$region0: #{neck_fwd.23}
  #allocation0 [shape = 'u32[]', space=smem, size = 0x4, offset = 0x4, fixed_abs, tag = 'smem constant byte address 0x4 - core index']
  #allocation1 [shape = 'u32[144,128]{1,0:T(1,128)}', space=vmem, size = 0x12000, scoped, tag = 'internal scratch']
  %s0 = inlined_call_operand.vmem [shape: bf16[16,1152], index: 0, kind: input, shape index: {}]
  %s1 = inlined_call_operand.vmem [shape: bf16[1152,128], index: 1, kind: input, shape index: {}]
  %s2 = inlined_call_operand.vmem [shape: f32[1,128], index: 2, kind: input, shape index: {}]
  %s3 = inlined_call_operand.vmem [shape: f32[16,128], index: 3, kind: output, shape index: {}]
  %s4 = sld [smem:[#allocation0]]
  $region22: #{neck_fwd.23} parent=0
    _
  %s6 = ssub.s32 1, %s4
  %s7 = scalar_select 0, %s6, %s4
  // Predicated region
  $region2: #{neck_fwd.23} parent=0 // pred_check
    _
  $region3: #{neck_fwd.23} parent=0 // pred_check_branch
    %9 = sbr.rel (0) target = $region5
  $region4: #{neck_fwd.23} parent=0 // pred_region
    _
  $region5: #{neck_fwd.23} parent=0 // pred_fallthru
    _
  // Predicated region
  $region6: #{neck_fwd.23} parent=0 // pred_check
    _
  $region7: #{neck_fwd.23} parent=0 // pred_check_branch
    %11 = sbr.rel (0) target = $region9
  $region8: #{neck_fwd.23} parent=0 // pred_region
    _
  $region9: #{neck_fwd.23} parent=0 // pred_fallthru
    _
  // Predicated region
  $region10: #{neck_fwd.23} parent=0 // pred_check
    _
  $region11: #{neck_fwd.23} parent=0 // pred_check_branch
    %13 = sbr.rel (0) target = $region13
  $region12: #{neck_fwd.23} parent=0 // pred_region
    _
  $region13: #{neck_fwd.23} parent=0 // pred_fallthru
    _
  %v15 = vld [vmem:[%s0] sm:$0xff]
  %v16 = vld [vmem:[%s0 + $0x8] sm:$0xff]
  %v17 = vld [vmem:[%s0 + $0x10] sm:$0xff]
  %v18 = vld [vmem:[%s0 + $0x18] sm:$0xff]
  %v19 = vld [vmem:[%s0 + $0x20] sm:$0xf]
  %v20 = vld [vmem:[%s0 + $0x24] sm:$0xff]
  %v21 = vld [vmem:[%s0 + $0x2c] sm:$0xff]
  %v22 = vld [vmem:[%s0 + $0x34] sm:$0xff]
  %v23 = vld [vmem:[%s0 + $0x3c] sm:$0xff]
  %v24 = vld [vmem:[%s0 + $0x44] sm:$0xf]
  %v25 = vld [vmem:[%s1] sm:$0xf]
  %v26 = vld [vmem:[%s1 + $0x4] sm:$0xf]
  %v27 = vld [vmem:[%s1 + $0x8] sm:$0xf]
  %v28 = vld [vmem:[%s1 + $0xc] sm:$0xf]
  %v29 = vld [vmem:[%s1 + $0x10] sm:$0xf]
  %v30 = vld [vmem:[%s1 + $0x14] sm:$0xf]
  %v31 = vld [vmem:[%s1 + $0x18] sm:$0xf]
  %v32 = vld [vmem:[%s1 + $0x1c] sm:$0xf]
  %v33 = vld [vmem:[%s1 + $0x20] sm:$0xf]
  %v34 = vld [vmem:[%s1 + $0x24] sm:$0xf]
  %v35 = vld [vmem:[%s1 + $0x28] sm:$0xf]
  %v36 = vld [vmem:[%s1 + $0x2c] sm:$0xf]
  %v37 = vld [vmem:[%s1 + $0x30] sm:$0xf]
  %v38 = vld [vmem:[%s1 + $0x34] sm:$0xf]
  %v39 = vld [vmem:[%s1 + $0x38] sm:$0xf]
  %v40 = vld [vmem:[%s1 + $0x3c] sm:$0xf]
  %v41 = vld [vmem:[%s1 + $0x40] sm:$0xf]
  %v42 = vld [vmem:[%s1 + $0x44] sm:$0xf]
  %v43 = vld [vmem:[%s1 + $0x48] sm:$0xf]
  %v44 = vld [vmem:[%s1 + $0x4c] sm:$0xf]
  %v45 = vld [vmem:[%s1 + $0x50] sm:$0xf]
  %v46 = vld [vmem:[%s1 + $0x54] sm:$0xf]
  %v47 = vld [vmem:[%s1 + $0x58] sm:$0xf]
  %v48 = vld [vmem:[%s1 + $0x5c] sm:$0xf]
  %v49 = vld [vmem:[%s1 + $0x60] sm:$0xf]
  %v50 = vld [vmem:[%s1 + $0x64] sm:$0xf]
  %v51 = vld [vmem:[%s1 + $0x68] sm:$0xf]
  %v52 = vld [vmem:[%s1 + $0x6c] sm:$0xf]
  %v53 = vld [vmem:[%s1 + $0x70] sm:$0xf]
  %v54 = vld [vmem:[%s1 + $0x74] sm:$0xf]
  %v55 = vld [vmem:[%s1 + $0x78] sm:$0xf]
  %v56 = vld [vmem:[%s1 + $0x7c] sm:$0xf]
  %v57 = vld [vmem:[%s1 + $0x80] sm:$0xf]
  %v58 = vld [vmem:[%s1 + $0x84] sm:$0xf]
  %v59 = vld [vmem:[%s1 + $0x88] sm:$0xf]
  %v60 = vld [vmem:[%s1 + $0x8c] sm:$0xf]
  %v61 = vld [vmem:[%s1 + $0x90] sm:$0xf]
  %v62 = vld [vmem:[%s1 + $0x94] sm:$0xf]
  %v63 = vld [vmem:[%s1 + $0x98] sm:$0xf]
  %v64 = vld [vmem:[%s1 + $0x9c] sm:$0xf]
  %v65 = vld [vmem:[%s1 + $0xa0] sm:$0xf]
  %v66 = vld [vmem:[%s1 + $0xa4] sm:$0xf]
  %v67 = vld [vmem:[%s1 + $0xa8] sm:$0xf]
  %v68 = vld [vmem:[%s1 + $0xac] sm:$0xf]
  %v69 = vld [vmem:[%s1 + $0xb0] sm:$0xf]
  %v70 = vld [vmem:[%s1 + $0xb4] sm:$0xf]
  %v71 = vld [vmem:[%s1 + $0xb8] sm:$0xf]
  %v72 = vld [vmem:[%s1 + $0xbc] sm:$0xf]
  %v73 = vld [vmem:[%s1 + $0xc0] sm:$0xf]
  %v74 = vld [vmem:[%s1 + $0xc4] sm:$0xf]
  %v75 = vld [vmem:[%s1 + $0xc8] sm:$0xf]
  %v76 = vld [vmem:[%s1 + $0xcc] sm:$0xf]
  %v77 = vld [vmem:[%s1 + $0xd0] sm:$0xf]
  %v78 = vld [vmem:[%s1 + $0xd4] sm:$0xf]
  %v79 = vld [vmem:[%s1 + $0xd8] sm:$0xf]
  %v80 = vld [vmem:[%s1 + $0xdc] sm:$0xf]
  %v81 = vld [vmem:[%s1 + $0xe0] sm:$0xf]
  %v82 = vld [vmem:[%s1 + $0xe4] sm:$0xf]
  %v83 = vld [vmem:[%s1 + $0xe8] sm:$0xf]
  %v84 = vld [vmem:[%s1 + $0xec] sm:$0xf]
  %v85 = vld [vmem:[%s1 + $0xf0] sm:$0xf]
  %v86 = vld [vmem:[%s1 + $0xf4] sm:$0xf]
  %v87 = vld [vmem:[%s1 + $0xf8] sm:$0xf]
  %v88 = vld [vmem:[%s1 + $0xfc] sm:$0xf]
  %v89 = vld [vmem:[%s1 + $0x100] sm:$0xf]
  %v90 = vld [vmem:[%s1 + $0x104] sm:$0xf]
  %v91 = vld [vmem:[%s1 + $0x108] sm:$0xf]
  %v92 = vld [vmem:[%s1 + $0x10c] sm:$0xf]
  %v93 = vld [vmem:[%s1 + $0x110] sm:$0xf]
  %v94 = vld [vmem:[%s1 + $0x114] sm:$0xf]
  %v95 = vld [vmem:[%s1 + $0x118] sm:$0xf]
  %v96 = vld [vmem:[%s1 + $0x11c] sm:$0xf]
  %v97 = vld [vmem:[%s1 + $0x120] sm:$0xf]
  %v98 = vld [vmem:[%s1 + $0x124] sm:$0xf]
  %v99 = vld [vmem:[%s1 + $0x128] sm:$0xf]
  %v100 = vld [vmem:[%s1 + $0x12c] sm:$0xf]
  %v101 = vld [vmem:[%s1 + $0x130] sm:$0xf]
  %v102 = vld [vmem:[%s1 + $0x134] sm:$0xf]
  %v103 = vld [vmem:[%s1 + $0x138] sm:$0xf]
  %v104 = vld [vmem:[%s1 + $0x13c] sm:$0xf]
  %v105 = vld [vmem:[%s1 + $0x140] sm:$0xf]
  %v106 = vld [vmem:[%s1 + $0x144] sm:$0xf]
  %v107 = vld [vmem:[%s1 + $0x148] sm:$0xf]
  %v108 = vld [vmem:[%s1 + $0x14c] sm:$0xf]
  %v109 = vld [vmem:[%s1 + $0x150] sm:$0xf]
  %v110 = vld [vmem:[%s1 + $0x154] sm:$0xf]
  %v111 = vld [vmem:[%s1 + $0x158] sm:$0xf]
  %v112 = vld [vmem:[%s1 + $0x15c] sm:$0xf]
  %v113 = vld [vmem:[%s1 + $0x160] sm:$0xf]
  %v114 = vld [vmem:[%s1 + $0x164] sm:$0xf]
  %v115 = vld [vmem:[%s1 + $0x168] sm:$0xf]
  %v116 = vld [vmem:[%s1 + $0x16c] sm:$0xf]
  %v117 = vld [vmem:[%s1 + $0x170] sm:$0xf]
  %v118 = vld [vmem:[%s1 + $0x174] sm:$0xf]
  %v119 = vld [vmem:[%s1 + $0x178] sm:$0xf]
  %v120 = vld [vmem:[%s1 + $0x17c] sm:$0xf]
  %v121 = vld [vmem:[%s1 + $0x180] sm:$0xf]
  %v122 = vld [vmem:[%s1 + $0x184] sm:$0xf]
  %v123 = vld [vmem:[%s1 + $0x188] sm:$0xf]
  %v124 = vld [vmem:[%s1 + $0x18c] sm:$0xf]
  %v125 = vld [vmem:[%s1 + $0x190] sm:$0xf]
  %v126 = vld [vmem:[%s1 + $0x194] sm:$0xf]
  %v127 = vld [vmem:[%s1 + $0x198] sm:$0xf]
  %v128 = vld [vmem:[%s1 + $0x19c] sm:$0xf]
  %v129 = vld [vmem:[%s1 + $0x1a0] sm:$0xf]
  %v130 = vld [vmem:[%s1 + $0x1a4] sm:$0xf]
  %v131 = vld [vmem:[%s1 + $0x1a8] sm:$0xf]
  %v132 = vld [vmem:[%s1 + $0x1ac] sm:$0xf]
  %v133 = vld [vmem:[%s1 + $0x1b0] sm:$0xf]
  %v134 = vld [vmem:[%s1 + $0x1b4] sm:$0xf]
  %v135 = vld [vmem:[%s1 + $0x1b8] sm:$0xf]
  %v136 = vld [vmem:[%s1 + $0x1bc] sm:$0xf]
  %v137 = vld [vmem:[%s1 + $0x1c0] sm:$0xf]
  %v138 = vld [vmem:[%s1 + $0x1c4] sm:$0xf]
  %v139 = vld [vmem:[%s1 + $0x1c8] sm:$0xf]
  %v140 = vld [vmem:[%s1 + $0x1cc] sm:$0xf]
  %v141 = vld [vmem:[%s1 + $0x1d0] sm:$0xf]
  %v142 = vld [vmem:[%s1 + $0x1d4] sm:$0xf]
  %v143 = vld [vmem:[%s1 + $0x1d8] sm:$0xf]
  %v144 = vld [vmem:[%s1 + $0x1dc] sm:$0xf]
  %v145 = vld [vmem:[%s1 + $0x1e0] sm:$0xf]
  %v146 = vld [vmem:[%s1 + $0x1e4] sm:$0xf]
  %v147 = vld [vmem:[%s1 + $0x1e8] sm:$0xf]
  %v148 = vld [vmem:[%s1 + $0x1ec] sm:$0xf]
  %v149 = vld [vmem:[%s1 + $0x1f0] sm:$0xf]
  %v150 = vld [vmem:[%s1 + $0x1f4] sm:$0xf]
  %v151 = vld [vmem:[%s1 + $0x1f8] sm:$0xf]
  %v152 = vld [vmem:[%s1 + $0x1fc] sm:$0xf]
  %v153 = vld [vmem:[%s1 + $0x200] sm:$0xf]
  %v154 = vld [vmem:[%s1 + $0x204] sm:$0xf]
  %v155 = vld [vmem:[%s1 + $0x208] sm:$0xf]
  %v156 = vld [vmem:[%s1 + $0x20c] sm:$0xf]
  %v157 = vld [vmem:[%s1 + $0x210] sm:$0xf]
  %v158 = vld [vmem:[%s1 + $0x214] sm:$0xf]
  %v159 = vld [vmem:[%s1 + $0x218] sm:$0xf]
  %v160 = vld [vmem:[%s1 + $0x21c] sm:$0xf]
  %v161 = vld [vmem:[%s1 + $0x220] sm:$0xf]
  %v162 = vld [vmem:[%s1 + $0x224] sm:$0xf]
  %v163 = vld [vmem:[%s1 + $0x228] sm:$0xf]
  %v164 = vld [vmem:[%s1 + $0x22c] sm:$0xf]
  %v165 = vld [vmem:[%s1 + $0x230] sm:$0xf]
  %v166 = vld [vmem:[%s1 + $0x234] sm:$0xf]
  %v167 = vld [vmem:[%s1 + $0x238] sm:$0xf]
  %v168 = vld [vmem:[%s1 + $0x23c] sm:$0xf]
  %v169 = vld [vmem:[%s2] sm:$0x1]
  %v171 = vlaneseq
  %v172 = vshrl.u32 %v171, 7
  %v173 = vsub.s32 0, %v172
  %v174 = vrot.slane %v169, %v173
  %v186 = vunpack.c.l.b16 %v15
  %v187 = vunpack.c.h.b16 %v15
  %v188 = vunpack.c.l.b16 %v16
  %v189 = vunpack.c.h.b16 %v16
  %v190 = vunpack.c.l.b16 %v17
  %v191 = vunpack.c.h.b16 %v17
  %v192 = vunpack.c.l.b16 %v18
  %v193 = vunpack.c.h.b16 %v18
  %v194 = vunpack.c.l.b16 %v19
  %v195 = vunpack.c.l.b16 %v20
  %v196 = vunpack.c.h.b16 %v20
  %v197 = vunpack.c.l.b16 %v21
  %v198 = vunpack.c.h.b16 %v21
  %v199 = vunpack.c.l.b16 %v22
  %v200 = vunpack.c.h.b16 %v22
  %v201 = vunpack.c.l.b16 %v23
  %v202 = vunpack.c.h.b16 %v23
  %v203 = vunpack.c.l.b16 %v24
  %v204 = vpack.c.b16 %v195, %v186
  %v205 = vpack.c.b16 %v196, %v187
  %v206 = vpack.c.b16 %v197, %v188
  %v207 = vpack.c.b16 %v198, %v189
  %v208 = vpack.c.b16 %v199, %v190
  %v209 = vpack.c.b16 %v200, %v191
  %v210 = vpack.c.b16 %v201, %v192
  %v211 = vpack.c.b16 %v202, %v193
  %v212 = vpack.c.b16 %v203, %v194
  %v366 = vunpack.c.l.b16 %v25
  %v367 = vunpack.c.l.b16 %v26
  %v368 = vunpack.c.l.b16 %v27
  %v369 = vunpack.c.l.b16 %v28
  %v370 = vunpack.c.l.b16 %v29
  %v371 = vunpack.c.l.b16 %v30
  %v372 = vunpack.c.l.b16 %v31
  %v373 = vunpack.c.l.b16 %v32
  %v374 = vunpack.c.l.b16 %v33
  %v375 = vunpack.c.l.b16 %v34
  %v376 = vunpack.c.l.b16 %v35
  %v377 = vunpack.c.l.b16 %v36
  %v378 = vunpack.c.l.b16 %v37
  %v379 = vunpack.c.l.b16 %v38
  %v380 = vunpack.c.l.b16 %v39
  %v381 = vunpack.c.l.b16 %v40
  %v382 = vunpack.c.l.b16 %v41
  %v383 = vunpack.c.l.b16 %v42
  %v384 = vunpack.c.l.b16 %v43
  %v385 = vunpack.c.l.b16 %v44
  %v386 = vunpack.c.l.b16 %v45
  %v387 = vunpack.c.l.b16 %v46
  %v388 = vunpack.c.l.b16 %v47
  %v389 = vunpack.c.l.b16 %v48
  %v390 = vunpack.c.l.b16 %v49
  %v391 = vunpack.c.l.b16 %v50
  %v392 = vunpack.c.l.b16 %v51
  %v393 = vunpack.c.l.b16 %v52
  %v394 = vunpack.c.l.b16 %v53
  %v395 = vunpack.c.l.b16 %v54
  %v396 = vunpack.c.l.b16 %v55
  %v397 = vunpack.c.l.b16 %v56
  %v398 = vunpack.c.l.b16 %v57
  %v399 = vunpack.c.l.b16 %v58
  %v400 = vunpack.c.l.b16 %v59
  %v401 = vunpack.c.l.b16 %v60
  %v402 = vunpack.c.l.b16 %v61
  %v403 = vunpack.c.l.b16 %v62
  %v404 = vunpack.c.l.b16 %v63
  %v405 = vunpack.c.l.b16 %v64
  %v406 = vunpack.c.l.b16 %v65
  %v407 = vunpack.c.l.b16 %v66
  %v408 = vunpack.c.l.b16 %v67
  %v409 = vunpack.c.l.b16 %v68
  %v410 = vunpack.c.l.b16 %v69
  %v411 = vunpack.c.l.b16 %v70
  %v412 = vunpack.c.l.b16 %v71
  %v413 = vunpack.c.l.b16 %v72
  %v414 = vunpack.c.l.b16 %v73
  %v415 = vunpack.c.l.b16 %v74
  %v416 = vunpack.c.l.b16 %v75
  %v417 = vunpack.c.l.b16 %v76
  %v418 = vunpack.c.l.b16 %v77
  %v419 = vunpack.c.l.b16 %v78
  %v420 = vunpack.c.l.b16 %v79
  %v421 = vunpack.c.l.b16 %v80
  %v422 = vunpack.c.l.b16 %v81
  %v423 = vunpack.c.l.b16 %v82
  %v424 = vunpack.c.l.b16 %v83
  %v425 = vunpack.c.l.b16 %v84
  %v426 = vunpack.c.l.b16 %v85
  %v427 = vunpack.c.l.b16 %v86
  %v428 = vunpack.c.l.b16 %v87
  %v429 = vunpack.c.l.b16 %v88
  %v430 = vunpack.c.l.b16 %v89
  %v431 = vunpack.c.l.b16 %v90
  %v432 = vunpack.c.l.b16 %v91
  %v433 = vunpack.c.l.b16 %v92
  %v434 = vunpack.c.l.b16 %v93
  %v435 = vunpack.c.l.b16 %v94
  %v436 = vunpack.c.l.b16 %v95
  %v437 = vunpack.c.l.b16 %v96
  %v438 = vunpack.c.l.b16 %v97
  %v439 = vunpack.c.l.b16 %v98
  %v440 = vunpack.c.l.b16 %v99
  %v441 = vunpack.c.l.b16 %v100
  %v442 = vunpack.c.l.b16 %v101
  %v443 = vunpack.c.l.b16 %v102
  %v444 = vunpack.c.l.b16 %v103
  %v445 = vunpack.c.l.b16 %v104
  %v446 = vunpack.c.l.b16 %v105
  %v447 = vunpack.c.l.b16 %v106
  %v448 = vunpack.c.l.b16 %v107
  %v449 = vunpack.c.l.b16 %v108
  %v450 = vunpack.c.l.b16 %v109
  %v451 = vunpack.c.l.b16 %v110
  %v452 = vunpack.c.l.b16 %v111
  %v453 = vunpack.c.l.b16 %v112
  %v454 = vunpack.c.l.b16 %v113
  %v455 = vunpack.c.l.b16 %v114
  %v456 = vunpack.c.l.b16 %v115
  %v457 = vunpack.c.l.b16 %v116
  %v458 = vunpack.c.l.b16 %v117
  %v459 = vunpack.c.l.b16 %v118
  %v460 = vunpack.c.l.b16 %v119
  %v461 = vunpack.c.l.b16 %v120
  %v462 = vunpack.c.l.b16 %v121
  %v463 = vunpack.c.l.b16 %v122
  %v464 = vunpack.c.l.b16 %v123
  %v465 = vunpack.c.l.b16 %v124
  %v466 = vunpack.c.l.b16 %v125
  %v467 = vunpack.c.l.b16 %v126
  %v468 = vunpack.c.l.b16 %v127
  %v469 = vunpack.c.l.b16 %v128
  %v470 = vunpack.c.l.b16 %v129
  %v471 = vunpack.c.l.b16 %v130
  %v472 = vunpack.c.l.b16 %v131
  %v473 = vunpack.c.l.b16 %v132
  %v474 = vunpack.c.l.b16 %v133
  %v475 = vunpack.c.l.b16 %v134
  %v476 = vunpack.c.l.b16 %v135
  %v477 = vunpack.c.l.b16 %v136
  %v478 = vunpack.c.l.b16 %v137
  %v479 = vunpack.c.l.b16 %v138
  %v480 = vunpack.c.l.b16 %v139
  %v481 = vunpack.c.l.b16 %v140
  %v482 = vunpack.c.l.b16 %v141
  %v483 = vunpack.c.l.b16 %v142
  %v484 = vunpack.c.l.b16 %v143
  %v485 = vunpack.c.l.b16 %v144
  %v486 = vunpack.c.l.b16 %v145
  %v487 = vunpack.c.l.b16 %v146
  %v488 = vunpack.c.l.b16 %v147
  %v489 = vunpack.c.l.b16 %v148
  %v490 = vunpack.c.l.b16 %v149
  %v491 = vunpack.c.l.b16 %v150
  %v492 = vunpack.c.l.b16 %v151
  %v493 = vunpack.c.l.b16 %v152
  %v494 = vunpack.c.l.b16 %v153
  %v495 = vunpack.c.l.b16 %v154
  %v496 = vunpack.c.l.b16 %v155
  %v497 = vunpack.c.l.b16 %v156
  %v498 = vunpack.c.l.b16 %v157
  %v499 = vunpack.c.l.b16 %v158
  %v500 = vunpack.c.l.b16 %v159
  %v501 = vunpack.c.l.b16 %v160
  %v502 = vunpack.c.l.b16 %v161
  %v503 = vunpack.c.l.b16 %v162
  %v504 = vunpack.c.l.b16 %v163
  %v505 = vunpack.c.l.b16 %v164
  %v506 = vunpack.c.l.b16 %v165
  %v507 = vunpack.c.l.b16 %v166
  %v508 = vunpack.c.l.b16 %v167
  %v509 = vunpack.c.l.b16 %v168
  %v510 = vpack.c.b16 %v367, %v366
  %v511 = vpack.c.b16 %v369, %v368
  %v512 = vpack.c.b16 %v371, %v370
  %v513 = vpack.c.b16 %v373, %v372
  %v514 = vpack.c.b16 %v375, %v374
  %v515 = vpack.c.b16 %v377, %v376
  %v516 = vpack.c.b16 %v379, %v378
  %v517 = vpack.c.b16 %v381, %v380
  %v518 = vpack.c.b16 %v383, %v382
  %v519 = vpack.c.b16 %v385, %v384
  %v520 = vpack.c.b16 %v387, %v386
  %v521 = vpack.c.b16 %v389, %v388
  %v522 = vpack.c.b16 %v391, %v390
  %v523 = vpack.c.b16 %v393, %v392
  %v524 = vpack.c.b16 %v395, %v394
  %v525 = vpack.c.b16 %v397, %v396
  %v526 = vpack.c.b16 %v399, %v398
  %v527 = vpack.c.b16 %v401, %v400
  %v528 = vpack.c.b16 %v403, %v402
  %v529 = vpack.c.b16 %v405, %v404
  %v530 = vpack.c.b16 %v407, %v406
  %v531 = vpack.c.b16 %v409, %v408
  %v532 = vpack.c.b16 %v411, %v410
  %v533 = vpack.c.b16 %v413, %v412
  %v534 = vpack.c.b16 %v415, %v414
  %v535 = vpack.c.b16 %v417, %v416
  %v536 = vpack.c.b16 %v419, %v418
  %v537 = vpack.c.b16 %v421, %v420
  %v538 = vpack.c.b16 %v423, %v422
  %v539 = vpack.c.b16 %v425, %v424
  %v540 = vpack.c.b16 %v427, %v426
  %v541 = vpack.c.b16 %v429, %v428
  %v542 = vpack.c.b16 %v431, %v430
  %v543 = vpack.c.b16 %v433, %v432
  %v544 = vpack.c.b16 %v435, %v434
  %v545 = vpack.c.b16 %v437, %v436
  %v546 = vpack.c.b16 %v439, %v438
  %v547 = vpack.c.b16 %v441, %v440
  %v548 = vpack.c.b16 %v443, %v442
  %v549 = vpack.c.b16 %v445, %v444
  %v550 = vpack.c.b16 %v447, %v446
  %v551 = vpack.c.b16 %v449, %v448
  %v552 = vpack.c.b16 %v451, %v450
  %v553 = vpack.c.b16 %v453, %v452
  %v554 = vpack.c.b16 %v455, %v454
  %v555 = vpack.c.b16 %v457, %v456
  %v556 = vpack.c.b16 %v459, %v458
  %v557 = vpack.c.b16 %v461, %v460
  %v558 = vpack.c.b16 %v463, %v462
  %v559 = vpack.c.b16 %v465, %v464
  %v560 = vpack.c.b16 %v467, %v466
  %v561 = vpack.c.b16 %v469, %v468
  %v562 = vpack.c.b16 %v471, %v470
  %v563 = vpack.c.b16 %v473, %v472
  %v564 = vpack.c.b16 %v475, %v474
  %v565 = vpack.c.b16 %v477, %v476
  %v566 = vpack.c.b16 %v479, %v478
  %v567 = vpack.c.b16 %v481, %v480
  %v568 = vpack.c.b16 %v483, %v482
  %v569 = vpack.c.b16 %v485, %v484
  %v570 = vpack.c.b16 %v487, %v486
  %v571 = vpack.c.b16 %v489, %v488
  %v572 = vpack.c.b16 %v491, %v490
  %v573 = vpack.c.b16 %v493, %v492
  %v574 = vpack.c.b16 %v495, %v494
  %v575 = vpack.c.b16 %v497, %v496
  %v576 = vpack.c.b16 %v499, %v498
  %v577 = vpack.c.b16 %v501, %v500
  %v578 = vpack.c.b16 %v503, %v502
  %v579 = vpack.c.b16 %v505, %v504
  %v580 = vpack.c.b16 %v507, %v506
  %v581 = vpack.c.b16 %v509, %v508
  %654 = vmatprep.subr.bf16.mxu0 0
  %655 = vmatpush1.bf16.msra.mxu0 %v510
  %656 = vmatprep.subr.bf16.mxu0 0
  %657 = vmatpush1.bf16.msra.mxu0 %v511
  %658 = vmatprep.subr.bf16.mxu0 0
  %659 = vmatpush1.bf16.msra.mxu0 %v512
  %660 = vmatprep.subr.bf16.mxu0 0
  %661 = vmatpush1.bf16.msra.mxu0 %v513
  %662 = vmatprep.subr.bf16.mxu0 0
  %663 = vmatpush1.bf16.msra.mxu0 %v514
  %664 = vmatprep.subr.bf16.mxu0 0
  %665 = vmatpush1.bf16.msra.mxu0 %v515
  %666 = vmatprep.subr.bf16.mxu0 0
  %667 = vmatpush1.bf16.msra.mxu0 %v516
  %668 = vmatprep.subr.bf16.mxu0 0
  %669 = vmatpush1.bf16.msra.mxu0 %v517
  %670 = vmatprep.subr.bf16.mxu0 0
  %671 = vmatpush1.bf16.msra.mxu0 %v518
  %672 = vmatprep.subr.bf16.mxu0 0
  %673 = vmatpush1.bf16.msra.mxu0 %v519
  %674 = vmatprep.subr.bf16.mxu0 0
  %675 = vmatpush1.bf16.msra.mxu0 %v520
  %676 = vmatprep.subr.bf16.mxu0 0
  %677 = vmatpush1.bf16.msra.mxu0 %v521
  %678 = vmatprep.subr.bf16.mxu0 0
  %679 = vmatpush1.bf16.msra.mxu0 %v522
  %680 = vmatprep.subr.bf16.mxu0 0
  %681 = vmatpush1.bf16.msra.mxu0 %v523
  %682 = vmatprep.subr.bf16.mxu0 0
  %683 = vmatpush1.bf16.msra.mxu0 %v524
  %684 = vmatprep.subr.bf16.mxu0 0
  %685 = vmatpush1.bf16.msra.mxu0 %v525
  %686 = vmatprep.mubr.bf16.mxu0 %v205
  %687 = vmatmul.mubr.bf16.gmra.mrb[0].mxu0 %v204
  %v688 = vpop.f32.mrb[0].mxu0
  %v689 = vadd.f32 %v174, %v688
  %v690 = vpop.f32.mrb[0].mxu0
  %v691 = vpop.f32.mrb[0].mxu0
  %v692 = vadd.f32 %v174, %v691
  %v693 = vpop.f32.mrb[0].mxu0
  %694 = vdwg.mxu0
  %695 = vmatprep.subr.bf16.mxu0 0
  %696 = vmatpush1.bf16.msra.mxu0 %v526
  %697 = vmatprep.subr.bf16.mxu0 0
  %698 = vmatpush1.bf16.msra.mxu0 %v527
  %699 = vmatprep.subr.bf16.mxu0 0
  %700 = vmatpush1.bf16.msra.mxu0 %v528
  %701 = vmatprep.subr.bf16.mxu0 0
  %702 = vmatpush1.bf16.msra.mxu0 %v529
  %703 = vmatprep.subr.bf16.mxu0 0
  %704 = vmatpush1.bf16.msra.mxu0 %v530
  %705 = vmatprep.subr.bf16.mxu0 0
  %706 = vmatpush1.bf16.msra.mxu0 %v531
  %707 = vmatprep.subr.bf16.mxu0 0
  %708 = vmatpush1.bf16.msra.mxu0 %v532
  %709 = vmatprep.subr.bf16.mxu0 0
  %710 = vmatpush1.bf16.msra.mxu0 %v533
  %711 = vmatprep.subr.bf16.mxu0 0
  %712 = vmatpush1.bf16.msra.mxu0 %v534
  %713 = vmatprep.subr.bf16.mxu0 0
  %714 = vmatpush1.bf16.msra.mxu0 %v535
  %715 = vmatprep.subr.bf16.mxu0 0
  %716 = vmatpush1.bf16.msra.mxu0 %v536
  %717 = vmatprep.subr.bf16.mxu0 0
  %718 = vmatpush1.bf16.msra.mxu0 %v537
  %719 = vmatprep.subr.bf16.mxu0 0
  %720 = vmatpush1.bf16.msra.mxu0 %v538
  %721 = vmatprep.subr.bf16.mxu0 0
  %722 = vmatpush1.bf16.msra.mxu0 %v539
  %723 = vmatprep.subr.bf16.mxu0 0
  %724 = vmatpush1.bf16.msra.mxu0 %v540
  %725 = vmatprep.subr.bf16.mxu0 0
  %726 = vmatpush1.bf16.msra.mxu0 %v541
  %727 = vmatprep.mubr.bf16.mxu0 %v207
  %728 = vmatmul.mubr.bf16.gmra.mrb[0].mxu0 %v206
  %v729 = vpop.f32.mrb[0].mxu0
  %v730 = vadd.f32 %v689, %v729
  %v731 = vpop.f32.mrb[0].mxu0
  %v732 = vpop.f32.mrb[0].mxu0
  %v733 = vadd.f32 %v692, %v732
  %v734 = vpop.f32.mrb[0].mxu0
  %735 = vdwg.mxu0
  %736 = vmatprep.subr.bf16.mxu0 0
  %737 = vmatpush1.bf16.msra.mxu0 %v542
  %738 = vmatprep.subr.bf16.mxu0 0
  %739 = vmatpush1.bf16.msra.mxu0 %v543
  %740 = vmatprep.subr.bf16.mxu0 0
  %741 = vmatpush1.bf16.msra.mxu0 %v544
  %742 = vmatprep.subr.bf16.mxu0 0
  %743 = vmatpush1.bf16.msra.mxu0 %v545
  %744 = vmatprep.subr.bf16.mxu0 0
  %745 = vmatpush1.bf16.msra.mxu0 %v546
  %746 = vmatprep.subr.bf16.mxu0 0
  %747 = vmatpush1.bf16.msra.mxu0 %v547
  %748 = vmatprep.subr.bf16.mxu0 0
  %749 = vmatpush1.bf16.msra.mxu0 %v548
  %750 = vmatprep.subr.bf16.mxu0 0
  %751 = vmatpush1.bf16.msra.mxu0 %v549
  %752 = vmatprep.subr.bf16.mxu0 0
  %753 = vmatpush1.bf16.msra.mxu0 %v550
  %754 = vmatprep.subr.bf16.mxu0 0
  %755 = vmatpush1.bf16.msra.mxu0 %v551
  %756 = vmatprep.subr.bf16.mxu0 0
  %757 = vmatpush1.bf16.msra.mxu0 %v552
  %758 = vmatprep.subr.bf16.mxu0 0
  %759 = vmatpush1.bf16.msra.mxu0 %v553
  %760 = vmatprep.subr.bf16.mxu0 0
  %761 = vmatpush1.bf16.msra.mxu0 %v554
  %762 = vmatprep.subr.bf16.mxu0 0
  %763 = vmatpush1.bf16.msra.mxu0 %v555
  %764 = vmatprep.subr.bf16.mxu0 0
  %765 = vmatpush1.bf16.msra.mxu0 %v556
  %766 = vmatprep.subr.bf16.mxu0 0
  %767 = vmatpush1.bf16.msra.mxu0 %v557
  %768 = vmatprep.mubr.bf16.mxu0 %v209
  %769 = vmatmul.mubr.bf16.gmra.mrb[0].mxu0 %v208
  %v770 = vpop.f32.mrb[0].mxu0
  %v771 = vadd.f32 %v730, %v770
  %v772 = vpop.f32.mrb[0].mxu0
  %v773 = vpop.f32.mrb[0].mxu0
  %v774 = vadd.f32 %v733, %v773
  %v775 = vpop.f32.mrb[0].mxu0
  %776 = vdwg.mxu0
  %777 = vmatprep.subr.bf16.mxu0 0
  %778 = vmatpush1.bf16.msra.mxu0 %v558
  %779 = vmatprep.subr.bf16.mxu0 0
  %780 = vmatpush1.bf16.msra.mxu0 %v559
  %781 = vmatprep.subr.bf16.mxu0 0
  %782 = vmatpush1.bf16.msra.mxu0 %v560
  %783 = vmatprep.subr.bf16.mxu0 0
  %784 = vmatpush1.bf16.msra.mxu0 %v561
  %785 = vmatprep.subr.bf16.mxu0 0
  %786 = vmatpush1.bf16.msra.mxu0 %v562
  %787 = vmatprep.subr.bf16.mxu0 0
  %788 = vmatpush1.bf16.msra.mxu0 %v563
  %789 = vmatprep.subr.bf16.mxu0 0
  %790 = vmatpush1.bf16.msra.mxu0 %v564
  %791 = vmatprep.subr.bf16.mxu0 0
  %792 = vmatpush1.bf16.msra.mxu0 %v565
  %793 = vmatprep.subr.bf16.mxu0 0
  %794 = vmatpush1.bf16.msra.mxu0 %v566
  %795 = vmatprep.subr.bf16.mxu0 0
  %796 = vmatpush1.bf16.msra.mxu0 %v567
  %797 = vmatprep.subr.bf16.mxu0 0
  %798 = vmatpush1.bf16.msra.mxu0 %v568
  %799 = vmatprep.subr.bf16.mxu0 0
  %800 = vmatpush1.bf16.msra.mxu0 %v569
  %801 = vmatprep.subr.bf16.mxu0 0
  %802 = vmatpush1.bf16.msra.mxu0 %v570
  %803 = vmatprep.subr.bf16.mxu0 0
  %804 = vmatpush1.bf16.msra.mxu0 %v571
  %805 = vmatprep.subr.bf16.mxu0 0
  %806 = vmatpush1.bf16.msra.mxu0 %v572
  %807 = vmatprep.subr.bf16.mxu0 0
  %808 = vmatpush1.bf16.msra.mxu0 %v573
  %809 = vmatprep.mubr.bf16.mxu0 %v211
  %810 = vmatmul.mubr.bf16.gmra.mrb[0].mxu0 %v210
  %v811 = vpop.f32.mrb[0].mxu0
  %v812 = vadd.f32 %v771, %v811
  %v813 = vpop.f32.mrb[0].mxu0
  %v814 = vpop.f32.mrb[0].mxu0
  %v815 = vadd.f32 %v774, %v814
  %v816 = vpop.f32.mrb[0].mxu0
  %817 = vdwg.mxu0
  %818 = vmatprep.subr.bf16.mxu0 0
  %819 = vmatpush1.bf16.msra.mxu0 %v574
  %820 = vmatprep.subr.bf16.mxu0 0
  %821 = vmatpush1.bf16.msra.mxu0 %v575
  %822 = vmatprep.subr.bf16.mxu0 0
  %823 = vmatpush1.bf16.msra.mxu0 %v576
  %824 = vmatprep.subr.bf16.mxu0 0
  %825 = vmatpush1.bf16.msra.mxu0 %v577
  %826 = vmatprep.subr.bf16.mxu0 0
  %827 = vmatpush1.bf16.msra.mxu0 %v578
  %828 = vmatprep.subr.bf16.mxu0 0
  %829 = vmatpush1.bf16.msra.mxu0 %v579
  %830 = vmatprep.subr.bf16.mxu0 0
  %831 = vmatpush1.bf16.msra.mxu0 %v580
  %832 = vmatprep.subr.bf16.mxu0 0
  %833 = vmatpush1.bf16.msra.mxu0 %v581
  %834 = vmatprep.subr.bf16.mxu0 0
  %835 = vmatpush1.bf16.msra.mxu0 0
  %836 = vmatprep.subr.bf16.mxu0 0
  %837 = vmatpush1.bf16.msra.mxu0 0
  %838 = vmatprep.subr.bf16.mxu0 0
  %839 = vmatpush1.bf16.msra.mxu0 0
  %840 = vmatprep.subr.bf16.mxu0 0
  %841 = vmatpush1.bf16.msra.mxu0 0
  %842 = vmatprep.subr.bf16.mxu0 0
  %843 = vmatpush1.bf16.msra.mxu0 0
  %844 = vmatprep.subr.bf16.mxu0 0
  %845 = vmatpush1.bf16.msra.mxu0 0
  %846 = vmatprep.subr.bf16.mxu0 0
  %847 = vmatpush1.bf16.msra.mxu0 0
  %848 = vmatprep.subr.bf16.mxu0 0
  %849 = vmatpush1.bf16.msra.mxu0 0
  %850 = vmatprep.mubr.bf16.mxu0 0
  %851 = vmatmul.mubr.bf16.gmra.mrb[0].mxu0 %v212
  %v852 = vpop.f32.mrb[0].mxu0
  %v853 = vadd.f32 %v812, %v852
  %v854 = vpop.f32.mrb[0].mxu0
  %v855 = vpop.f32.mrb[0].mxu0
  %v856 = vadd.f32 %v815, %v855
  %v857 = vpop.f32.mrb[0].mxu0
  %858 = vdwg.mxu0
  %v859 = vxor.u32 %v853, 2147483648
  %v860 = vxor.u32 %v856, 2147483648
  %v861 = vmul.f32 %v859, 1.442695
  %v862 = vpow.pop %v861
  %v863 = vmul.f32 %v860, 1.442695
  %v864 = vpow.pop %v863
  %v865 = vadd.f32 %v862, 1.0
  %v866 = vadd.f32 %v864, 1.0
  %v867 = vrcp.pop %v865
  %v868 = vmul.f32 1.0, %v867
  %v869 = vrcp.pop %v866
  %v870 = vmul.f32 1.0, %v869
  %v871 = vmul.f32 %v853, %v868
  %v872 = vmul.f32 %v856, %v870
  %873 = vst [vmem:[%s3] sm:$0xff] %v871
  %874 = vst [vmem:[%s3 + $0x8] sm:$0xff] %v872
  // Predicated region
  $region14: #{neck_fwd.23} parent=0 // pred_check
    _
  $region15: #{neck_fwd.23} parent=0 // pred_check_branch
    %876 = sbr.rel (0) target = $region17
  $region16: #{neck_fwd.23} parent=0 // pred_region
    _
  $region17: #{neck_fwd.23} parent=0 // pred_fallthru
    _
  // Predicated region
  $region18: #{neck_fwd.23} parent=0 // pred_check
    _
  $region19: #{neck_fwd.23} parent=0 // pred_check_branch
    %878 = sbr.rel (0) target = $region21
  $region20: #{neck_fwd.23} parent=0 // pred_region
    _
  $region21: #{neck_fwd.23} parent=0 // pred_fallthru
    _

// kernel: neck_fwd.25
$region0: #{neck_fwd.25}
  #allocation0 [shape = 'u32[]', space=smem, size = 0x4, offset = 0x4, fixed_abs, tag = 'smem constant byte address 0x4 - core index']
  #allocation1 [shape = 'u32[144,128]{1,0:T(1,128)}', space=vmem, size = 0x12000, scoped, tag = 'internal scratch']
  %s0 = inlined_call_operand.vmem [shape: bf16[16,256], index: 0, kind: input, shape index: {}]
  %s1 = inlined_call_operand.vmem [shape: bf16[256,128], index: 1, kind: input, shape index: {}]
  %s2 = inlined_call_operand.vmem [shape: f32[1,128], index: 2, kind: input, shape index: {}]
  %s3 = inlined_call_operand.vmem [shape: f32[16,128], index: 3, kind: output, shape index: {}]
  %s4 = sld [smem:[#allocation0]]
  $region22: #{neck_fwd.25} parent=0
    _
  %s6 = ssub.s32 1, %s4
  %s7 = scalar_select 0, %s6, %s4
  // Predicated region
  $region2: #{neck_fwd.25} parent=0 // pred_check
    _
  $region3: #{neck_fwd.25} parent=0 // pred_check_branch
    %9 = sbr.rel (0) target = $region5
  $region4: #{neck_fwd.25} parent=0 // pred_region
    _
  $region5: #{neck_fwd.25} parent=0 // pred_fallthru
    _
  // Predicated region
  $region6: #{neck_fwd.25} parent=0 // pred_check
    _
  $region7: #{neck_fwd.25} parent=0 // pred_check_branch
    %11 = sbr.rel (0) target = $region9
  $region8: #{neck_fwd.25} parent=0 // pred_region
    _
  $region9: #{neck_fwd.25} parent=0 // pred_fallthru
    _
  // Predicated region
  $region10: #{neck_fwd.25} parent=0 // pred_check
    _
  $region11: #{neck_fwd.25} parent=0 // pred_check_branch
    %13 = sbr.rel (0) target = $region13
  $region12: #{neck_fwd.25} parent=0 // pred_region
    _
  $region13: #{neck_fwd.25} parent=0 // pred_fallthru
    _
  %v15 = vld [vmem:[%s0] sm:$0xff]
  %v16 = vld [vmem:[%s0 + $0x8] sm:$0xff]
  %v17 = vld [vmem:[%s1] sm:$0xf]
  %v18 = vld [vmem:[%s1 + $0x4] sm:$0xf]
  %v19 = vld [vmem:[%s1 + $0x8] sm:$0xf]
  %v20 = vld [vmem:[%s1 + $0xc] sm:$0xf]
  %v21 = vld [vmem:[%s1 + $0x10] sm:$0xf]
  %v22 = vld [vmem:[%s1 + $0x14] sm:$0xf]
  %v23 = vld [vmem:[%s1 + $0x18] sm:$0xf]
  %v24 = vld [vmem:[%s1 + $0x1c] sm:$0xf]
  %v25 = vld [vmem:[%s1 + $0x20] sm:$0xf]
  %v26 = vld [vmem:[%s1 + $0x24] sm:$0xf]
  %v27 = vld [vmem:[%s1 + $0x28] sm:$0xf]
  %v28 = vld [vmem:[%s1 + $0x2c] sm:$0xf]
  %v29 = vld [vmem:[%s1 + $0x30] sm:$0xf]
  %v30 = vld [vmem:[%s1 + $0x34] sm:$0xf]
  %v31 = vld [vmem:[%s1 + $0x38] sm:$0xf]
  %v32 = vld [vmem:[%s1 + $0x3c] sm:$0xf]
  %v33 = vld [vmem:[%s1 + $0x40] sm:$0xf]
  %v34 = vld [vmem:[%s1 + $0x44] sm:$0xf]
  %v35 = vld [vmem:[%s1 + $0x48] sm:$0xf]
  %v36 = vld [vmem:[%s1 + $0x4c] sm:$0xf]
  %v37 = vld [vmem:[%s1 + $0x50] sm:$0xf]
  %v38 = vld [vmem:[%s1 + $0x54] sm:$0xf]
  %v39 = vld [vmem:[%s1 + $0x58] sm:$0xf]
  %v40 = vld [vmem:[%s1 + $0x5c] sm:$0xf]
  %v41 = vld [vmem:[%s1 + $0x60] sm:$0xf]
  %v42 = vld [vmem:[%s1 + $0x64] sm:$0xf]
  %v43 = vld [vmem:[%s1 + $0x68] sm:$0xf]
  %v44 = vld [vmem:[%s1 + $0x6c] sm:$0xf]
  %v45 = vld [vmem:[%s1 + $0x70] sm:$0xf]
  %v46 = vld [vmem:[%s1 + $0x74] sm:$0xf]
  %v47 = vld [vmem:[%s1 + $0x78] sm:$0xf]
  %v48 = vld [vmem:[%s1 + $0x7c] sm:$0xf]
  %v49 = vld [vmem:[%s2] sm:$0x1]
  %v51 = vlaneseq
  %v52 = vshrl.u32 %v51, 7
  %v53 = vsub.s32 0, %v52
  %v54 = vrot.slane %v49, %v53
  %v58 = vunpack.c.l.b16 %v15
  %v59 = vunpack.c.h.b16 %v15
  %v60 = vunpack.c.l.b16 %v16
  %v61 = vunpack.c.h.b16 %v16
  %v62 = vpack.c.b16 %v60, %v58
  %v63 = vpack.c.b16 %v61, %v59
  %v98 = vunpack.c.l.b16 %v17
  %v99 = vunpack.c.l.b16 %v18
  %v100 = vunpack.c.l.b16 %v19
  %v101 = vunpack.c.l.b16 %v20
  %v102 = vunpack.c.l.b16 %v21
  %v103 = vunpack.c.l.b16 %v22
  %v104 = vunpack.c.l.b16 %v23
  %v105 = vunpack.c.l.b16 %v24
  %v106 = vunpack.c.l.b16 %v25
  %v107 = vunpack.c.l.b16 %v26
  %v108 = vunpack.c.l.b16 %v27
  %v109 = vunpack.c.l.b16 %v28
  %v110 = vunpack.c.l.b16 %v29
  %v111 = vunpack.c.l.b16 %v30
  %v112 = vunpack.c.l.b16 %v31
  %v113 = vunpack.c.l.b16 %v32
  %v114 = vunpack.c.l.b16 %v33
  %v115 = vunpack.c.l.b16 %v34
  %v116 = vunpack.c.l.b16 %v35
  %v117 = vunpack.c.l.b16 %v36
  %v118 = vunpack.c.l.b16 %v37
  %v119 = vunpack.c.l.b16 %v38
  %v120 = vunpack.c.l.b16 %v39
  %v121 = vunpack.c.l.b16 %v40
  %v122 = vunpack.c.l.b16 %v41
  %v123 = vunpack.c.l.b16 %v42
  %v124 = vunpack.c.l.b16 %v43
  %v125 = vunpack.c.l.b16 %v44
  %v126 = vunpack.c.l.b16 %v45
  %v127 = vunpack.c.l.b16 %v46
  %v128 = vunpack.c.l.b16 %v47
  %v129 = vunpack.c.l.b16 %v48
  %v130 = vpack.c.b16 %v99, %v98
  %v131 = vpack.c.b16 %v101, %v100
  %v132 = vpack.c.b16 %v103, %v102
  %v133 = vpack.c.b16 %v105, %v104
  %v134 = vpack.c.b16 %v107, %v106
  %v135 = vpack.c.b16 %v109, %v108
  %v136 = vpack.c.b16 %v111, %v110
  %v137 = vpack.c.b16 %v113, %v112
  %v138 = vpack.c.b16 %v115, %v114
  %v139 = vpack.c.b16 %v117, %v116
  %v140 = vpack.c.b16 %v119, %v118
  %v141 = vpack.c.b16 %v121, %v120
  %v142 = vpack.c.b16 %v123, %v122
  %v143 = vpack.c.b16 %v125, %v124
  %v144 = vpack.c.b16 %v127, %v126
  %v145 = vpack.c.b16 %v129, %v128
  %162 = vmatprep.subr.bf16.mxu0 0
  %163 = vmatpush1.bf16.msra.mxu0 %v130
  %164 = vmatprep.subr.bf16.mxu0 0
  %165 = vmatpush1.bf16.msra.mxu0 %v131
  %166 = vmatprep.subr.bf16.mxu0 0
  %167 = vmatpush1.bf16.msra.mxu0 %v132
  %168 = vmatprep.subr.bf16.mxu0 0
  %169 = vmatpush1.bf16.msra.mxu0 %v133
  %170 = vmatprep.subr.bf16.mxu0 0
  %171 = vmatpush1.bf16.msra.mxu0 %v134
  %172 = vmatprep.subr.bf16.mxu0 0
  %173 = vmatpush1.bf16.msra.mxu0 %v135
  %174 = vmatprep.subr.bf16.mxu0 0
  %175 = vmatpush1.bf16.msra.mxu0 %v136
  %176 = vmatprep.subr.bf16.mxu0 0
  %177 = vmatpush1.bf16.msra.mxu0 %v137
  %178 = vmatprep.subr.bf16.mxu0 0
  %179 = vmatpush1.bf16.msra.mxu0 %v138
  %180 = vmatprep.subr.bf16.mxu0 0
  %181 = vmatpush1.bf16.msra.mxu0 %v139
  %182 = vmatprep.subr.bf16.mxu0 0
  %183 = vmatpush1.bf16.msra.mxu0 %v140
  %184 = vmatprep.subr.bf16.mxu0 0
  %185 = vmatpush1.bf16.msra.mxu0 %v141
  %186 = vmatprep.subr.bf16.mxu0 0
  %187 = vmatpush1.bf16.msra.mxu0 %v142
  %188 = vmatprep.subr.bf16.mxu0 0
  %189 = vmatpush1.bf16.msra.mxu0 %v143
  %190 = vmatprep.subr.bf16.mxu0 0
  %191 = vmatpush1.bf16.msra.mxu0 %v144
  %192 = vmatprep.subr.bf16.mxu0 0
  %193 = vmatpush1.bf16.msra.mxu0 %v145
  %194 = vmatprep.mubr.bf16.mxu0 %v63
  %195 = vmatmul.mubr.bf16.gmra.mrb[0].mxu0 %v62
  %v196 = vpop.f32.mrb[0].mxu0
  %v197 = vadd.f32 %v54, %v196
  %v198 = vpop.f32.mrb[0].mxu0
  %v199 = vpop.f32.mrb[0].mxu0
  %v200 = vadd.f32 %v54, %v199
  %v201 = vpop.f32.mrb[0].mxu0
  %202 = vdwg.mxu0
  %v203 = vxor.u32 %v197, 2147483648
  %v204 = vxor.u32 %v200, 2147483648
  %v205 = vmul.f32 %v203, 1.442695
  %v206 = vpow.pop %v205
  %v207 = vmul.f32 %v204, 1.442695
  %v208 = vpow.pop %v207
  %v209 = vadd.f32 %v206, 1.0
  %v210 = vadd.f32 %v208, 1.0
  %v211 = vrcp.pop %v209
  %v212 = vmul.f32 1.0, %v211
  %v213 = vrcp.pop %v210
  %v214 = vmul.f32 1.0, %v213
  %v215 = vmul.f32 %v197, %v212
  %v216 = vmul.f32 %v200, %v214
  %217 = vst [vmem:[%s3] sm:$0xff] %v215
  %218 = vst [vmem:[%s3 + $0x8] sm:$0xff] %v216
  // Predicated region
  $region14: #{neck_fwd.25} parent=0 // pred_check
    _
  $region15: #{neck_fwd.25} parent=0 // pred_check_branch
    %220 = sbr.rel (0) target = $region17
  $region16: #{neck_fwd.25} parent=0 // pred_region
    _
  $region17: #{neck_fwd.25} parent=0 // pred_fallthru
    _
  // Predicated region
  $region18: #{neck_fwd.25} parent=0 // pred_check
    _
  $region19: #{neck_fwd.25} parent=0 // pred_check_branch
    %222 = sbr.rel (0) target = $region21
  $region20: #{neck_fwd.25} parent=0 // pred_region
    _
  $region21: #{neck_fwd.25} parent=0 // pred_fallthru
    _

// kernel: neck_fwd.24
$region0: #{neck_fwd.24}
  #allocation0 [shape = 'u32[]', space=smem, size = 0x4, offset = 0x4, fixed_abs, tag = 'smem constant byte address 0x4 - core index']
  #allocation1 [shape = 'u32[144,128]{1,0:T(1,128)}', space=vmem, size = 0x12000, scoped, tag = 'internal scratch']
  %s0 = inlined_call_operand.vmem [shape: bf16[16,128], index: 0, kind: input, shape index: {}]
  %s1 = inlined_call_operand.vmem [shape: bf16[16,128], index: 1, kind: input, shape index: {}]
  %s2 = inlined_call_operand.vmem [shape: bf16[128,256], index: 2, kind: input, shape index: {}]
  %s3 = inlined_call_operand.vmem [shape: bf16[128,256], index: 3, kind: input, shape index: {}]
  %s4 = inlined_call_operand.vmem [shape: f32[1,256], index: 4, kind: input, shape index: {}]
  %s5 = inlined_call_operand.vmem [shape: f32[16,256], index: 5, kind: output, shape index: {}]
  %s6 = sld [smem:[#allocation0]]
  $region30: #{neck_fwd.24} parent=0
    _
  %s8 = ssub.s32 1, %s6
  %s9 = scalar_select 0, %s8, %s6
  // Predicated region
  $region2: #{neck_fwd.24} parent=0 // pred_check
    _
  $region3: #{neck_fwd.24} parent=0 // pred_check_branch
    %11 = sbr.rel (0) target = $region5
  $region4: #{neck_fwd.24} parent=0 // pred_region
    _
  $region5: #{neck_fwd.24} parent=0 // pred_fallthru
    _
  // Predicated region
  $region6: #{neck_fwd.24} parent=0 // pred_check
    _
  $region7: #{neck_fwd.24} parent=0 // pred_check_branch
    %13 = sbr.rel (0) target = $region9
  $region8: #{neck_fwd.24} parent=0 // pred_region
    _
  $region9: #{neck_fwd.24} parent=0 // pred_fallthru
    _
  // Predicated region
  $region10: #{neck_fwd.24} parent=0 // pred_check
    _
  $region11: #{neck_fwd.24} parent=0 // pred_check_branch
    %15 = sbr.rel (0) target = $region13
  $region12: #{neck_fwd.24} parent=0 // pred_region
    _
  $region13: #{neck_fwd.24} parent=0 // pred_fallthru
    _
  // Predicated region
  $region14: #{neck_fwd.24} parent=0 // pred_check
    _
  $region15: #{neck_fwd.24} parent=0 // pred_check_branch
    %17 = sbr.rel (0) target = $region17
  $region16: #{neck_fwd.24} parent=0 // pred_region
    _
  $region17: #{neck_fwd.24} parent=0 // pred_fallthru
    _
  // Predicated region
  $region18: #{neck_fwd.24} parent=0 // pred_check
    _
  $region19: #{neck_fwd.24} parent=0 // pred_check_branch
    %19 = sbr.rel (0) target = $region21
  $region20: #{neck_fwd.24} parent=0 // pred_region
    _
  $region21: #{neck_fwd.24} parent=0 // pred_fallthru
    _
  %v21 = vld [vmem:[%s0] sm:$0xf]
  %v22 = vld [vmem:[%s0 + $0x4] sm:$0xf]
  %v23 = vld [vmem:[%s2] sm:$0xff]
  %v24 = vld [vmem:[%s2 + $0x8] sm:$0xff]
  %v25 = vld [vmem:[%s2 + $0x10] sm:$0xff]
  %v26 = vld [vmem:[%s2 + $0x18] sm:$0xff]
  %v27 = vld [vmem:[%s2 + $0x20] sm:$0xff]
  %v28 = vld [vmem:[%s2 + $0x28] sm:$0xff]
  %v29 = vld [vmem:[%s2 + $0x30] sm:$0xff]
  %v30 = vld [vmem:[%s2 + $0x38] sm:$0xff]
  %v31 = vld [vmem:[%s2 + $0x40] sm:$0xff]
  %v32 = vld [vmem:[%s2 + $0x48] sm:$0xff]
  %v33 = vld [vmem:[%s2 + $0x50] sm:$0xff]
  %v34 = vld [vmem:[%s2 + $0x58] sm:$0xff]
  %v35 = vld [vmem:[%s2 + $0x60] sm:$0xff]
  %v36 = vld [vmem:[%s2 + $0x68] sm:$0xff]
  %v37 = vld [vmem:[%s2 + $0x70] sm:$0xff]
  %v38 = vld [vmem:[%s2 + $0x78] sm:$0xff]
  %v39 = vld [vmem:[%s1] sm:$0xf]
  %v40 = vld [vmem:[%s1 + $0x4] sm:$0xf]
  %v41 = vld [vmem:[%s3] sm:$0xff]
  %v42 = vld [vmem:[%s3 + $0x8] sm:$0xff]
  %v43 = vld [vmem:[%s3 + $0x10] sm:$0xff]
  %v44 = vld [vmem:[%s3 + $0x18] sm:$0xff]
  %v45 = vld [vmem:[%s3 + $0x20] sm:$0xff]
  %v46 = vld [vmem:[%s3 + $0x28] sm:$0xff]
  %v47 = vld [vmem:[%s3 + $0x30] sm:$0xff]
  %v48 = vld [vmem:[%s3 + $0x38] sm:$0xff]
  %v49 = vld [vmem:[%s3 + $0x40] sm:$0xff]
  %v50 = vld [vmem:[%s3 + $0x48] sm:$0xff]
  %v51 = vld [vmem:[%s3 + $0x50] sm:$0xff]
  %v52 = vld [vmem:[%s3 + $0x58] sm:$0xff]
  %v53 = vld [vmem:[%s3 + $0x60] sm:$0xff]
  %v54 = vld [vmem:[%s3 + $0x68] sm:$0xff]
  %v55 = vld [vmem:[%s3 + $0x70] sm:$0xff]
  %v56 = vld [vmem:[%s3 + $0x78] sm:$0xff]
  %v59 = vunpack.c.l.b16 %v39
  %v60 = vunpack.c.l.b16 %v40
  %v61 = vpack.c.b16 %v60, %v59
  %v79 = vunpack.c.l.b16 %v41
  %v80 = vunpack.c.h.b16 %v41
  %v81 = vunpack.c.l.b16 %v42
  %v82 = vunpack.c.h.b16 %v42
  %v83 = vunpack.c.l.b16 %v43
  %v84 = vunpack.c.h.b16 %v43
  %v85 = vunpack.c.l.b16 %v44
  %v86 = vunpack.c.h.b16 %v44
  %v87 = vunpack.c.l.b16 %v45
  %v88 = vunpack.c.h.b16 %v45
  %v89 = vunpack.c.l.b16 %v46
  %v90 = vunpack.c.h.b16 %v46
  %v91 = vunpack.c.l.b16 %v47
  %v92 = vunpack.c.h.b16 %v47
  %v93 = vunpack.c.l.b16 %v48
  %v94 = vunpack.c.h.b16 %v48
  %v95 = vunpack.c.l.b16 %v49
  %v96 = vunpack.c.h.b16 %v49
  %v97 = vunpack.c.l.b16 %v50
  %v98 = vunpack.c.h.b16 %v50
  %v99 = vunpack.c.l.b16 %v51
  %v100 = vunpack.c.h.b16 %v51
  %v101 = vunpack.c.l.b16 %v52
  %v102 = vunpack.c.h.b16 %v52
  %v103 = vunpack.c.l.b16 %v53
  %v104 = vunpack.c.h.b16 %v53
  %v105 = vunpack.c.l.b16 %v54
  %v106 = vunpack.c.h.b16 %v54
  %v107 = vunpack.c.l.b16 %v55
  %v108 = vunpack.c.h.b16 %v55
  %v109 = vunpack.c.l.b16 %v56
  %v110 = vunpack.c.h.b16 %v56
  %v111 = vpack.c.b16 %v81, %v79
  %v112 = vpack.c.b16 %v82, %v80
  %v113 = vpack.c.b16 %v85, %v83
  %v114 = vpack.c.b16 %v86, %v84
  %v115 = vpack.c.b16 %v89, %v87
  %v116 = vpack.c.b16 %v90, %v88
  %v117 = vpack.c.b16 %v93, %v91
  %v118 = vpack.c.b16 %v94, %v92
  %v119 = vpack.c.b16 %v97, %v95
  %v120 = vpack.c.b16 %v98, %v96
  %v121 = vpack.c.b16 %v101, %v99
  %v122 = vpack.c.b16 %v102, %v100
  %v123 = vpack.c.b16 %v105, %v103
  %v124 = vpack.c.b16 %v106, %v104
  %v125 = vpack.c.b16 %v109, %v107
  %v126 = vpack.c.b16 %v110, %v108
  %143 = vmatprep.subr.bf16.mxu0 %v112
  %144 = vmatpush1.bf16.msra.mxu0 %v111
  %145 = vmatprep.subr.bf16.mxu0 %v114
  %146 = vmatpush1.bf16.msra.mxu0 %v113
  %147 = vmatprep.subr.bf16.mxu0 %v116
  %148 = vmatpush1.bf16.msra.mxu0 %v115
  %149 = vmatprep.subr.bf16.mxu0 %v118
  %150 = vmatpush1.bf16.msra.mxu0 %v117
  %151 = vmatprep.subr.bf16.mxu0 %v120
  %152 = vmatpush1.bf16.msra.mxu0 %v119
  %153 = vmatprep.subr.bf16.mxu0 %v122
  %154 = vmatpush1.bf16.msra.mxu0 %v121
  %155 = vmatprep.subr.bf16.mxu0 %v124
  %156 = vmatpush1.bf16.msra.mxu0 %v123
  %157 = vmatprep.subr.bf16.mxu0 %v126
  %158 = vmatpush1.bf16.msra.mxu0 %v125
  %159 = vmatprep.subr.bf16.mxu0 0
  %160 = vmatpush1.bf16.msra.mxu0 0
  %161 = vmatprep.subr.bf16.mxu0 0
  %162 = vmatpush1.bf16.msra.mxu0 0
  %163 = vmatprep.subr.bf16.mxu0 0
  %164 = vmatpush1.bf16.msra.mxu0 0
  %165 = vmatprep.subr.bf16.mxu0 0
  %166 = vmatpush1.bf16.msra.mxu0 0
  %167 = vmatprep.subr.bf16.mxu0 0
  %168 = vmatpush1.bf16.msra.mxu0 0
  %169 = vmatprep.subr.bf16.mxu0 0
  %170 = vmatpush1.bf16.msra.mxu0 0
  %171 = vmatprep.subr.bf16.mxu0 0
  %172 = vmatpush1.bf16.msra.mxu0 0
  %173 = vmatprep.subr.bf16.mxu0 0
  %174 = vmatpush1.bf16.msra.mxu0 0
  %175 = vmatprep.mubr.bf16.mxu0 0
  %176 = vmatmul.mubr.bf16.gmra.mrb[0].mxu0 %v61
  %v177 = vpop.f32.mrb[0].mxu0
  %v178 = vadd.f32 0.0, %v177
  %v179 = vpop.f32.mrb[0].mxu0
  %v180 = vadd.f32 0.0, %v179
  %v181 = vpop.f32.mrb[0].mxu0
  %v182 = vadd.f32 0.0, %v181
  %v183 = vpop.f32.mrb[0].mxu0
  %v184 = vadd.f32 0.0, %v183
  %185 = vdwg.mxu0
  %v188 = vunpack.c.l.b16 %v21
  %v189 = vunpack.c.l.b16 %v22
  %v190 = vpack.c.b16 %v189, %v188
  %v208 = vunpack.c.l.b16 %v23
  %v209 = vunpack.c.h.b16 %v23
  %v210 = vunpack.c.l.b16 %v24
  %v211 = vunpack.c.h.b16 %v24
  %v212 = vunpack.c.l.b16 %v25
  %v213 = vunpack.c.h.b16 %v25
  %v214 = vunpack.c.l.b16 %v26
  %v215 = vunpack.c.h.b16 %v26
  %v216 = vunpack.c.l.b16 %v27
  %v217 = vunpack.c.h.b16 %v27
  %v218 = vunpack.c.l.b16 %v28
  %v219 = vunpack.c.h.b16 %v28
  %v220 = vunpack.c.l.b16 %v29
  %v221 = vunpack.c.h.b16 %v29
  %v222 = vunpack.c.l.b16 %v30
  %v223 = vunpack.c.h.b16 %v30
  %v224 = vunpack.c.l.b16 %v31
  %v225 = vunpack.c.h.b16 %v31
  %v226 = vunpack.c.l.b16 %v32
  %v227 = vunpack.c.h.b16 %v32
  %v228 = vunpack.c.l.b16 %v33
  %v229 = vunpack.c.h.b16 %v33
  %v230 = vunpack.c.l.b16 %v34
  %v231 = vunpack.c.h.b16 %v34
  %v232 = vunpack.c.l.b16 %v35
  %v233 = vunpack.c.h.b16 %v35
  %v234 = vunpack.c.l.b16 %v36
  %v235 = vunpack.c.h.b16 %v36
  %v236 = vunpack.c.l.b16 %v37
  %v237 = vunpack.c.h.b16 %v37
  %v238 = vunpack.c.l.b16 %v38
  %v239 = vunpack.c.h.b16 %v38
  %v240 = vpack.c.b16 %v210, %v208
  %v241 = vpack.c.b16 %v211, %v209
  %v242 = vpack.c.b16 %v214, %v212
  %v243 = vpack.c.b16 %v215, %v213
  %v244 = vpack.c.b16 %v218, %v216
  %v245 = vpack.c.b16 %v219, %v217
  %v246 = vpack.c.b16 %v222, %v220
  %v247 = vpack.c.b16 %v223, %v221
  %v248 = vpack.c.b16 %v226, %v224
  %v249 = vpack.c.b16 %v227, %v225
  %v250 = vpack.c.b16 %v230, %v228
  %v251 = vpack.c.b16 %v231, %v229
  %v252 = vpack.c.b16 %v234, %v232
  %v253 = vpack.c.b16 %v235, %v233
  %v254 = vpack.c.b16 %v238, %v236
  %v255 = vpack.c.b16 %v239, %v237
  %272 = vmatprep.subr.bf16.mxu0 %v241
  %273 = vmatpush1.bf16.msra.mxu0 %v240
  %274 = vmatprep.subr.bf16.mxu0 %v243
  %275 = vmatpush1.bf16.msra.mxu0 %v242
  %276 = vmatprep.subr.bf16.mxu0 %v245
  %277 = vmatpush1.bf16.msra.mxu0 %v244
  %278 = vmatprep.subr.bf16.mxu0 %v247
  %279 = vmatpush1.bf16.msra.mxu0 %v246
  %280 = vmatprep.subr.bf16.mxu0 %v249
  %281 = vmatpush1.bf16.msra.mxu0 %v248
  %282 = vmatprep.subr.bf16.mxu0 %v251
  %283 = vmatpush1.bf16.msra.mxu0 %v250
  %284 = vmatprep.subr.bf16.mxu0 %v253
  %285 = vmatpush1.bf16.msra.mxu0 %v252
  %286 = vmatprep.subr.bf16.mxu0 %v255
  %287 = vmatpush1.bf16.msra.mxu0 %v254
  %288 = vmatprep.subr.bf16.mxu0 0
  %289 = vmatpush1.bf16.msra.mxu0 0
  %290 = vmatprep.subr.bf16.mxu0 0
  %291 = vmatpush1.bf16.msra.mxu0 0
  %292 = vmatprep.subr.bf16.mxu0 0
  %293 = vmatpush1.bf16.msra.mxu0 0
  %294 = vmatprep.subr.bf16.mxu0 0
  %295 = vmatpush1.bf16.msra.mxu0 0
  %296 = vmatprep.subr.bf16.mxu0 0
  %297 = vmatpush1.bf16.msra.mxu0 0
  %298 = vmatprep.subr.bf16.mxu0 0
  %299 = vmatpush1.bf16.msra.mxu0 0
  %300 = vmatprep.subr.bf16.mxu0 0
  %301 = vmatpush1.bf16.msra.mxu0 0
  %302 = vmatprep.subr.bf16.mxu0 0
  %303 = vmatpush1.bf16.msra.mxu0 0
  %304 = vmatprep.mubr.bf16.mxu0 0
  %305 = vmatmul.mubr.bf16.gmra.mrb[0].mxu0 %v190
  %v306 = vpop.f32.mrb[0].mxu0
  %v307 = vadd.f32 %v178, %v306
  %v308 = vpop.f32.mrb[0].mxu0
  %v309 = vadd.f32 %v180, %v308
  %v310 = vpop.f32.mrb[0].mxu0
  %v311 = vadd.f32 %v182, %v310
  %v312 = vpop.f32.mrb[0].mxu0
  %v313 = vadd.f32 %v184, %v312
  %314 = vdwg.mxu0
  %v315 = vld [vmem:[%s4] sm:$0x3]
  %v317 = vlaneseq
  %v318 = vshrl.u32 %v317, 7
  %v319 = vsub.s32 0, %v318
  %v320 = vrot.slane %v315, %v319
  %v321 = vlaneseq
  %v322 = vshrl.u32 %v321, 7
  %v323 = vsub.s32 1, %v322
  %v324 = vrot.slane %v315, %v323
  %v327 = vadd.f32 %v307, %v320
  %v328 = vadd.f32 %v309, %v324
  %v329 = vadd.f32 %v311, %v320
  %v330 = vadd.f32 %v313, %v324
  %v331 = vxor.u32 %v327, 2147483648
  %v332 = vxor.u32 %v328, 2147483648
  %v333 = vxor.u32 %v329, 2147483648
  %v334 = vxor.u32 %v330, 2147483648
  %v335 = vmul.f32 %v331, 1.442695
  %v336 = vpow.pop %v335
  %v337 = vmul.f32 %v332, 1.442695
  %v338 = vpow.pop %v337
  %v339 = vmul.f32 %v333, 1.442695
  %v340 = vpow.pop %v339
  %v341 = vmul.f32 %v334, 1.442695
  %v342 = vpow.pop %v341
  %v343 = vadd.f32 %v336, 1.0
  %v344 = vadd.f32 %v338, 1.0
  %v345 = vadd.f32 %v340, 1.0
  %v346 = vadd.f32 %v342, 1.0
  %v347 = vrcp.pop %v343
  %v348 = vmul.f32 1.0, %v347
  %v349 = vrcp.pop %v344
  %v350 = vmul.f32 1.0, %v349
  %v351 = vrcp.pop %v345
  %v352 = vmul.f32 1.0, %v351
  %v353 = vrcp.pop %v346
  %v354 = vmul.f32 1.0, %v353
  %v355 = vmul.f32 %v327, %v348
  %v356 = vmul.f32 %v328, %v350
  %v357 = vmul.f32 %v329, %v352
  %v358 = vmul.f32 %v330, %v354
  %359 = vst [vmem:[%s5] sm:$0xff] %v355
  %360 = vst [vmem:[%s5 + $0x8] sm:$0xff] %v356
  %361 = vst [vmem:[%s5 + $0x10] sm:$0xff] %v357
  %362 = vst [vmem:[%s5 + $0x18] sm:$0xff] %v358
  // Predicated region
  $region22: #{neck_fwd.24} parent=0 // pred_check
    _
  $region23: #{neck_fwd.24} parent=0 // pred_check_branch
    %364 = sbr.rel (0) target = $region25
  $region24: #{neck_fwd.24} parent=0 // pred_region
    _
  $region25: #{neck_fwd.24} parent=0 // pred_fallthru
    _
  // Predicated region
  $region26: #{neck_fwd.24} parent=0 // pred_check
    _
  $region27: #{neck_fwd.24} parent=0 // pred_check_branch
    %366 = sbr.rel (0) target = $region29
  $region28: #{neck_fwd.24} parent=0 // pred_region
    _
  $region29: #{neck_fwd.24} parent=0 // pred_fallthru
    _

// kernel: neck_fwd.27
$region0: #{neck_fwd.27}
  #allocation0 [shape = 'u32[]', space=smem, size = 0x4, offset = 0x4, fixed_abs, tag = 'smem constant byte address 0x4 - core index']
  #allocation1 [shape = 'u32[144,128]{1,0:T(1,128)}', space=vmem, size = 0x12000, scoped, tag = 'internal scratch']
  %s0 = inlined_call_operand.vmem [shape: bf16[64,64], index: 0, kind: input, shape index: {}]
  %s1 = inlined_call_operand.vmem [shape: bf16[64,128], index: 1, kind: input, shape index: {}]
  %s2 = inlined_call_operand.vmem [shape: f32[1,128], index: 2, kind: input, shape index: {}]
  %s3 = inlined_call_operand.vmem [shape: f32[64,128], index: 3, kind: output, shape index: {}]
  %s4 = sld [smem:[#allocation0]]
  $region22: #{neck_fwd.27} parent=0
    _
  %s6 = ssub.s32 1, %s4
  %s7 = scalar_select 0, %s6, %s4
  // Predicated region
  $region2: #{neck_fwd.27} parent=0 // pred_check
    _
  $region3: #{neck_fwd.27} parent=0 // pred_check_branch
    %9 = sbr.rel (0) target = $region5
  $region4: #{neck_fwd.27} parent=0 // pred_region
    _
  $region5: #{neck_fwd.27} parent=0 // pred_fallthru
    _
  // Predicated region
  $region6: #{neck_fwd.27} parent=0 // pred_check
    _
  $region7: #{neck_fwd.27} parent=0 // pred_check_branch
    %11 = sbr.rel (0) target = $region9
  $region8: #{neck_fwd.27} parent=0 // pred_region
    _
  $region9: #{neck_fwd.27} parent=0 // pred_fallthru
    _
  // Predicated region
  $region10: #{neck_fwd.27} parent=0 // pred_check
    _
  $region11: #{neck_fwd.27} parent=0 // pred_check_branch
    %13 = sbr.rel (0) target = $region13
  $region12: #{neck_fwd.27} parent=0 // pred_region
    _
  $region13: #{neck_fwd.27} parent=0 // pred_fallthru
    _
  %v15 = vld [vmem:[%s0] sm:$0xf]
  %v16 = vld [vmem:[%s0 + $0x4] sm:$0xf]
  %v17 = vld [vmem:[%s0 + $0x8] sm:$0xf]
  %v18 = vld [vmem:[%s0 + $0xc] sm:$0xf]
  %v19 = vld [vmem:[%s0 + $0x10] sm:$0xf]
  %v20 = vld [vmem:[%s0 + $0x14] sm:$0xf]
  %v21 = vld [vmem:[%s0 + $0x18] sm:$0xf]
  %v22 = vld [vmem:[%s0 + $0x1c] sm:$0xf]
  %v23 = vld [vmem:[%s1] sm:$0xf]
  %v24 = vld [vmem:[%s1 + $0x4] sm:$0xf]
  %v25 = vld [vmem:[%s1 + $0x8] sm:$0xf]
  %v26 = vld [vmem:[%s1 + $0xc] sm:$0xf]
  %v27 = vld [vmem:[%s1 + $0x10] sm:$0xf]
  %v28 = vld [vmem:[%s1 + $0x14] sm:$0xf]
  %v29 = vld [vmem:[%s1 + $0x18] sm:$0xf]
  %v30 = vld [vmem:[%s1 + $0x1c] sm:$0xf]
  %v31 = vld [vmem:[%s2] sm:$0x1]
  %v33 = vlaneseq
  %v34 = vshrl.u32 %v33, 7
  %v35 = vsub.s32 0, %v34
  %v36 = vrot.slane %v31, %v35
  %v46 = vunpack.c.l.b16 %v15
  %v47 = vunpack.c.l.b16 %v16
  %v48 = vunpack.c.l.b16 %v17
  %v49 = vunpack.c.l.b16 %v18
  %v50 = vunpack.c.l.b16 %v19
  %v51 = vunpack.c.l.b16 %v20
  %v52 = vunpack.c.l.b16 %v21
  %v53 = vunpack.c.l.b16 %v22
  %v54 = vpack.c.b16 %v47, %v46
  %v55 = vpack.c.b16 %v49, %v48
  %v56 = vpack.c.b16 %v51, %v50
  %v57 = vpack.c.b16 %v53, %v52
  %v66 = vunpack.c.l.b16 %v23
  %v67 = vunpack.c.l.b16 %v24
  %v68 = vunpack.c.l.b16 %v25
  %v69 = vunpack.c.l.b16 %v26
  %v70 = vunpack.c.l.b16 %v27
  %v71 = vunpack.c.l.b16 %v28
  %v72 = vunpack.c.l.b16 %v29
  %v73 = vunpack.c.l.b16 %v30
  %v74 = vpack.c.b16 %v67, %v66
  %v75 = vpack.c.b16 %v69, %v68
  %v76 = vpack.c.b16 %v71, %v70
  %v77 = vpack.c.b16 %v73, %v72
  %vm82 = vcmask 523264
  %v84 = vsel %vm82, %v54, 0
  %v87 = vsel %vm82, %v55, 0
  %v90 = vsel %vm82, %v56, 0
  %v93 = vsel %vm82, %v57, 0
  %95 = vmatprep.subr.bf16.mxu0 0
  %96 = vmatpush1.bf16.msra.mxu0 %v74
  %97 = vmatprep.subr.bf16.mxu0 0
  %98 = vmatpush1.bf16.msra.mxu0 %v75
  %99 = vmatprep.subr.bf16.mxu0 0
  %100 = vmatpush1.bf16.msra.mxu0 %v76
  %101 = vmatprep.subr.bf16.mxu0 0
  %102 = vmatpush1.bf16.msra.mxu0 %v77
  %103 = vmatprep.subr.bf16.mxu0 0
  %104 = vmatpush1.bf16.msra.mxu0 0
  %105 = vmatprep.subr.bf16.mxu0 0
  %106 = vmatpush1.bf16.msra.mxu0 0
  %107 = vmatprep.subr.bf16.mxu0 0
  %108 = vmatpush1.bf16.msra.mxu0 0
  %109 = vmatprep.subr.bf16.mxu0 0
  %110 = vmatpush1.bf16.msra.mxu0 0
  %111 = vmatprep.subr.bf16.mxu0 0
  %112 = vmatpush1.bf16.msra.mxu0 0
  %113 = vmatprep.subr.bf16.mxu0 0
  %114 = vmatpush1.bf16.msra.mxu0 0
  %115 = vmatprep.subr.bf16.mxu0 0
  %116 = vmatpush1.bf16.msra.mxu0 0
  %117 = vmatprep.subr.bf16.mxu0 0
  %118 = vmatpush1.bf16.msra.mxu0 0
  %119 = vmatprep.subr.bf16.mxu0 0
  %120 = vmatpush1.bf16.msra.mxu0 0
  %121 = vmatprep.subr.bf16.mxu0 0
  %122 = vmatpush1.bf16.msra.mxu0 0
  %123 = vmatprep.subr.bf16.mxu0 0
  %124 = vmatpush1.bf16.msra.mxu0 0
  %125 = vmatprep.subr.bf16.mxu0 0
  %126 = vmatpush1.bf16.msra.mxu0 0
  %127 = vmatprep.mubr.bf16.mxu0 0
  %128 = vmatmul.mubr.bf16.gmra.mrb[0].mxu0 %v84
  %v129 = vpop.f32.mrb[0].mxu0
  %v130 = vadd.f32 %v36, %v129
  %v131 = vpop.f32.mrb[0].mxu0
  %v132 = vpop.f32.mrb[0].mxu0
  %v133 = vadd.f32 %v36, %v132
  %v134 = vpop.f32.mrb[0].mxu0
  %135 = vmatprep.mubr.bf16.mxu0 0
  %136 = vmatmul.mubr.bf16.gmra.mrb[0].mxu0 %v87
  %v137 = vpop.f32.mrb[0].mxu0
  %v138 = vadd.f32 %v36, %v137
  %v139 = vpop.f32.mrb[0].mxu0
  %v140 = vpop.f32.mrb[0].mxu0
  %v141 = vadd.f32 %v36, %v140
  %v142 = vpop.f32.mrb[0].mxu0
  %143 = vmatprep.mubr.bf16.mxu0 0
  %144 = vmatmul.mubr.bf16.gmra.mrb[0].mxu0 %v90
  %v145 = vpop.f32.mrb[0].mxu0
  %v146 = vadd.f32 %v36, %v145
  %v147 = vpop.f32.mrb[0].mxu0
  %v148 = vpop.f32.mrb[0].mxu0
  %v149 = vadd.f32 %v36, %v148
  %v150 = vpop.f32.mrb[0].mxu0
  %151 = vmatprep.mubr.bf16.mxu0 0
  %152 = vmatmul.mubr.bf16.gmra.mrb[0].mxu0 %v93
  %v153 = vpop.f32.mrb[0].mxu0
  %v154 = vadd.f32 %v36, %v153
  %v155 = vpop.f32.mrb[0].mxu0
  %v156 = vpop.f32.mrb[0].mxu0
  %v157 = vadd.f32 %v36, %v156
  %v158 = vpop.f32.mrb[0].mxu0
  %159 = vdwg.mxu0
  %v160 = vxor.u32 %v130, 2147483648
  %v161 = vxor.u32 %v133, 2147483648
  %v162 = vxor.u32 %v138, 2147483648
  %v163 = vxor.u32 %v141, 2147483648
  %v164 = vxor.u32 %v146, 2147483648
  %v165 = vxor.u32 %v149, 2147483648
  %v166 = vxor.u32 %v154, 2147483648
  %v167 = vxor.u32 %v157, 2147483648
  %v168 = vmul.f32 %v160, 1.442695
  %v169 = vpow.pop %v168
  %v170 = vmul.f32 %v161, 1.442695
  %v171 = vpow.pop %v170
  %v172 = vmul.f32 %v162, 1.442695
  %v173 = vpow.pop %v172
  %v174 = vmul.f32 %v163, 1.442695
  %v175 = vpow.pop %v174
  %v176 = vmul.f32 %v164, 1.442695
  %v177 = vpow.pop %v176
  %v178 = vmul.f32 %v165, 1.442695
  %v179 = vpow.pop %v178
  %v180 = vmul.f32 %v166, 1.442695
  %v181 = vpow.pop %v180
  %v182 = vmul.f32 %v167, 1.442695
  %v183 = vpow.pop %v182
  %v184 = vadd.f32 %v169, 1.0
  %v185 = vadd.f32 %v171, 1.0
  %v186 = vadd.f32 %v173, 1.0
  %v187 = vadd.f32 %v175, 1.0
  %v188 = vadd.f32 %v177, 1.0
  %v189 = vadd.f32 %v179, 1.0
  %v190 = vadd.f32 %v181, 1.0
  %v191 = vadd.f32 %v183, 1.0
  %v192 = vrcp.pop %v184
  %v193 = vmul.f32 1.0, %v192
  %v194 = vrcp.pop %v185
  %v195 = vmul.f32 1.0, %v194
  %v196 = vrcp.pop %v186
  %v197 = vmul.f32 1.0, %v196
  %v198 = vrcp.pop %v187
  %v199 = vmul.f32 1.0, %v198
  %v200 = vrcp.pop %v188
  %v201 = vmul.f32 1.0, %v200
  %v202 = vrcp.pop %v189
  %v203 = vmul.f32 1.0, %v202
  %v204 = vrcp.pop %v190
  %v205 = vmul.f32 1.0, %v204
  %v206 = vrcp.pop %v191
  %v207 = vmul.f32 1.0, %v206
  %v208 = vmul.f32 %v130, %v193
  %v209 = vmul.f32 %v133, %v195
  %v210 = vmul.f32 %v138, %v197
  %v211 = vmul.f32 %v141, %v199
  %v212 = vmul.f32 %v146, %v201
  %v213 = vmul.f32 %v149, %v203
  %v214 = vmul.f32 %v154, %v205
  %v215 = vmul.f32 %v157, %v207
  %216 = vst [vmem:[%s3] sm:$0xff] %v208
  %217 = vst [vmem:[%s3 + $0x8] sm:$0xff] %v209
  %218 = vst [vmem:[%s3 + $0x10] sm:$0xff] %v210
  %219 = vst [vmem:[%s3 + $0x18] sm:$0xff] %v211
  %220 = vst [vmem:[%s3 + $0x20] sm:$0xff] %v212
  %221 = vst [vmem:[%s3 + $0x28] sm:$0xff] %v213
  %222 = vst [vmem:[%s3 + $0x30] sm:$0xff] %v214
  %223 = vst [vmem:[%s3 + $0x38] sm:$0xff] %v215
  // Predicated region
  $region14: #{neck_fwd.27} parent=0 // pred_check
    _
  $region15: #{neck_fwd.27} parent=0 // pred_check_branch
    %225 = sbr.rel (0) target = $region17
  $region16: #{neck_fwd.27} parent=0 // pred_region
    _
  $region17: #{neck_fwd.27} parent=0 // pred_fallthru
    _
  // Predicated region
  $region18: #{neck_fwd.27} parent=0 // pred_check
    _
  $region19: #{neck_fwd.27} parent=0 // pred_check_branch
    %227 = sbr.rel (0) target = $region21
  $region20: #{neck_fwd.27} parent=0 // pred_region
    _
  $region21: #{neck_fwd.27} parent=0 // pred_fallthru
    _

// kernel: neck_fwd.26
$region0: #{neck_fwd.26}
  #allocation0 [shape = 'u32[]', space=smem, size = 0x4, offset = 0x4, fixed_abs, tag = 'smem constant byte address 0x4 - core index']
  #allocation1 [shape = 'u32[144,128]{1,0:T(1,128)}', space=vmem, size = 0x12000, scoped, tag = 'internal scratch']
  %s0 = inlined_call_operand.vmem [shape: bf16[64,128], index: 0, kind: input, shape index: {}]
  %s1 = inlined_call_operand.vmem [shape: bf16[64,128], index: 1, kind: input, shape index: {}]
  %s2 = inlined_call_operand.vmem [shape: bf16[128,128], index: 2, kind: input, shape index: {}]
  %s3 = inlined_call_operand.vmem [shape: bf16[128,128], index: 3, kind: input, shape index: {}]
  %s4 = inlined_call_operand.vmem [shape: f32[1,128], index: 4, kind: input, shape index: {}]
  %s5 = inlined_call_operand.vmem [shape: f32[64,128], index: 5, kind: output, shape index: {}]
  %s6 = sld [smem:[#allocation0]]
  $region30: #{neck_fwd.26} parent=0
    _
  %s8 = ssub.s32 1, %s6
  %s9 = scalar_select 0, %s8, %s6
  // Predicated region
  $region2: #{neck_fwd.26} parent=0 // pred_check
    _
  $region3: #{neck_fwd.26} parent=0 // pred_check_branch
    %11 = sbr.rel (0) target = $region5
  $region4: #{neck_fwd.26} parent=0 // pred_region
    _
  $region5: #{neck_fwd.26} parent=0 // pred_fallthru
    _
  // Predicated region
  $region6: #{neck_fwd.26} parent=0 // pred_check
    _
  $region7: #{neck_fwd.26} parent=0 // pred_check_branch
    %13 = sbr.rel (0) target = $region9
  $region8: #{neck_fwd.26} parent=0 // pred_region
    _
  $region9: #{neck_fwd.26} parent=0 // pred_fallthru
    _
  // Predicated region
  $region10: #{neck_fwd.26} parent=0 // pred_check
    _
  $region11: #{neck_fwd.26} parent=0 // pred_check_branch
    %15 = sbr.rel (0) target = $region13
  $region12: #{neck_fwd.26} parent=0 // pred_region
    _
  $region13: #{neck_fwd.26} parent=0 // pred_fallthru
    _
  // Predicated region
  $region14: #{neck_fwd.26} parent=0 // pred_check
    _
  $region15: #{neck_fwd.26} parent=0 // pred_check_branch
    %17 = sbr.rel (0) target = $region17
  $region16: #{neck_fwd.26} parent=0 // pred_region
    _
  $region17: #{neck_fwd.26} parent=0 // pred_fallthru
    _
  // Predicated region
  $region18: #{neck_fwd.26} parent=0 // pred_check
    _
  $region19: #{neck_fwd.26} parent=0 // pred_check_branch
    %19 = sbr.rel (0) target = $region21
  $region20: #{neck_fwd.26} parent=0 // pred_region
    _
  $region21: #{neck_fwd.26} parent=0 // pred_fallthru
    _
  %v21 = vld [vmem:[%s0] sm:$0xf]
  %v22 = vld [vmem:[%s0 + $0x4] sm:$0xf]
  %v23 = vld [vmem:[%s0 + $0x8] sm:$0xf]
  %v24 = vld [vmem:[%s0 + $0xc] sm:$0xf]
  %v25 = vld [vmem:[%s0 + $0x10] sm:$0xf]
  %v26 = vld [vmem:[%s0 + $0x14] sm:$0xf]
  %v27 = vld [vmem:[%s0 + $0x18] sm:$0xf]
  %v28 = vld [vmem:[%s0 + $0x1c] sm:$0xf]
  %v29 = vld [vmem:[%s2] sm:$0xf]
  %v30 = vld [vmem:[%s2 + $0x4] sm:$0xf]
  %v31 = vld [vmem:[%s2 + $0x8] sm:$0xf]
  %v32 = vld [vmem:[%s2 + $0xc] sm:$0xf]
  %v33 = vld [vmem:[%s2 + $0x10] sm:$0xf]
  %v34 = vld [vmem:[%s2 + $0x14] sm:$0xf]
  %v35 = vld [vmem:[%s2 + $0x18] sm:$0xf]
  %v36 = vld [vmem:[%s2 + $0x1c] sm:$0xf]
  %v37 = vld [vmem:[%s2 + $0x20] sm:$0xf]
  %v38 = vld [vmem:[%s2 + $0x24] sm:$0xf]
  %v39 = vld [vmem:[%s2 + $0x28] sm:$0xf]
  %v40 = vld [vmem:[%s2 + $0x2c] sm:$0xf]
  %v41 = vld [vmem:[%s2 + $0x30] sm:$0xf]
  %v42 = vld [vmem:[%s2 + $0x34] sm:$0xf]
  %v43 = vld [vmem:[%s2 + $0x38] sm:$0xf]
  %v44 = vld [vmem:[%s2 + $0x3c] sm:$0xf]
  %v45 = vld [vmem:[%s1] sm:$0xf]
  %v46 = vld [vmem:[%s1 + $0x4] sm:$0xf]
  %v47 = vld [vmem:[%s1 + $0x8] sm:$0xf]
  %v48 = vld [vmem:[%s1 + $0xc] sm:$0xf]
  %v49 = vld [vmem:[%s1 + $0x10] sm:$0xf]
  %v50 = vld [vmem:[%s1 + $0x14] sm:$0xf]
  %v51 = vld [vmem:[%s1 + $0x18] sm:$0xf]
  %v52 = vld [vmem:[%s1 + $0x1c] sm:$0xf]
  %v53 = vld [vmem:[%s3] sm:$0xf]
  %v54 = vld [vmem:[%s3 + $0x4] sm:$0xf]
  %v55 = vld [vmem:[%s3 + $0x8] sm:$0xf]
  %v56 = vld [vmem:[%s3 + $0xc] sm:$0xf]
  %v57 = vld [vmem:[%s3 + $0x10] sm:$0xf]
  %v58 = vld [vmem:[%s3 + $0x14] sm:$0xf]
  %v59 = vld [vmem:[%s3 + $0x18] sm:$0xf]
  %v60 = vld [vmem:[%s3 + $0x1c] sm:$0xf]
  %v61 = vld [vmem:[%s3 + $0x20] sm:$0xf]
  %v62 = vld [vmem:[%s3 + $0x24] sm:$0xf]
  %v63 = vld [vmem:[%s3 + $0x28] sm:$0xf]
  %v64 = vld [vmem:[%s3 + $0x2c] sm:$0xf]
  %v65 = vld [vmem:[%s3 + $0x30] sm:$0xf]
  %v66 = vld [vmem:[%s3 + $0x34] sm:$0xf]
  %v67 = vld [vmem:[%s3 + $0x38] sm:$0xf]
  %v68 = vld [vmem:[%s3 + $0x3c] sm:$0xf]
  %v77 = vunpack.c.l.b16 %v45
  %v78 = vunpack.c.l.b16 %v46
  %v79 = vunpack.c.l.b16 %v47
  %v80 = vunpack.c.l.b16 %v48
  %v81 = vunpack.c.l.b16 %v49
  %v82 = vunpack.c.l.b16 %v50
  %v83 = vunpack.c.l.b16 %v51
  %v84 = vunpack.c.l.b16 %v52
  %v85 = vpack.c.b16 %v78, %v77
  %v86 = vpack.c.b16 %v80, %v79
  %v87 = vpack.c.b16 %v82, %v81
  %v88 = vpack.c.b16 %v84, %v83
  %v109 = vunpack.c.l.b16 %v53
  %v110 = vunpack.c.l.b16 %v54
  %v111 = vunpack.c.l.b16 %v55
  %v112 = vunpack.c.l.b16 %v56
  %v113 = vunpack.c.l.b16 %v57
  %v114 = vunpack.c.l.b16 %v58
  %v115 = vunpack.c.l.b16 %v59
  %v116 = vunpack.c.l.b16 %v60
  %v117 = vunpack.c.l.b16 %v61
  %v118 = vunpack.c.l.b16 %v62
  %v119 = vunpack.c.l.b16 %v63
  %v120 = vunpack.c.l.b16 %v64
  %v121 = vunpack.c.l.b16 %v65
  %v122 = vunpack.c.l.b16 %v66
  %v123 = vunpack.c.l.b16 %v67
  %v124 = vunpack.c.l.b16 %v68
  %v125 = vpack.c.b16 %v110, %v109
  %v126 = vpack.c.b16 %v112, %v111
  %v127 = vpack.c.b16 %v114, %v113
  %v128 = vpack.c.b16 %v116, %v115
  %v129 = vpack.c.b16 %v118, %v117
  %v130 = vpack.c.b16 %v120, %v119
  %v131 = vpack.c.b16 %v122, %v121
  %v132 = vpack.c.b16 %v124, %v123
  %141 = vmatprep.subr.bf16.mxu0 0
  %142 = vmatpush1.bf16.msra.mxu0 %v125
  %143 = vmatprep.subr.bf16.mxu0 0
  %144 = vmatpush1.bf16.msra.mxu0 %v126
  %145 = vmatprep.subr.bf16.mxu0 0
  %146 = vmatpush1.bf16.msra.mxu0 %v127
  %147 = vmatprep.subr.bf16.mxu0 0
  %148 = vmatpush1.bf16.msra.mxu0 %v128
  %149 = vmatprep.subr.bf16.mxu0 0
  %150 = vmatpush1.bf16.msra.mxu0 %v129
  %151 = vmatprep.subr.bf16.mxu0 0
  %152 = vmatpush1.bf16.msra.mxu0 %v130
  %153 = vmatprep.subr.bf16.mxu0 0
  %154 = vmatpush1.bf16.msra.mxu0 %v131
  %155 = vmatprep.subr.bf16.mxu0 0
  %156 = vmatpush1.bf16.msra.mxu0 %v132
  %157 = vmatprep.subr.bf16.mxu0 0
  %158 = vmatpush1.bf16.msra.mxu0 0
  %159 = vmatprep.subr.bf16.mxu0 0
  %160 = vmatpush1.bf16.msra.mxu0 0
  %161 = vmatprep.subr.bf16.mxu0 0
  %162 = vmatpush1.bf16.msra.mxu0 0
  %163 = vmatprep.subr.bf16.mxu0 0
  %164 = vmatpush1.bf16.msra.mxu0 0
  %165 = vmatprep.subr.bf16.mxu0 0
  %166 = vmatpush1.bf16.msra.mxu0 0
  %167 = vmatprep.subr.bf16.mxu0 0
  %168 = vmatpush1.bf16.msra.mxu0 0
  %169 = vmatprep.subr.bf16.mxu0 0
  %170 = vmatpush1.bf16.msra.mxu0 0
  %171 = vmatprep.subr.bf16.mxu0 0
  %172 = vmatpush1.bf16.msra.mxu0 0
  %173 = vmatprep.mubr.bf16.mxu0 0
  %174 = vmatmul.mubr.bf16.gmra.mrb[0].mxu0 %v85
  %v175 = vpop.f32.mrb[0].mxu0
  %v176 = vadd.f32 0.0, %v175
  %v177 = vpop.f32.mrb[0].mxu0
  %v178 = vpop.f32.mrb[0].mxu0
  %v179 = vadd.f32 0.0, %v178
  %v180 = vpop.f32.mrb[0].mxu0
  %181 = vmatprep.mubr.bf16.mxu0 0
  %182 = vmatmul.mubr.bf16.gmra.mrb[0].mxu0 %v86
  %v183 = vpop.f32.mrb[0].mxu0
  %v184 = vadd.f32 0.0, %v183
  %v185 = vpop.f32.mrb[0].mxu0
  %v186 = vpop.f32.mrb[0].mxu0
  %v187 = vadd.f32 0.0, %v186
  %v188 = vpop.f32.mrb[0].mxu0
  %189 = vmatprep.mubr.bf16.mxu0 0
  %190 = vmatmul.mubr.bf16.gmra.mrb[0].mxu0 %v87
  %v191 = vpop.f32.mrb[0].mxu0
  %v192 = vadd.f32 0.0, %v191
  %v193 = vpop.f32.mrb[0].mxu0
  %v194 = vpop.f32.mrb[0].mxu0
  %v195 = vadd.f32 0.0, %v194
  %v196 = vpop.f32.mrb[0].mxu0
  %197 = vmatprep.mubr.bf16.mxu0 0
  %198 = vmatmul.mubr.bf16.gmra.mrb[0].mxu0 %v88
  %v199 = vpop.f32.mrb[0].mxu0
  %v200 = vadd.f32 0.0, %v199
  %v201 = vpop.f32.mrb[0].mxu0
  %v202 = vpop.f32.mrb[0].mxu0
  %v203 = vadd.f32 0.0, %v202
  %v204 = vpop.f32.mrb[0].mxu0
  %205 = vdwg.mxu0
  %v214 = vunpack.c.l.b16 %v21
  %v215 = vunpack.c.l.b16 %v22
  %v216 = vunpack.c.l.b16 %v23
  %v217 = vunpack.c.l.b16 %v24
  %v218 = vunpack.c.l.b16 %v25
  %v219 = vunpack.c.l.b16 %v26
  %v220 = vunpack.c.l.b16 %v27
  %v221 = vunpack.c.l.b16 %v28
  %v222 = vpack.c.b16 %v215, %v214
  %v223 = vpack.c.b16 %v217, %v216
  %v224 = vpack.c.b16 %v219, %v218
  %v225 = vpack.c.b16 %v221, %v220
  %v246 = vunpack.c.l.b16 %v29
  %v247 = vunpack.c.l.b16 %v30
  %v248 = vunpack.c.l.b16 %v31
  %v249 = vunpack.c.l.b16 %v32
  %v250 = vunpack.c.l.b16 %v33
  %v251 = vunpack.c.l.b16 %v34
  %v252 = vunpack.c.l.b16 %v35
  %v253 = vunpack.c.l.b16 %v36
  %v254 = vunpack.c.l.b16 %v37
  %v255 = vunpack.c.l.b16 %v38
  %v256 = vunpack.c.l.b16 %v39
  %v257 = vunpack.c.l.b16 %v40
  %v258 = vunpack.c.l.b16 %v41
  %v259 = vunpack.c.l.b16 %v42
  %v260 = vunpack.c.l.b16 %v43
  %v261 = vunpack.c.l.b16 %v44
  %v262 = vpack.c.b16 %v247, %v246
  %v263 = vpack.c.b16 %v249, %v248
  %v264 = vpack.c.b16 %v251, %v250
  %v265 = vpack.c.b16 %v253, %v252
  %v266 = vpack.c.b16 %v255, %v254
  %v267 = vpack.c.b16 %v257, %v256
  %v268 = vpack.c.b16 %v259, %v258
  %v269 = vpack.c.b16 %v261, %v260
  %278 = vmatprep.subr.bf16.mxu0 0
  %279 = vmatpush1.bf16.msra.mxu0 %v262
  %280 = vmatprep.subr.bf16.mxu0 0
  %281 = vmatpush1.bf16.msra.mxu0 %v263
  %282 = vmatprep.subr.bf16.mxu0 0
  %283 = vmatpush1.bf16.msra.mxu0 %v264
  %284 = vmatprep.subr.bf16.mxu0 0
  %285 = vmatpush1.bf16.msra.mxu0 %v265
  %286 = vmatprep.subr.bf16.mxu0 0
  %287 = vmatpush1.bf16.msra.mxu0 %v266
  %288 = vmatprep.subr.bf16.mxu0 0
  %289 = vmatpush1.bf16.msra.mxu0 %v267
  %290 = vmatprep.subr.bf16.mxu0 0
  %291 = vmatpush1.bf16.msra.mxu0 %v268
  %292 = vmatprep.subr.bf16.mxu0 0
  %293 = vmatpush1.bf16.msra.mxu0 %v269
  %294 = vmatprep.subr.bf16.mxu0 0
  %295 = vmatpush1.bf16.msra.mxu0 0
  %296 = vmatprep.subr.bf16.mxu0 0
  %297 = vmatpush1.bf16.msra.mxu0 0
  %298 = vmatprep.subr.bf16.mxu0 0
  %299 = vmatpush1.bf16.msra.mxu0 0
  %300 = vmatprep.subr.bf16.mxu0 0
  %301 = vmatpush1.bf16.msra.mxu0 0
  %302 = vmatprep.subr.bf16.mxu0 0
  %303 = vmatpush1.bf16.msra.mxu0 0
  %304 = vmatprep.subr.bf16.mxu0 0
  %305 = vmatpush1.bf16.msra.mxu0 0
  %306 = vmatprep.subr.bf16.mxu0 0
  %307 = vmatpush1.bf16.msra.mxu0 0
  %308 = vmatprep.subr.bf16.mxu0 0
  %309 = vmatpush1.bf16.msra.mxu0 0
  %310 = vmatprep.mubr.bf16.mxu0 0
  %311 = vmatmul.mubr.bf16.gmra.mrb[0].mxu0 %v222
  %v312 = vpop.f32.mrb[0].mxu0
  %v313 = vadd.f32 %v176, %v312
  %v314 = vpop.f32.mrb[0].mxu0
  %v315 = vpop.f32.mrb[0].mxu0
  %v316 = vadd.f32 %v179, %v315
  %v317 = vpop.f32.mrb[0].mxu0
  %318 = vmatprep.mubr.bf16.mxu0 0
  %319 = vmatmul.mubr.bf16.gmra.mrb[0].mxu0 %v223
  %v320 = vpop.f32.mrb[0].mxu0
  %v321 = vadd.f32 %v184, %v320
  %v322 = vpop.f32.mrb[0].mxu0
  %v323 = vpop.f32.mrb[0].mxu0
  %v324 = vadd.f32 %v187, %v323
  %v325 = vpop.f32.mrb[0].mxu0
  %326 = vmatprep.mubr.bf16.mxu0 0
  %327 = vmatmul.mubr.bf16.gmra.mrb[0].mxu0 %v224
  %v328 = vpop.f32.mrb[0].mxu0
  %v329 = vadd.f32 %v192, %v328
  %v330 = vpop.f32.mrb[0].mxu0
  %v331 = vpop.f32.mrb[0].mxu0
  %v332 = vadd.f32 %v195, %v331
  %v333 = vpop.f32.mrb[0].mxu0
  %334 = vmatprep.mubr.bf16.mxu0 0
  %335 = vmatmul.mubr.bf16.gmra.mrb[0].mxu0 %v225
  %v336 = vpop.f32.mrb[0].mxu0
  %v337 = vadd.f32 %v200, %v336
  %v338 = vpop.f32.mrb[0].mxu0
  %v339 = vpop.f32.mrb[0].mxu0
  %v340 = vadd.f32 %v203, %v339
  %v341 = vpop.f32.mrb[0].mxu0
  %342 = vdwg.mxu0
  %v343 = vld [vmem:[%s4] sm:$0x1]
  %v345 = vlaneseq
  %v346 = vshrl.u32 %v345, 7
  %v347 = vsub.s32 0, %v346
  %v348 = vrot.slane %v343, %v347
  %v350 = vadd.f32 %v313, %v348
  %v351 = vadd.f32 %v316, %v348
  %v352 = vadd.f32 %v321, %v348
  %v353 = vadd.f32 %v324, %v348
  %v354 = vadd.f32 %v329, %v348
  %v355 = vadd.f32 %v332, %v348
  %v356 = vadd.f32 %v337, %v348
  %v357 = vadd.f32 %v340, %v348
  %v358 = vxor.u32 %v350, 2147483648
  %v359 = vxor.u32 %v351, 2147483648
  %v360 = vxor.u32 %v352, 2147483648
  %v361 = vxor.u32 %v353, 2147483648
  %v362 = vxor.u32 %v354, 2147483648
  %v363 = vxor.u32 %v355, 2147483648
  %v364 = vxor.u32 %v356, 2147483648
  %v365 = vxor.u32 %v357, 2147483648
  %v366 = vmul.f32 %v358, 1.442695
  %v367 = vpow.pop %v366
  %v368 = vmul.f32 %v359, 1.442695
  %v369 = vpow.pop %v368
  %v370 = vmul.f32 %v360, 1.442695
  %v371 = vpow.pop %v370
  %v372 = vmul.f32 %v361, 1.442695
  %v373 = vpow.pop %v372
  %v374 = vmul.f32 %v362, 1.442695
  %v375 = vpow.pop %v374
  %v376 = vmul.f32 %v363, 1.442695
  %v377 = vpow.pop %v376
  %v378 = vmul.f32 %v364, 1.442695
  %v379 = vpow.pop %v378
  %v380 = vmul.f32 %v365, 1.442695
  %v381 = vpow.pop %v380
  %v382 = vadd.f32 %v367, 1.0
  %v383 = vadd.f32 %v369, 1.0
  %v384 = vadd.f32 %v371, 1.0
  %v385 = vadd.f32 %v373, 1.0
  %v386 = vadd.f32 %v375, 1.0
  %v387 = vadd.f32 %v377, 1.0
  %v388 = vadd.f32 %v379, 1.0
  %v389 = vadd.f32 %v381, 1.0
  %v390 = vrcp.pop %v382
  %v391 = vmul.f32 1.0, %v390
  %v392 = vrcp.pop %v383
  %v393 = vmul.f32 1.0, %v392
  %v394 = vrcp.pop %v384
  %v395 = vmul.f32 1.0, %v394
  %v396 = vrcp.pop %v385
  %v397 = vmul.f32 1.0, %v396
  %v398 = vrcp.pop %v386
  %v399 = vmul.f32 1.0, %v398
  %v400 = vrcp.pop %v387
  %v401 = vmul.f32 1.0, %v400
  %v402 = vrcp.pop %v388
  %v403 = vmul.f32 1.0, %v402
  %v404 = vrcp.pop %v389
  %v405 = vmul.f32 1.0, %v404
  %v406 = vmul.f32 %v350, %v391
  %v407 = vmul.f32 %v351, %v393
  %v408 = vmul.f32 %v352, %v395
  %v409 = vmul.f32 %v353, %v397
  %v410 = vmul.f32 %v354, %v399
  %v411 = vmul.f32 %v355, %v401
  %v412 = vmul.f32 %v356, %v403
  %v413 = vmul.f32 %v357, %v405
  %414 = vst [vmem:[%s5] sm:$0xff] %v406
  %415 = vst [vmem:[%s5 + $0x8] sm:$0xff] %v407
  %416 = vst [vmem:[%s5 + $0x10] sm:$0xff] %v408
  %417 = vst [vmem:[%s5 + $0x18] sm:$0xff] %v409
  %418 = vst [vmem:[%s5 + $0x20] sm:$0xff] %v410
  %419 = vst [vmem:[%s5 + $0x28] sm:$0xff] %v411
  %420 = vst [vmem:[%s5 + $0x30] sm:$0xff] %v412
  %421 = vst [vmem:[%s5 + $0x38] sm:$0xff] %v413
  // Predicated region
  $region22: #{neck_fwd.26} parent=0 // pred_check
    _
  $region23: #{neck_fwd.26} parent=0 // pred_check_branch
    %423 = sbr.rel (0) target = $region25
  $region24: #{neck_fwd.26} parent=0 // pred_region
    _
  $region25: #{neck_fwd.26} parent=0 // pred_fallthru
    _
  // Predicated region
  $region26: #{neck_fwd.26} parent=0 // pred_check
    _
  $region27: #{neck_fwd.26} parent=0 // pred_check_branch
    %425 = sbr.rel (0) target = $region29
  $region28: #{neck_fwd.26} parent=0 // pred_region
    _
  $region29: #{neck_fwd.26} parent=0 // pred_fallthru
    _

// kernel: neck_fwd.29
$region0: #{neck_fwd.29}
  #allocation0 [shape = 'u32[]', space=smem, size = 0x4, offset = 0x4, fixed_abs, tag = 'smem constant byte address 0x4 - core index']
  #allocation1 [shape = 'u32[144,128]{1,0:T(1,128)}', space=vmem, size = 0x12000, scoped, tag = 'internal scratch']
  %s0 = inlined_call_operand.vmem [shape: bf16[64,128], index: 0, kind: input, shape index: {}]
  %s1 = inlined_call_operand.vmem [shape: bf16[64,64], index: 1, kind: input, shape index: {}]
  %s2 = inlined_call_operand.vmem [shape: bf16[128,128], index: 2, kind: input, shape index: {}]
  %s3 = inlined_call_operand.vmem [shape: bf16[64,128], index: 3, kind: input, shape index: {}]
  %s4 = inlined_call_operand.vmem [shape: f32[1,128], index: 4, kind: input, shape index: {}]
  %s5 = inlined_call_operand.vmem [shape: f32[64,128], index: 5, kind: output, shape index: {}]
  %s6 = sld [smem:[#allocation0]]
  $region30: #{neck_fwd.29} parent=0
    _
  %s8 = ssub.s32 1, %s6
  %s9 = scalar_select 0, %s8, %s6
  // Predicated region
  $region2: #{neck_fwd.29} parent=0 // pred_check
    _
  $region3: #{neck_fwd.29} parent=0 // pred_check_branch
    %11 = sbr.rel (0) target = $region5
  $region4: #{neck_fwd.29} parent=0 // pred_region
    _
  $region5: #{neck_fwd.29} parent=0 // pred_fallthru
    _
  // Predicated region
  $region6: #{neck_fwd.29} parent=0 // pred_check
    _
  $region7: #{neck_fwd.29} parent=0 // pred_check_branch
    %13 = sbr.rel (0) target = $region9
  $region8: #{neck_fwd.29} parent=0 // pred_region
    _
  $region9: #{neck_fwd.29} parent=0 // pred_fallthru
    _
  // Predicated region
  $region10: #{neck_fwd.29} parent=0 // pred_check
    _
  $region11: #{neck_fwd.29} parent=0 // pred_check_branch
    %15 = sbr.rel (0) target = $region13
  $region12: #{neck_fwd.29} parent=0 // pred_region
    _
  $region13: #{neck_fwd.29} parent=0 // pred_fallthru
    _
  // Predicated region
  $region14: #{neck_fwd.29} parent=0 // pred_check
    _
  $region15: #{neck_fwd.29} parent=0 // pred_check_branch
    %17 = sbr.rel (0) target = $region17
  $region16: #{neck_fwd.29} parent=0 // pred_region
    _
  $region17: #{neck_fwd.29} parent=0 // pred_fallthru
    _
  // Predicated region
  $region18: #{neck_fwd.29} parent=0 // pred_check
    _
  $region19: #{neck_fwd.29} parent=0 // pred_check_branch
    %19 = sbr.rel (0) target = $region21
  $region20: #{neck_fwd.29} parent=0 // pred_region
    _
  $region21: #{neck_fwd.29} parent=0 // pred_fallthru
    _
  %v21 = vld [vmem:[%s0] sm:$0xf]
  %v22 = vld [vmem:[%s0 + $0x4] sm:$0xf]
  %v23 = vld [vmem:[%s0 + $0x8] sm:$0xf]
  %v24 = vld [vmem:[%s0 + $0xc] sm:$0xf]
  %v25 = vld [vmem:[%s0 + $0x10] sm:$0xf]
  %v26 = vld [vmem:[%s0 + $0x14] sm:$0xf]
  %v27 = vld [vmem:[%s0 + $0x18] sm:$0xf]
  %v28 = vld [vmem:[%s0 + $0x1c] sm:$0xf]
  %v29 = vld [vmem:[%s2] sm:$0xf]
  %v30 = vld [vmem:[%s2 + $0x4] sm:$0xf]
  %v31 = vld [vmem:[%s2 + $0x8] sm:$0xf]
  %v32 = vld [vmem:[%s2 + $0xc] sm:$0xf]
  %v33 = vld [vmem:[%s2 + $0x10] sm:$0xf]
  %v34 = vld [vmem:[%s2 + $0x14] sm:$0xf]
  %v35 = vld [vmem:[%s2 + $0x18] sm:$0xf]
  %v36 = vld [vmem:[%s2 + $0x1c] sm:$0xf]
  %v37 = vld [vmem:[%s2 + $0x20] sm:$0xf]
  %v38 = vld [vmem:[%s2 + $0x24] sm:$0xf]
  %v39 = vld [vmem:[%s2 + $0x28] sm:$0xf]
  %v40 = vld [vmem:[%s2 + $0x2c] sm:$0xf]
  %v41 = vld [vmem:[%s2 + $0x30] sm:$0xf]
  %v42 = vld [vmem:[%s2 + $0x34] sm:$0xf]
  %v43 = vld [vmem:[%s2 + $0x38] sm:$0xf]
  %v44 = vld [vmem:[%s2 + $0x3c] sm:$0xf]
  %v45 = vld [vmem:[%s1] sm:$0xf]
  %v46 = vld [vmem:[%s1 + $0x4] sm:$0xf]
  %v47 = vld [vmem:[%s1 + $0x8] sm:$0xf]
  %v48 = vld [vmem:[%s1 + $0xc] sm:$0xf]
  %v49 = vld [vmem:[%s1 + $0x10] sm:$0xf]
  %v50 = vld [vmem:[%s1 + $0x14] sm:$0xf]
  %v51 = vld [vmem:[%s1 + $0x18] sm:$0xf]
  %v52 = vld [vmem:[%s1 + $0x1c] sm:$0xf]
  %v53 = vld [vmem:[%s3] sm:$0xf]
  %v54 = vld [vmem:[%s3 + $0x4] sm:$0xf]
  %v55 = vld [vmem:[%s3 + $0x8] sm:$0xf]
  %v56 = vld [vmem:[%s3 + $0xc] sm:$0xf]
  %v57 = vld [vmem:[%s3 + $0x10] sm:$0xf]
  %v58 = vld [vmem:[%s3 + $0x14] sm:$0xf]
  %v59 = vld [vmem:[%s3 + $0x18] sm:$0xf]
  %v60 = vld [vmem:[%s3 + $0x1c] sm:$0xf]
  %v69 = vunpack.c.l.b16 %v45
  %v70 = vunpack.c.l.b16 %v46
  %v71 = vunpack.c.l.b16 %v47
  %v72 = vunpack.c.l.b16 %v48
  %v73 = vunpack.c.l.b16 %v49
  %v74 = vunpack.c.l.b16 %v50
  %v75 = vunpack.c.l.b16 %v51
  %v76 = vunpack.c.l.b16 %v52
  %v77 = vpack.c.b16 %v70, %v69
  %v78 = vpack.c.b16 %v72, %v71
  %v79 = vpack.c.b16 %v74, %v73
  %v80 = vpack.c.b16 %v76, %v75
  %v89 = vunpack.c.l.b16 %v53
  %v90 = vunpack.c.l.b16 %v54
  %v91 = vunpack.c.l.b16 %v55
  %v92 = vunpack.c.l.b16 %v56
  %v93 = vunpack.c.l.b16 %v57
  %v94 = vunpack.c.l.b16 %v58
  %v95 = vunpack.c.l.b16 %v59
  %v96 = vunpack.c.l.b16 %v60
  %v97 = vpack.c.b16 %v90, %v89
  %v98 = vpack.c.b16 %v92, %v91
  %v99 = vpack.c.b16 %v94, %v93
  %v100 = vpack.c.b16 %v96, %v95
  %vm105 = vcmask 523264
  %v107 = vsel %vm105, %v77, 0
  %v110 = vsel %vm105, %v78, 0
  %v113 = vsel %vm105, %v79, 0
  %v116 = vsel %vm105, %v80, 0
  %118 = vmatprep.subr.bf16.mxu0 0
  %119 = vmatpush1.bf16.msra.mxu0 %v97
  %120 = vmatprep.subr.bf16.mxu0 0
  %121 = vmatpush1.bf16.msra.mxu0 %v98
  %122 = vmatprep.subr.bf16.mxu0 0
  %123 = vmatpush1.bf16.msra.mxu0 %v99
  %124 = vmatprep.subr.bf16.mxu0 0
  %125 = vmatpush1.bf16.msra.mxu0 %v100
  %126 = vmatprep.subr.bf16.mxu0 0
  %127 = vmatpush1.bf16.msra.mxu0 0
  %128 = vmatprep.subr.bf16.mxu0 0
  %129 = vmatpush1.bf16.msra.mxu0 0
  %130 = vmatprep.subr.bf16.mxu0 0
  %131 = vmatpush1.bf16.msra.mxu0 0
  %132 = vmatprep.subr.bf16.mxu0 0
  %133 = vmatpush1.bf16.msra.mxu0 0
  %134 = vmatprep.subr.bf16.mxu0 0
  %135 = vmatpush1.bf16.msra.mxu0 0
  %136 = vmatprep.subr.bf16.mxu0 0
  %137 = vmatpush1.bf16.msra.mxu0 0
  %138 = vmatprep.subr.bf16.mxu0 0
  %139 = vmatpush1.bf16.msra.mxu0 0
  %140 = vmatprep.subr.bf16.mxu0 0
  %141 = vmatpush1.bf16.msra.mxu0 0
  %142 = vmatprep.subr.bf16.mxu0 0
  %143 = vmatpush1.bf16.msra.mxu0 0
  %144 = vmatprep.subr.bf16.mxu0 0
  %145 = vmatpush1.bf16.msra.mxu0 0
  %146 = vmatprep.subr.bf16.mxu0 0
  %147 = vmatpush1.bf16.msra.mxu0 0
  %148 = vmatprep.subr.bf16.mxu0 0
  %149 = vmatpush1.bf16.msra.mxu0 0
  %150 = vmatprep.mubr.bf16.mxu0 0
  %151 = vmatmul.mubr.bf16.gmra.mrb[0].mxu0 %v107
  %v152 = vpop.f32.mrb[0].mxu0
  %v153 = vadd.f32 0.0, %v152
  %v154 = vpop.f32.mrb[0].mxu0
  %v155 = vpop.f32.mrb[0].mxu0
  %v156 = vadd.f32 0.0, %v155
  %v157 = vpop.f32.mrb[0].mxu0
  %158 = vmatprep.mubr.bf16.mxu0 0
  %159 = vmatmul.mubr.bf16.gmra.mrb[0].mxu0 %v110
  %v160 = vpop.f32.mrb[0].mxu0
  %v161 = vadd.f32 0.0, %v160
  %v162 = vpop.f32.mrb[0].mxu0
  %v163 = vpop.f32.mrb[0].mxu0
  %v164 = vadd.f32 0.0, %v163
  %v165 = vpop.f32.mrb[0].mxu0
  %166 = vmatprep.mubr.bf16.mxu0 0
  %167 = vmatmul.mubr.bf16.gmra.mrb[0].mxu0 %v113
  %v168 = vpop.f32.mrb[0].mxu0
  %v169 = vadd.f32 0.0, %v168
  %v170 = vpop.f32.mrb[0].mxu0
  %v171 = vpop.f32.mrb[0].mxu0
  %v172 = vadd.f32 0.0, %v171
  %v173 = vpop.f32.mrb[0].mxu0
  %174 = vmatprep.mubr.bf16.mxu0 0
  %175 = vmatmul.mubr.bf16.gmra.mrb[0].mxu0 %v116
  %v176 = vpop.f32.mrb[0].mxu0
  %v177 = vadd.f32 0.0, %v176
  %v178 = vpop.f32.mrb[0].mxu0
  %v179 = vpop.f32.mrb[0].mxu0
  %v180 = vadd.f32 0.0, %v179
  %v181 = vpop.f32.mrb[0].mxu0
  %182 = vdwg.mxu0
  %v191 = vunpack.c.l.b16 %v21
  %v192 = vunpack.c.l.b16 %v22
  %v193 = vunpack.c.l.b16 %v23
  %v194 = vunpack.c.l.b16 %v24
  %v195 = vunpack.c.l.b16 %v25
  %v196 = vunpack.c.l.b16 %v26
  %v197 = vunpack.c.l.b16 %v27
  %v198 = vunpack.c.l.b16 %v28
  %v199 = vpack.c.b16 %v192, %v191
  %v200 = vpack.c.b16 %v194, %v193
  %v201 = vpack.c.b16 %v196, %v195
  %v202 = vpack.c.b16 %v198, %v197
  %v223 = vunpack.c.l.b16 %v29
  %v224 = vunpack.c.l.b16 %v30
  %v225 = vunpack.c.l.b16 %v31
  %v226 = vunpack.c.l.b16 %v32
  %v227 = vunpack.c.l.b16 %v33
  %v228 = vunpack.c.l.b16 %v34
  %v229 = vunpack.c.l.b16 %v35
  %v230 = vunpack.c.l.b16 %v36
  %v231 = vunpack.c.l.b16 %v37
  %v232 = vunpack.c.l.b16 %v38
  %v233 = vunpack.c.l.b16 %v39
  %v234 = vunpack.c.l.b16 %v40
  %v235 = vunpack.c.l.b16 %v41
  %v236 = vunpack.c.l.b16 %v42
  %v237 = vunpack.c.l.b16 %v43
  %v238 = vunpack.c.l.b16 %v44
  %v239 = vpack.c.b16 %v224, %v223
  %v240 = vpack.c.b16 %v226, %v225
  %v241 = vpack.c.b16 %v228, %v227
  %v242 = vpack.c.b16 %v230, %v229
  %v243 = vpack.c.b16 %v232, %v231
  %v244 = vpack.c.b16 %v234, %v233
  %v245 = vpack.c.b16 %v236, %v235
  %v246 = vpack.c.b16 %v238, %v237
  %255 = vmatprep.subr.bf16.mxu0 0
  %256 = vmatpush1.bf16.msra.mxu0 %v239
  %257 = vmatprep.subr.bf16.mxu0 0
  %258 = vmatpush1.bf16.msra.mxu0 %v240
  %259 = vmatprep.subr.bf16.mxu0 0
  %260 = vmatpush1.bf16.msra.mxu0 %v241
  %261 = vmatprep.subr.bf16.mxu0 0
  %262 = vmatpush1.bf16.msra.mxu0 %v242
  %263 = vmatprep.subr.bf16.mxu0 0
  %264 = vmatpush1.bf16.msra.mxu0 %v243
  %265 = vmatprep.subr.bf16.mxu0 0
  %266 = vmatpush1.bf16.msra.mxu0 %v244
  %267 = vmatprep.subr.bf16.mxu0 0
  %268 = vmatpush1.bf16.msra.mxu0 %v245
  %269 = vmatprep.subr.bf16.mxu0 0
  %270 = vmatpush1.bf16.msra.mxu0 %v246
  %271 = vmatprep.subr.bf16.mxu0 0
  %272 = vmatpush1.bf16.msra.mxu0 0
  %273 = vmatprep.subr.bf16.mxu0 0
  %274 = vmatpush1.bf16.msra.mxu0 0
  %275 = vmatprep.subr.bf16.mxu0 0
  %276 = vmatpush1.bf16.msra.mxu0 0
  %277 = vmatprep.subr.bf16.mxu0 0
  %278 = vmatpush1.bf16.msra.mxu0 0
  %279 = vmatprep.subr.bf16.mxu0 0
  %280 = vmatpush1.bf16.msra.mxu0 0
  %281 = vmatprep.subr.bf16.mxu0 0
  %282 = vmatpush1.bf16.msra.mxu0 0
  %283 = vmatprep.subr.bf16.mxu0 0
  %284 = vmatpush1.bf16.msra.mxu0 0
  %285 = vmatprep.subr.bf16.mxu0 0
  %286 = vmatpush1.bf16.msra.mxu0 0
  %287 = vmatprep.mubr.bf16.mxu0 0
  %288 = vmatmul.mubr.bf16.gmra.mrb[0].mxu0 %v199
  %v289 = vpop.f32.mrb[0].mxu0
  %v290 = vadd.f32 %v153, %v289
  %v291 = vpop.f32.mrb[0].mxu0
  %v292 = vpop.f32.mrb[0].mxu0
  %v293 = vadd.f32 %v156, %v292
  %v294 = vpop.f32.mrb[0].mxu0
  %295 = vmatprep.mubr.bf16.mxu0 0
  %296 = vmatmul.mubr.bf16.gmra.mrb[0].mxu0 %v200
  %v297 = vpop.f32.mrb[0].mxu0
  %v298 = vadd.f32 %v161, %v297
  %v299 = vpop.f32.mrb[0].mxu0
  %v300 = vpop.f32.mrb[0].mxu0
  %v301 = vadd.f32 %v164, %v300
  %v302 = vpop.f32.mrb[0].mxu0
  %303 = vmatprep.mubr.bf16.mxu0 0
  %304 = vmatmul.mubr.bf16.gmra.mrb[0].mxu0 %v201
  %v305 = vpop.f32.mrb[0].mxu0
  %v306 = vadd.f32 %v169, %v305
  %v307 = vpop.f32.mrb[0].mxu0
  %v308 = vpop.f32.mrb[0].mxu0
  %v309 = vadd.f32 %v172, %v308
  %v310 = vpop.f32.mrb[0].mxu0
  %311 = vmatprep.mubr.bf16.mxu0 0
  %312 = vmatmul.mubr.bf16.gmra.mrb[0].mxu0 %v202
  %v313 = vpop.f32.mrb[0].mxu0
  %v314 = vadd.f32 %v177, %v313
  %v315 = vpop.f32.mrb[0].mxu0
  %v316 = vpop.f32.mrb[0].mxu0
  %v317 = vadd.f32 %v180, %v316
  %v318 = vpop.f32.mrb[0].mxu0
  %319 = vdwg.mxu0
  %v320 = vld [vmem:[%s4] sm:$0x1]
  %v322 = vlaneseq
  %v323 = vshrl.u32 %v322, 7
  %v324 = vsub.s32 0, %v323
  %v325 = vrot.slane %v320, %v324
  %v327 = vadd.f32 %v290, %v325
  %v328 = vadd.f32 %v293, %v325
  %v329 = vadd.f32 %v298, %v325
  %v330 = vadd.f32 %v301, %v325
  %v331 = vadd.f32 %v306, %v325
  %v332 = vadd.f32 %v309, %v325
  %v333 = vadd.f32 %v314, %v325
  %v334 = vadd.f32 %v317, %v325
  %v335 = vxor.u32 %v327, 2147483648
  %v336 = vxor.u32 %v328, 2147483648
  %v337 = vxor.u32 %v329, 2147483648
  %v338 = vxor.u32 %v330, 2147483648
  %v339 = vxor.u32 %v331, 2147483648
  %v340 = vxor.u32 %v332, 2147483648
  %v341 = vxor.u32 %v333, 2147483648
  %v342 = vxor.u32 %v334, 2147483648
  %v343 = vmul.f32 %v335, 1.442695
  %v344 = vpow.pop %v343
  %v345 = vmul.f32 %v336, 1.442695
  %v346 = vpow.pop %v345
  %v347 = vmul.f32 %v337, 1.442695
  %v348 = vpow.pop %v347
  %v349 = vmul.f32 %v338, 1.442695
  %v350 = vpow.pop %v349
  %v351 = vmul.f32 %v339, 1.442695
  %v352 = vpow.pop %v351
  %v353 = vmul.f32 %v340, 1.442695
  %v354 = vpow.pop %v353
  %v355 = vmul.f32 %v341, 1.442695
  %v356 = vpow.pop %v355
  %v357 = vmul.f32 %v342, 1.442695
  %v358 = vpow.pop %v357
  %v359 = vadd.f32 %v344, 1.0
  %v360 = vadd.f32 %v346, 1.0
  %v361 = vadd.f32 %v348, 1.0
  %v362 = vadd.f32 %v350, 1.0
  %v363 = vadd.f32 %v352, 1.0
  %v364 = vadd.f32 %v354, 1.0
  %v365 = vadd.f32 %v356, 1.0
  %v366 = vadd.f32 %v358, 1.0
  %v367 = vrcp.pop %v359
  %v368 = vmul.f32 1.0, %v367
  %v369 = vrcp.pop %v360
  %v370 = vmul.f32 1.0, %v369
  %v371 = vrcp.pop %v361
  %v372 = vmul.f32 1.0, %v371
  %v373 = vrcp.pop %v362
  %v374 = vmul.f32 1.0, %v373
  %v375 = vrcp.pop %v363
  %v376 = vmul.f32 1.0, %v375
  %v377 = vrcp.pop %v364
  %v378 = vmul.f32 1.0, %v377
  %v379 = vrcp.pop %v365
  %v380 = vmul.f32 1.0, %v379
  %v381 = vrcp.pop %v366
  %v382 = vmul.f32 1.0, %v381
  %v383 = vmul.f32 %v327, %v368
  %v384 = vmul.f32 %v328, %v370
  %v385 = vmul.f32 %v329, %v372
  %v386 = vmul.f32 %v330, %v374
  %v387 = vmul.f32 %v331, %v376
  %v388 = vmul.f32 %v332, %v378
  %v389 = vmul.f32 %v333, %v380
  %v390 = vmul.f32 %v334, %v382
  %391 = vst [vmem:[%s5] sm:$0xff] %v383
  %392 = vst [vmem:[%s5 + $0x8] sm:$0xff] %v384
  %393 = vst [vmem:[%s5 + $0x10] sm:$0xff] %v385
  %394 = vst [vmem:[%s5 + $0x18] sm:$0xff] %v386
  %395 = vst [vmem:[%s5 + $0x20] sm:$0xff] %v387
  %396 = vst [vmem:[%s5 + $0x28] sm:$0xff] %v388
  %397 = vst [vmem:[%s5 + $0x30] sm:$0xff] %v389
  %398 = vst [vmem:[%s5 + $0x38] sm:$0xff] %v390
  // Predicated region
  $region22: #{neck_fwd.29} parent=0 // pred_check
    _
  $region23: #{neck_fwd.29} parent=0 // pred_check_branch
    %400 = sbr.rel (0) target = $region25
  $region24: #{neck_fwd.29} parent=0 // pred_region
    _
  $region25: #{neck_fwd.29} parent=0 // pred_fallthru
    _
  // Predicated region
  $region26: #{neck_fwd.29} parent=0 // pred_check
    _
  $region27: #{neck_fwd.29} parent=0 // pred_check_branch
    %402 = sbr.rel (0) target = $region29
  $region28: #{neck_fwd.29} parent=0 // pred_region
    _
  $region29: #{neck_fwd.29} parent=0 // pred_fallthru
    _

// kernel: neck_fwd.28
$region0: #{neck_fwd.28}
  #allocation0 [shape = 'u32[]', space=smem, size = 0x4, offset = 0x4, fixed_abs, tag = 'smem constant byte address 0x4 - core index']
  #allocation1 [shape = 'u32[144,128]{1,0:T(1,128)}', space=vmem, size = 0x12000, scoped, tag = 'internal scratch']
  %s0 = inlined_call_operand.vmem [shape: bf16[64,1152], index: 0, kind: input, shape index: {}]
  %s1 = inlined_call_operand.vmem [shape: bf16[1152,128], index: 1, kind: input, shape index: {}]
  %s2 = inlined_call_operand.vmem [shape: f32[1,128], index: 2, kind: input, shape index: {}]
  %s3 = inlined_call_operand.vmem [shape: f32[64,128], index: 3, kind: output, shape index: {}]
  %s4 = sld [smem:[#allocation0]]
  $region22: #{neck_fwd.28} parent=0
    _
  %s6 = ssub.s32 1, %s4
  %s7 = scalar_select 0, %s6, %s4
  // Predicated region
  $region2: #{neck_fwd.28} parent=0 // pred_check
    _
  $region3: #{neck_fwd.28} parent=0 // pred_check_branch
    %9 = sbr.rel (0) target = $region5
  $region4: #{neck_fwd.28} parent=0 // pred_region
    _
  $region5: #{neck_fwd.28} parent=0 // pred_fallthru
    _
  // Predicated region
  $region6: #{neck_fwd.28} parent=0 // pred_check
    _
  $region7: #{neck_fwd.28} parent=0 // pred_check_branch
    %11 = sbr.rel (0) target = $region9
  $region8: #{neck_fwd.28} parent=0 // pred_region
    _
  $region9: #{neck_fwd.28} parent=0 // pred_fallthru
    _
  // Predicated region
  $region10: #{neck_fwd.28} parent=0 // pred_check
    _
  $region11: #{neck_fwd.28} parent=0 // pred_check_branch
    %13 = sbr.rel (0) target = $region13
  $region12: #{neck_fwd.28} parent=0 // pred_region
    _
  $region13: #{neck_fwd.28} parent=0 // pred_fallthru
    _
  %v15 = vld [vmem:[%s0] sm:$0xff]
  %v16 = vld [vmem:[%s0 + $0x8] sm:$0xff]
  %v17 = vld [vmem:[%s0 + $0x10] sm:$0xff]
  %v18 = vld [vmem:[%s0 + $0x18] sm:$0xff]
  %v19 = vld [vmem:[%s0 + $0x20] sm:$0xf]
  %v20 = vld [vmem:[%s0 + $0x24] sm:$0xff]
  %v21 = vld [vmem:[%s0 + $0x2c] sm:$0xff]
  %v22 = vld [vmem:[%s0 + $0x34] sm:$0xff]
  %v23 = vld [vmem:[%s0 + $0x3c] sm:$0xff]
  %v24 = vld [vmem:[%s0 + $0x44] sm:$0xf]
  %v25 = vld [vmem:[%s0 + $0x48] sm:$0xff]
  %v26 = vld [vmem:[%s0 + $0x50] sm:$0xff]
  %v27 = vld [vmem:[%s0 + $0x58] sm:$0xff]
  %v28 = vld [vmem:[%s0 + $0x60] sm:$0xff]
  %v29 = vld [vmem:[%s0 + $0x68] sm:$0xf]
  %v30 = vld [vmem:[%s0 + $0x6c] sm:$0xff]
  %v31 = vld [vmem:[%s0 + $0x74] sm:$0xff]
  %v32 = vld [vmem:[%s0 + $0x7c] sm:$0xff]
  %v33 = vld [vmem:[%s0 + $0x84] sm:$0xff]
  %v34 = vld [vmem:[%s0 + $0x8c] sm:$0xf]
  %v35 = vld [vmem:[%s0 + $0x90] sm:$0xff]
  %v36 = vld [vmem:[%s0 + $0x98] sm:$0xff]
  %v37 = vld [vmem:[%s0 + $0xa0] sm:$0xff]
  %v38 = vld [vmem:[%s0 + $0xa8] sm:$0xff]
  %v39 = vld [vmem:[%s0 + $0xb0] sm:$0xf]
  %v40 = vld [vmem:[%s0 + $0xb4] sm:$0xff]
  %v41 = vld [vmem:[%s0 + $0xbc] sm:$0xff]
  %v42 = vld [vmem:[%s0 + $0xc4] sm:$0xff]
  %v43 = vld [vmem:[%s0 + $0xcc] sm:$0xff]
  %v44 = vld [vmem:[%s0 + $0xd4] sm:$0xf]
  %v45 = vld [vmem:[%s0 + $0xd8] sm:$0xff]
  %v46 = vld [vmem:[%s0 + $0xe0] sm:$0xff]
  %v47 = vld [vmem:[%s0 + $0xe8] sm:$0xff]
  %v48 = vld [vmem:[%s0 + $0xf0] sm:$0xff]
  %v49 = vld [vmem:[%s0 + $0xf8] sm:$0xf]
  %v50 = vld [vmem:[%s0 + $0xfc] sm:$0xff]
  %v51 = vld [vmem:[%s0 + $0x104] sm:$0xff]
  %v52 = vld [vmem:[%s0 + $0x10c] sm:$0xff]
  %v53 = vld [vmem:[%s0 + $0x114] sm:$0xff]
  %v54 = vld [vmem:[%s0 + $0x11c] sm:$0xf]
  %v55 = vld [vmem:[%s1] sm:$0xf]
  %v56 = vld [vmem:[%s1 + $0x4] sm:$0xf]
  %v57 = vld [vmem:[%s1 + $0x8] sm:$0xf]
  %v58 = vld [vmem:[%s1 + $0xc] sm:$0xf]
  %v59 = vld [vmem:[%s1 + $0x10] sm:$0xf]
  %v60 = vld [vmem:[%s1 + $0x14] sm:$0xf]
  %v61 = vld [vmem:[%s1 + $0x18] sm:$0xf]
  %v62 = vld [vmem:[%s1 + $0x1c] sm:$0xf]
  %v63 = vld [vmem:[%s1 + $0x20] sm:$0xf]
  %v64 = vld [vmem:[%s1 + $0x24] sm:$0xf]
  %v65 = vld [vmem:[%s1 + $0x28] sm:$0xf]
  %v66 = vld [vmem:[%s1 + $0x2c] sm:$0xf]
  %v67 = vld [vmem:[%s1 + $0x30] sm:$0xf]
  %v68 = vld [vmem:[%s1 + $0x34] sm:$0xf]
  %v69 = vld [vmem:[%s1 + $0x38] sm:$0xf]
  %v70 = vld [vmem:[%s1 + $0x3c] sm:$0xf]
  %v71 = vld [vmem:[%s1 + $0x40] sm:$0xf]
  %v72 = vld [vmem:[%s1 + $0x44] sm:$0xf]
  %v73 = vld [vmem:[%s1 + $0x48] sm:$0xf]
  %v74 = vld [vmem:[%s1 + $0x4c] sm:$0xf]
  %v75 = vld [vmem:[%s1 + $0x50] sm:$0xf]
  %v76 = vld [vmem:[%s1 + $0x54] sm:$0xf]
  %v77 = vld [vmem:[%s1 + $0x58] sm:$0xf]
  %v78 = vld [vmem:[%s1 + $0x5c] sm:$0xf]
  %v79 = vld [vmem:[%s1 + $0x60] sm:$0xf]
  %v80 = vld [vmem:[%s1 + $0x64] sm:$0xf]
  %v81 = vld [vmem:[%s1 + $0x68] sm:$0xf]
  %v82 = vld [vmem:[%s1 + $0x6c] sm:$0xf]
  %v83 = vld [vmem:[%s1 + $0x70] sm:$0xf]
  %v84 = vld [vmem:[%s1 + $0x74] sm:$0xf]
  %v85 = vld [vmem:[%s1 + $0x78] sm:$0xf]
  %v86 = vld [vmem:[%s1 + $0x7c] sm:$0xf]
  %v87 = vld [vmem:[%s1 + $0x80] sm:$0xf]
  %v88 = vld [vmem:[%s1 + $0x84] sm:$0xf]
  %v89 = vld [vmem:[%s1 + $0x88] sm:$0xf]
  %v90 = vld [vmem:[%s1 + $0x8c] sm:$0xf]
  %v91 = vld [vmem:[%s1 + $0x90] sm:$0xf]
  %v92 = vld [vmem:[%s1 + $0x94] sm:$0xf]
  %v93 = vld [vmem:[%s1 + $0x98] sm:$0xf]
  %v94 = vld [vmem:[%s1 + $0x9c] sm:$0xf]
  %v95 = vld [vmem:[%s1 + $0xa0] sm:$0xf]
  %v96 = vld [vmem:[%s1 + $0xa4] sm:$0xf]
  %v97 = vld [vmem:[%s1 + $0xa8] sm:$0xf]
  %v98 = vld [vmem:[%s1 + $0xac] sm:$0xf]
  %v99 = vld [vmem:[%s1 + $0xb0] sm:$0xf]
  %v100 = vld [vmem:[%s1 + $0xb4] sm:$0xf]
  %v101 = vld [vmem:[%s1 + $0xb8] sm:$0xf]
  %v102 = vld [vmem:[%s1 + $0xbc] sm:$0xf]
  %v103 = vld [vmem:[%s1 + $0xc0] sm:$0xf]
  %v104 = vld [vmem:[%s1 + $0xc4] sm:$0xf]
  %v105 = vld [vmem:[%s1 + $0xc8] sm:$0xf]
  %v106 = vld [vmem:[%s1 + $0xcc] sm:$0xf]
  %v107 = vld [vmem:[%s1 + $0xd0] sm:$0xf]
  %v108 = vld [vmem:[%s1 + $0xd4] sm:$0xf]
  %v109 = vld [vmem:[%s1 + $0xd8] sm:$0xf]
  %v110 = vld [vmem:[%s1 + $0xdc] sm:$0xf]
  %v111 = vld [vmem:[%s1 + $0xe0] sm:$0xf]
  %v112 = vld [vmem:[%s1 + $0xe4] sm:$0xf]
  %v113 = vld [vmem:[%s1 + $0xe8] sm:$0xf]
  %v114 = vld [vmem:[%s1 + $0xec] sm:$0xf]
  %v115 = vld [vmem:[%s1 + $0xf0] sm:$0xf]
  %v116 = vld [vmem:[%s1 + $0xf4] sm:$0xf]
  %v117 = vld [vmem:[%s1 + $0xf8] sm:$0xf]
  %v118 = vld [vmem:[%s1 + $0xfc] sm:$0xf]
  %v119 = vld [vmem:[%s1 + $0x100] sm:$0xf]
  %v120 = vld [vmem:[%s1 + $0x104] sm:$0xf]
  %v121 = vld [vmem:[%s1 + $0x108] sm:$0xf]
  %v122 = vld [vmem:[%s1 + $0x10c] sm:$0xf]
  %v123 = vld [vmem:[%s1 + $0x110] sm:$0xf]
  %v124 = vld [vmem:[%s1 + $0x114] sm:$0xf]
  %v125 = vld [vmem:[%s1 + $0x118] sm:$0xf]
  %v126 = vld [vmem:[%s1 + $0x11c] sm:$0xf]
  %v127 = vld [vmem:[%s1 + $0x120] sm:$0xf]
  %v128 = vld [vmem:[%s1 + $0x124] sm:$0xf]
  %v129 = vld [vmem:[%s1 + $0x128] sm:$0xf]
  %v130 = vld [vmem:[%s1 + $0x12c] sm:$0xf]
  %v131 = vld [vmem:[%s1 + $0x130] sm:$0xf]
  %v132 = vld [vmem:[%s1 + $0x134] sm:$0xf]
  %v133 = vld [vmem:[%s1 + $0x138] sm:$0xf]
  %v134 = vld [vmem:[%s1 + $0x13c] sm:$0xf]
  %v135 = vld [vmem:[%s1 + $0x140] sm:$0xf]
  %v136 = vld [vmem:[%s1 + $0x144] sm:$0xf]
  %v137 = vld [vmem:[%s1 + $0x148] sm:$0xf]
  %v138 = vld [vmem:[%s1 + $0x14c] sm:$0xf]
  %v139 = vld [vmem:[%s1 + $0x150] sm:$0xf]
  %v140 = vld [vmem:[%s1 + $0x154] sm:$0xf]
  %v141 = vld [vmem:[%s1 + $0x158] sm:$0xf]
  %v142 = vld [vmem:[%s1 + $0x15c] sm:$0xf]
  %v143 = vld [vmem:[%s1 + $0x160] sm:$0xf]
  %v144 = vld [vmem:[%s1 + $0x164] sm:$0xf]
  %v145 = vld [vmem:[%s1 + $0x168] sm:$0xf]
  %v146 = vld [vmem:[%s1 + $0x16c] sm:$0xf]
  %v147 = vld [vmem:[%s1 + $0x170] sm:$0xf]
  %v148 = vld [vmem:[%s1 + $0x174] sm:$0xf]
  %v149 = vld [vmem:[%s1 + $0x178] sm:$0xf]
  %v150 = vld [vmem:[%s1 + $0x17c] sm:$0xf]
  %v151 = vld [vmem:[%s1 + $0x180] sm:$0xf]
  %v152 = vld [vmem:[%s1 + $0x184] sm:$0xf]
  %v153 = vld [vmem:[%s1 + $0x188] sm:$0xf]
  %v154 = vld [vmem:[%s1 + $0x18c] sm:$0xf]
  %v155 = vld [vmem:[%s1 + $0x190] sm:$0xf]
  %v156 = vld [vmem:[%s1 + $0x194] sm:$0xf]
  %v157 = vld [vmem:[%s1 + $0x198] sm:$0xf]
  %v158 = vld [vmem:[%s1 + $0x19c] sm:$0xf]
  %v159 = vld [vmem:[%s1 + $0x1a0] sm:$0xf]
  %v160 = vld [vmem:[%s1 + $0x1a4] sm:$0xf]
  %v161 = vld [vmem:[%s1 + $0x1a8] sm:$0xf]
  %v162 = vld [vmem:[%s1 + $0x1ac] sm:$0xf]
  %v163 = vld [vmem:[%s1 + $0x1b0] sm:$0xf]
  %v164 = vld [vmem:[%s1 + $0x1b4] sm:$0xf]
  %v165 = vld [vmem:[%s1 + $0x1b8] sm:$0xf]
  %v166 = vld [vmem:[%s1 + $0x1bc] sm:$0xf]
  %v167 = vld [vmem:[%s1 + $0x1c0] sm:$0xf]
  %v168 = vld [vmem:[%s1 + $0x1c4] sm:$0xf]
  %v169 = vld [vmem:[%s1 + $0x1c8] sm:$0xf]
  %v170 = vld [vmem:[%s1 + $0x1cc] sm:$0xf]
  %v171 = vld [vmem:[%s1 + $0x1d0] sm:$0xf]
  %v172 = vld [vmem:[%s1 + $0x1d4] sm:$0xf]
  %v173 = vld [vmem:[%s1 + $0x1d8] sm:$0xf]
  %v174 = vld [vmem:[%s1 + $0x1dc] sm:$0xf]
  %v175 = vld [vmem:[%s1 + $0x1e0] sm:$0xf]
  %v176 = vld [vmem:[%s1 + $0x1e4] sm:$0xf]
  %v177 = vld [vmem:[%s1 + $0x1e8] sm:$0xf]
  %v178 = vld [vmem:[%s1 + $0x1ec] sm:$0xf]
  %v179 = vld [vmem:[%s1 + $0x1f0] sm:$0xf]
  %v180 = vld [vmem:[%s1 + $0x1f4] sm:$0xf]
  %v181 = vld [vmem:[%s1 + $0x1f8] sm:$0xf]
  %v182 = vld [vmem:[%s1 + $0x1fc] sm:$0xf]
  %v183 = vld [vmem:[%s1 + $0x200] sm:$0xf]
  %v184 = vld [vmem:[%s1 + $0x204] sm:$0xf]
  %v185 = vld [vmem:[%s1 + $0x208] sm:$0xf]
  %v186 = vld [vmem:[%s1 + $0x20c] sm:$0xf]
  %v187 = vld [vmem:[%s1 + $0x210] sm:$0xf]
  %v188 = vld [vmem:[%s1 + $0x214] sm:$0xf]
  %v189 = vld [vmem:[%s1 + $0x218] sm:$0xf]
  %v190 = vld [vmem:[%s1 + $0x21c] sm:$0xf]
  %v191 = vld [vmem:[%s1 + $0x220] sm:$0xf]
  %v192 = vld [vmem:[%s1 + $0x224] sm:$0xf]
  %v193 = vld [vmem:[%s1 + $0x228] sm:$0xf]
  %v194 = vld [vmem:[%s1 + $0x22c] sm:$0xf]
  %v195 = vld [vmem:[%s1 + $0x230] sm:$0xf]
  %v196 = vld [vmem:[%s1 + $0x234] sm:$0xf]
  %v197 = vld [vmem:[%s1 + $0x238] sm:$0xf]
  %v198 = vld [vmem:[%s1 + $0x23c] sm:$0xf]
  %v199 = vld [vmem:[%s2] sm:$0x1]
  %v201 = vlaneseq
  %v202 = vshrl.u32 %v201, 7
  %v203 = vsub.s32 0, %v202
  %v204 = vrot.slane %v199, %v203
  %v246 = vunpack.c.l.b16 %v15
  %v247 = vunpack.c.h.b16 %v15
  %v248 = vunpack.c.l.b16 %v16
  %v249 = vunpack.c.h.b16 %v16
  %v250 = vunpack.c.l.b16 %v17
  %v251 = vunpack.c.h.b16 %v17
  %v252 = vunpack.c.l.b16 %v18
  %v253 = vunpack.c.h.b16 %v18
  %v254 = vunpack.c.l.b16 %v19
  %v255 = vunpack.c.l.b16 %v20
  %v256 = vunpack.c.h.b16 %v20
  %v257 = vunpack.c.l.b16 %v21
  %v258 = vunpack.c.h.b16 %v21
  %v259 = vunpack.c.l.b16 %v22
  %v260 = vunpack.c.h.b16 %v22
  %v261 = vunpack.c.l.b16 %v23
  %v262 = vunpack.c.h.b16 %v23
  %v263 = vunpack.c.l.b16 %v24
  %v264 = vunpack.c.l.b16 %v25
  %v265 = vunpack.c.h.b16 %v25
  %v266 = vunpack.c.l.b16 %v26
  %v267 = vunpack.c.h.b16 %v26
  %v268 = vunpack.c.l.b16 %v27
  %v269 = vunpack.c.h.b16 %v27
  %v270 = vunpack.c.l.b16 %v28
  %v271 = vunpack.c.h.b16 %v28
  %v272 = vunpack.c.l.b16 %v29
  %v273 = vunpack.c.l.b16 %v30
  %v274 = vunpack.c.h.b16 %v30
  %v275 = vunpack.c.l.b16 %v31
  %v276 = vunpack.c.h.b16 %v31
  %v277 = vunpack.c.l.b16 %v32
  %v278 = vunpack.c.h.b16 %v32
  %v279 = vunpack.c.l.b16 %v33
  %v280 = vunpack.c.h.b16 %v33
  %v281 = vunpack.c.l.b16 %v34
  %v282 = vunpack.c.l.b16 %v35
  %v283 = vunpack.c.h.b16 %v35
  %v284 = vunpack.c.l.b16 %v36
  %v285 = vunpack.c.h.b16 %v36
  %v286 = vunpack.c.l.b16 %v37
  %v287 = vunpack.c.h.b16 %v37
  %v288 = vunpack.c.l.b16 %v38
  %v289 = vunpack.c.h.b16 %v38
  %v290 = vunpack.c.l.b16 %v39
  %v291 = vunpack.c.l.b16 %v40
  %v292 = vunpack.c.h.b16 %v40
  %v293 = vunpack.c.l.b16 %v41
  %v294 = vunpack.c.h.b16 %v41
  %v295 = vunpack.c.l.b16 %v42
  %v296 = vunpack.c.h.b16 %v42
  %v297 = vunpack.c.l.b16 %v43
  %v298 = vunpack.c.h.b16 %v43
  %v299 = vunpack.c.l.b16 %v44
  %v300 = vunpack.c.l.b16 %v45
  %v301 = vunpack.c.h.b16 %v45
  %v302 = vunpack.c.l.b16 %v46
  %v303 = vunpack.c.h.b16 %v46
  %v304 = vunpack.c.l.b16 %v47
  %v305 = vunpack.c.h.b16 %v47
  %v306 = vunpack.c.l.b16 %v48
  %v307 = vunpack.c.h.b16 %v48
  %v308 = vunpack.c.l.b16 %v49
  %v309 = vunpack.c.l.b16 %v50
  %v310 = vunpack.c.h.b16 %v50
  %v311 = vunpack.c.l.b16 %v51
  %v312 = vunpack.c.h.b16 %v51
  %v313 = vunpack.c.l.b16 %v52
  %v314 = vunpack.c.h.b16 %v52
  %v315 = vunpack.c.l.b16 %v53
  %v316 = vunpack.c.h.b16 %v53
  %v317 = vunpack.c.l.b16 %v54
  %v318 = vpack.c.b16 %v255, %v246
  %v319 = vpack.c.b16 %v256, %v247
  %v320 = vpack.c.b16 %v257, %v248
  %v321 = vpack.c.b16 %v258, %v249
  %v322 = vpack.c.b16 %v259, %v250
  %v323 = vpack.c.b16 %v260, %v251
  %v324 = vpack.c.b16 %v261, %v252
  %v325 = vpack.c.b16 %v262, %v253
  %v326 = vpack.c.b16 %v263, %v254
  %v327 = vpack.c.b16 %v273, %v264
  %v328 = vpack.c.b16 %v274, %v265
  %v329 = vpack.c.b16 %v275, %v266
  %v330 = vpack.c.b16 %v276, %v267
  %v331 = vpack.c.b16 %v277, %v268
  %v332 = vpack.c.b16 %v278, %v269
  %v333 = vpack.c.b16 %v279, %v270
  %v334 = vpack.c.b16 %v280, %v271
  %v335 = vpack.c.b16 %v281, %v272
  %v336 = vpack.c.b16 %v291, %v282
  %v337 = vpack.c.b16 %v292, %v283
  %v338 = vpack.c.b16 %v293, %v284
  %v339 = vpack.c.b16 %v294, %v285
  %v340 = vpack.c.b16 %v295, %v286
  %v341 = vpack.c.b16 %v296, %v287
  %v342 = vpack.c.b16 %v297, %v288
  %v343 = vpack.c.b16 %v298, %v289
  %v344 = vpack.c.b16 %v299, %v290
  %v345 = vpack.c.b16 %v309, %v300
  %v346 = vpack.c.b16 %v310, %v301
  %v347 = vpack.c.b16 %v311, %v302
  %v348 = vpack.c.b16 %v312, %v303
  %v349 = vpack.c.b16 %v313, %v304
  %v350 = vpack.c.b16 %v314, %v305
  %v351 = vpack.c.b16 %v315, %v306
  %v352 = vpack.c.b16 %v316, %v307
  %v353 = vpack.c.b16 %v317, %v308
  %v534 = vunpack.c.l.b16 %v55
  %v535 = vunpack.c.l.b16 %v56
  %v536 = vunpack.c.l.b16 %v57
  %v537 = vunpack.c.l.b16 %v58
  %v538 = vunpack.c.l.b16 %v59
  %v539 = vunpack.c.l.b16 %v60
  %v540 = vunpack.c.l.b16 %v61
  %v541 = vunpack.c.l.b16 %v62
  %v542 = vunpack.c.l.b16 %v63
  %v543 = vunpack.c.l.b16 %v64
  %v544 = vunpack.c.l.b16 %v65
  %v545 = vunpack.c.l.b16 %v66
  %v546 = vunpack.c.l.b16 %v67
  %v547 = vunpack.c.l.b16 %v68
  %v548 = vunpack.c.l.b16 %v69
  %v549 = vunpack.c.l.b16 %v70
  %v550 = vunpack.c.l.b16 %v71
  %v551 = vunpack.c.l.b16 %v72
  %v552 = vunpack.c.l.b16 %v73
  %v553 = vunpack.c.l.b16 %v74
  %v554 = vunpack.c.l.b16 %v75
  %v555 = vunpack.c.l.b16 %v76
  %v556 = vunpack.c.l.b16 %v77
  %v557 = vunpack.c.l.b16 %v78
  %v558 = vunpack.c.l.b16 %v79
  %v559 = vunpack.c.l.b16 %v80
  %v560 = vunpack.c.l.b16 %v81
  %v561 = vunpack.c.l.b16 %v82
  %v562 = vunpack.c.l.b16 %v83
  %v563 = vunpack.c.l.b16 %v84
  %v564 = vunpack.c.l.b16 %v85
  %v565 = vunpack.c.l.b16 %v86
  %v566 = vunpack.c.l.b16 %v87
  %v567 = vunpack.c.l.b16 %v88
  %v568 = vunpack.c.l.b16 %v89
  %v569 = vunpack.c.l.b16 %v90
  %v570 = vunpack.c.l.b16 %v91
  %v571 = vunpack.c.l.b16 %v92
  %v572 = vunpack.c.l.b16 %v93
  %v573 = vunpack.c.l.b16 %v94
  %v574 = vunpack.c.l.b16 %v95
  %v575 = vunpack.c.l.b16 %v96
  %v576 = vunpack.c.l.b16 %v97
  %v577 = vunpack.c.l.b16 %v98
  %v578 = vunpack.c.l.b16 %v99
  %v579 = vunpack.c.l.b16 %v100
  %v580 = vunpack.c.l.b16 %v101
  %v581 = vunpack.c.l.b16 %v102
  %v582 = vunpack.c.l.b16 %v103
  %v583 = vunpack.c.l.b16 %v104
  %v584 = vunpack.c.l.b16 %v105
  %v585 = vunpack.c.l.b16 %v106
  %v586 = vunpack.c.l.b16 %v107
  %v587 = vunpack.c.l.b16 %v108
  %v588 = vunpack.c.l.b16 %v109
  %v589 = vunpack.c.l.b16 %v110
  %v590 = vunpack.c.l.b16 %v111
  %v591 = vunpack.c.l.b16 %v112
  %v592 = vunpack.c.l.b16 %v113
  %v593 = vunpack.c.l.b16 %v114
  %v594 = vunpack.c.l.b16 %v115
  %v595 = vunpack.c.l.b16 %v116
  %v596 = vunpack.c.l.b16 %v117
  %v597 = vunpack.c.l.b16 %v118
  %v598 = vunpack.c.l.b16 %v119
  %v599 = vunpack.c.l.b16 %v120
  %v600 = vunpack.c.l.b16 %v121
  %v601 = vunpack.c.l.b16 %v122
  %v602 = vunpack.c.l.b16 %v123
  %v603 = vunpack.c.l.b16 %v124
  %v604 = vunpack.c.l.b16 %v125
  %v605 = vunpack.c.l.b16 %v126
  %v606 = vunpack.c.l.b16 %v127
  %v607 = vunpack.c.l.b16 %v128
  %v608 = vunpack.c.l.b16 %v129
  %v609 = vunpack.c.l.b16 %v130
  %v610 = vunpack.c.l.b16 %v131
  %v611 = vunpack.c.l.b16 %v132
  %v612 = vunpack.c.l.b16 %v133
  %v613 = vunpack.c.l.b16 %v134
  %v614 = vunpack.c.l.b16 %v135
  %v615 = vunpack.c.l.b16 %v136
  %v616 = vunpack.c.l.b16 %v137
  %v617 = vunpack.c.l.b16 %v138
  %v618 = vunpack.c.l.b16 %v139
  %v619 = vunpack.c.l.b16 %v140
  %v620 = vunpack.c.l.b16 %v141
  %v621 = vunpack.c.l.b16 %v142
  %v622 = vunpack.c.l.b16 %v143
  %v623 = vunpack.c.l.b16 %v144
  %v624 = vunpack.c.l.b16 %v145
  %v625 = vunpack.c.l.b16 %v146
  %v626 = vunpack.c.l.b16 %v147
  %v627 = vunpack.c.l.b16 %v148
  %v628 = vunpack.c.l.b16 %v149
  %v629 = vunpack.c.l.b16 %v150
  %v630 = vunpack.c.l.b16 %v151
  %v631 = vunpack.c.l.b16 %v152
  %v632 = vunpack.c.l.b16 %v153
  %v633 = vunpack.c.l.b16 %v154
  %v634 = vunpack.c.l.b16 %v155
  %v635 = vunpack.c.l.b16 %v156
  %v636 = vunpack.c.l.b16 %v157
  %v637 = vunpack.c.l.b16 %v158
  %v638 = vunpack.c.l.b16 %v159
  %v639 = vunpack.c.l.b16 %v160
  %v640 = vunpack.c.l.b16 %v161
  %v641 = vunpack.c.l.b16 %v162
  %v642 = vunpack.c.l.b16 %v163
  %v643 = vunpack.c.l.b16 %v164
  %v644 = vunpack.c.l.b16 %v165
  %v645 = vunpack.c.l.b16 %v166
  %v646 = vunpack.c.l.b16 %v167
  %v647 = vunpack.c.l.b16 %v168
  %v648 = vunpack.c.l.b16 %v169
  %v649 = vunpack.c.l.b16 %v170
  %v650 = vunpack.c.l.b16 %v171
  %v651 = vunpack.c.l.b16 %v172
  %v652 = vunpack.c.l.b16 %v173
  %v653 = vunpack.c.l.b16 %v174
  %v654 = vunpack.c.l.b16 %v175
  %v655 = vunpack.c.l.b16 %v176
  %v656 = vunpack.c.l.b16 %v177
  %v657 = vunpack.c.l.b16 %v178
  %v658 = vunpack.c.l.b16 %v179
  %v659 = vunpack.c.l.b16 %v180
  %v660 = vunpack.c.l.b16 %v181
  %v661 = vunpack.c.l.b16 %v182
  %v662 = vunpack.c.l.b16 %v183
  %v663 = vunpack.c.l.b16 %v184
  %v664 = vunpack.c.l.b16 %v185
  %v665 = vunpack.c.l.b16 %v186
  %v666 = vunpack.c.l.b16 %v187
  %v667 = vunpack.c.l.b16 %v188
  %v668 = vunpack.c.l.b16 %v189
  %v669 = vunpack.c.l.b16 %v190
  %v670 = vunpack.c.l.b16 %v191
  %v671 = vunpack.c.l.b16 %v192
  %v672 = vunpack.c.l.b16 %v193
  %v673 = vunpack.c.l.b16 %v194
  %v674 = vunpack.c.l.b16 %v195
  %v675 = vunpack.c.l.b16 %v196
  %v676 = vunpack.c.l.b16 %v197
  %v677 = vunpack.c.l.b16 %v198
  %v678 = vpack.c.b16 %v535, %v534
  %v679 = vpack.c.b16 %v537, %v536
  %v680 = vpack.c.b16 %v539, %v538
  %v681 = vpack.c.b16 %v541, %v540
  %v682 = vpack.c.b16 %v543, %v542
  %v683 = vpack.c.b16 %v545, %v544
  %v684 = vpack.c.b16 %v547, %v546
  %v685 = vpack.c.b16 %v549, %v548
  %v686 = vpack.c.b16 %v551, %v550
  %v687 = vpack.c.b16 %v553, %v552
  %v688 = vpack.c.b16 %v555, %v554
  %v689 = vpack.c.b16 %v557, %v556
  %v690 = vpack.c.b16 %v559, %v558
  %v691 = vpack.c.b16 %v561, %v560
  %v692 = vpack.c.b16 %v563, %v562
  %v693 = vpack.c.b16 %v565, %v564
  %v694 = vpack.c.b16 %v567, %v566
  %v695 = vpack.c.b16 %v569, %v568
  %v696 = vpack.c.b16 %v571, %v570
  %v697 = vpack.c.b16 %v573, %v572
  %v698 = vpack.c.b16 %v575, %v574
  %v699 = vpack.c.b16 %v577, %v576
  %v700 = vpack.c.b16 %v579, %v578
  %v701 = vpack.c.b16 %v581, %v580
  %v702 = vpack.c.b16 %v583, %v582
  %v703 = vpack.c.b16 %v585, %v584
  %v704 = vpack.c.b16 %v587, %v586
  %v705 = vpack.c.b16 %v589, %v588
  %v706 = vpack.c.b16 %v591, %v590
  %v707 = vpack.c.b16 %v593, %v592
  %v708 = vpack.c.b16 %v595, %v594
  %v709 = vpack.c.b16 %v597, %v596
  %v710 = vpack.c.b16 %v599, %v598
  %v711 = vpack.c.b16 %v601, %v600
  %v712 = vpack.c.b16 %v603, %v602
  %v713 = vpack.c.b16 %v605, %v604
  %v714 = vpack.c.b16 %v607, %v606
  %v715 = vpack.c.b16 %v609, %v608
  %v716 = vpack.c.b16 %v611, %v610
  %v717 = vpack.c.b16 %v613, %v612
  %v718 = vpack.c.b16 %v615, %v614
  %v719 = vpack.c.b16 %v617, %v616
  %v720 = vpack.c.b16 %v619, %v618
  %v721 = vpack.c.b16 %v621, %v620
  %v722 = vpack.c.b16 %v623, %v622
  %v723 = vpack.c.b16 %v625, %v624
  %v724 = vpack.c.b16 %v627, %v626
  %v725 = vpack.c.b16 %v629, %v628
  %v726 = vpack.c.b16 %v631, %v630
  %v727 = vpack.c.b16 %v633, %v632
  %v728 = vpack.c.b16 %v635, %v634
  %v729 = vpack.c.b16 %v637, %v636
  %v730 = vpack.c.b16 %v639, %v638
  %v731 = vpack.c.b16 %v641, %v640
  %v732 = vpack.c.b16 %v643, %v642
  %v733 = vpack.c.b16 %v645, %v644
  %v734 = vpack.c.b16 %v647, %v646
  %v735 = vpack.c.b16 %v649, %v648
  %v736 = vpack.c.b16 %v651, %v650
  %v737 = vpack.c.b16 %v653, %v652
  %v738 = vpack.c.b16 %v655, %v654
  %v739 = vpack.c.b16 %v657, %v656
  %v740 = vpack.c.b16 %v659, %v658
  %v741 = vpack.c.b16 %v661, %v660
  %v742 = vpack.c.b16 %v663, %v662
  %v743 = vpack.c.b16 %v665, %v664
  %v744 = vpack.c.b16 %v667, %v666
  %v745 = vpack.c.b16 %v669, %v668
  %v746 = vpack.c.b16 %v671, %v670
  %v747 = vpack.c.b16 %v673, %v672
  %v748 = vpack.c.b16 %v675, %v674
  %v749 = vpack.c.b16 %v677, %v676
  %822 = vmatprep.subr.bf16.mxu0 0
  %823 = vmatpush1.bf16.msra.mxu0 %v678
  %824 = vmatprep.subr.bf16.mxu0 0
  %825 = vmatpush1.bf16.msra.mxu0 %v679
  %826 = vmatprep.subr.bf16.mxu0 0
  %827 = vmatpush1.bf16.msra.mxu0 %v680
  %828 = vmatprep.subr.bf16.mxu0 0
  %829 = vmatpush1.bf16.msra.mxu0 %v681
  %830 = vmatprep.subr.bf16.mxu0 0
  %831 = vmatpush1.bf16.msra.mxu0 %v682
  %832 = vmatprep.subr.bf16.mxu0 0
  %833 = vmatpush1.bf16.msra.mxu0 %v683
  %834 = vmatprep.subr.bf16.mxu0 0
  %835 = vmatpush1.bf16.msra.mxu0 %v684
  %836 = vmatprep.subr.bf16.mxu0 0
  %837 = vmatpush1.bf16.msra.mxu0 %v685
  %838 = vmatprep.subr.bf16.mxu0 0
  %839 = vmatpush1.bf16.msra.mxu0 %v686
  %840 = vmatprep.subr.bf16.mxu0 0
  %841 = vmatpush1.bf16.msra.mxu0 %v687
  %842 = vmatprep.subr.bf16.mxu0 0
  %843 = vmatpush1.bf16.msra.mxu0 %v688
  %844 = vmatprep.subr.bf16.mxu0 0
  %845 = vmatpush1.bf16.msra.mxu0 %v689
  %846 = vmatprep.subr.bf16.mxu0 0
  %847 = vmatpush1.bf16.msra.mxu0 %v690
  %848 = vmatprep.subr.bf16.mxu0 0
  %849 = vmatpush1.bf16.msra.mxu0 %v691
  %850 = vmatprep.subr.bf16.mxu0 0
  %851 = vmatpush1.bf16.msra.mxu0 %v692
  %852 = vmatprep.subr.bf16.mxu0 0
  %853 = vmatpush1.bf16.msra.mxu0 %v693
  %854 = vmatprep.mubr.bf16.mxu0 %v319
  %855 = vmatmul.mubr.bf16.gmra.mrb[0].mxu0 %v318
  %v856 = vpop.f32.mrb[0].mxu0
  %v857 = vadd.f32 %v204, %v856
  %v858 = vpop.f32.mrb[0].mxu0
  %v859 = vpop.f32.mrb[0].mxu0
  %v860 = vadd.f32 %v204, %v859
  %v861 = vpop.f32.mrb[0].mxu0
  %862 = vmatprep.mubr.bf16.mxu0 %v328
  %863 = vmatmul.mubr.bf16.gmra.mrb[0].mxu0 %v327
  %v864 = vpop.f32.mrb[0].mxu0
  %v865 = vadd.f32 %v204, %v864
  %v866 = vpop.f32.mrb[0].mxu0
  %v867 = vpop.f32.mrb[0].mxu0
  %v868 = vadd.f32 %v204, %v867
  %v869 = vpop.f32.mrb[0].mxu0
  %870 = vmatprep.mubr.bf16.mxu0 %v337
  %871 = vmatmul.mubr.bf16.gmra.mrb[0].mxu0 %v336
  %v872 = vpop.f32.mrb[0].mxu0
  %v873 = vadd.f32 %v204, %v872
  %v874 = vpop.f32.mrb[0].mxu0
  %v875 = vpop.f32.mrb[0].mxu0
  %v876 = vadd.f32 %v204, %v875
  %v877 = vpop.f32.mrb[0].mxu0
  %878 = vmatprep.mubr.bf16.mxu0 %v346
  %879 = vmatmul.mubr.bf16.gmra.mrb[0].mxu0 %v345
  %v880 = vpop.f32.mrb[0].mxu0
  %v881 = vadd.f32 %v204, %v880
  %v882 = vpop.f32.mrb[0].mxu0
  %v883 = vpop.f32.mrb[0].mxu0
  %v884 = vadd.f32 %v204, %v883
  %v885 = vpop.f32.mrb[0].mxu0
  %886 = vdwg.mxu0
  %887 = vmatprep.subr.bf16.mxu0 0
  %888 = vmatpush1.bf16.msra.mxu0 %v694
  %889 = vmatprep.subr.bf16.mxu0 0
  %890 = vmatpush1.bf16.msra.mxu0 %v695
  %891 = vmatprep.subr.bf16.mxu0 0
  %892 = vmatpush1.bf16.msra.mxu0 %v696
  %893 = vmatprep.subr.bf16.mxu0 0
  %894 = vmatpush1.bf16.msra.mxu0 %v697
  %895 = vmatprep.subr.bf16.mxu0 0
  %896 = vmatpush1.bf16.msra.mxu0 %v698
  %897 = vmatprep.subr.bf16.mxu0 0
  %898 = vmatpush1.bf16.msra.mxu0 %v699
  %899 = vmatprep.subr.bf16.mxu0 0
  %900 = vmatpush1.bf16.msra.mxu0 %v700
  %901 = vmatprep.subr.bf16.mxu0 0
  %902 = vmatpush1.bf16.msra.mxu0 %v701
  %903 = vmatprep.subr.bf16.mxu0 0
  %904 = vmatpush1.bf16.msra.mxu0 %v702
  %905 = vmatprep.subr.bf16.mxu0 0
  %906 = vmatpush1.bf16.msra.mxu0 %v703
  %907 = vmatprep.subr.bf16.mxu0 0
  %908 = vmatpush1.bf16.msra.mxu0 %v704
  %909 = vmatprep.subr.bf16.mxu0 0
  %910 = vmatpush1.bf16.msra.mxu0 %v705
  %911 = vmatprep.subr.bf16.mxu0 0
  %912 = vmatpush1.bf16.msra.mxu0 %v706
  %913 = vmatprep.subr.bf16.mxu0 0
  %914 = vmatpush1.bf16.msra.mxu0 %v707
  %915 = vmatprep.subr.bf16.mxu0 0
  %916 = vmatpush1.bf16.msra.mxu0 %v708
  %917 = vmatprep.subr.bf16.mxu0 0
  %918 = vmatpush1.bf16.msra.mxu0 %v709
  %919 = vmatprep.mubr.bf16.mxu0 %v321
  %920 = vmatmul.mubr.bf16.gmra.mrb[0].mxu0 %v320
  %v921 = vpop.f32.mrb[0].mxu0
  %v922 = vadd.f32 %v857, %v921
  %v923 = vpop.f32.mrb[0].mxu0
  %v924 = vpop.f32.mrb[0].mxu0
  %v925 = vadd.f32 %v860, %v924
  %v926 = vpop.f32.mrb[0].mxu0
  %927 = vmatprep.mubr.bf16.mxu0 %v330
  %928 = vmatmul.mubr.bf16.gmra.mrb[0].mxu0 %v329
  %v929 = vpop.f32.mrb[0].mxu0
  %v930 = vadd.f32 %v865, %v929
  %v931 = vpop.f32.mrb[0].mxu0
  %v932 = vpop.f32.mrb[0].mxu0
  %v933 = vadd.f32 %v868, %v932
  %v934 = vpop.f32.mrb[0].mxu0
  %935 = vmatprep.mubr.bf16.mxu0 %v339
  %936 = vmatmul.mubr.bf16.gmra.mrb[0].mxu0 %v338
  %v937 = vpop.f32.mrb[0].mxu0
  %v938 = vadd.f32 %v873, %v937
  %v939 = vpop.f32.mrb[0].mxu0
  %v940 = vpop.f32.mrb[0].mxu0
  %v941 = vadd.f32 %v876, %v940
  %v942 = vpop.f32.mrb[0].mxu0
  %943 = vmatprep.mubr.bf16.mxu0 %v348
  %944 = vmatmul.mubr.bf16.gmra.mrb[0].mxu0 %v347
  %v945 = vpop.f32.mrb[0].mxu0
  %v946 = vadd.f32 %v881, %v945
  %v947 = vpop.f32.mrb[0].mxu0
  %v948 = vpop.f32.mrb[0].mxu0
  %v949 = vadd.f32 %v884, %v948
  %v950 = vpop.f32.mrb[0].mxu0
  %951 = vdwg.mxu0
  %952 = vmatprep.subr.bf16.mxu0 0
  %953 = vmatpush1.bf16.msra.mxu0 %v710
  %954 = vmatprep.subr.bf16.mxu0 0
  %955 = vmatpush1.bf16.msra.mxu0 %v711
  %956 = vmatprep.subr.bf16.mxu0 0
  %957 = vmatpush1.bf16.msra.mxu0 %v712
  %958 = vmatprep.subr.bf16.mxu0 0
  %959 = vmatpush1.bf16.msra.mxu0 %v713
  %960 = vmatprep.subr.bf16.mxu0 0
  %961 = vmatpush1.bf16.msra.mxu0 %v714
  %962 = vmatprep.subr.bf16.mxu0 0
  %963 = vmatpush1.bf16.msra.mxu0 %v715
  %964 = vmatprep.subr.bf16.mxu0 0
  %965 = vmatpush1.bf16.msra.mxu0 %v716
  %966 = vmatprep.subr.bf16.mxu0 0
  %967 = vmatpush1.bf16.msra.mxu0 %v717
  %968 = vmatprep.subr.bf16.mxu0 0
  %969 = vmatpush1.bf16.msra.mxu0 %v718
  %970 = vmatprep.subr.bf16.mxu0 0
  %971 = vmatpush1.bf16.msra.mxu0 %v719
  %972 = vmatprep.subr.bf16.mxu0 0
  %973 = vmatpush1.bf16.msra.mxu0 %v720
  %974 = vmatprep.subr.bf16.mxu0 0
  %975 = vmatpush1.bf16.msra.mxu0 %v721
  %976 = vmatprep.subr.bf16.mxu0 0
  %977 = vmatpush1.bf16.msra.mxu0 %v722
  %978 = vmatprep.subr.bf16.mxu0 0
  %979 = vmatpush1.bf16.msra.mxu0 %v723
  %980 = vmatprep.subr.bf16.mxu0 0
  %981 = vmatpush1.bf16.msra.mxu0 %v724
  %982 = vmatprep.subr.bf16.mxu0 0
  %983 = vmatpush1.bf16.msra.mxu0 %v725
  %984 = vmatprep.mubr.bf16.mxu0 %v323
  %985 = vmatmul.mubr.bf16.gmra.mrb[0].mxu0 %v322
  %v986 = vpop.f32.mrb[0].mxu0
  %v987 = vadd.f32 %v922, %v986
  %v988 = vpop.f32.mrb[0].mxu0
  %v989 = vpop.f32.mrb[0].mxu0
  %v990 = vadd.f32 %v925, %v989
  %v991 = vpop.f32.mrb[0].mxu0
  %992 = vmatprep.mubr.bf16.mxu0 %v332
  %993 = vmatmul.mubr.bf16.gmra.mrb[0].mxu0 %v331
  %v994 = vpop.f32.mrb[0].mxu0
  %v995 = vadd.f32 %v930, %v994
  %v996 = vpop.f32.mrb[0].mxu0
  %v997 = vpop.f32.mrb[0].mxu0
  %v998 = vadd.f32 %v933, %v997
  %v999 = vpop.f32.mrb[0].mxu0
  %1000 = vmatprep.mubr.bf16.mxu0 %v341
  %1001 = vmatmul.mubr.bf16.gmra.mrb[0].mxu0 %v340
  %v1002 = vpop.f32.mrb[0].mxu0
  %v1003 = vadd.f32 %v938, %v1002
  %v1004 = vpop.f32.mrb[0].mxu0
  %v1005 = vpop.f32.mrb[0].mxu0
  %v1006 = vadd.f32 %v941, %v1005
  %v1007 = vpop.f32.mrb[0].mxu0
  %1008 = vmatprep.mubr.bf16.mxu0 %v350
  %1009 = vmatmul.mubr.bf16.gmra.mrb[0].mxu0 %v349
  %v1010 = vpop.f32.mrb[0].mxu0
  %v1011 = vadd.f32 %v946, %v1010
  %v1012 = vpop.f32.mrb[0].mxu0
  %v1013 = vpop.f32.mrb[0].mxu0
  %v1014 = vadd.f32 %v949, %v1013
  %v1015 = vpop.f32.mrb[0].mxu0
  %1016 = vdwg.mxu0
  %1017 = vmatprep.subr.bf16.mxu0 0
  %1018 = vmatpush1.bf16.msra.mxu0 %v726
  %1019 = vmatprep.subr.bf16.mxu0 0
  %1020 = vmatpush1.bf16.msra.mxu0 %v727
  %1021 = vmatprep.subr.bf16.mxu0 0
  %1022 = vmatpush1.bf16.msra.mxu0 %v728
  %1023 = vmatprep.subr.bf16.mxu0 0
  %1024 = vmatpush1.bf16.msra.mxu0 %v729
  %1025 = vmatprep.subr.bf16.mxu0 0
  %1026 = vmatpush1.bf16.msra.mxu0 %v730
  %1027 = vmatprep.subr.bf16.mxu0 0
  %1028 = vmatpush1.bf16.msra.mxu0 %v731
  %1029 = vmatprep.subr.bf16.mxu0 0
  %1030 = vmatpush1.bf16.msra.mxu0 %v732
  %1031 = vmatprep.subr.bf16.mxu0 0
  %1032 = vmatpush1.bf16.msra.mxu0 %v733
  %1033 = vmatprep.subr.bf16.mxu0 0
  %1034 = vmatpush1.bf16.msra.mxu0 %v734
  %1035 = vmatprep.subr.bf16.mxu0 0
  %1036 = vmatpush1.bf16.msra.mxu0 %v735
  %1037 = vmatprep.subr.bf16.mxu0 0
  %1038 = vmatpush1.bf16.msra.mxu0 %v736
  %1039 = vmatprep.subr.bf16.mxu0 0
  %1040 = vmatpush1.bf16.msra.mxu0 %v737
  %1041 = vmatprep.subr.bf16.mxu0 0
  %1042 = vmatpush1.bf16.msra.mxu0 %v738
  %1043 = vmatprep.subr.bf16.mxu0 0
  %1044 = vmatpush1.bf16.msra.mxu0 %v739
  %1045 = vmatprep.subr.bf16.mxu0 0
  %1046 = vmatpush1.bf16.msra.mxu0 %v740
  %1047 = vmatprep.subr.bf16.mxu0 0
  %1048 = vmatpush1.bf16.msra.mxu0 %v741
  %1049 = vmatprep.mubr.bf16.mxu0 %v325
  %1050 = vmatmul.mubr.bf16.gmra.mrb[0].mxu0 %v324
  %v1051 = vpop.f32.mrb[0].mxu0
  %v1052 = vadd.f32 %v987, %v1051
  %v1053 = vpop.f32.mrb[0].mxu0
  %v1054 = vpop.f32.mrb[0].mxu0
  %v1055 = vadd.f32 %v990, %v1054
  %v1056 = vpop.f32.mrb[0].mxu0
  %1057 = vmatprep.mubr.bf16.mxu0 %v334
  %1058 = vmatmul.mubr.bf16.gmra.mrb[0].mxu0 %v333
  %v1059 = vpop.f32.mrb[0].mxu0
  %v1060 = vadd.f32 %v995, %v1059
  %v1061 = vpop.f32.mrb[0].mxu0
  %v1062 = vpop.f32.mrb[0].mxu0
  %v1063 = vadd.f32 %v998, %v1062
  %v1064 = vpop.f32.mrb[0].mxu0
  %1065 = vmatprep.mubr.bf16.mxu0 %v343
  %1066 = vmatmul.mubr.bf16.gmra.mrb[0].mxu0 %v342
  %v1067 = vpop.f32.mrb[0].mxu0
  %v1068 = vadd.f32 %v1003, %v1067
  %v1069 = vpop.f32.mrb[0].mxu0
  %v1070 = vpop.f32.mrb[0].mxu0
  %v1071 = vadd.f32 %v1006, %v1070
  %v1072 = vpop.f32.mrb[0].mxu0
  %1073 = vmatprep.mubr.bf16.mxu0 %v352
  %1074 = vmatmul.mubr.bf16.gmra.mrb[0].mxu0 %v351
  %v1075 = vpop.f32.mrb[0].mxu0
  %v1076 = vadd.f32 %v1011, %v1075
  %v1077 = vpop.f32.mrb[0].mxu0
  %v1078 = vpop.f32.mrb[0].mxu0
  %v1079 = vadd.f32 %v1014, %v1078
  %v1080 = vpop.f32.mrb[0].mxu0
  %1081 = vdwg.mxu0
  %1082 = vmatprep.subr.bf16.mxu0 0
  %1083 = vmatpush1.bf16.msra.mxu0 %v742
  %1084 = vmatprep.subr.bf16.mxu0 0
  %1085 = vmatpush1.bf16.msra.mxu0 %v743
  %1086 = vmatprep.subr.bf16.mxu0 0
  %1087 = vmatpush1.bf16.msra.mxu0 %v744
  %1088 = vmatprep.subr.bf16.mxu0 0
  %1089 = vmatpush1.bf16.msra.mxu0 %v745
  %1090 = vmatprep.subr.bf16.mxu0 0
  %1091 = vmatpush1.bf16.msra.mxu0 %v746
  %1092 = vmatprep.subr.bf16.mxu0 0
  %1093 = vmatpush1.bf16.msra.mxu0 %v747
  %1094 = vmatprep.subr.bf16.mxu0 0
  %1095 = vmatpush1.bf16.msra.mxu0 %v748
  %1096 = vmatprep.subr.bf16.mxu0 0
  %1097 = vmatpush1.bf16.msra.mxu0 %v749
  %1098 = vmatprep.subr.bf16.mxu0 0
  %1099 = vmatpush1.bf16.msra.mxu0 0
  %1100 = vmatprep.subr.bf16.mxu0 0
  %1101 = vmatpush1.bf16.msra.mxu0 0
  %1102 = vmatprep.subr.bf16.mxu0 0
  %1103 = vmatpush1.bf16.msra.mxu0 0
  %1104 = vmatprep.subr.bf16.mxu0 0
  %1105 = vmatpush1.bf16.msra.mxu0 0
  %1106 = vmatprep.subr.bf16.mxu0 0
  %1107 = vmatpush1.bf16.msra.mxu0 0
  %1108 = vmatprep.subr.bf16.mxu0 0
  %1109 = vmatpush1.bf16.msra.mxu0 0
  %1110 = vmatprep.subr.bf16.mxu0 0
  %1111 = vmatpush1.bf16.msra.mxu0 0
  %1112 = vmatprep.subr.bf16.mxu0 0
  %1113 = vmatpush1.bf16.msra.mxu0 0
  %1114 = vmatprep.mubr.bf16.mxu0 0
  %1115 = vmatmul.mubr.bf16.gmra.mrb[0].mxu0 %v326
  %v1116 = vpop.f32.mrb[0].mxu0
  %v1117 = vadd.f32 %v1052, %v1116
  %v1118 = vpop.f32.mrb[0].mxu0
  %v1119 = vpop.f32.mrb[0].mxu0
  %v1120 = vadd.f32 %v1055, %v1119
  %v1121 = vpop.f32.mrb[0].mxu0
  %1122 = vmatprep.mubr.bf16.mxu0 0
  %1123 = vmatmul.mubr.bf16.gmra.mrb[0].mxu0 %v335
  %v1124 = vpop.f32.mrb[0].mxu0
  %v1125 = vadd.f32 %v1060, %v1124
  %v1126 = vpop.f32.mrb[0].mxu0
  %v1127 = vpop.f32.mrb[0].mxu0
  %v1128 = vadd.f32 %v1063, %v1127
  %v1129 = vpop.f32.mrb[0].mxu0
  %1130 = vmatprep.mubr.bf16.mxu0 0
  %1131 = vmatmul.mubr.bf16.gmra.mrb[0].mxu0 %v344
  %v1132 = vpop.f32.mrb[0].mxu0
  %v1133 = vadd.f32 %v1068, %v1132
  %v1134 = vpop.f32.mrb[0].mxu0
  %v1135 = vpop.f32.mrb[0].mxu0
  %v1136 = vadd.f32 %v1071, %v1135
  %v1137 = vpop.f32.mrb[0].mxu0
  %1138 = vmatprep.mubr.bf16.mxu0 0
  %1139 = vmatmul.mubr.bf16.gmra.mrb[0].mxu0 %v353
  %v1140 = vpop.f32.mrb[0].mxu0
  %v1141 = vadd.f32 %v1076, %v1140
  %v1142 = vpop.f32.mrb[0].mxu0
  %v1143 = vpop.f32.mrb[0].mxu0
  %v1144 = vadd.f32 %v1079, %v1143
  %v1145 = vpop.f32.mrb[0].mxu0
  %1146 = vdwg.mxu0
  %v1147 = vxor.u32 %v1117, 2147483648
  %v1148 = vxor.u32 %v1120, 2147483648
  %v1149 = vxor.u32 %v1125, 2147483648
  %v1150 = vxor.u32 %v1128, 2147483648
  %v1151 = vxor.u32 %v1133, 2147483648
  %v1152 = vxor.u32 %v1136, 2147483648
  %v1153 = vxor.u32 %v1141, 2147483648
  %v1154 = vxor.u32 %v1144, 2147483648
  %v1155 = vmul.f32 %v1147, 1.442695
  %v1156 = vpow.pop %v1155
  %v1157 = vmul.f32 %v1148, 1.442695
  %v1158 = vpow.pop %v1157
  %v1159 = vmul.f32 %v1149, 1.442695
  %v1160 = vpow.pop %v1159
  %v1161 = vmul.f32 %v1150, 1.442695
  %v1162 = vpow.pop %v1161
  %v1163 = vmul.f32 %v1151, 1.442695
  %v1164 = vpow.pop %v1163
  %v1165 = vmul.f32 %v1152, 1.442695
  %v1166 = vpow.pop %v1165
  %v1167 = vmul.f32 %v1153, 1.442695
  %v1168 = vpow.pop %v1167
  %v1169 = vmul.f32 %v1154, 1.442695
  %v1170 = vpow.pop %v1169
  %v1171 = vadd.f32 %v1156, 1.0
  %v1172 = vadd.f32 %v1158, 1.0
  %v1173 = vadd.f32 %v1160, 1.0
  %v1174 = vadd.f32 %v1162, 1.0
  %v1175 = vadd.f32 %v1164, 1.0
  %v1176 = vadd.f32 %v1166, 1.0
  %v1177 = vadd.f32 %v1168, 1.0
  %v1178 = vadd.f32 %v1170, 1.0
  %v1179 = vrcp.pop %v1171
  %v1180 = vmul.f32 1.0, %v1179
  %v1181 = vrcp.pop %v1172
  %v1182 = vmul.f32 1.0, %v1181
  %v1183 = vrcp.pop %v1173
  %v1184 = vmul.f32 1.0, %v1183
  %v1185 = vrcp.pop %v1174
  %v1186 = vmul.f32 1.0, %v1185
  %v1187 = vrcp.pop %v1175
  %v1188 = vmul.f32 1.0, %v1187
  %v1189 = vrcp.pop %v1176
  %v1190 = vmul.f32 1.0, %v1189
  %v1191 = vrcp.pop %v1177
  %v1192 = vmul.f32 1.0, %v1191
  %v1193 = vrcp.pop %v1178
  %v1194 = vmul.f32 1.0, %v1193
  %v1195 = vmul.f32 %v1117, %v1180
  %v1196 = vmul.f32 %v1120, %v1182
  %v1197 = vmul.f32 %v1125, %v1184
  %v1198 = vmul.f32 %v1128, %v1186
  %v1199 = vmul.f32 %v1133, %v1188
  %v1200 = vmul.f32 %v1136, %v1190
  %v1201 = vmul.f32 %v1141, %v1192
  %v1202 = vmul.f32 %v1144, %v1194
  %1203 = vst [vmem:[%s3] sm:$0xff] %v1195
  %1204 = vst [vmem:[%s3 + $0x8] sm:$0xff] %v1196
  %1205 = vst [vmem:[%s3 + $0x10] sm:$0xff] %v1197
  %1206 = vst [vmem:[%s3 + $0x18] sm:$0xff] %v1198
  %1207 = vst [vmem:[%s3 + $0x20] sm:$0xff] %v1199
  %1208 = vst [vmem:[%s3 + $0x28] sm:$0xff] %v1200
  %1209 = vst [vmem:[%s3 + $0x30] sm:$0xff] %v1201
  %1210 = vst [vmem:[%s3 + $0x38] sm:$0xff] %v1202
  // Predicated region
  $region14: #{neck_fwd.28} parent=0 // pred_check
    _
  $region15: #{neck_fwd.28} parent=0 // pred_check_branch
    %1212 = sbr.rel (0) target = $region17
  $region16: #{neck_fwd.28} parent=0 // pred_region
    _
  $region17: #{neck_fwd.28} parent=0 // pred_fallthru
    _
  // Predicated region
  $region18: #{neck_fwd.28} parent=0 // pred_check
    _
  $region19: #{neck_fwd.28} parent=0 // pred_check_branch
    %1214 = sbr.rel (0) target = $region21
  $region20: #{neck_fwd.28} parent=0 // pred_region
    _
  $region21: #{neck_fwd.28} parent=0 // pred_fallthru
    _

// kernel: neck_fwd.36
$region0: #{neck_fwd.36}
  #allocation0 [shape = 'u32[]', space=smem, size = 0x4, offset = 0x4, fixed_abs, tag = 'smem constant byte address 0x4 - core index']
  #allocation1 [shape = 'u32[144,128]{1,0:T(1,128)}', space=vmem, size = 0x12000, scoped, tag = 'internal scratch']
  %s0 = inlined_call_operand.vmem [shape: bf16[8,256], index: 0, kind: input, shape index: {}]
  %s1 = inlined_call_operand.vmem [shape: bf16[8,256], index: 1, kind: input, shape index: {}]
  %s2 = inlined_call_operand.vmem [shape: bf16[256,512], index: 2, kind: input, shape index: {}]
  %s3 = inlined_call_operand.vmem [shape: bf16[256,512], index: 3, kind: input, shape index: {}]
  %s4 = inlined_call_operand.vmem [shape: f32[1,512], index: 4, kind: input, shape index: {}]
  %s5 = inlined_call_operand.vmem [shape: f32[8,512], index: 5, kind: output, shape index: {}]
  %s6 = sld [smem:[#allocation0]]
  $region30: #{neck_fwd.36} parent=0
    _
  %s8 = ssub.s32 1, %s6
  %s9 = scalar_select 0, %s8, %s6
  // Predicated region
  $region2: #{neck_fwd.36} parent=0 // pred_check
    _
  $region3: #{neck_fwd.36} parent=0 // pred_check_branch
    %11 = sbr.rel (0) target = $region5
  $region4: #{neck_fwd.36} parent=0 // pred_region
    _
  $region5: #{neck_fwd.36} parent=0 // pred_fallthru
    _
  // Predicated region
  $region6: #{neck_fwd.36} parent=0 // pred_check
    _
  $region7: #{neck_fwd.36} parent=0 // pred_check_branch
    %13 = sbr.rel (0) target = $region9
  $region8: #{neck_fwd.36} parent=0 // pred_region
    _
  $region9: #{neck_fwd.36} parent=0 // pred_fallthru
    _
  // Predicated region
  $region10: #{neck_fwd.36} parent=0 // pred_check
    _
  $region11: #{neck_fwd.36} parent=0 // pred_check_branch
    %15 = sbr.rel (0) target = $region13
  $region12: #{neck_fwd.36} parent=0 // pred_region
    _
  $region13: #{neck_fwd.36} parent=0 // pred_fallthru
    _
  // Predicated region
  $region14: #{neck_fwd.36} parent=0 // pred_check
    _
  $region15: #{neck_fwd.36} parent=0 // pred_check_branch
    %17 = sbr.rel (0) target = $region17
  $region16: #{neck_fwd.36} parent=0 // pred_region
    _
  $region17: #{neck_fwd.36} parent=0 // pred_fallthru
    _
  // Predicated region
  $region18: #{neck_fwd.36} parent=0 // pred_check
    _
  $region19: #{neck_fwd.36} parent=0 // pred_check_branch
    %19 = sbr.rel (0) target = $region21
  $region20: #{neck_fwd.36} parent=0 // pred_region
    _
  $region21: #{neck_fwd.36} parent=0 // pred_fallthru
    _
  %v20 = vld [vmem:[%s0] sm:$0xff]
  %v21 = vld [vmem:[%s2] sm:$0xff]
  %v22 = vld [vmem:[%s2 + $0x8] sm:$0xff]
  %v23 = vld [vmem:[%s2 + $0x10] sm:$0xff]
  %v24 = vld [vmem:[%s2 + $0x18] sm:$0xff]
  %v25 = vld [vmem:[%s2 + $0x20] sm:$0xff]
  %v26 = vld [vmem:[%s2 + $0x28] sm:$0xff]
  %v27 = vld [vmem:[%s2 + $0x30] sm:$0xff]
  %v28 = vld [vmem:[%s2 + $0x38] sm:$0xff]
  %v29 = vld [vmem:[%s2 + $0x40] sm:$0xff]
  %v30 = vld [vmem:[%s2 + $0x48] sm:$0xff]
  %v31 = vld [vmem:[%s2 + $0x50] sm:$0xff]
  %v32 = vld [vmem:[%s2 + $0x58] sm:$0xff]
  %v33 = vld [vmem:[%s2 + $0x60] sm:$0xff]
  %v34 = vld [vmem:[%s2 + $0x68] sm:$0xff]
  %v35 = vld [vmem:[%s2 + $0x70] sm:$0xff]
  %v36 = vld [vmem:[%s2 + $0x78] sm:$0xff]
  %v37 = vld [vmem:[%s2 + $0x80] sm:$0xff]
  %v38 = vld [vmem:[%s2 + $0x88] sm:$0xff]
  %v39 = vld [vmem:[%s2 + $0x90] sm:$0xff]
  %v40 = vld [vmem:[%s2 + $0x98] sm:$0xff]
  %v41 = vld [vmem:[%s2 + $0xa0] sm:$0xff]
  %v42 = vld [vmem:[%s2 + $0xa8] sm:$0xff]
  %v43 = vld [vmem:[%s2 + $0xb0] sm:$0xff]
  %v44 = vld [vmem:[%s2 + $0xb8] sm:$0xff]
  %v45 = vld [vmem:[%s2 + $0xc0] sm:$0xff]
  %v46 = vld [vmem:[%s2 + $0xc8] sm:$0xff]
  %v47 = vld [vmem:[%s2 + $0xd0] sm:$0xff]
  %v48 = vld [vmem:[%s2 + $0xd8] sm:$0xff]
  %v49 = vld [vmem:[%s2 + $0xe0] sm:$0xff]
  %v50 = vld [vmem:[%s2 + $0xe8] sm:$0xff]
  %v51 = vld [vmem:[%s2 + $0xf0] sm:$0xff]
  %v52 = vld [vmem:[%s2 + $0xf8] sm:$0xff]
  %v53 = vld [vmem:[%s2 + $0x100] sm:$0xff]
  %v54 = vld [vmem:[%s2 + $0x108] sm:$0xff]
  %v55 = vld [vmem:[%s2 + $0x110] sm:$0xff]
  %v56 = vld [vmem:[%s2 + $0x118] sm:$0xff]
  %v57 = vld [vmem:[%s2 + $0x120] sm:$0xff]
  %v58 = vld [vmem:[%s2 + $0x128] sm:$0xff]
  %v59 = vld [vmem:[%s2 + $0x130] sm:$0xff]
  %v60 = vld [vmem:[%s2 + $0x138] sm:$0xff]
  %v61 = vld [vmem:[%s2 + $0x140] sm:$0xff]
  %v62 = vld [vmem:[%s2 + $0x148] sm:$0xff]
  %v63 = vld [vmem:[%s2 + $0x150] sm:$0xff]
  %v64 = vld [vmem:[%s2 + $0x158] sm:$0xff]
  %v65 = vld [vmem:[%s2 + $0x160] sm:$0xff]
  %v66 = vld [vmem:[%s2 + $0x168] sm:$0xff]
  %v67 = vld [vmem:[%s2 + $0x170] sm:$0xff]
  %v68 = vld [vmem:[%s2 + $0x178] sm:$0xff]
  %v69 = vld [vmem:[%s2 + $0x180] sm:$0xff]
  %v70 = vld [vmem:[%s2 + $0x188] sm:$0xff]
  %v71 = vld [vmem:[%s2 + $0x190] sm:$0xff]
  %v72 = vld [vmem:[%s2 + $0x198] sm:$0xff]
  %v73 = vld [vmem:[%s2 + $0x1a0] sm:$0xff]
  %v74 = vld [vmem:[%s2 + $0x1a8] sm:$0xff]
  %v75 = vld [vmem:[%s2 + $0x1b0] sm:$0xff]
  %v76 = vld [vmem:[%s2 + $0x1b8] sm:$0xff]
  %v77 = vld [vmem:[%s2 + $0x1c0] sm:$0xff]
  %v78 = vld [vmem:[%s2 + $0x1c8] sm:$0xff]
  %v79 = vld [vmem:[%s2 + $0x1d0] sm:$0xff]
  %v80 = vld [vmem:[%s2 + $0x1d8] sm:$0xff]
  %v81 = vld [vmem:[%s2 + $0x1e0] sm:$0xff]
  %v82 = vld [vmem:[%s2 + $0x1e8] sm:$0xff]
  %v83 = vld [vmem:[%s2 + $0x1f0] sm:$0xff]
  %v84 = vld [vmem:[%s2 + $0x1f8] sm:$0xff]
  %v85 = vld [vmem:[%s1] sm:$0xff]
  %v86 = vld [vmem:[%s3] sm:$0xff]
  %v87 = vld [vmem:[%s3 + $0x8] sm:$0xff]
  %v88 = vld [vmem:[%s3 + $0x10] sm:$0xff]
  %v89 = vld [vmem:[%s3 + $0x18] sm:$0xff]
  %v90 = vld [vmem:[%s3 + $0x20] sm:$0xff]
  %v91 = vld [vmem:[%s3 + $0x28] sm:$0xff]
  %v92 = vld [vmem:[%s3 + $0x30] sm:$0xff]
  %v93 = vld [vmem:[%s3 + $0x38] sm:$0xff]
  %v94 = vld [vmem:[%s3 + $0x40] sm:$0xff]
  %v95 = vld [vmem:[%s3 + $0x48] sm:$0xff]
  %v96 = vld [vmem:[%s3 + $0x50] sm:$0xff]
  %v97 = vld [vmem:[%s3 + $0x58] sm:$0xff]
  %v98 = vld [vmem:[%s3 + $0x60] sm:$0xff]
  %v99 = vld [vmem:[%s3 + $0x68] sm:$0xff]
  %v100 = vld [vmem:[%s3 + $0x70] sm:$0xff]
  %v101 = vld [vmem:[%s3 + $0x78] sm:$0xff]
  %v102 = vld [vmem:[%s3 + $0x80] sm:$0xff]
  %v103 = vld [vmem:[%s3 + $0x88] sm:$0xff]
  %v104 = vld [vmem:[%s3 + $0x90] sm:$0xff]
  %v105 = vld [vmem:[%s3 + $0x98] sm:$0xff]
  %v106 = vld [vmem:[%s3 + $0xa0] sm:$0xff]
  %v107 = vld [vmem:[%s3 + $0xa8] sm:$0xff]
  %v108 = vld [vmem:[%s3 + $0xb0] sm:$0xff]
  %v109 = vld [vmem:[%s3 + $0xb8] sm:$0xff]
  %v110 = vld [vmem:[%s3 + $0xc0] sm:$0xff]
  %v111 = vld [vmem:[%s3 + $0xc8] sm:$0xff]
  %v112 = vld [vmem:[%s3 + $0xd0] sm:$0xff]
  %v113 = vld [vmem:[%s3 + $0xd8] sm:$0xff]
  %v114 = vld [vmem:[%s3 + $0xe0] sm:$0xff]
  %v115 = vld [vmem:[%s3 + $0xe8] sm:$0xff]
  %v116 = vld [vmem:[%s3 + $0xf0] sm:$0xff]
  %v117 = vld [vmem:[%s3 + $0xf8] sm:$0xff]
  %v118 = vld [vmem:[%s3 + $0x100] sm:$0xff]
  %v119 = vld [vmem:[%s3 + $0x108] sm:$0xff]
  %v120 = vld [vmem:[%s3 + $0x110] sm:$0xff]
  %v121 = vld [vmem:[%s3 + $0x118] sm:$0xff]
  %v122 = vld [vmem:[%s3 + $0x120] sm:$0xff]
  %v123 = vld [vmem:[%s3 + $0x128] sm:$0xff]
  %v124 = vld [vmem:[%s3 + $0x130] sm:$0xff]
  %v125 = vld [vmem:[%s3 + $0x138] sm:$0xff]
  %v126 = vld [vmem:[%s3 + $0x140] sm:$0xff]
  %v127 = vld [vmem:[%s3 + $0x148] sm:$0xff]
  %v128 = vld [vmem:[%s3 + $0x150] sm:$0xff]
  %v129 = vld [vmem:[%s3 + $0x158] sm:$0xff]
  %v130 = vld [vmem:[%s3 + $0x160] sm:$0xff]
  %v131 = vld [vmem:[%s3 + $0x168] sm:$0xff]
  %v132 = vld [vmem:[%s3 + $0x170] sm:$0xff]
  %v133 = vld [vmem:[%s3 + $0x178] sm:$0xff]
  %v134 = vld [vmem:[%s3 + $0x180] sm:$0xff]
  %v135 = vld [vmem:[%s3 + $0x188] sm:$0xff]
  %v136 = vld [vmem:[%s3 + $0x190] sm:$0xff]
  %v137 = vld [vmem:[%s3 + $0x198] sm:$0xff]
  %v138 = vld [vmem:[%s3 + $0x1a0] sm:$0xff]
  %v139 = vld [vmem:[%s3 + $0x1a8] sm:$0xff]
  %v140 = vld [vmem:[%s3 + $0x1b0] sm:$0xff]
  %v141 = vld [vmem:[%s3 + $0x1b8] sm:$0xff]
  %v142 = vld [vmem:[%s3 + $0x1c0] sm:$0xff]
  %v143 = vld [vmem:[%s3 + $0x1c8] sm:$0xff]
  %v144 = vld [vmem:[%s3 + $0x1d0] sm:$0xff]
  %v145 = vld [vmem:[%s3 + $0x1d8] sm:$0xff]
  %v146 = vld [vmem:[%s3 + $0x1e0] sm:$0xff]
  %v147 = vld [vmem:[%s3 + $0x1e8] sm:$0xff]
  %v148 = vld [vmem:[%s3 + $0x1f0] sm:$0xff]
  %v149 = vld [vmem:[%s3 + $0x1f8] sm:$0xff]
  %v151 = vunpack.c.l.b16 %v85
  %v152 = vunpack.c.h.b16 %v85
  %v153 = vpack.c.b16 %v151, %v151
  %v154 = vpack.c.b16 %v152, %v152
  %v221 = vunpack.c.l.b16 %v86
  %v222 = vunpack.c.h.b16 %v86
  %v223 = vunpack.c.l.b16 %v87
  %v224 = vunpack.c.h.b16 %v87
  %v225 = vunpack.c.l.b16 %v88
  %v226 = vunpack.c.h.b16 %v88
  %v227 = vunpack.c.l.b16 %v89
  %v228 = vunpack.c.h.b16 %v89
  %v229 = vunpack.c.l.b16 %v90
  %v230 = vunpack.c.h.b16 %v90
  %v231 = vunpack.c.l.b16 %v91
  %v232 = vunpack.c.h.b16 %v91
  %v233 = vunpack.c.l.b16 %v92
  %v234 = vunpack.c.h.b16 %v92
  %v235 = vunpack.c.l.b16 %v93
  %v236 = vunpack.c.h.b16 %v93
  %v237 = vunpack.c.l.b16 %v94
  %v238 = vunpack.c.h.b16 %v94
  %v239 = vunpack.c.l.b16 %v95
  %v240 = vunpack.c.h.b16 %v95
  %v241 = vunpack.c.l.b16 %v96
  %v242 = vunpack.c.h.b16 %v96
  %v243 = vunpack.c.l.b16 %v97
  %v244 = vunpack.c.h.b16 %v97
  %v245 = vunpack.c.l.b16 %v98
  %v246 = vunpack.c.h.b16 %v98
  %v247 = vunpack.c.l.b16 %v99
  %v248 = vunpack.c.h.b16 %v99
  %v249 = vunpack.c.l.b16 %v100
  %v250 = vunpack.c.h.b16 %v100
  %v251 = vunpack.c.l.b16 %v101
  %v252 = vunpack.c.h.b16 %v101
  %v253 = vunpack.c.l.b16 %v102
  %v254 = vunpack.c.h.b16 %v102
  %v255 = vunpack.c.l.b16 %v103
  %v256 = vunpack.c.h.b16 %v103
  %v257 = vunpack.c.l.b16 %v104
  %v258 = vunpack.c.h.b16 %v104
  %v259 = vunpack.c.l.b16 %v105
  %v260 = vunpack.c.h.b16 %v105
  %v261 = vunpack.c.l.b16 %v106
  %v262 = vunpack.c.h.b16 %v106
  %v263 = vunpack.c.l.b16 %v107
  %v264 = vunpack.c.h.b16 %v107
  %v265 = vunpack.c.l.b16 %v108
  %v266 = vunpack.c.h.b16 %v108
  %v267 = vunpack.c.l.b16 %v109
  %v268 = vunpack.c.h.b16 %v109
  %v269 = vunpack.c.l.b16 %v110
  %v270 = vunpack.c.h.b16 %v110
  %v271 = vunpack.c.l.b16 %v111
  %v272 = vunpack.c.h.b16 %v111
  %v273 = vunpack.c.l.b16 %v112
  %v274 = vunpack.c.h.b16 %v112
  %v275 = vunpack.c.l.b16 %v113
  %v276 = vunpack.c.h.b16 %v113
  %v277 = vunpack.c.l.b16 %v114
  %v278 = vunpack.c.h.b16 %v114
  %v279 = vunpack.c.l.b16 %v115
  %v280 = vunpack.c.h.b16 %v115
  %v281 = vunpack.c.l.b16 %v116
  %v282 = vunpack.c.h.b16 %v116
  %v283 = vunpack.c.l.b16 %v117
  %v284 = vunpack.c.h.b16 %v117
  %v285 = vunpack.c.l.b16 %v118
  %v286 = vunpack.c.h.b16 %v118
  %v287 = vunpack.c.l.b16 %v119
  %v288 = vunpack.c.h.b16 %v119
  %v289 = vunpack.c.l.b16 %v120
  %v290 = vunpack.c.h.b16 %v120
  %v291 = vunpack.c.l.b16 %v121
  %v292 = vunpack.c.h.b16 %v121
  %v293 = vunpack.c.l.b16 %v122
  %v294 = vunpack.c.h.b16 %v122
  %v295 = vunpack.c.l.b16 %v123
  %v296 = vunpack.c.h.b16 %v123
  %v297 = vunpack.c.l.b16 %v124
  %v298 = vunpack.c.h.b16 %v124
  %v299 = vunpack.c.l.b16 %v125
  %v300 = vunpack.c.h.b16 %v125
  %v301 = vunpack.c.l.b16 %v126
  %v302 = vunpack.c.h.b16 %v126
  %v303 = vunpack.c.l.b16 %v127
  %v304 = vunpack.c.h.b16 %v127
  %v305 = vunpack.c.l.b16 %v128
  %v306 = vunpack.c.h.b16 %v128
  %v307 = vunpack.c.l.b16 %v129
  %v308 = vunpack.c.h.b16 %v129
  %v309 = vunpack.c.l.b16 %v130
  %v310 = vunpack.c.h.b16 %v130
  %v311 = vunpack.c.l.b16 %v131
  %v312 = vunpack.c.h.b16 %v131
  %v313 = vunpack.c.l.b16 %v132
  %v314 = vunpack.c.h.b16 %v132
  %v315 = vunpack.c.l.b16 %v133
  %v316 = vunpack.c.h.b16 %v133
  %v317 = vunpack.c.l.b16 %v134
  %v318 = vunpack.c.h.b16 %v134
  %v319 = vunpack.c.l.b16 %v135
  %v320 = vunpack.c.h.b16 %v135
  %v321 = vunpack.c.l.b16 %v136
  %v322 = vunpack.c.h.b16 %v136
  %v323 = vunpack.c.l.b16 %v137
  %v324 = vunpack.c.h.b16 %v137
  %v325 = vunpack.c.l.b16 %v138
  %v326 = vunpack.c.h.b16 %v138
  %v327 = vunpack.c.l.b16 %v139
  %v328 = vunpack.c.h.b16 %v139
  %v329 = vunpack.c.l.b16 %v140
  %v330 = vunpack.c.h.b16 %v140
  %v331 = vunpack.c.l.b16 %v141
  %v332 = vunpack.c.h.b16 %v141
  %v333 = vunpack.c.l.b16 %v142
  %v334 = vunpack.c.h.b16 %v142
  %v335 = vunpack.c.l.b16 %v143
  %v336 = vunpack.c.h.b16 %v143
  %v337 = vunpack.c.l.b16 %v144
  %v338 = vunpack.c.h.b16 %v144
  %v339 = vunpack.c.l.b16 %v145
  %v340 = vunpack.c.h.b16 %v145
  %v341 = vunpack.c.l.b16 %v146
  %v342 = vunpack.c.h.b16 %v146
  %v343 = vunpack.c.l.b16 %v147
  %v344 = vunpack.c.h.b16 %v147
  %v345 = vunpack.c.l.b16 %v148
  %v346 = vunpack.c.h.b16 %v148
  %v347 = vunpack.c.l.b16 %v149
  %v348 = vunpack.c.h.b16 %v149
  %v349 = vpack.c.b16 %v225, %v221
  %v350 = vpack.c.b16 %v226, %v222
  %v351 = vpack.c.b16 %v227, %v223
  %v352 = vpack.c.b16 %v228, %v224
  %v353 = vpack.c.b16 %v233, %v229
  %v354 = vpack.c.b16 %v234, %v230
  %v355 = vpack.c.b16 %v235, %v231
  %v356 = vpack.c.b16 %v236, %v232
  %v357 = vpack.c.b16 %v241, %v237
  %v358 = vpack.c.b16 %v242, %v238
  %v359 = vpack.c.b16 %v243, %v239
  %v360 = vpack.c.b16 %v244, %v240
  %v361 = vpack.c.b16 %v249, %v245
  %v362 = vpack.c.b16 %v250, %v246
  %v363 = vpack.c.b16 %v251, %v247
  %v364 = vpack.c.b16 %v252, %v248
  %v365 = vpack.c.b16 %v257, %v253
  %v366 = vpack.c.b16 %v258, %v254
  %v367 = vpack.c.b16 %v259, %v255
  %v368 = vpack.c.b16 %v260, %v256
  %v369 = vpack.c.b16 %v265, %v261
  %v370 = vpack.c.b16 %v266, %v262
  %v371 = vpack.c.b16 %v267, %v263
  %v372 = vpack.c.b16 %v268, %v264
  %v373 = vpack.c.b16 %v273, %v269
  %v374 = vpack.c.b16 %v274, %v270
  %v375 = vpack.c.b16 %v275, %v271
  %v376 = vpack.c.b16 %v276, %v272
  %v377 = vpack.c.b16 %v281, %v277
  %v378 = vpack.c.b16 %v282, %v278
  %v379 = vpack.c.b16 %v283, %v279
  %v380 = vpack.c.b16 %v284, %v280
  %v381 = vpack.c.b16 %v289, %v285
  %v382 = vpack.c.b16 %v290, %v286
  %v383 = vpack.c.b16 %v291, %v287
  %v384 = vpack.c.b16 %v292, %v288
  %v385 = vpack.c.b16 %v297, %v293
  %v386 = vpack.c.b16 %v298, %v294
  %v387 = vpack.c.b16 %v299, %v295
  %v388 = vpack.c.b16 %v300, %v296
  %v389 = vpack.c.b16 %v305, %v301
  %v390 = vpack.c.b16 %v306, %v302
  %v391 = vpack.c.b16 %v307, %v303
  %v392 = vpack.c.b16 %v308, %v304
  %v393 = vpack.c.b16 %v313, %v309
  %v394 = vpack.c.b16 %v314, %v310
  %v395 = vpack.c.b16 %v315, %v311
  %v396 = vpack.c.b16 %v316, %v312
  %v397 = vpack.c.b16 %v321, %v317
  %v398 = vpack.c.b16 %v322, %v318
  %v399 = vpack.c.b16 %v323, %v319
  %v400 = vpack.c.b16 %v324, %v320
  %v401 = vpack.c.b16 %v329, %v325
  %v402 = vpack.c.b16 %v330, %v326
  %v403 = vpack.c.b16 %v331, %v327
  %v404 = vpack.c.b16 %v332, %v328
  %v405 = vpack.c.b16 %v337, %v333
  %v406 = vpack.c.b16 %v338, %v334
  %v407 = vpack.c.b16 %v339, %v335
  %v408 = vpack.c.b16 %v340, %v336
  %v409 = vpack.c.b16 %v345, %v341
  %v410 = vpack.c.b16 %v346, %v342
  %v411 = vpack.c.b16 %v347, %v343
  %v412 = vpack.c.b16 %v348, %v344
  %477 = vmatprep.subr.bf16.mxu0 %v350
  %478 = vmatpush1.bf16.msra.mxu0 %v349
  %479 = vmatprep.subr.bf16.mxu0 %v354
  %480 = vmatpush1.bf16.msra.mxu0 %v353
  %481 = vmatprep.subr.bf16.mxu0 %v358
  %482 = vmatpush1.bf16.msra.mxu0 %v357
  %483 = vmatprep.subr.bf16.mxu0 %v362
  %484 = vmatpush1.bf16.msra.mxu0 %v361
  %485 = vmatprep.subr.bf16.mxu0 %v366
  %486 = vmatpush1.bf16.msra.mxu0 %v365
  %487 = vmatprep.subr.bf16.mxu0 %v370
  %488 = vmatpush1.bf16.msra.mxu0 %v369
  %489 = vmatprep.subr.bf16.mxu0 %v374
  %490 = vmatpush1.bf16.msra.mxu0 %v373
  %491 = vmatprep.subr.bf16.mxu0 %v378
  %492 = vmatpush1.bf16.msra.mxu0 %v377
  %493 = vmatprep.subr.bf16.mxu0 %v382
  %494 = vmatpush1.bf16.msra.mxu0 %v381
  %495 = vmatprep.subr.bf16.mxu0 %v386
  %496 = vmatpush1.bf16.msra.mxu0 %v385
  %497 = vmatprep.subr.bf16.mxu0 %v390
  %498 = vmatpush1.bf16.msra.mxu0 %v389
  %499 = vmatprep.subr.bf16.mxu0 %v394
  %500 = vmatpush1.bf16.msra.mxu0 %v393
  %501 = vmatprep.subr.bf16.mxu0 %v398
  %502 = vmatpush1.bf16.msra.mxu0 %v397
  %503 = vmatprep.subr.bf16.mxu0 %v402
  %504 = vmatpush1.bf16.msra.mxu0 %v401
  %505 = vmatprep.subr.bf16.mxu0 %v406
  %506 = vmatpush1.bf16.msra.mxu0 %v405
  %507 = vmatprep.subr.bf16.mxu0 %v410
  %508 = vmatpush1.bf16.msra.mxu0 %v409
  %509 = vmatprep.mubr.bf16.mxu0 %v154
  %510 = vmatmul.mubr.bf16.gmra.mrb[0].mxu0 %v153
  %v511 = vpop.f32.mrb[0].mxu0
  %v512 = vadd.f32 0.0, %v511
  %v513 = vpop.f32.mrb[0].mxu0
  %v514 = vadd.f32 0.0, %v513
  %v515 = vpop.f32.mrb[0].mxu0
  %v516 = vpop.f32.mrb[0].mxu0
  %517 = vdwg.mxu0
  %518 = vmatprep.subr.bf16.mxu0 %v352
  %519 = vmatpush1.bf16.msra.mxu0 %v351
  %520 = vmatprep.subr.bf16.mxu0 %v356
  %521 = vmatpush1.bf16.msra.mxu0 %v355
  %522 = vmatprep.subr.bf16.mxu0 %v360
  %523 = vmatpush1.bf16.msra.mxu0 %v359
  %524 = vmatprep.subr.bf16.mxu0 %v364
  %525 = vmatpush1.bf16.msra.mxu0 %v363
  %526 = vmatprep.subr.bf16.mxu0 %v368
  %527 = vmatpush1.bf16.msra.mxu0 %v367
  %528 = vmatprep.subr.bf16.mxu0 %v372
  %529 = vmatpush1.bf16.msra.mxu0 %v371
  %530 = vmatprep.subr.bf16.mxu0 %v376
  %531 = vmatpush1.bf16.msra.mxu0 %v375
  %532 = vmatprep.subr.bf16.mxu0 %v380
  %533 = vmatpush1.bf16.msra.mxu0 %v379
  %534 = vmatprep.subr.bf16.mxu0 %v384
  %535 = vmatpush1.bf16.msra.mxu0 %v383
  %536 = vmatprep.subr.bf16.mxu0 %v388
  %537 = vmatpush1.bf16.msra.mxu0 %v387
  %538 = vmatprep.subr.bf16.mxu0 %v392
  %539 = vmatpush1.bf16.msra.mxu0 %v391
  %540 = vmatprep.subr.bf16.mxu0 %v396
  %541 = vmatpush1.bf16.msra.mxu0 %v395
  %542 = vmatprep.subr.bf16.mxu0 %v400
  %543 = vmatpush1.bf16.msra.mxu0 %v399
  %544 = vmatprep.subr.bf16.mxu0 %v404
  %545 = vmatpush1.bf16.msra.mxu0 %v403
  %546 = vmatprep.subr.bf16.mxu0 %v408
  %547 = vmatpush1.bf16.msra.mxu0 %v407
  %548 = vmatprep.subr.bf16.mxu0 %v412
  %549 = vmatpush1.bf16.msra.mxu0 %v411
  %550 = vmatprep.mubr.bf16.mxu0 %v154
  %551 = vmatmul.mubr.bf16.gmra.mrb[0].mxu0 %v153
  %v552 = vpop.f32.mrb[0].mxu0
  %v553 = vadd.f32 0.0, %v552
  %v554 = vpop.f32.mrb[0].mxu0
  %v555 = vadd.f32 0.0, %v554
  %v556 = vpop.f32.mrb[0].mxu0
  %v557 = vpop.f32.mrb[0].mxu0
  %558 = vdwg.mxu0
  %v560 = vunpack.c.l.b16 %v20
  %v561 = vunpack.c.h.b16 %v20
  %v562 = vpack.c.b16 %v560, %v560
  %v563 = vpack.c.b16 %v561, %v561
  %v630 = vunpack.c.l.b16 %v21
  %v631 = vunpack.c.h.b16 %v21
  %v632 = vunpack.c.l.b16 %v22
  %v633 = vunpack.c.h.b16 %v22
  %v634 = vunpack.c.l.b16 %v23
  %v635 = vunpack.c.h.b16 %v23
  %v636 = vunpack.c.l.b16 %v24
  %v637 = vunpack.c.h.b16 %v24
  %v638 = vunpack.c.l.b16 %v25
  %v639 = vunpack.c.h.b16 %v25
  %v640 = vunpack.c.l.b16 %v26
  %v641 = vunpack.c.h.b16 %v26
  %v642 = vunpack.c.l.b16 %v27
  %v643 = vunpack.c.h.b16 %v27
  %v644 = vunpack.c.l.b16 %v28
  %v645 = vunpack.c.h.b16 %v28
  %v646 = vunpack.c.l.b16 %v29
  %v647 = vunpack.c.h.b16 %v29
  %v648 = vunpack.c.l.b16 %v30
  %v649 = vunpack.c.h.b16 %v30
  %v650 = vunpack.c.l.b16 %v31
  %v651 = vunpack.c.h.b16 %v31
  %v652 = vunpack.c.l.b16 %v32
  %v653 = vunpack.c.h.b16 %v32
  %v654 = vunpack.c.l.b16 %v33
  %v655 = vunpack.c.h.b16 %v33
  %v656 = vunpack.c.l.b16 %v34
  %v657 = vunpack.c.h.b16 %v34
  %v658 = vunpack.c.l.b16 %v35
  %v659 = vunpack.c.h.b16 %v35
  %v660 = vunpack.c.l.b16 %v36
  %v661 = vunpack.c.h.b16 %v36
  %v662 = vunpack.c.l.b16 %v37
  %v663 = vunpack.c.h.b16 %v37
  %v664 = vunpack.c.l.b16 %v38
  %v665 = vunpack.c.h.b16 %v38
  %v666 = vunpack.c.l.b16 %v39
  %v667 = vunpack.c.h.b16 %v39
  %v668 = vunpack.c.l.b16 %v40
  %v669 = vunpack.c.h.b16 %v40
  %v670 = vunpack.c.l.b16 %v41
  %v671 = vunpack.c.h.b16 %v41
  %v672 = vunpack.c.l.b16 %v42
  %v673 = vunpack.c.h.b16 %v42
  %v674 = vunpack.c.l.b16 %v43
  %v675 = vunpack.c.h.b16 %v43
  %v676 = vunpack.c.l.b16 %v44
  %v677 = vunpack.c.h.b16 %v44
  %v678 = vunpack.c.l.b16 %v45
  %v679 = vunpack.c.h.b16 %v45
  %v680 = vunpack.c.l.b16 %v46
  %v681 = vunpack.c.h.b16 %v46
  %v682 = vunpack.c.l.b16 %v47
  %v683 = vunpack.c.h.b16 %v47
  %v684 = vunpack.c.l.b16 %v48
  %v685 = vunpack.c.h.b16 %v48
  %v686 = vunpack.c.l.b16 %v49
  %v687 = vunpack.c.h.b16 %v49
  %v688 = vunpack.c.l.b16 %v50
  %v689 = vunpack.c.h.b16 %v50
  %v690 = vunpack.c.l.b16 %v51
  %v691 = vunpack.c.h.b16 %v51
  %v692 = vunpack.c.l.b16 %v52
  %v693 = vunpack.c.h.b16 %v52
  %v694 = vunpack.c.l.b16 %v53
  %v695 = vunpack.c.h.b16 %v53
  %v696 = vunpack.c.l.b16 %v54
  %v697 = vunpack.c.h.b16 %v54
  %v698 = vunpack.c.l.b16 %v55
  %v699 = vunpack.c.h.b16 %v55
  %v700 = vunpack.c.l.b16 %v56
  %v701 = vunpack.c.h.b16 %v56
  %v702 = vunpack.c.l.b16 %v57
  %v703 = vunpack.c.h.b16 %v57
  %v704 = vunpack.c.l.b16 %v58
  %v705 = vunpack.c.h.b16 %v58
  %v706 = vunpack.c.l.b16 %v59
  %v707 = vunpack.c.h.b16 %v59
  %v708 = vunpack.c.l.b16 %v60
  %v709 = vunpack.c.h.b16 %v60
  %v710 = vunpack.c.l.b16 %v61
  %v711 = vunpack.c.h.b16 %v61
  %v712 = vunpack.c.l.b16 %v62
  %v713 = vunpack.c.h.b16 %v62
  %v714 = vunpack.c.l.b16 %v63
  %v715 = vunpack.c.h.b16 %v63
  %v716 = vunpack.c.l.b16 %v64
  %v717 = vunpack.c.h.b16 %v64
  %v718 = vunpack.c.l.b16 %v65
  %v719 = vunpack.c.h.b16 %v65
  %v720 = vunpack.c.l.b16 %v66
  %v721 = vunpack.c.h.b16 %v66
  %v722 = vunpack.c.l.b16 %v67
  %v723 = vunpack.c.h.b16 %v67
  %v724 = vunpack.c.l.b16 %v68
  %v725 = vunpack.c.h.b16 %v68
  %v726 = vunpack.c.l.b16 %v69
  %v727 = vunpack.c.h.b16 %v69
  %v728 = vunpack.c.l.b16 %v70
  %v729 = vunpack.c.h.b16 %v70
  %v730 = vunpack.c.l.b16 %v71
  %v731 = vunpack.c.h.b16 %v71
  %v732 = vunpack.c.l.b16 %v72
  %v733 = vunpack.c.h.b16 %v72
  %v734 = vunpack.c.l.b16 %v73
  %v735 = vunpack.c.h.b16 %v73
  %v736 = vunpack.c.l.b16 %v74
  %v737 = vunpack.c.h.b16 %v74
  %v738 = vunpack.c.l.b16 %v75
  %v739 = vunpack.c.h.b16 %v75
  %v740 = vunpack.c.l.b16 %v76
  %v741 = vunpack.c.h.b16 %v76
  %v742 = vunpack.c.l.b16 %v77
  %v743 = vunpack.c.h.b16 %v77
  %v744 = vunpack.c.l.b16 %v78
  %v745 = vunpack.c.h.b16 %v78
  %v746 = vunpack.c.l.b16 %v79
  %v747 = vunpack.c.h.b16 %v79
  %v748 = vunpack.c.l.b16 %v80
  %v749 = vunpack.c.h.b16 %v80
  %v750 = vunpack.c.l.b16 %v81
  %v751 = vunpack.c.h.b16 %v81
  %v752 = vunpack.c.l.b16 %v82
  %v753 = vunpack.c.h.b16 %v82
  %v754 = vunpack.c.l.b16 %v83
  %v755 = vunpack.c.h.b16 %v83
  %v756 = vunpack.c.l.b16 %v84
  %v757 = vunpack.c.h.b16 %v84
  %v758 = vpack.c.b16 %v634, %v630
  %v759 = vpack.c.b16 %v635, %v631
  %v760 = vpack.c.b16 %v636, %v632
  %v761 = vpack.c.b16 %v637, %v633
  %v762 = vpack.c.b16 %v642, %v638
  %v763 = vpack.c.b16 %v643, %v639
  %v764 = vpack.c.b16 %v644, %v640
  %v765 = vpack.c.b16 %v645, %v641
  %v766 = vpack.c.b16 %v650, %v646
  %v767 = vpack.c.b16 %v651, %v647
  %v768 = vpack.c.b16 %v652, %v648
  %v769 = vpack.c.b16 %v653, %v649
  %v770 = vpack.c.b16 %v658, %v654
  %v771 = vpack.c.b16 %v659, %v655
  %v772 = vpack.c.b16 %v660, %v656
  %v773 = vpack.c.b16 %v661, %v657
  %v774 = vpack.c.b16 %v666, %v662
  %v775 = vpack.c.b16 %v667, %v663
  %v776 = vpack.c.b16 %v668, %v664
  %v777 = vpack.c.b16 %v669, %v665
  %v778 = vpack.c.b16 %v674, %v670
  %v779 = vpack.c.b16 %v675, %v671
  %v780 = vpack.c.b16 %v676, %v672
  %v781 = vpack.c.b16 %v677, %v673
  %v782 = vpack.c.b16 %v682, %v678
  %v783 = vpack.c.b16 %v683, %v679
  %v784 = vpack.c.b16 %v684, %v680
  %v785 = vpack.c.b16 %v685, %v681
  %v786 = vpack.c.b16 %v690, %v686
  %v787 = vpack.c.b16 %v691, %v687
  %v788 = vpack.c.b16 %v692, %v688
  %v789 = vpack.c.b16 %v693, %v689
  %v790 = vpack.c.b16 %v698, %v694
  %v791 = vpack.c.b16 %v699, %v695
  %v792 = vpack.c.b16 %v700, %v696
  %v793 = vpack.c.b16 %v701, %v697
  %v794 = vpack.c.b16 %v706, %v702
  %v795 = vpack.c.b16 %v707, %v703
  %v796 = vpack.c.b16 %v708, %v704
  %v797 = vpack.c.b16 %v709, %v705
  %v798 = vpack.c.b16 %v714, %v710
  %v799 = vpack.c.b16 %v715, %v711
  %v800 = vpack.c.b16 %v716, %v712
  %v801 = vpack.c.b16 %v717, %v713
  %v802 = vpack.c.b16 %v722, %v718
  %v803 = vpack.c.b16 %v723, %v719
  %v804 = vpack.c.b16 %v724, %v720
  %v805 = vpack.c.b16 %v725, %v721
  %v806 = vpack.c.b16 %v730, %v726
  %v807 = vpack.c.b16 %v731, %v727
  %v808 = vpack.c.b16 %v732, %v728
  %v809 = vpack.c.b16 %v733, %v729
  %v810 = vpack.c.b16 %v738, %v734
  %v811 = vpack.c.b16 %v739, %v735
  %v812 = vpack.c.b16 %v740, %v736
  %v813 = vpack.c.b16 %v741, %v737
  %v814 = vpack.c.b16 %v746, %v742
  %v815 = vpack.c.b16 %v747, %v743
  %v816 = vpack.c.b16 %v748, %v744
  %v817 = vpack.c.b16 %v749, %v745
  %v818 = vpack.c.b16 %v754, %v750
  %v819 = vpack.c.b16 %v755, %v751
  %v820 = vpack.c.b16 %v756, %v752
  %v821 = vpack.c.b16 %v757, %v753
  %886 = vmatprep.subr.bf16.mxu0 %v759
  %887 = vmatpush1.bf16.msra.mxu0 %v758
  %888 = vmatprep.subr.bf16.mxu0 %v763
  %889 = vmatpush1.bf16.msra.mxu0 %v762
  %890 = vmatprep.subr.bf16.mxu0 %v767
  %891 = vmatpush1.bf16.msra.mxu0 %v766
  %892 = vmatprep.subr.bf16.mxu0 %v771
  %893 = vmatpush1.bf16.msra.mxu0 %v770
  %894 = vmatprep.subr.bf16.mxu0 %v775
  %895 = vmatpush1.bf16.msra.mxu0 %v774
  %896 = vmatprep.subr.bf16.mxu0 %v779
  %897 = vmatpush1.bf16.msra.mxu0 %v778
  %898 = vmatprep.subr.bf16.mxu0 %v783
  %899 = vmatpush1.bf16.msra.mxu0 %v782
  %900 = vmatprep.subr.bf16.mxu0 %v787
  %901 = vmatpush1.bf16.msra.mxu0 %v786
  %902 = vmatprep.subr.bf16.mxu0 %v791
  %903 = vmatpush1.bf16.msra.mxu0 %v790
  %904 = vmatprep.subr.bf16.mxu0 %v795
  %905 = vmatpush1.bf16.msra.mxu0 %v794
  %906 = vmatprep.subr.bf16.mxu0 %v799
  %907 = vmatpush1.bf16.msra.mxu0 %v798
  %908 = vmatprep.subr.bf16.mxu0 %v803
  %909 = vmatpush1.bf16.msra.mxu0 %v802
  %910 = vmatprep.subr.bf16.mxu0 %v807
  %911 = vmatpush1.bf16.msra.mxu0 %v806
  %912 = vmatprep.subr.bf16.mxu0 %v811
  %913 = vmatpush1.bf16.msra.mxu0 %v810
  %914 = vmatprep.subr.bf16.mxu0 %v815
  %915 = vmatpush1.bf16.msra.mxu0 %v814
  %916 = vmatprep.subr.bf16.mxu0 %v819
  %917 = vmatpush1.bf16.msra.mxu0 %v818
  %918 = vmatprep.mubr.bf16.mxu0 %v563
  %919 = vmatmul.mubr.bf16.gmra.mrb[0].mxu0 %v562
  %v920 = vpop.f32.mrb[0].mxu0
  %v921 = vadd.f32 %v512, %v920
  %v922 = vpop.f32.mrb[0].mxu0
  %v923 = vadd.f32 %v514, %v922
  %v924 = vpop.f32.mrb[0].mxu0
  %v925 = vpop.f32.mrb[0].mxu0
  %926 = vdwg.mxu0
  %927 = vmatprep.subr.bf16.mxu0 %v761
  %928 = vmatpush1.bf16.msra.mxu0 %v760
  %929 = vmatprep.subr.bf16.mxu0 %v765
  %930 = vmatpush1.bf16.msra.mxu0 %v764
  %931 = vmatprep.subr.bf16.mxu0 %v769
  %932 = vmatpush1.bf16.msra.mxu0 %v768
  %933 = vmatprep.subr.bf16.mxu0 %v773
  %934 = vmatpush1.bf16.msra.mxu0 %v772
  %935 = vmatprep.subr.bf16.mxu0 %v777
  %936 = vmatpush1.bf16.msra.mxu0 %v776
  %937 = vmatprep.subr.bf16.mxu0 %v781
  %938 = vmatpush1.bf16.msra.mxu0 %v780
  %939 = vmatprep.subr.bf16.mxu0 %v785
  %940 = vmatpush1.bf16.msra.mxu0 %v784
  %941 = vmatprep.subr.bf16.mxu0 %v789
  %942 = vmatpush1.bf16.msra.mxu0 %v788
  %943 = vmatprep.subr.bf16.mxu0 %v793
  %944 = vmatpush1.bf16.msra.mxu0 %v792
  %945 = vmatprep.subr.bf16.mxu0 %v797
  %946 = vmatpush1.bf16.msra.mxu0 %v796
  %947 = vmatprep.subr.bf16.mxu0 %v801
  %948 = vmatpush1.bf16.msra.mxu0 %v800
  %949 = vmatprep.subr.bf16.mxu0 %v805
  %950 = vmatpush1.bf16.msra.mxu0 %v804
  %951 = vmatprep.subr.bf16.mxu0 %v809
  %952 = vmatpush1.bf16.msra.mxu0 %v808
  %953 = vmatprep.subr.bf16.mxu0 %v813
  %954 = vmatpush1.bf16.msra.mxu0 %v812
  %955 = vmatprep.subr.bf16.mxu0 %v817
  %956 = vmatpush1.bf16.msra.mxu0 %v816
  %957 = vmatprep.subr.bf16.mxu0 %v821
  %958 = vmatpush1.bf16.msra.mxu0 %v820
  %959 = vmatprep.mubr.bf16.mxu0 %v563
  %960 = vmatmul.mubr.bf16.gmra.mrb[0].mxu0 %v562
  %v961 = vpop.f32.mrb[0].mxu0
  %v962 = vadd.f32 %v553, %v961
  %v963 = vpop.f32.mrb[0].mxu0
  %v964 = vadd.f32 %v555, %v963
  %v965 = vpop.f32.mrb[0].mxu0
  %v966 = vpop.f32.mrb[0].mxu0
  %967 = vdwg.mxu0
  %v968 = vld [vmem:[%s4] sm:$0xf]
  %v970 = vlaneseq
  %v971 = vshrl.u32 %v970, 7
  %v972 = vsub.s32 0, %v971
  %v973 = vrot.slane %v968, %v972
  %v974 = vlaneseq
  %v975 = vshrl.u32 %v974, 7
  %v976 = vsub.s32 1, %v975
  %v977 = vrot.slane %v968, %v976
  %v978 = vlaneseq
  %v979 = vshrl.u32 %v978, 7
  %v980 = vsub.s32 2, %v979
  %v981 = vrot.slane %v968, %v980
  %v982 = vlaneseq
  %v983 = vshrl.u32 %v982, 7
  %v984 = vsub.s32 3, %v983
  %v985 = vrot.slane %v968, %v984
  %v990 = vadd.f32 %v921, %v973
  %v991 = vadd.f32 %v923, %v977
  %v992 = vadd.f32 %v962, %v981
  %v993 = vadd.f32 %v964, %v985
  %v994 = vxor.u32 %v990, 2147483648
  %v995 = vxor.u32 %v991, 2147483648
  %v996 = vxor.u32 %v992, 2147483648
  %v997 = vxor.u32 %v993, 2147483648
  %v998 = vmul.f32 %v994, 1.442695
  %v999 = vpow.pop %v998
  %v1000 = vmul.f32 %v995, 1.442695
  %v1001 = vpow.pop %v1000
  %v1002 = vmul.f32 %v996, 1.442695
  %v1003 = vpow.pop %v1002
  %v1004 = vmul.f32 %v997, 1.442695
  %v1005 = vpow.pop %v1004
  %v1006 = vadd.f32 %v999, 1.0
  %v1007 = vadd.f32 %v1001, 1.0
  %v1008 = vadd.f32 %v1003, 1.0
  %v1009 = vadd.f32 %v1005, 1.0
  %v1010 = vrcp.pop %v1006
  %v1011 = vmul.f32 1.0, %v1010
  %v1012 = vrcp.pop %v1007
  %v1013 = vmul.f32 1.0, %v1012
  %v1014 = vrcp.pop %v1008
  %v1015 = vmul.f32 1.0, %v1014
  %v1016 = vrcp.pop %v1009
  %v1017 = vmul.f32 1.0, %v1016
  %v1018 = vmul.f32 %v990, %v1011
  %v1019 = vmul.f32 %v991, %v1013
  %v1020 = vmul.f32 %v992, %v1015
  %v1021 = vmul.f32 %v993, %v1017
  %1022 = vst [vmem:[%s5] sm:$0xff] %v1018
  %1023 = vst [vmem:[%s5 + $0x8] sm:$0xff] %v1019
  %1024 = vst [vmem:[%s5 + $0x10] sm:$0xff] %v1020
  %1025 = vst [vmem:[%s5 + $0x18] sm:$0xff] %v1021
  // Predicated region
  $region22: #{neck_fwd.36} parent=0 // pred_check
    _
  $region23: #{neck_fwd.36} parent=0 // pred_check_branch
    %1027 = sbr.rel (0) target = $region25
  $region24: #{neck_fwd.36} parent=0 // pred_region
    _
  $region25: #{neck_fwd.36} parent=0 // pred_fallthru
    _
  // Predicated region
  $region26: #{neck_fwd.36} parent=0 // pred_check
    _
  $region27: #{neck_fwd.36} parent=0 // pred_check_branch
    %1029 = sbr.rel (0) target = $region29
  $region28: #{neck_fwd.36} parent=0 // pred_region
    _
  $region29: #{neck_fwd.36} parent=0 // pred_fallthru
    _

// kernel: neck_fwd.37
$region0: #{neck_fwd.37}
  #allocation0 [shape = 'u32[]', space=smem, size = 0x4, offset = 0x4, fixed_abs, tag = 'smem constant byte address 0x4 - core index']
  #allocation1 [shape = 'u32[144,128]{1,0:T(1,128)}', space=vmem, size = 0x12000, scoped, tag = 'internal scratch']
  %s0 = inlined_call_operand.vmem [shape: bf16[8,256], index: 0, kind: input, shape index: {}]
  %s1 = inlined_call_operand.vmem [shape: bf16[256,256], index: 1, kind: input, shape index: {}]
  %s2 = inlined_call_operand.vmem [shape: f32[1,256], index: 2, kind: input, shape index: {}]
  %s3 = inlined_call_operand.vmem [shape: f32[8,256], index: 3, kind: output, shape index: {}]
  %s4 = sld [smem:[#allocation0]]
  $region22: #{neck_fwd.37} parent=0
    _
  %s6 = ssub.s32 1, %s4
  %s7 = scalar_select 0, %s6, %s4
  // Predicated region
  $region2: #{neck_fwd.37} parent=0 // pred_check
    _
  $region3: #{neck_fwd.37} parent=0 // pred_check_branch
    %9 = sbr.rel (0) target = $region5
  $region4: #{neck_fwd.37} parent=0 // pred_region
    _
  $region5: #{neck_fwd.37} parent=0 // pred_fallthru
    _
  // Predicated region
  $region6: #{neck_fwd.37} parent=0 // pred_check
    _
  $region7: #{neck_fwd.37} parent=0 // pred_check_branch
    %11 = sbr.rel (0) target = $region9
  $region8: #{neck_fwd.37} parent=0 // pred_region
    _
  $region9: #{neck_fwd.37} parent=0 // pred_fallthru
    _
  // Predicated region
  $region10: #{neck_fwd.37} parent=0 // pred_check
    _
  $region11: #{neck_fwd.37} parent=0 // pred_check_branch
    %13 = sbr.rel (0) target = $region13
  $region12: #{neck_fwd.37} parent=0 // pred_region
    _
  $region13: #{neck_fwd.37} parent=0 // pred_fallthru
    _
  %v14 = vld [vmem:[%s0] sm:$0xff]
  %v15 = vld [vmem:[%s1] sm:$0xff]
  %v16 = vld [vmem:[%s1 + $0x8] sm:$0xff]
  %v17 = vld [vmem:[%s1 + $0x10] sm:$0xff]
  %v18 = vld [vmem:[%s1 + $0x18] sm:$0xff]
  %v19 = vld [vmem:[%s1 + $0x20] sm:$0xff]
  %v20 = vld [vmem:[%s1 + $0x28] sm:$0xff]
  %v21 = vld [vmem:[%s1 + $0x30] sm:$0xff]
  %v22 = vld [vmem:[%s1 + $0x38] sm:$0xff]
  %v23 = vld [vmem:[%s1 + $0x40] sm:$0xff]
  %v24 = vld [vmem:[%s1 + $0x48] sm:$0xff]
  %v25 = vld [vmem:[%s1 + $0x50] sm:$0xff]
  %v26 = vld [vmem:[%s1 + $0x58] sm:$0xff]
  %v27 = vld [vmem:[%s1 + $0x60] sm:$0xff]
  %v28 = vld [vmem:[%s1 + $0x68] sm:$0xff]
  %v29 = vld [vmem:[%s1 + $0x70] sm:$0xff]
  %v30 = vld [vmem:[%s1 + $0x78] sm:$0xff]
  %v31 = vld [vmem:[%s1 + $0x80] sm:$0xff]
  %v32 = vld [vmem:[%s1 + $0x88] sm:$0xff]
  %v33 = vld [vmem:[%s1 + $0x90] sm:$0xff]
  %v34 = vld [vmem:[%s1 + $0x98] sm:$0xff]
  %v35 = vld [vmem:[%s1 + $0xa0] sm:$0xff]
  %v36 = vld [vmem:[%s1 + $0xa8] sm:$0xff]
  %v37 = vld [vmem:[%s1 + $0xb0] sm:$0xff]
  %v38 = vld [vmem:[%s1 + $0xb8] sm:$0xff]
  %v39 = vld [vmem:[%s1 + $0xc0] sm:$0xff]
  %v40 = vld [vmem:[%s1 + $0xc8] sm:$0xff]
  %v41 = vld [vmem:[%s1 + $0xd0] sm:$0xff]
  %v42 = vld [vmem:[%s1 + $0xd8] sm:$0xff]
  %v43 = vld [vmem:[%s1 + $0xe0] sm:$0xff]
  %v44 = vld [vmem:[%s1 + $0xe8] sm:$0xff]
  %v45 = vld [vmem:[%s1 + $0xf0] sm:$0xff]
  %v46 = vld [vmem:[%s1 + $0xf8] sm:$0xff]
  %v47 = vld [vmem:[%s2] sm:$0x3]
  %v49 = vlaneseq
  %v50 = vshrl.u32 %v49, 7
  %v51 = vsub.s32 0, %v50
  %v52 = vrot.slane %v47, %v51
  %v53 = vlaneseq
  %v54 = vshrl.u32 %v53, 7
  %v55 = vsub.s32 1, %v54
  %v56 = vrot.slane %v47, %v55
  %v60 = vunpack.c.l.b16 %v14
  %v61 = vunpack.c.h.b16 %v14
  %v62 = vpack.c.b16 %v60, %v60
  %v63 = vpack.c.b16 %v61, %v61
  %v98 = vunpack.c.l.b16 %v15
  %v99 = vunpack.c.h.b16 %v15
  %v100 = vunpack.c.l.b16 %v16
  %v101 = vunpack.c.h.b16 %v16
  %v102 = vunpack.c.l.b16 %v17
  %v103 = vunpack.c.h.b16 %v17
  %v104 = vunpack.c.l.b16 %v18
  %v105 = vunpack.c.h.b16 %v18
  %v106 = vunpack.c.l.b16 %v19
  %v107 = vunpack.c.h.b16 %v19
  %v108 = vunpack.c.l.b16 %v20
  %v109 = vunpack.c.h.b16 %v20
  %v110 = vunpack.c.l.b16 %v21
  %v111 = vunpack.c.h.b16 %v21
  %v112 = vunpack.c.l.b16 %v22
  %v113 = vunpack.c.h.b16 %v22
  %v114 = vunpack.c.l.b16 %v23
  %v115 = vunpack.c.h.b16 %v23
  %v116 = vunpack.c.l.b16 %v24
  %v117 = vunpack.c.h.b16 %v24
  %v118 = vunpack.c.l.b16 %v25
  %v119 = vunpack.c.h.b16 %v25
  %v120 = vunpack.c.l.b16 %v26
  %v121 = vunpack.c.h.b16 %v26
  %v122 = vunpack.c.l.b16 %v27
  %v123 = vunpack.c.h.b16 %v27
  %v124 = vunpack.c.l.b16 %v28
  %v125 = vunpack.c.h.b16 %v28
  %v126 = vunpack.c.l.b16 %v29
  %v127 = vunpack.c.h.b16 %v29
  %v128 = vunpack.c.l.b16 %v30
  %v129 = vunpack.c.h.b16 %v30
  %v130 = vunpack.c.l.b16 %v31
  %v131 = vunpack.c.h.b16 %v31
  %v132 = vunpack.c.l.b16 %v32
  %v133 = vunpack.c.h.b16 %v32
  %v134 = vunpack.c.l.b16 %v33
  %v135 = vunpack.c.h.b16 %v33
  %v136 = vunpack.c.l.b16 %v34
  %v137 = vunpack.c.h.b16 %v34
  %v138 = vunpack.c.l.b16 %v35
  %v139 = vunpack.c.h.b16 %v35
  %v140 = vunpack.c.l.b16 %v36
  %v141 = vunpack.c.h.b16 %v36
  %v142 = vunpack.c.l.b16 %v37
  %v143 = vunpack.c.h.b16 %v37
  %v144 = vunpack.c.l.b16 %v38
  %v145 = vunpack.c.h.b16 %v38
  %v146 = vunpack.c.l.b16 %v39
  %v147 = vunpack.c.h.b16 %v39
  %v148 = vunpack.c.l.b16 %v40
  %v149 = vunpack.c.h.b16 %v40
  %v150 = vunpack.c.l.b16 %v41
  %v151 = vunpack.c.h.b16 %v41
  %v152 = vunpack.c.l.b16 %v42
  %v153 = vunpack.c.h.b16 %v42
  %v154 = vunpack.c.l.b16 %v43
  %v155 = vunpack.c.h.b16 %v43
  %v156 = vunpack.c.l.b16 %v44
  %v157 = vunpack.c.h.b16 %v44
  %v158 = vunpack.c.l.b16 %v45
  %v159 = vunpack.c.h.b16 %v45
  %v160 = vunpack.c.l.b16 %v46
  %v161 = vunpack.c.h.b16 %v46
  %v162 = vpack.c.b16 %v100, %v98
  %v163 = vpack.c.b16 %v101, %v99
  %v164 = vpack.c.b16 %v104, %v102
  %v165 = vpack.c.b16 %v105, %v103
  %v166 = vpack.c.b16 %v108, %v106
  %v167 = vpack.c.b16 %v109, %v107
  %v168 = vpack.c.b16 %v112, %v110
  %v169 = vpack.c.b16 %v113, %v111
  %v170 = vpack.c.b16 %v116, %v114
  %v171 = vpack.c.b16 %v117, %v115
  %v172 = vpack.c.b16 %v120, %v118
  %v173 = vpack.c.b16 %v121, %v119
  %v174 = vpack.c.b16 %v124, %v122
  %v175 = vpack.c.b16 %v125, %v123
  %v176 = vpack.c.b16 %v128, %v126
  %v177 = vpack.c.b16 %v129, %v127
  %v178 = vpack.c.b16 %v132, %v130
  %v179 = vpack.c.b16 %v133, %v131
  %v180 = vpack.c.b16 %v136, %v134
  %v181 = vpack.c.b16 %v137, %v135
  %v182 = vpack.c.b16 %v140, %v138
  %v183 = vpack.c.b16 %v141, %v139
  %v184 = vpack.c.b16 %v144, %v142
  %v185 = vpack.c.b16 %v145, %v143
  %v186 = vpack.c.b16 %v148, %v146
  %v187 = vpack.c.b16 %v149, %v147
  %v188 = vpack.c.b16 %v152, %v150
  %v189 = vpack.c.b16 %v153, %v151
  %v190 = vpack.c.b16 %v156, %v154
  %v191 = vpack.c.b16 %v157, %v155
  %v192 = vpack.c.b16 %v160, %v158
  %v193 = vpack.c.b16 %v161, %v159
  %226 = vmatprep.subr.bf16.mxu0 %v163
  %227 = vmatpush1.bf16.msra.mxu0 %v162
  %228 = vmatprep.subr.bf16.mxu0 %v165
  %229 = vmatpush1.bf16.msra.mxu0 %v164
  %230 = vmatprep.subr.bf16.mxu0 %v167
  %231 = vmatpush1.bf16.msra.mxu0 %v166
  %232 = vmatprep.subr.bf16.mxu0 %v169
  %233 = vmatpush1.bf16.msra.mxu0 %v168
  %234 = vmatprep.subr.bf16.mxu0 %v171
  %235 = vmatpush1.bf16.msra.mxu0 %v170
  %236 = vmatprep.subr.bf16.mxu0 %v173
  %237 = vmatpush1.bf16.msra.mxu0 %v172
  %238 = vmatprep.subr.bf16.mxu0 %v175
  %239 = vmatpush1.bf16.msra.mxu0 %v174
  %240 = vmatprep.subr.bf16.mxu0 %v177
  %241 = vmatpush1.bf16.msra.mxu0 %v176
  %242 = vmatprep.subr.bf16.mxu0 %v179
  %243 = vmatpush1.bf16.msra.mxu0 %v178
  %244 = vmatprep.subr.bf16.mxu0 %v181
  %245 = vmatpush1.bf16.msra.mxu0 %v180
  %246 = vmatprep.subr.bf16.mxu0 %v183
  %247 = vmatpush1.bf16.msra.mxu0 %v182
  %248 = vmatprep.subr.bf16.mxu0 %v185
  %249 = vmatpush1.bf16.msra.mxu0 %v184
  %250 = vmatprep.subr.bf16.mxu0 %v187
  %251 = vmatpush1.bf16.msra.mxu0 %v186
  %252 = vmatprep.subr.bf16.mxu0 %v189
  %253 = vmatpush1.bf16.msra.mxu0 %v188
  %254 = vmatprep.subr.bf16.mxu0 %v191
  %255 = vmatpush1.bf16.msra.mxu0 %v190
  %256 = vmatprep.subr.bf16.mxu0 %v193
  %257 = vmatpush1.bf16.msra.mxu0 %v192
  %258 = vmatprep.mubr.bf16.mxu0 %v63
  %259 = vmatmul.mubr.bf16.gmra.mrb[0].mxu0 %v62
  %v260 = vpop.f32.mrb[0].mxu0
  %v261 = vadd.f32 %v52, %v260
  %v262 = vpop.f32.mrb[0].mxu0
  %v263 = vadd.f32 %v56, %v262
  %v264 = vpop.f32.mrb[0].mxu0
  %v265 = vpop.f32.mrb[0].mxu0
  %266 = vdwg.mxu0
  %v267 = vxor.u32 %v261, 2147483648
  %v268 = vxor.u32 %v263, 2147483648
  %v269 = vmul.f32 %v267, 1.442695
  %v270 = vpow.pop %v269
  %v271 = vmul.f32 %v268, 1.442695
  %v272 = vpow.pop %v271
  %v273 = vadd.f32 %v270, 1.0
  %v274 = vadd.f32 %v272, 1.0
  %v275 = vrcp.pop %v273
  %v276 = vmul.f32 1.0, %v275
  %v277 = vrcp.pop %v274
  %v278 = vmul.f32 1.0, %v277
  %v279 = vmul.f32 %v261, %v276
  %v280 = vmul.f32 %v263, %v278
  %281 = vst [vmem:[%s3] sm:$0xff] %v279
  %282 = vst [vmem:[%s3 + $0x8] sm:$0xff] %v280
  // Predicated region
  $region14: #{neck_fwd.37} parent=0 // pred_check
    _
  $region15: #{neck_fwd.37} parent=0 // pred_check_branch
    %284 = sbr.rel (0) target = $region17
  $region16: #{neck_fwd.37} parent=0 // pred_region
    _
  $region17: #{neck_fwd.37} parent=0 // pred_fallthru
    _
  // Predicated region
  $region18: #{neck_fwd.37} parent=0 // pred_check
    _
  $region19: #{neck_fwd.37} parent=0 // pred_check_branch
    %286 = sbr.rel (0) target = $region21
  $region20: #{neck_fwd.37} parent=0 // pred_region
    _
  $region21: #{neck_fwd.37} parent=0 // pred_fallthru
    _

// kernel: neck_fwd.35
$region0: #{neck_fwd.35}
  #allocation0 [shape = 'u32[]', space=smem, size = 0x4, offset = 0x4, fixed_abs, tag = 'smem constant byte address 0x4 - core index']
  #allocation1 [shape = 'u32[144,128]{1,0:T(1,128)}', space=vmem, size = 0x12000, scoped, tag = 'internal scratch']
  %s0 = inlined_call_operand.vmem [shape: bf16[8,2304], index: 0, kind: input, shape index: {}]
  %s1 = inlined_call_operand.vmem [shape: bf16[2304,256], index: 1, kind: input, shape index: {}]
  %s2 = inlined_call_operand.vmem [shape: f32[1,256], index: 2, kind: input, shape index: {}]
  %s3 = inlined_call_operand.vmem [shape: f32[8,256], index: 3, kind: output, shape index: {}]
  %s4 = sld [smem:[#allocation0]]
  $region22: #{neck_fwd.35} parent=0
    _
  %s6 = ssub.s32 1, %s4
  %s7 = scalar_select 0, %s6, %s4
  // Predicated region
  $region2: #{neck_fwd.35} parent=0 // pred_check
    _
  $region3: #{neck_fwd.35} parent=0 // pred_check_branch
    %9 = sbr.rel (0) target = $region5
  $region4: #{neck_fwd.35} parent=0 // pred_region
    _
  $region5: #{neck_fwd.35} parent=0 // pred_fallthru
    _
  // Predicated region
  $region6: #{neck_fwd.35} parent=0 // pred_check
    _
  $region7: #{neck_fwd.35} parent=0 // pred_check_branch
    %11 = sbr.rel (0) target = $region9
  $region8: #{neck_fwd.35} parent=0 // pred_region
    _
  $region9: #{neck_fwd.35} parent=0 // pred_fallthru
    _
  // Predicated region
  $region10: #{neck_fwd.35} parent=0 // pred_check
    _
  $region11: #{neck_fwd.35} parent=0 // pred_check_branch
    %13 = sbr.rel (0) target = $region13
  $region12: #{neck_fwd.35} parent=0 // pred_region
    _
  $region13: #{neck_fwd.35} parent=0 // pred_fallthru
    _
  %v14 = vld [vmem:[%s0] sm:$0xff]
  %v15 = vld [vmem:[%s0 + $0x8] sm:$0xff]
  %v16 = vld [vmem:[%s0 + $0x10] sm:$0xff]
  %v17 = vld [vmem:[%s0 + $0x18] sm:$0xff]
  %v18 = vld [vmem:[%s0 + $0x20] sm:$0xff]
  %v19 = vld [vmem:[%s0 + $0x28] sm:$0xff]
  %v20 = vld [vmem:[%s0 + $0x30] sm:$0xff]
  %v21 = vld [vmem:[%s0 + $0x38] sm:$0xff]
  %v22 = vld [vmem:[%s0 + $0x40] sm:$0xff]
  %v23 = vld [vmem:[%s1] sm:$0xff]
  %v24 = vld [vmem:[%s1 + $0x8] sm:$0xff]
  %v25 = vld [vmem:[%s1 + $0x10] sm:$0xff]
  %v26 = vld [vmem:[%s1 + $0x18] sm:$0xff]
  %v27 = vld [vmem:[%s1 + $0x20] sm:$0xff]
  %v28 = vld [vmem:[%s1 + $0x28] sm:$0xff]
  %v29 = vld [vmem:[%s1 + $0x30] sm:$0xff]
  %v30 = vld [vmem:[%s1 + $0x38] sm:$0xff]
  %v31 = vld [vmem:[%s1 + $0x40] sm:$0xff]
  %v32 = vld [vmem:[%s1 + $0x48] sm:$0xff]
  %v33 = vld [vmem:[%s1 + $0x50] sm:$0xff]
  %v34 = vld [vmem:[%s1 + $0x58] sm:$0xff]
  %v35 = vld [vmem:[%s1 + $0x60] sm:$0xff]
  %v36 = vld [vmem:[%s1 + $0x68] sm:$0xff]
  %v37 = vld [vmem:[%s1 + $0x70] sm:$0xff]
  %v38 = vld [vmem:[%s1 + $0x78] sm:$0xff]
  %v39 = vld [vmem:[%s1 + $0x80] sm:$0xff]
  %v40 = vld [vmem:[%s1 + $0x88] sm:$0xff]
  %v41 = vld [vmem:[%s1 + $0x90] sm:$0xff]
  %v42 = vld [vmem:[%s1 + $0x98] sm:$0xff]
  %v43 = vld [vmem:[%s1 + $0xa0] sm:$0xff]
  %v44 = vld [vmem:[%s1 + $0xa8] sm:$0xff]
  %v45 = vld [vmem:[%s1 + $0xb0] sm:$0xff]
  %v46 = vld [vmem:[%s1 + $0xb8] sm:$0xff]
  %v47 = vld [vmem:[%s1 + $0xc0] sm:$0xff]
  %v48 = vld [vmem:[%s1 + $0xc8] sm:$0xff]
  %v49 = vld [vmem:[%s1 + $0xd0] sm:$0xff]
  %v50 = vld [vmem:[%s1 + $0xd8] sm:$0xff]
  %v51 = vld [vmem:[%s1 + $0xe0] sm:$0xff]
  %v52 = vld [vmem:[%s1 + $0xe8] sm:$0xff]
  %v53 = vld [vmem:[%s1 + $0xf0] sm:$0xff]
  %v54 = vld [vmem:[%s1 + $0xf8] sm:$0xff]
  %v55 = vld [vmem:[%s1 + $0x100] sm:$0xff]
  %v56 = vld [vmem:[%s1 + $0x108] sm:$0xff]
  %v57 = vld [vmem:[%s1 + $0x110] sm:$0xff]
  %v58 = vld [vmem:[%s1 + $0x118] sm:$0xff]
  %v59 = vld [vmem:[%s1 + $0x120] sm:$0xff]
  %v60 = vld [vmem:[%s1 + $0x128] sm:$0xff]
  %v61 = vld [vmem:[%s1 + $0x130] sm:$0xff]
  %v62 = vld [vmem:[%s1 + $0x138] sm:$0xff]
  %v63 = vld [vmem:[%s1 + $0x140] sm:$0xff]
  %v64 = vld [vmem:[%s1 + $0x148] sm:$0xff]
  %v65 = vld [vmem:[%s1 + $0x150] sm:$0xff]
  %v66 = vld [vmem:[%s1 + $0x158] sm:$0xff]
  %v67 = vld [vmem:[%s1 + $0x160] sm:$0xff]
  %v68 = vld [vmem:[%s1 + $0x168] sm:$0xff]
  %v69 = vld [vmem:[%s1 + $0x170] sm:$0xff]
  %v70 = vld [vmem:[%s1 + $0x178] sm:$0xff]
  %v71 = vld [vmem:[%s1 + $0x180] sm:$0xff]
  %v72 = vld [vmem:[%s1 + $0x188] sm:$0xff]
  %v73 = vld [vmem:[%s1 + $0x190] sm:$0xff]
  %v74 = vld [vmem:[%s1 + $0x198] sm:$0xff]
  %v75 = vld [vmem:[%s1 + $0x1a0] sm:$0xff]
  %v76 = vld [vmem:[%s1 + $0x1a8] sm:$0xff]
  %v77 = vld [vmem:[%s1 + $0x1b0] sm:$0xff]
  %v78 = vld [vmem:[%s1 + $0x1b8] sm:$0xff]
  %v79 = vld [vmem:[%s1 + $0x1c0] sm:$0xff]
  %v80 = vld [vmem:[%s1 + $0x1c8] sm:$0xff]
  %v81 = vld [vmem:[%s1 + $0x1d0] sm:$0xff]
  %v82 = vld [vmem:[%s1 + $0x1d8] sm:$0xff]
  %v83 = vld [vmem:[%s1 + $0x1e0] sm:$0xff]
  %v84 = vld [vmem:[%s1 + $0x1e8] sm:$0xff]
  %v85 = vld [vmem:[%s1 + $0x1f0] sm:$0xff]
  %v86 = vld [vmem:[%s1 + $0x1f8] sm:$0xff]
  %v87 = vld [vmem:[%s1 + $0x200] sm:$0xff]
  %v88 = vld [vmem:[%s1 + $0x208] sm:$0xff]
  %v89 = vld [vmem:[%s1 + $0x210] sm:$0xff]
  %v90 = vld [vmem:[%s1 + $0x218] sm:$0xff]
  %v91 = vld [vmem:[%s1 + $0x220] sm:$0xff]
  %v92 = vld [vmem:[%s1 + $0x228] sm:$0xff]
  %v93 = vld [vmem:[%s1 + $0x230] sm:$0xff]
  %v94 = vld [vmem:[%s1 + $0x238] sm:$0xff]
  %v95 = vld [vmem:[%s1 + $0x240] sm:$0xff]
  %v96 = vld [vmem:[%s1 + $0x248] sm:$0xff]
  %v97 = vld [vmem:[%s1 + $0x250] sm:$0xff]
  %v98 = vld [vmem:[%s1 + $0x258] sm:$0xff]
  %v99 = vld [vmem:[%s1 + $0x260] sm:$0xff]
  %v100 = vld [vmem:[%s1 + $0x268] sm:$0xff]
  %v101 = vld [vmem:[%s1 + $0x270] sm:$0xff]
  %v102 = vld [vmem:[%s1 + $0x278] sm:$0xff]
  %v103 = vld [vmem:[%s1 + $0x280] sm:$0xff]
  %v104 = vld [vmem:[%s1 + $0x288] sm:$0xff]
  %v105 = vld [vmem:[%s1 + $0x290] sm:$0xff]
  %v106 = vld [vmem:[%s1 + $0x298] sm:$0xff]
  %v107 = vld [vmem:[%s1 + $0x2a0] sm:$0xff]
  %v108 = vld [vmem:[%s1 + $0x2a8] sm:$0xff]
  %v109 = vld [vmem:[%s1 + $0x2b0] sm:$0xff]
  %v110 = vld [vmem:[%s1 + $0x2b8] sm:$0xff]
  %v111 = vld [vmem:[%s1 + $0x2c0] sm:$0xff]
  %v112 = vld [vmem:[%s1 + $0x2c8] sm:$0xff]
  %v113 = vld [vmem:[%s1 + $0x2d0] sm:$0xff]
  %v114 = vld [vmem:[%s1 + $0x2d8] sm:$0xff]
  %v115 = vld [vmem:[%s1 + $0x2e0] sm:$0xff]
  %v116 = vld [vmem:[%s1 + $0x2e8] sm:$0xff]
  %v117 = vld [vmem:[%s1 + $0x2f0] sm:$0xff]
  %v118 = vld [vmem:[%s1 + $0x2f8] sm:$0xff]
  %v119 = vld [vmem:[%s1 + $0x300] sm:$0xff]
  %v120 = vld [vmem:[%s1 + $0x308] sm:$0xff]
  %v121 = vld [vmem:[%s1 + $0x310] sm:$0xff]
  %v122 = vld [vmem:[%s1 + $0x318] sm:$0xff]
  %v123 = vld [vmem:[%s1 + $0x320] sm:$0xff]
  %v124 = vld [vmem:[%s1 + $0x328] sm:$0xff]
  %v125 = vld [vmem:[%s1 + $0x330] sm:$0xff]
  %v126 = vld [vmem:[%s1 + $0x338] sm:$0xff]
  %v127 = vld [vmem:[%s1 + $0x340] sm:$0xff]
  %v128 = vld [vmem:[%s1 + $0x348] sm:$0xff]
  %v129 = vld [vmem:[%s1 + $0x350] sm:$0xff]
  %v130 = vld [vmem:[%s1 + $0x358] sm:$0xff]
  %v131 = vld [vmem:[%s1 + $0x360] sm:$0xff]
  %v132 = vld [vmem:[%s1 + $0x368] sm:$0xff]
  %v133 = vld [vmem:[%s1 + $0x370] sm:$0xff]
  %v134 = vld [vmem:[%s1 + $0x378] sm:$0xff]
  %v135 = vld [vmem:[%s1 + $0x380] sm:$0xff]
  %v136 = vld [vmem:[%s1 + $0x388] sm:$0xff]
  %v137 = vld [vmem:[%s1 + $0x390] sm:$0xff]
  %v138 = vld [vmem:[%s1 + $0x398] sm:$0xff]
  %v139 = vld [vmem:[%s1 + $0x3a0] sm:$0xff]
  %v140 = vld [vmem:[%s1 + $0x3a8] sm:$0xff]
  %v141 = vld [vmem:[%s1 + $0x3b0] sm:$0xff]
  %v142 = vld [vmem:[%s1 + $0x3b8] sm:$0xff]
  %v143 = vld [vmem:[%s1 + $0x3c0] sm:$0xff]
  %v144 = vld [vmem:[%s1 + $0x3c8] sm:$0xff]
  %v145 = vld [vmem:[%s1 + $0x3d0] sm:$0xff]
  %v146 = vld [vmem:[%s1 + $0x3d8] sm:$0xff]
  %v147 = vld [vmem:[%s1 + $0x3e0] sm:$0xff]
  %v148 = vld [vmem:[%s1 + $0x3e8] sm:$0xff]
  %v149 = vld [vmem:[%s1 + $0x3f0] sm:$0xff]
  %v150 = vld [vmem:[%s1 + $0x3f8] sm:$0xff]
  %v151 = vld [vmem:[%s1 + $0x400] sm:$0xff]
  %v152 = vld [vmem:[%s1 + $0x408] sm:$0xff]
  %v153 = vld [vmem:[%s1 + $0x410] sm:$0xff]
  %v154 = vld [vmem:[%s1 + $0x418] sm:$0xff]
  %v155 = vld [vmem:[%s1 + $0x420] sm:$0xff]
  %v156 = vld [vmem:[%s1 + $0x428] sm:$0xff]
  %v157 = vld [vmem:[%s1 + $0x430] sm:$0xff]
  %v158 = vld [vmem:[%s1 + $0x438] sm:$0xff]
  %v159 = vld [vmem:[%s1 + $0x440] sm:$0xff]
  %v160 = vld [vmem:[%s1 + $0x448] sm:$0xff]
  %v161 = vld [vmem:[%s1 + $0x450] sm:$0xff]
  %v162 = vld [vmem:[%s1 + $0x458] sm:$0xff]
  %v163 = vld [vmem:[%s1 + $0x460] sm:$0xff]
  %v164 = vld [vmem:[%s1 + $0x468] sm:$0xff]
  %v165 = vld [vmem:[%s1 + $0x470] sm:$0xff]
  %v166 = vld [vmem:[%s1 + $0x478] sm:$0xff]
  %v167 = vld [vmem:[%s1 + $0x480] sm:$0xff]
  %v168 = vld [vmem:[%s1 + $0x488] sm:$0xff]
  %v169 = vld [vmem:[%s1 + $0x490] sm:$0xff]
  %v170 = vld [vmem:[%s1 + $0x498] sm:$0xff]
  %v171 = vld [vmem:[%s1 + $0x4a0] sm:$0xff]
  %v172 = vld [vmem:[%s1 + $0x4a8] sm:$0xff]
  %v173 = vld [vmem:[%s1 + $0x4b0] sm:$0xff]
  %v174 = vld [vmem:[%s1 + $0x4b8] sm:$0xff]
  %v175 = vld [vmem:[%s1 + $0x4c0] sm:$0xff]
  %v176 = vld [vmem:[%s1 + $0x4c8] sm:$0xff]
  %v177 = vld [vmem:[%s1 + $0x4d0] sm:$0xff]
  %v178 = vld [vmem:[%s1 + $0x4d8] sm:$0xff]
  %v179 = vld [vmem:[%s1 + $0x4e0] sm:$0xff]
  %v180 = vld [vmem:[%s1 + $0x4e8] sm:$0xff]
  %v181 = vld [vmem:[%s1 + $0x4f0] sm:$0xff]
  %v182 = vld [vmem:[%s1 + $0x4f8] sm:$0xff]
  %v183 = vld [vmem:[%s1 + $0x500] sm:$0xff]
  %v184 = vld [vmem:[%s1 + $0x508] sm:$0xff]
  %v185 = vld [vmem:[%s1 + $0x510] sm:$0xff]
  %v186 = vld [vmem:[%s1 + $0x518] sm:$0xff]
  %v187 = vld [vmem:[%s1 + $0x520] sm:$0xff]
  %v188 = vld [vmem:[%s1 + $0x528] sm:$0xff]
  %v189 = vld [vmem:[%s1 + $0x530] sm:$0xff]
  %v190 = vld [vmem:[%s1 + $0x538] sm:$0xff]
  %v191 = vld [vmem:[%s1 + $0x540] sm:$0xff]
  %v192 = vld [vmem:[%s1 + $0x548] sm:$0xff]
  %v193 = vld [vmem:[%s1 + $0x550] sm:$0xff]
  %v194 = vld [vmem:[%s1 + $0x558] sm:$0xff]
  %v195 = vld [vmem:[%s1 + $0x560] sm:$0xff]
  %v196 = vld [vmem:[%s1 + $0x568] sm:$0xff]
  %v197 = vld [vmem:[%s1 + $0x570] sm:$0xff]
  %v198 = vld [vmem:[%s1 + $0x578] sm:$0xff]
  %v199 = vld [vmem:[%s1 + $0x580] sm:$0xff]
  %v200 = vld [vmem:[%s1 + $0x588] sm:$0xff]
  %v201 = vld [vmem:[%s1 + $0x590] sm:$0xff]
  %v202 = vld [vmem:[%s1 + $0x598] sm:$0xff]
  %v203 = vld [vmem:[%s1 + $0x5a0] sm:$0xff]
  %v204 = vld [vmem:[%s1 + $0x5a8] sm:$0xff]
  %v205 = vld [vmem:[%s1 + $0x5b0] sm:$0xff]
  %v206 = vld [vmem:[%s1 + $0x5b8] sm:$0xff]
  %v207 = vld [vmem:[%s1 + $0x5c0] sm:$0xff]
  %v208 = vld [vmem:[%s1 + $0x5c8] sm:$0xff]
  %v209 = vld [vmem:[%s1 + $0x5d0] sm:$0xff]
  %v210 = vld [vmem:[%s1 + $0x5d8] sm:$0xff]
  %v211 = vld [vmem:[%s1 + $0x5e0] sm:$0xff]
  %v212 = vld [vmem:[%s1 + $0x5e8] sm:$0xff]
  %v213 = vld [vmem:[%s1 + $0x5f0] sm:$0xff]
  %v214 = vld [vmem:[%s1 + $0x5f8] sm:$0xff]
  %v215 = vld [vmem:[%s1 + $0x600] sm:$0xff]
  %v216 = vld [vmem:[%s1 + $0x608] sm:$0xff]
  %v217 = vld [vmem:[%s1 + $0x610] sm:$0xff]
  %v218 = vld [vmem:[%s1 + $0x618] sm:$0xff]
  %v219 = vld [vmem:[%s1 + $0x620] sm:$0xff]
  %v220 = vld [vmem:[%s1 + $0x628] sm:$0xff]
  %v221 = vld [vmem:[%s1 + $0x630] sm:$0xff]
  %v222 = vld [vmem:[%s1 + $0x638] sm:$0xff]
  %v223 = vld [vmem:[%s1 + $0x640] sm:$0xff]
  %v224 = vld [vmem:[%s1 + $0x648] sm:$0xff]
  %v225 = vld [vmem:[%s1 + $0x650] sm:$0xff]
  %v226 = vld [vmem:[%s1 + $0x658] sm:$0xff]
  %v227 = vld [vmem:[%s1 + $0x660] sm:$0xff]
  %v228 = vld [vmem:[%s1 + $0x668] sm:$0xff]
  %v229 = vld [vmem:[%s1 + $0x670] sm:$0xff]
  %v230 = vld [vmem:[%s1 + $0x678] sm:$0xff]
  %v231 = vld [vmem:[%s1 + $0x680] sm:$0xff]
  %v232 = vld [vmem:[%s1 + $0x688] sm:$0xff]
  %v233 = vld [vmem:[%s1 + $0x690] sm:$0xff]
  %v234 = vld [vmem:[%s1 + $0x698] sm:$0xff]
  %v235 = vld [vmem:[%s1 + $0x6a0] sm:$0xff]
  %v236 = vld [vmem:[%s1 + $0x6a8] sm:$0xff]
  %v237 = vld [vmem:[%s1 + $0x6b0] sm:$0xff]
  %v238 = vld [vmem:[%s1 + $0x6b8] sm:$0xff]
  %v239 = vld [vmem:[%s1 + $0x6c0] sm:$0xff]
  %v240 = vld [vmem:[%s1 + $0x6c8] sm:$0xff]
  %v241 = vld [vmem:[%s1 + $0x6d0] sm:$0xff]
  %v242 = vld [vmem:[%s1 + $0x6d8] sm:$0xff]
  %v243 = vld [vmem:[%s1 + $0x6e0] sm:$0xff]
  %v244 = vld [vmem:[%s1 + $0x6e8] sm:$0xff]
  %v245 = vld [vmem:[%s1 + $0x6f0] sm:$0xff]
  %v246 = vld [vmem:[%s1 + $0x6f8] sm:$0xff]
  %v247 = vld [vmem:[%s1 + $0x700] sm:$0xff]
  %v248 = vld [vmem:[%s1 + $0x708] sm:$0xff]
  %v249 = vld [vmem:[%s1 + $0x710] sm:$0xff]
  %v250 = vld [vmem:[%s1 + $0x718] sm:$0xff]
  %v251 = vld [vmem:[%s1 + $0x720] sm:$0xff]
  %v252 = vld [vmem:[%s1 + $0x728] sm:$0xff]
  %v253 = vld [vmem:[%s1 + $0x730] sm:$0xff]
  %v254 = vld [vmem:[%s1 + $0x738] sm:$0xff]
  %v255 = vld [vmem:[%s1 + $0x740] sm:$0xff]
  %v256 = vld [vmem:[%s1 + $0x748] sm:$0xff]
  %v257 = vld [vmem:[%s1 + $0x750] sm:$0xff]
  %v258 = vld [vmem:[%s1 + $0x758] sm:$0xff]
  %v259 = vld [vmem:[%s1 + $0x760] sm:$0xff]
  %v260 = vld [vmem:[%s1 + $0x768] sm:$0xff]
  %v261 = vld [vmem:[%s1 + $0x770] sm:$0xff]
  %v262 = vld [vmem:[%s1 + $0x778] sm:$0xff]
  %v263 = vld [vmem:[%s1 + $0x780] sm:$0xff]
  %v264 = vld [vmem:[%s1 + $0x788] sm:$0xff]
  %v265 = vld [vmem:[%s1 + $0x790] sm:$0xff]
  %v266 = vld [vmem:[%s1 + $0x798] sm:$0xff]
  %v267 = vld [vmem:[%s1 + $0x7a0] sm:$0xff]
  %v268 = vld [vmem:[%s1 + $0x7a8] sm:$0xff]
  %v269 = vld [vmem:[%s1 + $0x7b0] sm:$0xff]
  %v270 = vld [vmem:[%s1 + $0x7b8] sm:$0xff]
  %v271 = vld [vmem:[%s1 + $0x7c0] sm:$0xff]
  %v272 = vld [vmem:[%s1 + $0x7c8] sm:$0xff]
  %v273 = vld [vmem:[%s1 + $0x7d0] sm:$0xff]
  %v274 = vld [vmem:[%s1 + $0x7d8] sm:$0xff]
  %v275 = vld [vmem:[%s1 + $0x7e0] sm:$0xff]
  %v276 = vld [vmem:[%s1 + $0x7e8] sm:$0xff]
  %v277 = vld [vmem:[%s1 + $0x7f0] sm:$0xff]
  %v278 = vld [vmem:[%s1 + $0x7f8] sm:$0xff]
  %v279 = vld [vmem:[%s1 + $0x800] sm:$0xff]
  %v280 = vld [vmem:[%s1 + $0x808] sm:$0xff]
  %v281 = vld [vmem:[%s1 + $0x810] sm:$0xff]
  %v282 = vld [vmem:[%s1 + $0x818] sm:$0xff]
  %v283 = vld [vmem:[%s1 + $0x820] sm:$0xff]
  %v284 = vld [vmem:[%s1 + $0x828] sm:$0xff]
  %v285 = vld [vmem:[%s1 + $0x830] sm:$0xff]
  %v286 = vld [vmem:[%s1 + $0x838] sm:$0xff]
  %v287 = vld [vmem:[%s1 + $0x840] sm:$0xff]
  %v288 = vld [vmem:[%s1 + $0x848] sm:$0xff]
  %v289 = vld [vmem:[%s1 + $0x850] sm:$0xff]
  %v290 = vld [vmem:[%s1 + $0x858] sm:$0xff]
  %v291 = vld [vmem:[%s1 + $0x860] sm:$0xff]
  %v292 = vld [vmem:[%s1 + $0x868] sm:$0xff]
  %v293 = vld [vmem:[%s1 + $0x870] sm:$0xff]
  %v294 = vld [vmem:[%s1 + $0x878] sm:$0xff]
  %v295 = vld [vmem:[%s1 + $0x880] sm:$0xff]
  %v296 = vld [vmem:[%s1 + $0x888] sm:$0xff]
  %v297 = vld [vmem:[%s1 + $0x890] sm:$0xff]
  %v298 = vld [vmem:[%s1 + $0x898] sm:$0xff]
  %v299 = vld [vmem:[%s1 + $0x8a0] sm:$0xff]
  %v300 = vld [vmem:[%s1 + $0x8a8] sm:$0xff]
  %v301 = vld [vmem:[%s1 + $0x8b0] sm:$0xff]
  %v302 = vld [vmem:[%s1 + $0x8b8] sm:$0xff]
  %v303 = vld [vmem:[%s1 + $0x8c0] sm:$0xff]
  %v304 = vld [vmem:[%s1 + $0x8c8] sm:$0xff]
  %v305 = vld [vmem:[%s1 + $0x8d0] sm:$0xff]
  %v306 = vld [vmem:[%s1 + $0x8d8] sm:$0xff]
  %v307 = vld [vmem:[%s1 + $0x8e0] sm:$0xff]
  %v308 = vld [vmem:[%s1 + $0x8e8] sm:$0xff]
  %v309 = vld [vmem:[%s1 + $0x8f0] sm:$0xff]
  %v310 = vld [vmem:[%s1 + $0x8f8] sm:$0xff]
  %v311 = vld [vmem:[%s2] sm:$0x3]
  %v313 = vlaneseq
  %v314 = vshrl.u32 %v313, 7
  %v315 = vsub.s32 0, %v314
  %v316 = vrot.slane %v311, %v315
  %v317 = vlaneseq
  %v318 = vshrl.u32 %v317, 7
  %v319 = vsub.s32 1, %v318
  %v320 = vrot.slane %v311, %v319
  %v332 = vunpack.c.l.b16 %v14
  %v333 = vunpack.c.h.b16 %v14
  %v334 = vunpack.c.l.b16 %v15
  %v335 = vunpack.c.h.b16 %v15
  %v336 = vunpack.c.l.b16 %v16
  %v337 = vunpack.c.h.b16 %v16
  %v338 = vunpack.c.l.b16 %v17
  %v339 = vunpack.c.h.b16 %v17
  %v340 = vunpack.c.l.b16 %v18
  %v341 = vunpack.c.h.b16 %v18
  %v342 = vunpack.c.l.b16 %v19
  %v343 = vunpack.c.h.b16 %v19
  %v344 = vunpack.c.l.b16 %v20
  %v345 = vunpack.c.h.b16 %v20
  %v346 = vunpack.c.l.b16 %v21
  %v347 = vunpack.c.h.b16 %v21
  %v348 = vunpack.c.l.b16 %v22
  %v349 = vunpack.c.h.b16 %v22
  %v350 = vpack.c.b16 %v332, %v332
  %v351 = vpack.c.b16 %v333, %v333
  %v352 = vpack.c.b16 %v334, %v334
  %v353 = vpack.c.b16 %v335, %v335
  %v354 = vpack.c.b16 %v336, %v336
  %v355 = vpack.c.b16 %v337, %v337
  %v356 = vpack.c.b16 %v338, %v338
  %v357 = vpack.c.b16 %v339, %v339
  %v358 = vpack.c.b16 %v340, %v340
  %v359 = vpack.c.b16 %v341, %v341
  %v360 = vpack.c.b16 %v342, %v342
  %v361 = vpack.c.b16 %v343, %v343
  %v362 = vpack.c.b16 %v344, %v344
  %v363 = vpack.c.b16 %v345, %v345
  %v364 = vpack.c.b16 %v346, %v346
  %v365 = vpack.c.b16 %v347, %v347
  %v366 = vpack.c.b16 %v348, %v348
  %v367 = vpack.c.b16 %v349, %v349
  %v674 = vunpack.c.l.b16 %v23
  %v675 = vunpack.c.h.b16 %v23
  %v676 = vunpack.c.l.b16 %v24
  %v677 = vunpack.c.h.b16 %v24
  %v678 = vunpack.c.l.b16 %v25
  %v679 = vunpack.c.h.b16 %v25
  %v680 = vunpack.c.l.b16 %v26
  %v681 = vunpack.c.h.b16 %v26
  %v682 = vunpack.c.l.b16 %v27
  %v683 = vunpack.c.h.b16 %v27
  %v684 = vunpack.c.l.b16 %v28
  %v685 = vunpack.c.h.b16 %v28
  %v686 = vunpack.c.l.b16 %v29
  %v687 = vunpack.c.h.b16 %v29
  %v688 = vunpack.c.l.b16 %v30
  %v689 = vunpack.c.h.b16 %v30
  %v690 = vunpack.c.l.b16 %v31
  %v691 = vunpack.c.h.b16 %v31
  %v692 = vunpack.c.l.b16 %v32
  %v693 = vunpack.c.h.b16 %v32
  %v694 = vunpack.c.l.b16 %v33
  %v695 = vunpack.c.h.b16 %v33
  %v696 = vunpack.c.l.b16 %v34
  %v697 = vunpack.c.h.b16 %v34
  %v698 = vunpack.c.l.b16 %v35
  %v699 = vunpack.c.h.b16 %v35
  %v700 = vunpack.c.l.b16 %v36
  %v701 = vunpack.c.h.b16 %v36
  %v702 = vunpack.c.l.b16 %v37
  %v703 = vunpack.c.h.b16 %v37
  %v704 = vunpack.c.l.b16 %v38
  %v705 = vunpack.c.h.b16 %v38
  %v706 = vunpack.c.l.b16 %v39
  %v707 = vunpack.c.h.b16 %v39
  %v708 = vunpack.c.l.b16 %v40
  %v709 = vunpack.c.h.b16 %v40
  %v710 = vunpack.c.l.b16 %v41
  %v711 = vunpack.c.h.b16 %v41
  %v712 = vunpack.c.l.b16 %v42
  %v713 = vunpack.c.h.b16 %v42
  %v714 = vunpack.c.l.b16 %v43
  %v715 = vunpack.c.h.b16 %v43
  %v716 = vunpack.c.l.b16 %v44
  %v717 = vunpack.c.h.b16 %v44
  %v718 = vunpack.c.l.b16 %v45
  %v719 = vunpack.c.h.b16 %v45
  %v720 = vunpack.c.l.b16 %v46
  %v721 = vunpack.c.h.b16 %v46
  %v722 = vunpack.c.l.b16 %v47
  %v723 = vunpack.c.h.b16 %v47
  %v724 = vunpack.c.l.b16 %v48
  %v725 = vunpack.c.h.b16 %v48
  %v726 = vunpack.c.l.b16 %v49
  %v727 = vunpack.c.h.b16 %v49
  %v728 = vunpack.c.l.b16 %v50
  %v729 = vunpack.c.h.b16 %v50
  %v730 = vunpack.c.l.b16 %v51
  %v731 = vunpack.c.h.b16 %v51
  %v732 = vunpack.c.l.b16 %v52
  %v733 = vunpack.c.h.b16 %v52
  %v734 = vunpack.c.l.b16 %v53
  %v735 = vunpack.c.h.b16 %v53
  %v736 = vunpack.c.l.b16 %v54
  %v737 = vunpack.c.h.b16 %v54
  %v738 = vunpack.c.l.b16 %v55
  %v739 = vunpack.c.h.b16 %v55
  %v740 = vunpack.c.l.b16 %v56
  %v741 = vunpack.c.h.b16 %v56
  %v742 = vunpack.c.l.b16 %v57
  %v743 = vunpack.c.h.b16 %v57
  %v744 = vunpack.c.l.b16 %v58
  %v745 = vunpack.c.h.b16 %v58
  %v746 = vunpack.c.l.b16 %v59
  %v747 = vunpack.c.h.b16 %v59
  %v748 = vunpack.c.l.b16 %v60
  %v749 = vunpack.c.h.b16 %v60
  %v750 = vunpack.c.l.b16 %v61
  %v751 = vunpack.c.h.b16 %v61
  %v752 = vunpack.c.l.b16 %v62
  %v753 = vunpack.c.h.b16 %v62
  %v754 = vunpack.c.l.b16 %v63
  %v755 = vunpack.c.h.b16 %v63
  %v756 = vunpack.c.l.b16 %v64
  %v757 = vunpack.c.h.b16 %v64
  %v758 = vunpack.c.l.b16 %v65
  %v759 = vunpack.c.h.b16 %v65
  %v760 = vunpack.c.l.b16 %v66
  %v761 = vunpack.c.h.b16 %v66
  %v762 = vunpack.c.l.b16 %v67
  %v763 = vunpack.c.h.b16 %v67
  %v764 = vunpack.c.l.b16 %v68
  %v765 = vunpack.c.h.b16 %v68
  %v766 = vunpack.c.l.b16 %v69
  %v767 = vunpack.c.h.b16 %v69
  %v768 = vunpack.c.l.b16 %v70
  %v769 = vunpack.c.h.b16 %v70
  %v770 = vunpack.c.l.b16 %v71
  %v771 = vunpack.c.h.b16 %v71
  %v772 = vunpack.c.l.b16 %v72
  %v773 = vunpack.c.h.b16 %v72
  %v774 = vunpack.c.l.b16 %v73
  %v775 = vunpack.c.h.b16 %v73
  %v776 = vunpack.c.l.b16 %v74
  %v777 = vunpack.c.h.b16 %v74
  %v778 = vunpack.c.l.b16 %v75
  %v779 = vunpack.c.h.b16 %v75
  %v780 = vunpack.c.l.b16 %v76
  %v781 = vunpack.c.h.b16 %v76
  %v782 = vunpack.c.l.b16 %v77
  %v783 = vunpack.c.h.b16 %v77
  %v784 = vunpack.c.l.b16 %v78
  %v785 = vunpack.c.h.b16 %v78
  %v786 = vunpack.c.l.b16 %v79
  %v787 = vunpack.c.h.b16 %v79
  %v788 = vunpack.c.l.b16 %v80
  %v789 = vunpack.c.h.b16 %v80
  %v790 = vunpack.c.l.b16 %v81
  %v791 = vunpack.c.h.b16 %v81
  %v792 = vunpack.c.l.b16 %v82
  %v793 = vunpack.c.h.b16 %v82
  %v794 = vunpack.c.l.b16 %v83
  %v795 = vunpack.c.h.b16 %v83
  %v796 = vunpack.c.l.b16 %v84
  %v797 = vunpack.c.h.b16 %v84
  %v798 = vunpack.c.l.b16 %v85
  %v799 = vunpack.c.h.b16 %v85
  %v800 = vunpack.c.l.b16 %v86
  %v801 = vunpack.c.h.b16 %v86
  %v802 = vunpack.c.l.b16 %v87
  %v803 = vunpack.c.h.b16 %v87
  %v804 = vunpack.c.l.b16 %v88
  %v805 = vunpack.c.h.b16 %v88
  %v806 = vunpack.c.l.b16 %v89
  %v807 = vunpack.c.h.b16 %v89
  %v808 = vunpack.c.l.b16 %v90
  %v809 = vunpack.c.h.b16 %v90
  %v810 = vunpack.c.l.b16 %v91
  %v811 = vunpack.c.h.b16 %v91
  %v812 = vunpack.c.l.b16 %v92
  %v813 = vunpack.c.h.b16 %v92
  %v814 = vunpack.c.l.b16 %v93
  %v815 = vunpack.c.h.b16 %v93
  %v816 = vunpack.c.l.b16 %v94
  %v817 = vunpack.c.h.b16 %v94
  %v818 = vunpack.c.l.b16 %v95
  %v819 = vunpack.c.h.b16 %v95
  %v820 = vunpack.c.l.b16 %v96
  %v821 = vunpack.c.h.b16 %v96
  %v822 = vunpack.c.l.b16 %v97
  %v823 = vunpack.c.h.b16 %v97
  %v824 = vunpack.c.l.b16 %v98
  %v825 = vunpack.c.h.b16 %v98
  %v826 = vunpack.c.l.b16 %v99
  %v827 = vunpack.c.h.b16 %v99
  %v828 = vunpack.c.l.b16 %v100
  %v829 = vunpack.c.h.b16 %v100
  %v830 = vunpack.c.l.b16 %v101
  %v831 = vunpack.c.h.b16 %v101
  %v832 = vunpack.c.l.b16 %v102
  %v833 = vunpack.c.h.b16 %v102
  %v834 = vunpack.c.l.b16 %v103
  %v835 = vunpack.c.h.b16 %v103
  %v836 = vunpack.c.l.b16 %v104
  %v837 = vunpack.c.h.b16 %v104
  %v838 = vunpack.c.l.b16 %v105
  %v839 = vunpack.c.h.b16 %v105
  %v840 = vunpack.c.l.b16 %v106
  %v841 = vunpack.c.h.b16 %v106
  %v842 = vunpack.c.l.b16 %v107
  %v843 = vunpack.c.h.b16 %v107
  %v844 = vunpack.c.l.b16 %v108
  %v845 = vunpack.c.h.b16 %v108
  %v846 = vunpack.c.l.b16 %v109
  %v847 = vunpack.c.h.b16 %v109
  %v848 = vunpack.c.l.b16 %v110
  %v849 = vunpack.c.h.b16 %v110
  %v850 = vunpack.c.l.b16 %v111
  %v851 = vunpack.c.h.b16 %v111
  %v852 = vunpack.c.l.b16 %v112
  %v853 = vunpack.c.h.b16 %v112
  %v854 = vunpack.c.l.b16 %v113
  %v855 = vunpack.c.h.b16 %v113
  %v856 = vunpack.c.l.b16 %v114
  %v857 = vunpack.c.h.b16 %v114
  %v858 = vunpack.c.l.b16 %v115
  %v859 = vunpack.c.h.b16 %v115
  %v860 = vunpack.c.l.b16 %v116
  %v861 = vunpack.c.h.b16 %v116
  %v862 = vunpack.c.l.b16 %v117
  %v863 = vunpack.c.h.b16 %v117
  %v864 = vunpack.c.l.b16 %v118
  %v865 = vunpack.c.h.b16 %v118
  %v866 = vunpack.c.l.b16 %v119
  %v867 = vunpack.c.h.b16 %v119
  %v868 = vunpack.c.l.b16 %v120
  %v869 = vunpack.c.h.b16 %v120
  %v870 = vunpack.c.l.b16 %v121
  %v871 = vunpack.c.h.b16 %v121
  %v872 = vunpack.c.l.b16 %v122
  %v873 = vunpack.c.h.b16 %v122
  %v874 = vunpack.c.l.b16 %v123
  %v875 = vunpack.c.h.b16 %v123
  %v876 = vunpack.c.l.b16 %v124
  %v877 = vunpack.c.h.b16 %v124
  %v878 = vunpack.c.l.b16 %v125
  %v879 = vunpack.c.h.b16 %v125
  %v880 = vunpack.c.l.b16 %v126
  %v881 = vunpack.c.h.b16 %v126
  %v882 = vunpack.c.l.b16 %v127
  %v883 = vunpack.c.h.b16 %v127
  %v884 = vunpack.c.l.b16 %v128
  %v885 = vunpack.c.h.b16 %v128
  %v886 = vunpack.c.l.b16 %v129
  %v887 = vunpack.c.h.b16 %v129
  %v888 = vunpack.c.l.b16 %v130
  %v889 = vunpack.c.h.b16 %v130
  %v890 = vunpack.c.l.b16 %v131
  %v891 = vunpack.c.h.b16 %v131
  %v892 = vunpack.c.l.b16 %v132
  %v893 = vunpack.c.h.b16 %v132
  %v894 = vunpack.c.l.b16 %v133
  %v895 = vunpack.c.h.b16 %v133
  %v896 = vunpack.c.l.b16 %v134
  %v897 = vunpack.c.h.b16 %v134
  %v898 = vunpack.c.l.b16 %v135
  %v899 = vunpack.c.h.b16 %v135
  %v900 = vunpack.c.l.b16 %v136
  %v901 = vunpack.c.h.b16 %v136
  %v902 = vunpack.c.l.b16 %v137
  %v903 = vunpack.c.h.b16 %v137
  %v904 = vunpack.c.l.b16 %v138
  %v905 = vunpack.c.h.b16 %v138
  %v906 = vunpack.c.l.b16 %v139
  %v907 = vunpack.c.h.b16 %v139
  %v908 = vunpack.c.l.b16 %v140
  %v909 = vunpack.c.h.b16 %v140
  %v910 = vunpack.c.l.b16 %v141
  %v911 = vunpack.c.h.b16 %v141
  %v912 = vunpack.c.l.b16 %v142
  %v913 = vunpack.c.h.b16 %v142
  %v914 = vunpack.c.l.b16 %v143
  %v915 = vunpack.c.h.b16 %v143
  %v916 = vunpack.c.l.b16 %v144
  %v917 = vunpack.c.h.b16 %v144
  %v918 = vunpack.c.l.b16 %v145
  %v919 = vunpack.c.h.b16 %v145
  %v920 = vunpack.c.l.b16 %v146
  %v921 = vunpack.c.h.b16 %v146
  %v922 = vunpack.c.l.b16 %v147
  %v923 = vunpack.c.h.b16 %v147
  %v924 = vunpack.c.l.b16 %v148
  %v925 = vunpack.c.h.b16 %v148
  %v926 = vunpack.c.l.b16 %v149
  %v927 = vunpack.c.h.b16 %v149
  %v928 = vunpack.c.l.b16 %v150
  %v929 = vunpack.c.h.b16 %v150
  %v930 = vunpack.c.l.b16 %v151
  %v931 = vunpack.c.h.b16 %v151
  %v932 = vunpack.c.l.b16 %v152
  %v933 = vunpack.c.h.b16 %v152
  %v934 = vunpack.c.l.b16 %v153
  %v935 = vunpack.c.h.b16 %v153
  %v936 = vunpack.c.l.b16 %v154
  %v937 = vunpack.c.h.b16 %v154
  %v938 = vunpack.c.l.b16 %v155
  %v939 = vunpack.c.h.b16 %v155
  %v940 = vunpack.c.l.b16 %v156
  %v941 = vunpack.c.h.b16 %v156
  %v942 = vunpack.c.l.b16 %v157
  %v943 = vunpack.c.h.b16 %v157
  %v944 = vunpack.c.l.b16 %v158
  %v945 = vunpack.c.h.b16 %v158
  %v946 = vunpack.c.l.b16 %v159
  %v947 = vunpack.c.h.b16 %v159
  %v948 = vunpack.c.l.b16 %v160
  %v949 = vunpack.c.h.b16 %v160
  %v950 = vunpack.c.l.b16 %v161
  %v951 = vunpack.c.h.b16 %v161
  %v952 = vunpack.c.l.b16 %v162
  %v953 = vunpack.c.h.b16 %v162
  %v954 = vunpack.c.l.b16 %v163
  %v955 = vunpack.c.h.b16 %v163
  %v956 = vunpack.c.l.b16 %v164
  %v957 = vunpack.c.h.b16 %v164
  %v958 = vunpack.c.l.b16 %v165
  %v959 = vunpack.c.h.b16 %v165
  %v960 = vunpack.c.l.b16 %v166
  %v961 = vunpack.c.h.b16 %v166
  %v962 = vunpack.c.l.b16 %v167
  %v963 = vunpack.c.h.b16 %v167
  %v964 = vunpack.c.l.b16 %v168
  %v965 = vunpack.c.h.b16 %v168
  %v966 = vunpack.c.l.b16 %v169
  %v967 = vunpack.c.h.b16 %v169
  %v968 = vunpack.c.l.b16 %v170
  %v969 = vunpack.c.h.b16 %v170
  %v970 = vunpack.c.l.b16 %v171
  %v971 = vunpack.c.h.b16 %v171
  %v972 = vunpack.c.l.b16 %v172
  %v973 = vunpack.c.h.b16 %v172
  %v974 = vunpack.c.l.b16 %v173
  %v975 = vunpack.c.h.b16 %v173
  %v976 = vunpack.c.l.b16 %v174
  %v977 = vunpack.c.h.b16 %v174
  %v978 = vunpack.c.l.b16 %v175
  %v979 = vunpack.c.h.b16 %v175
  %v980 = vunpack.c.l.b16 %v176
  %v981 = vunpack.c.h.b16 %v176
  %v982 = vunpack.c.l.b16 %v177
  %v983 = vunpack.c.h.b16 %v177
  %v984 = vunpack.c.l.b16 %v178
  %v985 = vunpack.c.h.b16 %v178
  %v986 = vunpack.c.l.b16 %v179
  %v987 = vunpack.c.h.b16 %v179
  %v988 = vunpack.c.l.b16 %v180
  %v989 = vunpack.c.h.b16 %v180
  %v990 = vunpack.c.l.b16 %v181
  %v991 = vunpack.c.h.b16 %v181
  %v992 = vunpack.c.l.b16 %v182
  %v993 = vunpack.c.h.b16 %v182
  %v994 = vunpack.c.l.b16 %v183
  %v995 = vunpack.c.h.b16 %v183
  %v996 = vunpack.c.l.b16 %v184
  %v997 = vunpack.c.h.b16 %v184
  %v998 = vunpack.c.l.b16 %v185
  %v999 = vunpack.c.h.b16 %v185
  %v1000 = vunpack.c.l.b16 %v186
  %v1001 = vunpack.c.h.b16 %v186
  %v1002 = vunpack.c.l.b16 %v187
  %v1003 = vunpack.c.h.b16 %v187
  %v1004 = vunpack.c.l.b16 %v188
  %v1005 = vunpack.c.h.b16 %v188
  %v1006 = vunpack.c.l.b16 %v189
  %v1007 = vunpack.c.h.b16 %v189
  %v1008 = vunpack.c.l.b16 %v190
  %v1009 = vunpack.c.h.b16 %v190
  %v1010 = vunpack.c.l.b16 %v191
  %v1011 = vunpack.c.h.b16 %v191
  %v1012 = vunpack.c.l.b16 %v192
  %v1013 = vunpack.c.h.b16 %v192
  %v1014 = vunpack.c.l.b16 %v193
  %v1015 = vunpack.c.h.b16 %v193
  %v1016 = vunpack.c.l.b16 %v194
  %v1017 = vunpack.c.h.b16 %v194
  %v1018 = vunpack.c.l.b16 %v195
  %v1019 = vunpack.c.h.b16 %v195
  %v1020 = vunpack.c.l.b16 %v196
  %v1021 = vunpack.c.h.b16 %v196
  %v1022 = vunpack.c.l.b16 %v197
  %v1023 = vunpack.c.h.b16 %v197
  %v1024 = vunpack.c.l.b16 %v198
  %v1025 = vunpack.c.h.b16 %v198
  %v1026 = vunpack.c.l.b16 %v199
  %v1027 = vunpack.c.h.b16 %v199
  %v1028 = vunpack.c.l.b16 %v200
  %v1029 = vunpack.c.h.b16 %v200
  %v1030 = vunpack.c.l.b16 %v201
  %v1031 = vunpack.c.h.b16 %v201
  %v1032 = vunpack.c.l.b16 %v202
  %v1033 = vunpack.c.h.b16 %v202
  %v1034 = vunpack.c.l.b16 %v203
  %v1035 = vunpack.c.h.b16 %v203
  %v1036 = vunpack.c.l.b16 %v204
  %v1037 = vunpack.c.h.b16 %v204
  %v1038 = vunpack.c.l.b16 %v205
  %v1039 = vunpack.c.h.b16 %v205
  %v1040 = vunpack.c.l.b16 %v206
  %v1041 = vunpack.c.h.b16 %v206
  %v1042 = vunpack.c.l.b16 %v207
  %v1043 = vunpack.c.h.b16 %v207
  %v1044 = vunpack.c.l.b16 %v208
  %v1045 = vunpack.c.h.b16 %v208
  %v1046 = vunpack.c.l.b16 %v209
  %v1047 = vunpack.c.h.b16 %v209
  %v1048 = vunpack.c.l.b16 %v210
  %v1049 = vunpack.c.h.b16 %v210
  %v1050 = vunpack.c.l.b16 %v211
  %v1051 = vunpack.c.h.b16 %v211
  %v1052 = vunpack.c.l.b16 %v212
  %v1053 = vunpack.c.h.b16 %v212
  %v1054 = vunpack.c.l.b16 %v213
  %v1055 = vunpack.c.h.b16 %v213
  %v1056 = vunpack.c.l.b16 %v214
  %v1057 = vunpack.c.h.b16 %v214
  %v1058 = vunpack.c.l.b16 %v215
  %v1059 = vunpack.c.h.b16 %v215
  %v1060 = vunpack.c.l.b16 %v216
  %v1061 = vunpack.c.h.b16 %v216
  %v1062 = vunpack.c.l.b16 %v217
  %v1063 = vunpack.c.h.b16 %v217
  %v1064 = vunpack.c.l.b16 %v218
  %v1065 = vunpack.c.h.b16 %v218
  %v1066 = vunpack.c.l.b16 %v219
  %v1067 = vunpack.c.h.b16 %v219
  %v1068 = vunpack.c.l.b16 %v220
  %v1069 = vunpack.c.h.b16 %v220
  %v1070 = vunpack.c.l.b16 %v221
  %v1071 = vunpack.c.h.b16 %v221
  %v1072 = vunpack.c.l.b16 %v222
  %v1073 = vunpack.c.h.b16 %v222
  %v1074 = vunpack.c.l.b16 %v223
  %v1075 = vunpack.c.h.b16 %v223
  %v1076 = vunpack.c.l.b16 %v224
  %v1077 = vunpack.c.h.b16 %v224
  %v1078 = vunpack.c.l.b16 %v225
  %v1079 = vunpack.c.h.b16 %v225
  %v1080 = vunpack.c.l.b16 %v226
  %v1081 = vunpack.c.h.b16 %v226
  %v1082 = vunpack.c.l.b16 %v227
  %v1083 = vunpack.c.h.b16 %v227
  %v1084 = vunpack.c.l.b16 %v228
  %v1085 = vunpack.c.h.b16 %v228
  %v1086 = vunpack.c.l.b16 %v229
  %v1087 = vunpack.c.h.b16 %v229
  %v1088 = vunpack.c.l.b16 %v230
  %v1089 = vunpack.c.h.b16 %v230
  %v1090 = vunpack.c.l.b16 %v231
  %v1091 = vunpack.c.h.b16 %v231
  %v1092 = vunpack.c.l.b16 %v232
  %v1093 = vunpack.c.h.b16 %v232
  %v1094 = vunpack.c.l.b16 %v233
  %v1095 = vunpack.c.h.b16 %v233
  %v1096 = vunpack.c.l.b16 %v234
  %v1097 = vunpack.c.h.b16 %v234
  %v1098 = vunpack.c.l.b16 %v235
  %v1099 = vunpack.c.h.b16 %v235
  %v1100 = vunpack.c.l.b16 %v236
  %v1101 = vunpack.c.h.b16 %v236
  %v1102 = vunpack.c.l.b16 %v237
  %v1103 = vunpack.c.h.b16 %v237
  %v1104 = vunpack.c.l.b16 %v238
  %v1105 = vunpack.c.h.b16 %v238
  %v1106 = vunpack.c.l.b16 %v239
  %v1107 = vunpack.c.h.b16 %v239
  %v1108 = vunpack.c.l.b16 %v240
  %v1109 = vunpack.c.h.b16 %v240
  %v1110 = vunpack.c.l.b16 %v241
  %v1111 = vunpack.c.h.b16 %v241
  %v1112 = vunpack.c.l.b16 %v242
  %v1113 = vunpack.c.h.b16 %v242
  %v1114 = vunpack.c.l.b16 %v243
  %v1115 = vunpack.c.h.b16 %v243
  %v1116 = vunpack.c.l.b16 %v244
  %v1117 = vunpack.c.h.b16 %v244
  %v1118 = vunpack.c.l.b16 %v245
  %v1119 = vunpack.c.h.b16 %v245
  %v1120 = vunpack.c.l.b16 %v246
  %v1121 = vunpack.c.h.b16 %v246
  %v1122 = vunpack.c.l.b16 %v247
  %v1123 = vunpack.c.h.b16 %v247
  %v1124 = vunpack.c.l.b16 %v248
  %v1125 = vunpack.c.h.b16 %v248
  %v1126 = vunpack.c.l.b16 %v249
  %v1127 = vunpack.c.h.b16 %v249
  %v1128 = vunpack.c.l.b16 %v250
  %v1129 = vunpack.c.h.b16 %v250
  %v1130 = vunpack.c.l.b16 %v251
  %v1131 = vunpack.c.h.b16 %v251
  %v1132 = vunpack.c.l.b16 %v252
  %v1133 = vunpack.c.h.b16 %v252
  %v1134 = vunpack.c.l.b16 %v253
  %v1135 = vunpack.c.h.b16 %v253
  %v1136 = vunpack.c.l.b16 %v254
  %v1137 = vunpack.c.h.b16 %v254
  %v1138 = vunpack.c.l.b16 %v255
  %v1139 = vunpack.c.h.b16 %v255
  %v1140 = vunpack.c.l.b16 %v256
  %v1141 = vunpack.c.h.b16 %v256
  %v1142 = vunpack.c.l.b16 %v257
  %v1143 = vunpack.c.h.b16 %v257
  %v1144 = vunpack.c.l.b16 %v258
  %v1145 = vunpack.c.h.b16 %v258
  %v1146 = vunpack.c.l.b16 %v259
  %v1147 = vunpack.c.h.b16 %v259
  %v1148 = vunpack.c.l.b16 %v260
  %v1149 = vunpack.c.h.b16 %v260
  %v1150 = vunpack.c.l.b16 %v261
  %v1151 = vunpack.c.h.b16 %v261
  %v1152 = vunpack.c.l.b16 %v262
  %v1153 = vunpack.c.h.b16 %v262
  %v1154 = vunpack.c.l.b16 %v263
  %v1155 = vunpack.c.h.b16 %v263
  %v1156 = vunpack.c.l.b16 %v264
  %v1157 = vunpack.c.h.b16 %v264
  %v1158 = vunpack.c.l.b16 %v265
  %v1159 = vunpack.c.h.b16 %v265
  %v1160 = vunpack.c.l.b16 %v266
  %v1161 = vunpack.c.h.b16 %v266
  %v1162 = vunpack.c.l.b16 %v267
  %v1163 = vunpack.c.h.b16 %v267
  %v1164 = vunpack.c.l.b16 %v268
  %v1165 = vunpack.c.h.b16 %v268
  %v1166 = vunpack.c.l.b16 %v269
  %v1167 = vunpack.c.h.b16 %v269
  %v1168 = vunpack.c.l.b16 %v270
  %v1169 = vunpack.c.h.b16 %v270
  %v1170 = vunpack.c.l.b16 %v271
  %v1171 = vunpack.c.h.b16 %v271
  %v1172 = vunpack.c.l.b16 %v272
  %v1173 = vunpack.c.h.b16 %v272
  %v1174 = vunpack.c.l.b16 %v273
  %v1175 = vunpack.c.h.b16 %v273
  %v1176 = vunpack.c.l.b16 %v274
  %v1177 = vunpack.c.h.b16 %v274
  %v1178 = vunpack.c.l.b16 %v275
  %v1179 = vunpack.c.h.b16 %v275
  %v1180 = vunpack.c.l.b16 %v276
  %v1181 = vunpack.c.h.b16 %v276
  %v1182 = vunpack.c.l.b16 %v277
  %v1183 = vunpack.c.h.b16 %v277
  %v1184 = vunpack.c.l.b16 %v278
  %v1185 = vunpack.c.h.b16 %v278
  %v1186 = vunpack.c.l.b16 %v279
  %v1187 = vunpack.c.h.b16 %v279
  %v1188 = vunpack.c.l.b16 %v280
  %v1189 = vunpack.c.h.b16 %v280
  %v1190 = vunpack.c.l.b16 %v281
  %v1191 = vunpack.c.h.b16 %v281
  %v1192 = vunpack.c.l.b16 %v282
  %v1193 = vunpack.c.h.b16 %v282
  %v1194 = vunpack.c.l.b16 %v283
  %v1195 = vunpack.c.h.b16 %v283
  %v1196 = vunpack.c.l.b16 %v284
  %v1197 = vunpack.c.h.b16 %v284
  %v1198 = vunpack.c.l.b16 %v285
  %v1199 = vunpack.c.h.b16 %v285
  %v1200 = vunpack.c.l.b16 %v286
  %v1201 = vunpack.c.h.b16 %v286
  %v1202 = vunpack.c.l.b16 %v287
  %v1203 = vunpack.c.h.b16 %v287
  %v1204 = vunpack.c.l.b16 %v288
  %v1205 = vunpack.c.h.b16 %v288
  %v1206 = vunpack.c.l.b16 %v289
  %v1207 = vunpack.c.h.b16 %v289
  %v1208 = vunpack.c.l.b16 %v290
  %v1209 = vunpack.c.h.b16 %v290
  %v1210 = vunpack.c.l.b16 %v291
  %v1211 = vunpack.c.h.b16 %v291
  %v1212 = vunpack.c.l.b16 %v292
  %v1213 = vunpack.c.h.b16 %v292
  %v1214 = vunpack.c.l.b16 %v293
  %v1215 = vunpack.c.h.b16 %v293
  %v1216 = vunpack.c.l.b16 %v294
  %v1217 = vunpack.c.h.b16 %v294
  %v1218 = vunpack.c.l.b16 %v295
  %v1219 = vunpack.c.h.b16 %v295
  %v1220 = vunpack.c.l.b16 %v296
  %v1221 = vunpack.c.h.b16 %v296
  %v1222 = vunpack.c.l.b16 %v297
  %v1223 = vunpack.c.h.b16 %v297
  %v1224 = vunpack.c.l.b16 %v298
  %v1225 = vunpack.c.h.b16 %v298
  %v1226 = vunpack.c.l.b16 %v299
  %v1227 = vunpack.c.h.b16 %v299
  %v1228 = vunpack.c.l.b16 %v300
  %v1229 = vunpack.c.h.b16 %v300
  %v1230 = vunpack.c.l.b16 %v301
  %v1231 = vunpack.c.h.b16 %v301
  %v1232 = vunpack.c.l.b16 %v302
  %v1233 = vunpack.c.h.b16 %v302
  %v1234 = vunpack.c.l.b16 %v303
  %v1235 = vunpack.c.h.b16 %v303
  %v1236 = vunpack.c.l.b16 %v304
  %v1237 = vunpack.c.h.b16 %v304
  %v1238 = vunpack.c.l.b16 %v305
  %v1239 = vunpack.c.h.b16 %v305
  %v1240 = vunpack.c.l.b16 %v306
  %v1241 = vunpack.c.h.b16 %v306
  %v1242 = vunpack.c.l.b16 %v307
  %v1243 = vunpack.c.h.b16 %v307
  %v1244 = vunpack.c.l.b16 %v308
  %v1245 = vunpack.c.h.b16 %v308
  %v1246 = vunpack.c.l.b16 %v309
  %v1247 = vunpack.c.h.b16 %v309
  %v1248 = vunpack.c.l.b16 %v310
  %v1249 = vunpack.c.h.b16 %v310
  %v1250 = vpack.c.b16 %v676, %v674
  %v1251 = vpack.c.b16 %v677, %v675
  %v1252 = vpack.c.b16 %v680, %v678
  %v1253 = vpack.c.b16 %v681, %v679
  %v1254 = vpack.c.b16 %v684, %v682
  %v1255 = vpack.c.b16 %v685, %v683
  %v1256 = vpack.c.b16 %v688, %v686
  %v1257 = vpack.c.b16 %v689, %v687
  %v1258 = vpack.c.b16 %v692, %v690
  %v1259 = vpack.c.b16 %v693, %v691
  %v1260 = vpack.c.b16 %v696, %v694
  %v1261 = vpack.c.b16 %v697, %v695
  %v1262 = vpack.c.b16 %v700, %v698
  %v1263 = vpack.c.b16 %v701, %v699
  %v1264 = vpack.c.b16 %v704, %v702
  %v1265 = vpack.c.b16 %v705, %v703
  %v1266 = vpack.c.b16 %v708, %v706
  %v1267 = vpack.c.b16 %v709, %v707
  %v1268 = vpack.c.b16 %v712, %v710
  %v1269 = vpack.c.b16 %v713, %v711
  %v1270 = vpack.c.b16 %v716, %v714
  %v1271 = vpack.c.b16 %v717, %v715
  %v1272 = vpack.c.b16 %v720, %v718
  %v1273 = vpack.c.b16 %v721, %v719
  %v1274 = vpack.c.b16 %v724, %v722
  %v1275 = vpack.c.b16 %v725, %v723
  %v1276 = vpack.c.b16 %v728, %v726
  %v1277 = vpack.c.b16 %v729, %v727
  %v1278 = vpack.c.b16 %v732, %v730
  %v1279 = vpack.c.b16 %v733, %v731
  %v1280 = vpack.c.b16 %v736, %v734
  %v1281 = vpack.c.b16 %v737, %v735
  %v1282 = vpack.c.b16 %v740, %v738
  %v1283 = vpack.c.b16 %v741, %v739
  %v1284 = vpack.c.b16 %v744, %v742
  %v1285 = vpack.c.b16 %v745, %v743
  %v1286 = vpack.c.b16 %v748, %v746
  %v1287 = vpack.c.b16 %v749, %v747
  %v1288 = vpack.c.b16 %v752, %v750
  %v1289 = vpack.c.b16 %v753, %v751
  %v1290 = vpack.c.b16 %v756, %v754
  %v1291 = vpack.c.b16 %v757, %v755
  %v1292 = vpack.c.b16 %v760, %v758
  %v1293 = vpack.c.b16 %v761, %v759
  %v1294 = vpack.c.b16 %v764, %v762
  %v1295 = vpack.c.b16 %v765, %v763
  %v1296 = vpack.c.b16 %v768, %v766
  %v1297 = vpack.c.b16 %v769, %v767
  %v1298 = vpack.c.b16 %v772, %v770
  %v1299 = vpack.c.b16 %v773, %v771
  %v1300 = vpack.c.b16 %v776, %v774
  %v1301 = vpack.c.b16 %v777, %v775
  %v1302 = vpack.c.b16 %v780, %v778
  %v1303 = vpack.c.b16 %v781, %v779
  %v1304 = vpack.c.b16 %v784, %v782
  %v1305 = vpack.c.b16 %v785, %v783
  %v1306 = vpack.c.b16 %v788, %v786
  %v1307 = vpack.c.b16 %v789, %v787
  %v1308 = vpack.c.b16 %v792, %v790
  %v1309 = vpack.c.b16 %v793, %v791
  %v1310 = vpack.c.b16 %v796, %v794
  %v1311 = vpack.c.b16 %v797, %v795
  %v1312 = vpack.c.b16 %v800, %v798
  %v1313 = vpack.c.b16 %v801, %v799
  %v1314 = vpack.c.b16 %v804, %v802
  %v1315 = vpack.c.b16 %v805, %v803
  %v1316 = vpack.c.b16 %v808, %v806
  %v1317 = vpack.c.b16 %v809, %v807
  %v1318 = vpack.c.b16 %v812, %v810
  %v1319 = vpack.c.b16 %v813, %v811
  %v1320 = vpack.c.b16 %v816, %v814
  %v1321 = vpack.c.b16 %v817, %v815
  %v1322 = vpack.c.b16 %v820, %v818
  %v1323 = vpack.c.b16 %v821, %v819
  %v1324 = vpack.c.b16 %v824, %v822
  %v1325 = vpack.c.b16 %v825, %v823
  %v1326 = vpack.c.b16 %v828, %v826
  %v1327 = vpack.c.b16 %v829, %v827
  %v1328 = vpack.c.b16 %v832, %v830
  %v1329 = vpack.c.b16 %v833, %v831
  %v1330 = vpack.c.b16 %v836, %v834
  %v1331 = vpack.c.b16 %v837, %v835
  %v1332 = vpack.c.b16 %v840, %v838
  %v1333 = vpack.c.b16 %v841, %v839
  %v1334 = vpack.c.b16 %v844, %v842
  %v1335 = vpack.c.b16 %v845, %v843
  %v1336 = vpack.c.b16 %v848, %v846
  %v1337 = vpack.c.b16 %v849, %v847
  %v1338 = vpack.c.b16 %v852, %v850
  %v1339 = vpack.c.b16 %v853, %v851
  %v1340 = vpack.c.b16 %v856, %v854
  %v1341 = vpack.c.b16 %v857, %v855
  %v1342 = vpack.c.b16 %v860, %v858
  %v1343 = vpack.c.b16 %v861, %v859
  %v1344 = vpack.c.b16 %v864, %v862
  %v1345 = vpack.c.b16 %v865, %v863
  %v1346 = vpack.c.b16 %v868, %v866
  %v1347 = vpack.c.b16 %v869, %v867
  %v1348 = vpack.c.b16 %v872, %v870
  %v1349 = vpack.c.b16 %v873, %v871
  %v1350 = vpack.c.b16 %v876, %v874
  %v1351 = vpack.c.b16 %v877, %v875
  %v1352 = vpack.c.b16 %v880, %v878
  %v1353 = vpack.c.b16 %v881, %v879
  %v1354 = vpack.c.b16 %v884, %v882
  %v1355 = vpack.c.b16 %v885, %v883
  %v1356 = vpack.c.b16 %v888, %v886
  %v1357 = vpack.c.b16 %v889, %v887
  %v1358 = vpack.c.b16 %v892, %v890
  %v1359 = vpack.c.b16 %v893, %v891
  %v1360 = vpack.c.b16 %v896, %v894
  %v1361 = vpack.c.b16 %v897, %v895
  %v1362 = vpack.c.b16 %v900, %v898
  %v1363 = vpack.c.b16 %v901, %v899
  %v1364 = vpack.c.b16 %v904, %v902
  %v1365 = vpack.c.b16 %v905, %v903
  %v1366 = vpack.c.b16 %v908, %v906
  %v1367 = vpack.c.b16 %v909, %v907
  %v1368 = vpack.c.b16 %v912, %v910
  %v1369 = vpack.c.b16 %v913, %v911
  %v1370 = vpack.c.b16 %v916, %v914
  %v1371 = vpack.c.b16 %v917, %v915
  %v1372 = vpack.c.b16 %v920, %v918
  %v1373 = vpack.c.b16 %v921, %v919
  %v1374 = vpack.c.b16 %v924, %v922
  %v1375 = vpack.c.b16 %v925, %v923
  %v1376 = vpack.c.b16 %v928, %v926
  %v1377 = vpack.c.b16 %v929, %v927
  %v1378 = vpack.c.b16 %v932, %v930
  %v1379 = vpack.c.b16 %v933, %v931
  %v1380 = vpack.c.b16 %v936, %v934
  %v1381 = vpack.c.b16 %v937, %v935
  %v1382 = vpack.c.b16 %v940, %v938
  %v1383 = vpack.c.b16 %v941, %v939
  %v1384 = vpack.c.b16 %v944, %v942
  %v1385 = vpack.c.b16 %v945, %v943
  %v1386 = vpack.c.b16 %v948, %v946
  %v1387 = vpack.c.b16 %v949, %v947
  %v1388 = vpack.c.b16 %v952, %v950
  %v1389 = vpack.c.b16 %v953, %v951
  %v1390 = vpack.c.b16 %v956, %v954
  %v1391 = vpack.c.b16 %v957, %v955
  %v1392 = vpack.c.b16 %v960, %v958
  %v1393 = vpack.c.b16 %v961, %v959
  %v1394 = vpack.c.b16 %v964, %v962
  %v1395 = vpack.c.b16 %v965, %v963
  %v1396 = vpack.c.b16 %v968, %v966
  %v1397 = vpack.c.b16 %v969, %v967
  %v1398 = vpack.c.b16 %v972, %v970
  %v1399 = vpack.c.b16 %v973, %v971
  %v1400 = vpack.c.b16 %v976, %v974
  %v1401 = vpack.c.b16 %v977, %v975
  %v1402 = vpack.c.b16 %v980, %v978
  %v1403 = vpack.c.b16 %v981, %v979
  %v1404 = vpack.c.b16 %v984, %v982
  %v1405 = vpack.c.b16 %v985, %v983
  %v1406 = vpack.c.b16 %v988, %v986
  %v1407 = vpack.c.b16 %v989, %v987
  %v1408 = vpack.c.b16 %v992, %v990
  %v1409 = vpack.c.b16 %v993, %v991
  %v1410 = vpack.c.b16 %v996, %v994
  %v1411 = vpack.c.b16 %v997, %v995
  %v1412 = vpack.c.b16 %v1000, %v998
  %v1413 = vpack.c.b16 %v1001, %v999
  %v1414 = vpack.c.b16 %v1004, %v1002
  %v1415 = vpack.c.b16 %v1005, %v1003
  %v1416 = vpack.c.b16 %v1008, %v1006
  %v1417 = vpack.c.b16 %v1009, %v1007
  %v1418 = vpack.c.b16 %v1012, %v1010
  %v1419 = vpack.c.b16 %v1013, %v1011
  %v1420 = vpack.c.b16 %v1016, %v1014
  %v1421 = vpack.c.b16 %v1017, %v1015
  %v1422 = vpack.c.b16 %v1020, %v1018
  %v1423 = vpack.c.b16 %v1021, %v1019
  %v1424 = vpack.c.b16 %v1024, %v1022
  %v1425 = vpack.c.b16 %v1025, %v1023
  %v1426 = vpack.c.b16 %v1028, %v1026
  %v1427 = vpack.c.b16 %v1029, %v1027
  %v1428 = vpack.c.b16 %v1032, %v1030
  %v1429 = vpack.c.b16 %v1033, %v1031
  %v1430 = vpack.c.b16 %v1036, %v1034
  %v1431 = vpack.c.b16 %v1037, %v1035
  %v1432 = vpack.c.b16 %v1040, %v1038
  %v1433 = vpack.c.b16 %v1041, %v1039
  %v1434 = vpack.c.b16 %v1044, %v1042
  %v1435 = vpack.c.b16 %v1045, %v1043
  %v1436 = vpack.c.b16 %v1048, %v1046
  %v1437 = vpack.c.b16 %v1049, %v1047
  %v1438 = vpack.c.b16 %v1052, %v1050
  %v1439 = vpack.c.b16 %v1053, %v1051
  %v1440 = vpack.c.b16 %v1056, %v1054
  %v1441 = vpack.c.b16 %v1057, %v1055
  %v1442 = vpack.c.b16 %v1060, %v1058
  %v1443 = vpack.c.b16 %v1061, %v1059
  %v1444 = vpack.c.b16 %v1064, %v1062
  %v1445 = vpack.c.b16 %v1065, %v1063
  %v1446 = vpack.c.b16 %v1068, %v1066
  %v1447 = vpack.c.b16 %v1069, %v1067
  %v1448 = vpack.c.b16 %v1072, %v1070
  %v1449 = vpack.c.b16 %v1073, %v1071
  %v1450 = vpack.c.b16 %v1076, %v1074
  %v1451 = vpack.c.b16 %v1077, %v1075
  %v1452 = vpack.c.b16 %v1080, %v1078
  %v1453 = vpack.c.b16 %v1081, %v1079
  %v1454 = vpack.c.b16 %v1084, %v1082
  %v1455 = vpack.c.b16 %v1085, %v1083
  %v1456 = vpack.c.b16 %v1088, %v1086
  %v1457 = vpack.c.b16 %v1089, %v1087
  %v1458 = vpack.c.b16 %v1092, %v1090
  %v1459 = vpack.c.b16 %v1093, %v1091
  %v1460 = vpack.c.b16 %v1096, %v1094
  %v1461 = vpack.c.b16 %v1097, %v1095
  %v1462 = vpack.c.b16 %v1100, %v1098
  %v1463 = vpack.c.b16 %v1101, %v1099
  %v1464 = vpack.c.b16 %v1104, %v1102
  %v1465 = vpack.c.b16 %v1105, %v1103
  %v1466 = vpack.c.b16 %v1108, %v1106
  %v1467 = vpack.c.b16 %v1109, %v1107
  %v1468 = vpack.c.b16 %v1112, %v1110
  %v1469 = vpack.c.b16 %v1113, %v1111
  %v1470 = vpack.c.b16 %v1116, %v1114
  %v1471 = vpack.c.b16 %v1117, %v1115
  %v1472 = vpack.c.b16 %v1120, %v1118
  %v1473 = vpack.c.b16 %v1121, %v1119
  %v1474 = vpack.c.b16 %v1124, %v1122
  %v1475 = vpack.c.b16 %v1125, %v1123
  %v1476 = vpack.c.b16 %v1128, %v1126
  %v1477 = vpack.c.b16 %v1129, %v1127
  %v1478 = vpack.c.b16 %v1132, %v1130
  %v1479 = vpack.c.b16 %v1133, %v1131
  %v1480 = vpack.c.b16 %v1136, %v1134
  %v1481 = vpack.c.b16 %v1137, %v1135
  %v1482 = vpack.c.b16 %v1140, %v1138
  %v1483 = vpack.c.b16 %v1141, %v1139
  %v1484 = vpack.c.b16 %v1144, %v1142
  %v1485 = vpack.c.b16 %v1145, %v1143
  %v1486 = vpack.c.b16 %v1148, %v1146
  %v1487 = vpack.c.b16 %v1149, %v1147
  %v1488 = vpack.c.b16 %v1152, %v1150
  %v1489 = vpack.c.b16 %v1153, %v1151
  %v1490 = vpack.c.b16 %v1156, %v1154
  %v1491 = vpack.c.b16 %v1157, %v1155
  %v1492 = vpack.c.b16 %v1160, %v1158
  %v1493 = vpack.c.b16 %v1161, %v1159
  %v1494 = vpack.c.b16 %v1164, %v1162
  %v1495 = vpack.c.b16 %v1165, %v1163
  %v1496 = vpack.c.b16 %v1168, %v1166
  %v1497 = vpack.c.b16 %v1169, %v1167
  %v1498 = vpack.c.b16 %v1172, %v1170
  %v1499 = vpack.c.b16 %v1173, %v1171
  %v1500 = vpack.c.b16 %v1176, %v1174
  %v1501 = vpack.c.b16 %v1177, %v1175
  %v1502 = vpack.c.b16 %v1180, %v1178
  %v1503 = vpack.c.b16 %v1181, %v1179
  %v1504 = vpack.c.b16 %v1184, %v1182
  %v1505 = vpack.c.b16 %v1185, %v1183
  %v1506 = vpack.c.b16 %v1188, %v1186
  %v1507 = vpack.c.b16 %v1189, %v1187
  %v1508 = vpack.c.b16 %v1192, %v1190
  %v1509 = vpack.c.b16 %v1193, %v1191
  %v1510 = vpack.c.b16 %v1196, %v1194
  %v1511 = vpack.c.b16 %v1197, %v1195
  %v1512 = vpack.c.b16 %v1200, %v1198
  %v1513 = vpack.c.b16 %v1201, %v1199
  %v1514 = vpack.c.b16 %v1204, %v1202
  %v1515 = vpack.c.b16 %v1205, %v1203
  %v1516 = vpack.c.b16 %v1208, %v1206
  %v1517 = vpack.c.b16 %v1209, %v1207
  %v1518 = vpack.c.b16 %v1212, %v1210
  %v1519 = vpack.c.b16 %v1213, %v1211
  %v1520 = vpack.c.b16 %v1216, %v1214
  %v1521 = vpack.c.b16 %v1217, %v1215
  %v1522 = vpack.c.b16 %v1220, %v1218
  %v1523 = vpack.c.b16 %v1221, %v1219
  %v1524 = vpack.c.b16 %v1224, %v1222
  %v1525 = vpack.c.b16 %v1225, %v1223
  %v1526 = vpack.c.b16 %v1228, %v1226
  %v1527 = vpack.c.b16 %v1229, %v1227
  %v1528 = vpack.c.b16 %v1232, %v1230
  %v1529 = vpack.c.b16 %v1233, %v1231
  %v1530 = vpack.c.b16 %v1236, %v1234
  %v1531 = vpack.c.b16 %v1237, %v1235
  %v1532 = vpack.c.b16 %v1240, %v1238
  %v1533 = vpack.c.b16 %v1241, %v1239
  %v1534 = vpack.c.b16 %v1244, %v1242
  %v1535 = vpack.c.b16 %v1245, %v1243
  %v1536 = vpack.c.b16 %v1248, %v1246
  %v1537 = vpack.c.b16 %v1249, %v1247
  %1826 = vmatprep.subr.bf16.mxu0 %v1251
  %1827 = vmatpush1.bf16.msra.mxu0 %v1250
  %1828 = vmatprep.subr.bf16.mxu0 %v1253
  %1829 = vmatpush1.bf16.msra.mxu0 %v1252
  %1830 = vmatprep.subr.bf16.mxu0 %v1255
  %1831 = vmatpush1.bf16.msra.mxu0 %v1254
  %1832 = vmatprep.subr.bf16.mxu0 %v1257
  %1833 = vmatpush1.bf16.msra.mxu0 %v1256
  %1834 = vmatprep.subr.bf16.mxu0 %v1259
  %1835 = vmatpush1.bf16.msra.mxu0 %v1258
  %1836 = vmatprep.subr.bf16.mxu0 %v1261
  %1837 = vmatpush1.bf16.msra.mxu0 %v1260
  %1838 = vmatprep.subr.bf16.mxu0 %v1263
  %1839 = vmatpush1.bf16.msra.mxu0 %v1262
  %1840 = vmatprep.subr.bf16.mxu0 %v1265
  %1841 = vmatpush1.bf16.msra.mxu0 %v1264
  %1842 = vmatprep.subr.bf16.mxu0 %v1267
  %1843 = vmatpush1.bf16.msra.mxu0 %v1266
  %1844 = vmatprep.subr.bf16.mxu0 %v1269
  %1845 = vmatpush1.bf16.msra.mxu0 %v1268
  %1846 = vmatprep.subr.bf16.mxu0 %v1271
  %1847 = vmatpush1.bf16.msra.mxu0 %v1270
  %1848 = vmatprep.subr.bf16.mxu0 %v1273
  %1849 = vmatpush1.bf16.msra.mxu0 %v1272
  %1850 = vmatprep.subr.bf16.mxu0 %v1275
  %1851 = vmatpush1.bf16.msra.mxu0 %v1274
  %1852 = vmatprep.subr.bf16.mxu0 %v1277
  %1853 = vmatpush1.bf16.msra.mxu0 %v1276
  %1854 = vmatprep.subr.bf16.mxu0 %v1279
  %1855 = vmatpush1.bf16.msra.mxu0 %v1278
  %1856 = vmatprep.subr.bf16.mxu0 %v1281
  %1857 = vmatpush1.bf16.msra.mxu0 %v1280
  %1858 = vmatprep.mubr.bf16.mxu0 %v351
  %1859 = vmatmul.mubr.bf16.gmra.mrb[0].mxu0 %v350
  %v1860 = vpop.f32.mrb[0].mxu0
  %v1861 = vadd.f32 %v316, %v1860
  %v1862 = vpop.f32.mrb[0].mxu0
  %v1863 = vadd.f32 %v320, %v1862
  %v1864 = vpop.f32.mrb[0].mxu0
  %v1865 = vpop.f32.mrb[0].mxu0
  %1866 = vdwg.mxu0
  %1867 = vmatprep.subr.bf16.mxu0 %v1283
  %1868 = vmatpush1.bf16.msra.mxu0 %v1282
  %1869 = vmatprep.subr.bf16.mxu0 %v1285
  %1870 = vmatpush1.bf16.msra.mxu0 %v1284
  %1871 = vmatprep.subr.bf16.mxu0 %v1287
  %1872 = vmatpush1.bf16.msra.mxu0 %v1286
  %1873 = vmatprep.subr.bf16.mxu0 %v1289
  %1874 = vmatpush1.bf16.msra.mxu0 %v1288
  %1875 = vmatprep.subr.bf16.mxu0 %v1291
  %1876 = vmatpush1.bf16.msra.mxu0 %v1290
  %1877 = vmatprep.subr.bf16.mxu0 %v1293
  %1878 = vmatpush1.bf16.msra.mxu0 %v1292
  %1879 = vmatprep.subr.bf16.mxu0 %v1295
  %1880 = vmatpush1.bf16.msra.mxu0 %v1294
  %1881 = vmatprep.subr.bf16.mxu0 %v1297
  %1882 = vmatpush1.bf16.msra.mxu0 %v1296
  %1883 = vmatprep.subr.bf16.mxu0 %v1299
  %1884 = vmatpush1.bf16.msra.mxu0 %v1298
  %1885 = vmatprep.subr.bf16.mxu0 %v1301
  %1886 = vmatpush1.bf16.msra.mxu0 %v1300
  %1887 = vmatprep.subr.bf16.mxu0 %v1303
  %1888 = vmatpush1.bf16.msra.mxu0 %v1302
  %1889 = vmatprep.subr.bf16.mxu0 %v1305
  %1890 = vmatpush1.bf16.msra.mxu0 %v1304
  %1891 = vmatprep.subr.bf16.mxu0 %v1307
  %1892 = vmatpush1.bf16.msra.mxu0 %v1306
  %1893 = vmatprep.subr.bf16.mxu0 %v1309
  %1894 = vmatpush1.bf16.msra.mxu0 %v1308
  %1895 = vmatprep.subr.bf16.mxu0 %v1311
  %1896 = vmatpush1.bf16.msra.mxu0 %v1310
  %1897 = vmatprep.subr.bf16.mxu0 %v1313
  %1898 = vmatpush1.bf16.msra.mxu0 %v1312
  %1899 = vmatprep.mubr.bf16.mxu0 %v353
  %1900 = vmatmul.mubr.bf16.gmra.mrb[0].mxu0 %v352
  %v1901 = vpop.f32.mrb[0].mxu0
  %v1902 = vadd.f32 %v1861, %v1901
  %v1903 = vpop.f32.mrb[0].mxu0
  %v1904 = vadd.f32 %v1863, %v1903
  %v1905 = vpop.f32.mrb[0].mxu0
  %v1906 = vpop.f32.mrb[0].mxu0
  %1907 = vdwg.mxu0
  %1908 = vmatprep.subr.bf16.mxu0 %v1315
  %1909 = vmatpush1.bf16.msra.mxu0 %v1314
  %1910 = vmatprep.subr.bf16.mxu0 %v1317
  %1911 = vmatpush1.bf16.msra.mxu0 %v1316
  %1912 = vmatprep.subr.bf16.mxu0 %v1319
  %1913 = vmatpush1.bf16.msra.mxu0 %v1318
  %1914 = vmatprep.subr.bf16.mxu0 %v1321
  %1915 = vmatpush1.bf16.msra.mxu0 %v1320
  %1916 = vmatprep.subr.bf16.mxu0 %v1323
  %1917 = vmatpush1.bf16.msra.mxu0 %v1322
  %1918 = vmatprep.subr.bf16.mxu0 %v1325
  %1919 = vmatpush1.bf16.msra.mxu0 %v1324
  %1920 = vmatprep.subr.bf16.mxu0 %v1327
  %1921 = vmatpush1.bf16.msra.mxu0 %v1326
  %1922 = vmatprep.subr.bf16.mxu0 %v1329
  %1923 = vmatpush1.bf16.msra.mxu0 %v1328
  %1924 = vmatprep.subr.bf16.mxu0 %v1331
  %1925 = vmatpush1.bf16.msra.mxu0 %v1330
  %1926 = vmatprep.subr.bf16.mxu0 %v1333
  %1927 = vmatpush1.bf16.msra.mxu0 %v1332
  %1928 = vmatprep.subr.bf16.mxu0 %v1335
  %1929 = vmatpush1.bf16.msra.mxu0 %v1334
  %1930 = vmatprep.subr.bf16.mxu0 %v1337
  %1931 = vmatpush1.bf16.msra.mxu0 %v1336
  %1932 = vmatprep.subr.bf16.mxu0 %v1339
  %1933 = vmatpush1.bf16.msra.mxu0 %v1338
  %1934 = vmatprep.subr.bf16.mxu0 %v1341
  %1935 = vmatpush1.bf16.msra.mxu0 %v1340
  %1936 = vmatprep.subr.bf16.mxu0 %v1343
  %1937 = vmatpush1.bf16.msra.mxu0 %v1342
  %1938 = vmatprep.subr.bf16.mxu0 %v1345
  %1939 = vmatpush1.bf16.msra.mxu0 %v1344
  %1940 = vmatprep.mubr.bf16.mxu0 %v355
  %1941 = vmatmul.mubr.bf16.gmra.mrb[0].mxu0 %v354
  %v1942 = vpop.f32.mrb[0].mxu0
  %v1943 = vadd.f32 %v1902, %v1942
  %v1944 = vpop.f32.mrb[0].mxu0
  %v1945 = vadd.f32 %v1904, %v1944
  %v1946 = vpop.f32.mrb[0].mxu0
  %v1947 = vpop.f32.mrb[0].mxu0
  %1948 = vdwg.mxu0
  %1949 = vmatprep.subr.bf16.mxu0 %v1347
  %1950 = vmatpush1.bf16.msra.mxu0 %v1346
  %1951 = vmatprep.subr.bf16.mxu0 %v1349
  %1952 = vmatpush1.bf16.msra.mxu0 %v1348
  %1953 = vmatprep.subr.bf16.mxu0 %v1351
  %1954 = vmatpush1.bf16.msra.mxu0 %v1350
  %1955 = vmatprep.subr.bf16.mxu0 %v1353
  %1956 = vmatpush1.bf16.msra.mxu0 %v1352
  %1957 = vmatprep.subr.bf16.mxu0 %v1355
  %1958 = vmatpush1.bf16.msra.mxu0 %v1354
  %1959 = vmatprep.subr.bf16.mxu0 %v1357
  %1960 = vmatpush1.bf16.msra.mxu0 %v1356
  %1961 = vmatprep.subr.bf16.mxu0 %v1359
  %1962 = vmatpush1.bf16.msra.mxu0 %v1358
  %1963 = vmatprep.subr.bf16.mxu0 %v1361
  %1964 = vmatpush1.bf16.msra.mxu0 %v1360
  %1965 = vmatprep.subr.bf16.mxu0 %v1363
  %1966 = vmatpush1.bf16.msra.mxu0 %v1362
  %1967 = vmatprep.subr.bf16.mxu0 %v1365
  %1968 = vmatpush1.bf16.msra.mxu0 %v1364
  %1969 = vmatprep.subr.bf16.mxu0 %v1367
  %1970 = vmatpush1.bf16.msra.mxu0 %v1366
  %1971 = vmatprep.subr.bf16.mxu0 %v1369
  %1972 = vmatpush1.bf16.msra.mxu0 %v1368
  %1973 = vmatprep.subr.bf16.mxu0 %v1371
  %1974 = vmatpush1.bf16.msra.mxu0 %v1370
  %1975 = vmatprep.subr.bf16.mxu0 %v1373
  %1976 = vmatpush1.bf16.msra.mxu0 %v1372
  %1977 = vmatprep.subr.bf16.mxu0 %v1375
  %1978 = vmatpush1.bf16.msra.mxu0 %v1374
  %1979 = vmatprep.subr.bf16.mxu0 %v1377
  %1980 = vmatpush1.bf16.msra.mxu0 %v1376
  %1981 = vmatprep.mubr.bf16.mxu0 %v357
  %1982 = vmatmul.mubr.bf16.gmra.mrb[0].mxu0 %v356
  %v1983 = vpop.f32.mrb[0].mxu0
  %v1984 = vadd.f32 %v1943, %v1983
  %v1985 = vpop.f32.mrb[0].mxu0
  %v1986 = vadd.f32 %v1945, %v1985
  %v1987 = vpop.f32.mrb[0].mxu0
  %v1988 = vpop.f32.mrb[0].mxu0
  %1989 = vdwg.mxu0
  %1990 = vmatprep.subr.bf16.mxu0 %v1379
  %1991 = vmatpush1.bf16.msra.mxu0 %v1378
  %1992 = vmatprep.subr.bf16.mxu0 %v1381
  %1993 = vmatpush1.bf16.msra.mxu0 %v1380
  %1994 = vmatprep.subr.bf16.mxu0 %v1383
  %1995 = vmatpush1.bf16.msra.mxu0 %v1382
  %1996 = vmatprep.subr.bf16.mxu0 %v1385
  %1997 = vmatpush1.bf16.msra.mxu0 %v1384
  %1998 = vmatprep.subr.bf16.mxu0 %v1387
  %1999 = vmatpush1.bf16.msra.mxu0 %v1386
  %2000 = vmatprep.subr.bf16.mxu0 %v1389
  %2001 = vmatpush1.bf16.msra.mxu0 %v1388
  %2002 = vmatprep.subr.bf16.mxu0 %v1391
  %2003 = vmatpush1.bf16.msra.mxu0 %v1390
  %2004 = vmatprep.subr.bf16.mxu0 %v1393
  %2005 = vmatpush1.bf16.msra.mxu0 %v1392
  %2006 = vmatprep.subr.bf16.mxu0 %v1395
  %2007 = vmatpush1.bf16.msra.mxu0 %v1394
  %2008 = vmatprep.subr.bf16.mxu0 %v1397
  %2009 = vmatpush1.bf16.msra.mxu0 %v1396
  %2010 = vmatprep.subr.bf16.mxu0 %v1399
  %2011 = vmatpush1.bf16.msra.mxu0 %v1398
  %2012 = vmatprep.subr.bf16.mxu0 %v1401
  %2013 = vmatpush1.bf16.msra.mxu0 %v1400
  %2014 = vmatprep.subr.bf16.mxu0 %v1403
  %2015 = vmatpush1.bf16.msra.mxu0 %v1402
  %2016 = vmatprep.subr.bf16.mxu0 %v1405
  %2017 = vmatpush1.bf16.msra.mxu0 %v1404
  %2018 = vmatprep.subr.bf16.mxu0 %v1407
  %2019 = vmatpush1.bf16.msra.mxu0 %v1406
  %2020 = vmatprep.subr.bf16.mxu0 %v1409
  %2021 = vmatpush1.bf16.msra.mxu0 %v1408
  %2022 = vmatprep.mubr.bf16.mxu0 %v359
  %2023 = vmatmul.mubr.bf16.gmra.mrb[0].mxu0 %v358
  %v2024 = vpop.f32.mrb[0].mxu0
  %v2025 = vadd.f32 %v1984, %v2024
  %v2026 = vpop.f32.mrb[0].mxu0
  %v2027 = vadd.f32 %v1986, %v2026
  %v2028 = vpop.f32.mrb[0].mxu0
  %v2029 = vpop.f32.mrb[0].mxu0
  %2030 = vdwg.mxu0
  %2031 = vmatprep.subr.bf16.mxu0 %v1411
  %2032 = vmatpush1.bf16.msra.mxu0 %v1410
  %2033 = vmatprep.subr.bf16.mxu0 %v1413
  %2034 = vmatpush1.bf16.msra.mxu0 %v1412
  %2035 = vmatprep.subr.bf16.mxu0 %v1415
  %2036 = vmatpush1.bf16.msra.mxu0 %v1414
  %2037 = vmatprep.subr.bf16.mxu0 %v1417
  %2038 = vmatpush1.bf16.msra.mxu0 %v1416
  %2039 = vmatprep.subr.bf16.mxu0 %v1419
  %2040 = vmatpush1.bf16.msra.mxu0 %v1418
  %2041 = vmatprep.subr.bf16.mxu0 %v1421
  %2042 = vmatpush1.bf16.msra.mxu0 %v1420
  %2043 = vmatprep.subr.bf16.mxu0 %v1423
  %2044 = vmatpush1.bf16.msra.mxu0 %v1422
  %2045 = vmatprep.subr.bf16.mxu0 %v1425
  %2046 = vmatpush1.bf16.msra.mxu0 %v1424
  %2047 = vmatprep.subr.bf16.mxu0 %v1427
  %2048 = vmatpush1.bf16.msra.mxu0 %v1426
  %2049 = vmatprep.subr.bf16.mxu0 %v1429
  %2050 = vmatpush1.bf16.msra.mxu0 %v1428
  %2051 = vmatprep.subr.bf16.mxu0 %v1431
  %2052 = vmatpush1.bf16.msra.mxu0 %v1430
  %2053 = vmatprep.subr.bf16.mxu0 %v1433
  %2054 = vmatpush1.bf16.msra.mxu0 %v1432
  %2055 = vmatprep.subr.bf16.mxu0 %v1435
  %2056 = vmatpush1.bf16.msra.mxu0 %v1434
  %2057 = vmatprep.subr.bf16.mxu0 %v1437
  %2058 = vmatpush1.bf16.msra.mxu0 %v1436
  %2059 = vmatprep.subr.bf16.mxu0 %v1439
  %2060 = vmatpush1.bf16.msra.mxu0 %v1438
  %2061 = vmatprep.subr.bf16.mxu0 %v1441
  %2062 = vmatpush1.bf16.msra.mxu0 %v1440
  %2063 = vmatprep.mubr.bf16.mxu0 %v361
  %2064 = vmatmul.mubr.bf16.gmra.mrb[0].mxu0 %v360
  %v2065 = vpop.f32.mrb[0].mxu0
  %v2066 = vadd.f32 %v2025, %v2065
  %v2067 = vpop.f32.mrb[0].mxu0
  %v2068 = vadd.f32 %v2027, %v2067
  %v2069 = vpop.f32.mrb[0].mxu0
  %v2070 = vpop.f32.mrb[0].mxu0
  %2071 = vdwg.mxu0
  %2072 = vmatprep.subr.bf16.mxu0 %v1443
  %2073 = vmatpush1.bf16.msra.mxu0 %v1442
  %2074 = vmatprep.subr.bf16.mxu0 %v1445
  %2075 = vmatpush1.bf16.msra.mxu0 %v1444
  %2076 = vmatprep.subr.bf16.mxu0 %v1447
  %2077 = vmatpush1.bf16.msra.mxu0 %v1446
  %2078 = vmatprep.subr.bf16.mxu0 %v1449
  %2079 = vmatpush1.bf16.msra.mxu0 %v1448
  %2080 = vmatprep.subr.bf16.mxu0 %v1451
  %2081 = vmatpush1.bf16.msra.mxu0 %v1450
  %2082 = vmatprep.subr.bf16.mxu0 %v1453
  %2083 = vmatpush1.bf16.msra.mxu0 %v1452
  %2084 = vmatprep.subr.bf16.mxu0 %v1455
  %2085 = vmatpush1.bf16.msra.mxu0 %v1454
  %2086 = vmatprep.subr.bf16.mxu0 %v1457
  %2087 = vmatpush1.bf16.msra.mxu0 %v1456
  %2088 = vmatprep.subr.bf16.mxu0 %v1459
  %2089 = vmatpush1.bf16.msra.mxu0 %v1458
  %2090 = vmatprep.subr.bf16.mxu0 %v1461
  %2091 = vmatpush1.bf16.msra.mxu0 %v1460
  %2092 = vmatprep.subr.bf16.mxu0 %v1463
  %2093 = vmatpush1.bf16.msra.mxu0 %v1462
  %2094 = vmatprep.subr.bf16.mxu0 %v1465
  %2095 = vmatpush1.bf16.msra.mxu0 %v1464
  %2096 = vmatprep.subr.bf16.mxu0 %v1467
  %2097 = vmatpush1.bf16.msra.mxu0 %v1466
  %2098 = vmatprep.subr.bf16.mxu0 %v1469
  %2099 = vmatpush1.bf16.msra.mxu0 %v1468
  %2100 = vmatprep.subr.bf16.mxu0 %v1471
  %2101 = vmatpush1.bf16.msra.mxu0 %v1470
  %2102 = vmatprep.subr.bf16.mxu0 %v1473
  %2103 = vmatpush1.bf16.msra.mxu0 %v1472
  %2104 = vmatprep.mubr.bf16.mxu0 %v363
  %2105 = vmatmul.mubr.bf16.gmra.mrb[0].mxu0 %v362
  %v2106 = vpop.f32.mrb[0].mxu0
  %v2107 = vadd.f32 %v2066, %v2106
  %v2108 = vpop.f32.mrb[0].mxu0
  %v2109 = vadd.f32 %v2068, %v2108
  %v2110 = vpop.f32.mrb[0].mxu0
  %v2111 = vpop.f32.mrb[0].mxu0
  %2112 = vdwg.mxu0
  %2113 = vmatprep.subr.bf16.mxu0 %v1475
  %2114 = vmatpush1.bf16.msra.mxu0 %v1474
  %2115 = vmatprep.subr.bf16.mxu0 %v1477
  %2116 = vmatpush1.bf16.msra.mxu0 %v1476
  %2117 = vmatprep.subr.bf16.mxu0 %v1479
  %2118 = vmatpush1.bf16.msra.mxu0 %v1478
  %2119 = vmatprep.subr.bf16.mxu0 %v1481
  %2120 = vmatpush1.bf16.msra.mxu0 %v1480
  %2121 = vmatprep.subr.bf16.mxu0 %v1483
  %2122 = vmatpush1.bf16.msra.mxu0 %v1482
  %2123 = vmatprep.subr.bf16.mxu0 %v1485
  %2124 = vmatpush1.bf16.msra.mxu0 %v1484
  %2125 = vmatprep.subr.bf16.mxu0 %v1487
  %2126 = vmatpush1.bf16.msra.mxu0 %v1486
  %2127 = vmatprep.subr.bf16.mxu0 %v1489
  %2128 = vmatpush1.bf16.msra.mxu0 %v1488
  %2129 = vmatprep.subr.bf16.mxu0 %v1491
  %2130 = vmatpush1.bf16.msra.mxu0 %v1490
  %2131 = vmatprep.subr.bf16.mxu0 %v1493
  %2132 = vmatpush1.bf16.msra.mxu0 %v1492
  %2133 = vmatprep.subr.bf16.mxu0 %v1495
  %2134 = vmatpush1.bf16.msra.mxu0 %v1494
  %2135 = vmatprep.subr.bf16.mxu0 %v1497
  %2136 = vmatpush1.bf16.msra.mxu0 %v1496
  %2137 = vmatprep.subr.bf16.mxu0 %v1499
  %2138 = vmatpush1.bf16.msra.mxu0 %v1498
  %2139 = vmatprep.subr.bf16.mxu0 %v1501
  %2140 = vmatpush1.bf16.msra.mxu0 %v1500
  %2141 = vmatprep.subr.bf16.mxu0 %v1503
  %2142 = vmatpush1.bf16.msra.mxu0 %v1502
  %2143 = vmatprep.subr.bf16.mxu0 %v1505
  %2144 = vmatpush1.bf16.msra.mxu0 %v1504
  %2145 = vmatprep.mubr.bf16.mxu0 %v365
  %2146 = vmatmul.mubr.bf16.gmra.mrb[0].mxu0 %v364
  %v2147 = vpop.f32.mrb[0].mxu0
  %v2148 = vadd.f32 %v2107, %v2147
  %v2149 = vpop.f32.mrb[0].mxu0
  %v2150 = vadd.f32 %v2109, %v2149
  %v2151 = vpop.f32.mrb[0].mxu0
  %v2152 = vpop.f32.mrb[0].mxu0
  %2153 = vdwg.mxu0
  %2154 = vmatprep.subr.bf16.mxu0 %v1507
  %2155 = vmatpush1.bf16.msra.mxu0 %v1506
  %2156 = vmatprep.subr.bf16.mxu0 %v1509
  %2157 = vmatpush1.bf16.msra.mxu0 %v1508
  %2158 = vmatprep.subr.bf16.mxu0 %v1511
  %2159 = vmatpush1.bf16.msra.mxu0 %v1510
  %2160 = vmatprep.subr.bf16.mxu0 %v1513
  %2161 = vmatpush1.bf16.msra.mxu0 %v1512
  %2162 = vmatprep.subr.bf16.mxu0 %v1515
  %2163 = vmatpush1.bf16.msra.mxu0 %v1514
  %2164 = vmatprep.subr.bf16.mxu0 %v1517
  %2165 = vmatpush1.bf16.msra.mxu0 %v1516
  %2166 = vmatprep.subr.bf16.mxu0 %v1519
  %2167 = vmatpush1.bf16.msra.mxu0 %v1518
  %2168 = vmatprep.subr.bf16.mxu0 %v1521
  %2169 = vmatpush1.bf16.msra.mxu0 %v1520
  %2170 = vmatprep.subr.bf16.mxu0 %v1523
  %2171 = vmatpush1.bf16.msra.mxu0 %v1522
  %2172 = vmatprep.subr.bf16.mxu0 %v1525
  %2173 = vmatpush1.bf16.msra.mxu0 %v1524
  %2174 = vmatprep.subr.bf16.mxu0 %v1527
  %2175 = vmatpush1.bf16.msra.mxu0 %v1526
  %2176 = vmatprep.subr.bf16.mxu0 %v1529
  %2177 = vmatpush1.bf16.msra.mxu0 %v1528
  %2178 = vmatprep.subr.bf16.mxu0 %v1531
  %2179 = vmatpush1.bf16.msra.mxu0 %v1530
  %2180 = vmatprep.subr.bf16.mxu0 %v1533
  %2181 = vmatpush1.bf16.msra.mxu0 %v1532
  %2182 = vmatprep.subr.bf16.mxu0 %v1535
  %2183 = vmatpush1.bf16.msra.mxu0 %v1534
  %2184 = vmatprep.subr.bf16.mxu0 %v1537
  %2185 = vmatpush1.bf16.msra.mxu0 %v1536
  %2186 = vmatprep.mubr.bf16.mxu0 %v367
  %2187 = vmatmul.mubr.bf16.gmra.mrb[0].mxu0 %v366
  %v2188 = vpop.f32.mrb[0].mxu0
  %v2189 = vadd.f32 %v2148, %v2188
  %v2190 = vpop.f32.mrb[0].mxu0
  %v2191 = vadd.f32 %v2150, %v2190
  %v2192 = vpop.f32.mrb[0].mxu0
  %v2193 = vpop.f32.mrb[0].mxu0
  %2194 = vdwg.mxu0
  %v2195 = vxor.u32 %v2189, 2147483648
  %v2196 = vxor.u32 %v2191, 2147483648
  %v2197 = vmul.f32 %v2195, 1.442695
  %v2198 = vpow.pop %v2197
  %v2199 = vmul.f32 %v2196, 1.442695
  %v2200 = vpow.pop %v2199
  %v2201 = vadd.f32 %v2198, 1.0
  %v2202 = vadd.f32 %v2200, 1.0
  %v2203 = vrcp.pop %v2201
  %v2204 = vmul.f32 1.0, %v2203
  %v2205 = vrcp.pop %v2202
  %v2206 = vmul.f32 1.0, %v2205
  %v2207 = vmul.f32 %v2189, %v2204
  %v2208 = vmul.f32 %v2191, %v2206
  %2209 = vst [vmem:[%s3] sm:$0xff] %v2207
  %2210 = vst [vmem:[%s3 + $0x8] sm:$0xff] %v2208
  // Predicated region
  $region14: #{neck_fwd.35} parent=0 // pred_check
    _
  $region15: #{neck_fwd.35} parent=0 // pred_check_branch
    %2212 = sbr.rel (0) target = $region17
  $region16: #{neck_fwd.35} parent=0 // pred_region
    _
  $region17: #{neck_fwd.35} parent=0 // pred_fallthru
    _
  // Predicated region
  $region18: #{neck_fwd.35} parent=0 // pred_check
    _
  $region19: #{neck_fwd.35} parent=0 // pred_check_branch
    %2214 = sbr.rel (0) target = $region21
  $region20: #{neck_fwd.35} parent=0 // pred_region
    _
  $region21: #{neck_fwd.35} parent=0 // pred_fallthru
    _

</llo_original>
